<compile_context>
chip_gen: v7x
topology: tpu7x:2x2x1
jax: 0.10.0
libtpu: 0.0.40
codegen_flags: <defaults>
</compile_context>

<pallas_src>
import functools

import jax
import jax.numpy as jnp
from jax.experimental import pallas as pl
from jax.experimental.pallas import tpu as pltpu


# ----------------------------------------------------------------------------
# Helpers
# ----------------------------------------------------------------------------
def _round_up(x, m):
    return (x + m - 1) // m * m


def _choose_tile_m(m8):
    """m8 is M rounded up to a multiple of 8. Returns (tm, Mp).

    Small M: one step (tm = m8).  Large M: prefer a 512/256/128 tile that divides
    m8; otherwise pad M up to a multiple of 256 (cheap zero rows) instead of
    degrading to tiny tiles."""
    if m8 <= 512:
        return m8, m8
    for cand in (512, 256, 128):
        if m8 % cand == 0:
            return cand, m8
    return 256, _round_up(m8, 256)


def _activate(r, activation):
    if activation == "relu":
        return jnp.maximum(r, 0.0)
    if activation == "relu6":
        return jnp.clip(r, 0.0, 6.0)
    return r


# ----------------------------------------------------------------------------
# Pallas kernels
# ----------------------------------------------------------------------------
def _mm_single_kernel(*refs, activation, has_residual):
    """Single K-step matmul: out = act(A @ B + bias [+ residual])."""
    if has_residual:
        a_ref, b_ref, bias_ref, res_ref, o_ref = refs
    else:
        a_ref, b_ref, bias_ref, o_ref = refs
    r = jnp.dot(a_ref[...], b_ref[...], preferred_element_type=jnp.float32)
    r = r + bias_ref[...]
    if has_residual:
        r = r + res_ref[...].astype(jnp.float32)
    r = _activate(r, activation)
    o_ref[...] = r.astype(o_ref.dtype)


def _mm_ktiled_kernel(*refs, activation, has_residual):
    """K-tiled matmul with f32 VMEM accumulator (only used for very large K)."""
    if has_residual:
        a_ref, b_ref, bias_ref, res_ref, o_ref, acc_ref = refs
    else:
        a_ref, b_ref, bias_ref, o_ref, acc_ref = refs

    @pl.when(pl.program_id(2) == 0)
    def _():
        acc_ref[...] = jnp.zeros_like(acc_ref)

    acc_ref[...] += jnp.dot(a_ref[...], b_ref[...],
                            preferred_element_type=jnp.float32)

    @pl.when(pl.program_id(2) == pl.num_programs(2) - 1)
    def _():
        r = acc_ref[...] + bias_ref[...]
        if has_residual:
            r = r + res_ref[...].astype(jnp.float32)
        r = _activate(r, activation)
        o_ref[...] = r.astype(o_ref.dtype)


def pallas_matmul(a, b, bias, *, activation="none", residual=None,
                  out_dtype=jnp.bfloat16):
    """a: (M, K), b: (K, N) bf16 weights, bias: (N,) f32 -> (M, N) out_dtype.

    Fuses bias + activation (+ optional bf16 residual add) into the epilogue.
    bf16 operands, f32 accumulation on the MXU.
    """
    M, K = a.shape
    K2, N = b.shape
    assert K == K2
    a = a.astype(jnp.bfloat16)
    b = b.astype(jnp.bfloat16)
    bias2 = jnp.asarray(bias, jnp.float32).reshape(1, N)

    # --- M tiling: pad up to a multiple of the chosen tile (no tiny-tile cliff) ---
    m8 = _round_up(M, 8)
    tm, Mp = _choose_tile_m(m8)
    if Mp != M:
        a = jnp.pad(a, ((0, Mp - M), (0, 0)))

    # --- N tiling: full extent when N <= 128 (no padding), else 128-wide lanes ---
    if N <= 128:
        tn, Np = N, N
    elif N % 128 == 0:
        tn, Np = 128, N
    else:  # rare: pad the constant weight side only
        Np = _round_up(N, 128)
        tn = 128
        b = jnp.pad(b, ((0, 0), (0, Np - N)))
        bias2 = jnp.pad(bias2, ((0, 0), (0, Np - N)))

    has_res = residual is not None
    res2d = None
    if has_res:
        res2d = residual.astype(jnp.bfloat16)          # stays bf16; upcast in-kernel
        if Mp != M or Np != N:
            res2d = jnp.pad(res2d, ((0, Mp - M), (0, Np - N)))

    out_bytes = jnp.dtype(out_dtype).itemsize
    cost = pl.CostEstimate(
        flops=2 * M * N * K,
        transcendentals=0,
        bytes_accessed=(Mp * K * 2 + K * Np * 2 + Np * 4 + Mp * Np * out_bytes
                        + (Mp * Np * 2 if has_res else 0)))

    if K <= 4096:
        # Fast path: whole K in one step, no accumulator scratch, no pl.when phases.
        grid = (Mp // tm, Np // tn)
        in_specs = [pl.BlockSpec((tm, K), lambda i, j: (i, 0)),
                    pl.BlockSpec((K, tn), lambda i, j: (0, j)),
                    pl.BlockSpec((1, tn), lambda i, j: (0, j))]
        operands = [a, b, bias2]
        if has_res:
            in_specs.append(pl.BlockSpec((tm, tn), lambda i, j: (i, j)))
            operands.append(res2d)
        out = pl.pallas_call(
            functools.partial(_mm_single_kernel, activation=activation,
                              has_residual=has_res),
            out_shape=jax.ShapeDtypeStruct((Mp, Np), out_dtype),
            grid_spec=pltpu.PrefetchScalarGridSpec(
                num_scalar_prefetch=0, grid=grid,
                in_specs=in_specs,
                out_specs=pl.BlockSpec((tm, tn), lambda i, j: (i, j))),
            compiler_params=pltpu.CompilerParams(
                dimension_semantics=("parallel", "parallel"),
                vmem_limit_bytes=32 * 1024 * 1024),
            cost_estimate=cost,
        )(*operands)
    else:
        # Fallback: K-tiled with f32 accumulator (not hit at these model sizes).
        tk = 512
        Kp = _round_up(K, tk)
        a = jnp.pad(a, ((0, 0), (0, Kp - K)))
        b = jnp.pad(b, ((0, Kp - K), (0, 0)))
        grid = (Mp // tm, Np // tn, Kp // tk)
        in_specs = [pl.BlockSpec((tm, tk), lambda i, j, k: (i, k)),
                    pl.BlockSpec((tk, tn), lambda i, j, k: (k, j)),
                    pl.BlockSpec((1, tn), lambda i, j, k: (0, j))]
        operands = [a, b, bias2]
        if has_res:
            in_specs.append(pl.BlockSpec((tm, tn), lambda i, j, k: (i, j)))
            operands.append(res2d)
        out = pl.pallas_call(
            functools.partial(_mm_ktiled_kernel, activation=activation,
                              has_residual=has_res),
            out_shape=jax.ShapeDtypeStruct((Mp, Np), out_dtype),
            grid_spec=pltpu.PrefetchScalarGridSpec(
                num_scalar_prefetch=0, grid=grid,
                in_specs=in_specs,
                out_specs=pl.BlockSpec((tm, tn), lambda i, j, k: (i, j)),
                scratch_shapes=[pltpu.VMEM((tm, tn), jnp.float32)]),
            compiler_params=pltpu.CompilerParams(
                dimension_semantics=("parallel", "parallel", "arbitrary"),
                vmem_limit_bytes=32 * 1024 * 1024),
            cost_estimate=cost,
        )(*operands)

    if Mp != M or Np != N:
        out = out[:M, :N]
    return out


# ----------------------------------------------------------------------------
# Conv / pooling building blocks (NHWC, Pallas matmul hot path)
# ----------------------------------------------------------------------------
def conv2d(x, cp, *, stride=1, padding=0, activation="none", residual=None,
           out_dtype=jnp.bfloat16):
    """x: (B, H, W, Cin) bf16; cp: prepared conv {'w': (K,Cout) bf16, 'b', 'kh', 'kw'}."""
    B, H, W, Cin = x.shape
    kh, kw = int(cp["kh"]), int(cp["kw"])           # always plain Python ints
    Cout = cp["w"].shape[1]
    Ho = (H + 2 * padding - kh) // stride + 1
    Wo = (W + 2 * padding - kw) // stride + 1

    xb = x if x.dtype == jnp.bfloat16 else x.astype(jnp.bfloat16)
    if kh == 1 and kw == 1 and padding == 0:
        xs = xb if stride == 1 else xb[:, ::stride, ::stride, :]
        patches = xs.reshape(B * Ho * Wo, Cin)
    else:
        xp = jnp.pad(xb, ((0, 0), (padding, padding), (padding, padding), (0, 0))) \
            if padding else xb
        # TODO(synk): move this im2col (slice+concat) into the kernel as a tap
        # grid axis; for now it stays in XLA glue but operates fully in bf16.
        slices = [xp[:, i:i + stride * Ho:stride, j:j + stride * Wo:stride, :]
                  for i in range(kh) for j in range(kw)]
        patches = jnp.concatenate(slices, axis=-1).reshape(B * Ho * Wo, kh * kw * Cin)

    res2d = None
    if residual is not None:
        res2d = residual.reshape(B * Ho * Wo, Cout)      # bf16, upcast in-kernel
    out = pallas_matmul(patches, cp["w"], cp["b"], activation=activation,
                        residual=res2d, out_dtype=out_dtype)
    return out.reshape(B, Ho, Wo, Cout)


def maxpool2x2(x):
    """MaxPool2d(kernel=2, stride=2) in NHWC (bf16); floors odd dims like PyTorch."""
    B, H, W, C = x.shape
    H2, W2 = H // 2, W // 2
    x = x[:, :H2 * 2, :W2 * 2, :]
    return x.reshape(B, H2, 2, W2, 2, C).max(axis=(2, 4))


def basic_block(x, bp, stride):
    out = conv2d(x, bp["conv1"], stride=stride, padding=1, activation="relu")
    if bp["down"] is not None:
        identity = conv2d(x, bp["down"], stride=stride, padding=0, activation="relu6")
    else:
        identity = x
    # residual add + ReLU fused into the conv2 matmul epilogue (bf16 residual)
    return conv2d(out, bp["conv2"], stride=1, padding=1,
                  activation="relu", residual=identity)


def backbone_forward(prep, images):
    """images: (B, 3, H, W) NCHW f32 -> (B, hidden_dim, H', W') NCHW f32."""
    x = jnp.transpose(images, (0, 2, 3, 1)).astype(jnp.bfloat16)   # NHWC bf16
    p = conv2d(x, prep["stem"], stride=2, padding=2, activation="relu6")
    p = maxpool2x2(p)                                              # bf16 pool
    for layer in prep["layers"]:
        for bi, blk in enumerate(layer["blocks"]):
            stride = layer["stride"] if bi == 0 else 1
            p = basic_block(p, blk, stride)
    # final input_proj emits f32 to match the nn.Module output dtype
    p = conv2d(p, prep["proj"], stride=1, padding=0, activation="none",
               out_dtype=jnp.float32)
    return jnp.transpose(p, (0, 3, 1, 2))                          # back to NCHW


# ----------------------------------------------------------------------------
# Parameter init (torch layout) + one-time prepare (BN fold, transpose, bf16)
# ----------------------------------------------------------------------------
class KeyGen:
    def __init__(self, key):
        self.key = key

    def next(self):
        self.key, sub = jax.random.split(self.key)
        return sub


def normal(kg, shape, scale=0.05):
    return scale * jax.random.normal(kg.next(), shape, jnp.float32)


def bn_default(n):
    # (weight, bias, running_mean, running_var) — module __init__ defaults.
    return (jnp.ones((n,), jnp.float32), jnp.zeros((n,), jnp.float32),
            jnp.zeros((n,), jnp.float32), jnp.ones((n,), jnp.float32))


def bn_fold(conv_w, gamma, beta, mean, var, eps=1e-5):
    """Fold (Frozen)BatchNorm (eval semantics) into the preceding conv."""
    scale = gamma / jnp.sqrt(var + eps)
    return conv_w * scale[:, None, None, None], beta - mean * scale


def init_backbone_raw(kg, res_dims, res_strides, layers, hidden):
    params = {"conv1_w": normal(kg, (res_dims[0], 3, 5, 5)),
              "bn1": bn_default(res_dims[0])}
    inplanes = res_dims[0]
    layer_list = []
    for planes, stride, nblocks in zip(res_dims, res_strides, layers):
        blocks = []
        for bi in range(nblocks):
            bp = {"conv1_w": normal(kg, (planes, inplanes, 3, 3)), "bn1": bn_default(planes),
                  "conv2_w": normal(kg, (planes, planes, 3, 3)), "bn2": bn_default(planes)}
            if bi == 0 and (stride != 1 or inplanes != planes):
                bp["down_w"] = normal(kg, (planes, inplanes, 1, 1))
                bp["down_bn"] = bn_default(planes)
            blocks.append(bp)
            inplanes = planes
        layer_list.append({"stride": stride, "blocks": blocks})
    params["layers"] = layer_list
    params["proj_w"] = normal(kg, (hidden, res_dims[-1], 1, 1))
    params["proj_b"] = normal(kg, (hidden,))
    return params


def _prep_conv(w_oihw, bias):
    """Torch (Cout,Cin,kh,kw) -> matmul-ready (kh*kw*Cin, Cout) bf16 + f32 bias.

    kh/kw are kept as plain Python ints (static) — they drive host-side control
    flow and must never become traced/device values.
    """
    Cout, Cin, kh, kw = (int(d) for d in w_oihw.shape)
    wmat = jnp.transpose(w_oihw, (2, 3, 1, 0)).reshape(kh * kw * Cin, Cout)
    return {"w": wmat.astype(jnp.bfloat16),
            "b": jnp.asarray(bias, jnp.float32),
            "kh": kh, "kw": kw}


def prepare_backbone(raw):
    stem_w, stem_b = bn_fold(raw["conv1_w"], *raw["bn1"])
    prep_layers = []
    for layer in raw["layers"]:
        blocks = []
        for bp in layer["blocks"]:
            w1, b1 = bn_fold(bp["conv1_w"], *bp["bn1"])
            w2, b2 = bn_fold(bp["conv2_w"], *bp["bn2"])
            down = None
            if "down_w" in bp:
                wd, bd = bn_fold(bp["down_w"], *bp["down_bn"])
                down = _prep_conv(wd, bd)
            blocks.append({"conv1": _prep_conv(w1, b1),
                           "conv2": _prep_conv(w2, b2),
                           "down": down})
        prep_layers.append({"stride": layer["stride"], "blocks": blocks})
    return {"stem": _prep_conv(stem_w, stem_b),
            "layers": prep_layers,
            "proj": _prep_conv(raw["proj_w"], raw["proj_b"])}


# ----------------------------------------------------------------------------
if __name__ == "__main__":
    cfg = dict(res_dims=[16, 32, 64, 128], res_strides=[1, 2, 2, 2],
               layers=[1, 1, 1, 1], attn_dim=32)

    kg = KeyGen(jax.random.PRNGKey(0))
    raw = init_backbone_raw(kg, cfg["res_dims"], cfg["res_strides"],
                            cfg["layers"], cfg["attn_dim"])
    # NOTE: no jax.device_put on the prep pytree — it would convert the static
    # kh/kw ints into device arrays (the previous TracerBoolConversionError).
    prep = prepare_backbone(raw)

    images = jax.random.normal(jax.random.PRNGKey(0), (2, 3, 64, 96), jnp.float32)

    fwd = jax.jit(lambda im: backbone_forward(prep, im))
    out = fwd(images)
    jax.block_until_ready(out)

    # 64x96 -> conv1(s2) 32x48 -> maxpool 16x24 -> strides 1,2,2,2 -> 2x3
    assert out.shape == (2, cfg["attn_dim"], 2, 3), out.shape
    assert out.dtype == jnp.float32
    assert bool(jnp.all(jnp.isfinite(out)))
    print("KERNEL_OK")
</pallas_src>

<mosaic_0001>
module attributes {stable_mosaic.version = 11 : i64} {
  func.func @_mm_single_kernel(%arg0: i32, %arg1: i32, %arg2: memref<512x75xbf16, #tpu.memory_space<vmem>>, %arg3: memref<75x16xbf16, #tpu.memory_space<vmem>>, %arg4: memref<1x16xf32, #tpu.memory_space<vmem>>, %arg5: memref<512x16xbf16, #tpu.memory_space<vmem>>) attributes {dimension_semantics = [#tpu.dimension_semantics<parallel>, #tpu.dimension_semantics<parallel>], iteration_bounds = array<i64: 6, 1>, scalar_prefetch = 0 : i64, scratch_operands = 0 : i64, tpu.core_type = #tpu.core_type<tc>, window_params = [{transform_indices = @transform_0, window_bounds = array<i64: 512, 75>}, {transform_indices = @transform_1, window_bounds = array<i64: 75, 16>}, {transform_indices = @transform_2, window_bounds = array<i64: 1, 16>}, {transform_indices = @transform_3, window_bounds = array<i64: 512, 16>}]} {
    %c0 = arith.constant 0 : index
    %c0_0 = arith.constant 0 : index
    %0 = vector.load %arg2[%c0, %c0_0] : memref<512x75xbf16, #tpu.memory_space<vmem>>, vector<512x75xbf16>
    %c0_1 = arith.constant 0 : index
    %c0_2 = arith.constant 0 : index
    %1 = vector.load %arg3[%c0_1, %c0_2] : memref<75x16xbf16, #tpu.memory_space<vmem>>, vector<75x16xbf16>
    %cst = arith.constant dense<0.000000e+00> : vector<512x16xf32>
    %2 = tpu.matmul %0, %1, %cst {dimension_numbers = #tpu.dot_dimension_numbers<[1], [0], [0], [1], [0, 0, 1, 1], [], []>} : vector<512x75xbf16>, vector<75x16xbf16>, vector<512x16xf32> -> vector<512x16xf32>
    %c0_3 = arith.constant 0 : index
    %c0_4 = arith.constant 0 : index
    %3 = vector.load %arg4[%c0_3, %c0_4] : memref<1x16xf32, #tpu.memory_space<vmem>>, vector<1x16xf32>
    %4 = vector.broadcast %3 : vector<1x16xf32> to vector<512x16xf32>
    %5 = arith.addf %2, %4 : vector<512x16xf32>
    %cst_5 = arith.constant 0.000000e+00 : f32
    %cst_6 = arith.constant 6.000000e+00 : f32
    %6 = vector.broadcast %cst_5 : f32 to vector<512x16xf32>
    %7 = arith.maximumf %6, %5 : vector<512x16xf32>
    %8 = vector.broadcast %cst_6 : f32 to vector<512x16xf32>
    %9 = arith.minimumf %8, %7 : vector<512x16xf32>
    %10 = arith.truncf %9 : vector<512x16xf32> to vector<512x16xbf16>
    %c0_7 = arith.constant 0 : index
    %c0_8 = arith.constant 0 : index
    %11 = vector.load %arg5[%c0_7, %c0_8] : memref<512x16xbf16, #tpu.memory_space<vmem>>, vector<512x16xbf16>
    tpu.vector_store %arg5[%c0_7, %c0_8], %10 {strides = array<i32>} : memref<512x16xbf16, #tpu.memory_space<vmem>>, vector<512x16xbf16>,
    return
  }
  func.func @transform_0(%arg0: i32, %arg1: i32) -> (i32, i32) {
    %c0_i32 = arith.constant 0 : i32
    %c0_i32_0 = arith.constant 0 : i32
    return %arg0, %c0_i32 : i32, i32
  }
  func.func @transform_1(%arg0: i32, %arg1: i32) -> (i32, i32) {
    %c0_i32 = arith.constant 0 : i32
    %c0_i32_0 = arith.constant 0 : i32
    return %c0_i32, %arg1 : i32, i32
  }
  func.func @transform_2(%arg0: i32, %arg1: i32) -> (i32, i32) {
    %c0_i32 = arith.constant 0 : i32
    %c0_i32_0 = arith.constant 0 : i32
    return %c0_i32, %arg1 : i32, i32
  }
  func.func @transform_3(%arg0: i32, %arg1: i32) -> (i32, i32) {
    %c0_i32 = arith.constant 0 : i32
    return %arg0, %arg1 : i32, i32
  }
}

module attributes {stable_mosaic.version = 11 : i64} {
  func.func @_mm_single_kernel(%arg0: i32, %arg1: i32, %arg2: memref<256x144xbf16, #tpu.memory_space<vmem>>, %arg3: memref<144x16xbf16, #tpu.memory_space<vmem>>, %arg4: memref<1x16xf32, #tpu.memory_space<vmem>>, %arg5: memref<256x16xbf16, #tpu.memory_space<vmem>>) attributes {dimension_semantics = [#tpu.dimension_semantics<parallel>, #tpu.dimension_semantics<parallel>], iteration_bounds = array<i64: 3, 1>, scalar_prefetch = 0 : i64, scratch_operands = 0 : i64, tpu.core_type = #tpu.core_type<tc>, window_params = [{transform_indices = @transform_0, window_bounds = array<i64: 256, 144>}, {transform_indices = @transform_1, window_bounds = array<i64: 144, 16>}, {transform_indices = @transform_2, window_bounds = array<i64: 1, 16>}, {transform_indices = @transform_3, window_bounds = array<i64: 256, 16>}]} {
    %c0 = arith.constant 0 : index
    %c0_0 = arith.constant 0 : index
    %0 = vector.load %arg2[%c0, %c0_0] : memref<256x144xbf16, #tpu.memory_space<vmem>>, vector<256x144xbf16>
    %c0_1 = arith.constant 0 : index
    %c0_2 = arith.constant 0 : index
    %1 = vector.load %arg3[%c0_1, %c0_2] : memref<144x16xbf16, #tpu.memory_space<vmem>>, vector<144x16xbf16>
    %cst = arith.constant dense<0.000000e+00> : vector<256x16xf32>
    %2 = tpu.matmul %0, %1, %cst {dimension_numbers = #tpu.dot_dimension_numbers<[1], [0], [0], [1], [0, 0, 1, 1], [], []>} : vector<256x144xbf16>, vector<144x16xbf16>, vector<256x16xf32> -> vector<256x16xf32>
    %c0_3 = arith.constant 0 : index
    %c0_4 = arith.constant 0 : index
    %3 = vector.load %arg4[%c0_3, %c0_4] : memref<1x16xf32, #tpu.memory_space<vmem>>, vector<1x16xf32>
    %4 = vector.broadcast %3 : vector<1x16xf32> to vector<256x16xf32>
    %5 = arith.addf %2, %4 : vector<256x16xf32>
    %cst_5 = arith.constant 0.000000e+00 : f32
    %6 = vector.broadcast %cst_5 : f32 to vector<256x16xf32>
    %7 = arith.maximumf %5, %6 : vector<256x16xf32>
    %8 = arith.truncf %7 : vector<256x16xf32> to vector<256x16xbf16>
    %c0_6 = arith.constant 0 : index
    %c0_7 = arith.constant 0 : index
    %9 = vector.load %arg5[%c0_6, %c0_7] : memref<256x16xbf16, #tpu.memory_space<vmem>>, vector<256x16xbf16>
    tpu.vector_store %arg5[%c0_6, %c0_7], %8 {strides = array<i32>} : memref<256x16xbf16, #tpu.memory_space<vmem>>, vector<256x16xbf16>,
    return
  }
  func.func @transform_0(%arg0: i32, %arg1: i32) -> (i32, i32) {
    %c0_i32 = arith.constant 0 : i32
    %c0_i32_0 = arith.constant 0 : i32
    return %arg0, %c0_i32 : i32, i32
  }
  func.func @transform_1(%arg0: i32, %arg1: i32) -> (i32, i32) {
    %c0_i32 = arith.constant 0 : i32
    %c0_i32_0 = arith.constant 0 : i32
    return %c0_i32, %arg1 : i32, i32
  }
  func.func @transform_2(%arg0: i32, %arg1: i32) -> (i32, i32) {
    %c0_i32 = arith.constant 0 : i32
    %c0_i32_0 = arith.constant 0 : i32
    return %c0_i32, %arg1 : i32, i32
  }
  func.func @transform_3(%arg0: i32, %arg1: i32) -> (i32, i32) {
    %c0_i32 = arith.constant 0 : i32
    return %arg0, %arg1 : i32, i32
  }
}

module attributes {stable_mosaic.version = 11 : i64} {
  func.func @_mm_single_kernel(%arg0: i32, %arg1: i32, %arg2: memref<256x144xbf16, #tpu.memory_space<vmem>>, %arg3: memref<144x16xbf16, #tpu.memory_space<vmem>>, %arg4: memref<1x16xf32, #tpu.memory_space<vmem>>, %arg5: memref<256x16xbf16, #tpu.memory_space<vmem>>, %arg6: memref<256x16xbf16, #tpu.memory_space<vmem>>) attributes {dimension_semantics = [#tpu.dimension_semantics<parallel>, #tpu.dimension_semantics<parallel>], iteration_bounds = array<i64: 3, 1>, scalar_prefetch = 0 : i64, scratch_operands = 0 : i64, tpu.core_type = #tpu.core_type<tc>, window_params = [{transform_indices = @transform_0, window_bounds = array<i64: 256, 144>}, {transform_indices = @transform_1, window_bounds = array<i64: 144, 16>}, {transform_indices = @transform_2, window_bounds = array<i64: 1, 16>}, {transform_indices = @transform_3, window_bounds = array<i64: 256, 16>}, {transform_indices = @transform_4, window_bounds = array<i64: 256, 16>}]} {
    %c0 = arith.constant 0 : index
    %c0_0 = arith.constant 0 : index
    %0 = vector.load %arg2[%c0, %c0_0] : memref<256x144xbf16, #tpu.memory_space<vmem>>, vector<256x144xbf16>
    %c0_1 = arith.constant 0 : index
    %c0_2 = arith.constant 0 : index
    %1 = vector.load %arg3[%c0_1, %c0_2] : memref<144x16xbf16, #tpu.memory_space<vmem>>, vector<144x16xbf16>
    %cst = arith.constant dense<0.000000e+00> : vector<256x16xf32>
    %2 = tpu.matmul %0, %1, %cst {dimension_numbers = #tpu.dot_dimension_numbers<[1], [0], [0], [1], [0, 0, 1, 1], [], []>} : vector<256x144xbf16>, vector<144x16xbf16>, vector<256x16xf32> -> vector<256x16xf32>
    %c0_3 = arith.constant 0 : index
    %c0_4 = arith.constant 0 : index
    %3 = vector.load %arg4[%c0_3, %c0_4] : memref<1x16xf32, #tpu.memory_space<vmem>>, vector<1x16xf32>
    %4 = vector.broadcast %3 : vector<1x16xf32> to vector<256x16xf32>
    %5 = arith.addf %2, %4 : vector<256x16xf32>
    %c0_5 = arith.constant 0 : index
    %c0_6 = arith.constant 0 : index
    %6 = vector.load %arg5[%c0_5, %c0_6] : memref<256x16xbf16, #tpu.memory_space<vmem>>, vector<256x16xbf16>
    %7 = arith.extf %6 : vector<256x16xbf16> to vector<256x16xf32>
    %8 = arith.addf %5, %7 : vector<256x16xf32>
    %cst_7 = arith.constant 0.000000e+00 : f32
    %9 = vector.broadcast %cst_7 : f32 to vector<256x16xf32>
    %10 = arith.maximumf %8, %9 : vector<256x16xf32>
    %11 = arith.truncf %10 : vector<256x16xf32> to vector<256x16xbf16>
    %c0_8 = arith.constant 0 : index
    %c0_9 = arith.constant 0 : index
    %12 = vector.load %arg6[%c0_8, %c0_9] : memref<256x16xbf16, #tpu.memory_space<vmem>>, vector<256x16xbf16>
    tpu.vector_store %arg6[%c0_8, %c0_9], %11 {strides = array<i32>} : memref<256x16xbf16, #tpu.memory_space<vmem>>, vector<256x16xbf16>,
    return
  }
  func.func @transform_0(%arg0: i32, %arg1: i32) -> (i32, i32) {
    %c0_i32 = arith.constant 0 : i32
    %c0_i32_0 = arith.constant 0 : i32
    return %arg0, %c0_i32 : i32, i32
  }
  func.func @transform_1(%arg0: i32, %arg1: i32) -> (i32, i32) {
    %c0_i32 = arith.constant 0 : i32
    %c0_i32_0 = arith.constant 0 : i32
    return %c0_i32, %arg1 : i32, i32
  }
  func.func @transform_2(%arg0: i32, %arg1: i32) -> (i32, i32) {
    %c0_i32 = arith.constant 0 : i32
    %c0_i32_0 = arith.constant 0 : i32
    return %c0_i32, %arg1 : i32, i32
  }
  func.func @transform_3(%arg0: i32, %arg1: i32) -> (i32, i32) {
    %c0_i32 = arith.constant 0 : i32
    return %arg0, %arg1 : i32, i32
  }
  func.func @transform_4(%arg0: i32, %arg1: i32) -> (i32, i32) {
    %c0_i32 = arith.constant 0 : i32
    return %arg0, %arg1 : i32, i32
  }
}

module attributes {stable_mosaic.version = 11 : i64} {
  func.func @_mm_single_kernel(%arg0: i32, %arg1: i32, %arg2: memref<192x144xbf16, #tpu.memory_space<vmem>>, %arg3: memref<144x32xbf16, #tpu.memory_space<vmem>>, %arg4: memref<1x32xf32, #tpu.memory_space<vmem>>, %arg5: memref<192x32xbf16, #tpu.memory_space<vmem>>) attributes {dimension_semantics = [#tpu.dimension_semantics<parallel>, #tpu.dimension_semantics<parallel>], iteration_bounds = array<i64: 1, 1>, scalar_prefetch = 0 : i64, scratch_operands = 0 : i64, tpu.core_type = #tpu.core_type<tc>, window_params = [{transform_indices = @transform_0, window_bounds = array<i64: 192, 144>}, {transform_indices = @transform_1, window_bounds = array<i64: 144, 32>}, {transform_indices = @transform_2, window_bounds = array<i64: 1, 32>}, {transform_indices = @transform_3, window_bounds = array<i64: 192, 32>}]} {
    %c0 = arith.constant 0 : index
    %c0_0 = arith.constant 0 : index
    %0 = vector.load %arg2[%c0, %c0_0] : memref<192x144xbf16, #tpu.memory_space<vmem>>, vector<192x144xbf16>
    %c0_1 = arith.constant 0 : index
    %c0_2 = arith.constant 0 : index
    %1 = vector.load %arg3[%c0_1, %c0_2] : memref<144x32xbf16, #tpu.memory_space<vmem>>, vector<144x32xbf16>
    %cst = arith.constant dense<0.000000e+00> : vector<192x32xf32>
    %2 = tpu.matmul %0, %1, %cst {dimension_numbers = #tpu.dot_dimension_numbers<[1], [0], [0], [1], [0, 0, 1, 1], [], []>} : vector<192x144xbf16>, vector<144x32xbf16>, vector<192x32xf32> -> vector<192x32xf32>
    %c0_3 = arith.constant 0 : index
    %c0_4 = arith.constant 0 : index
    %3 = vector.load %arg4[%c0_3, %c0_4] : memref<1x32xf32, #tpu.memory_space<vmem>>, vector<1x32xf32>
    %4 = vector.broadcast %3 : vector<1x32xf32> to vector<192x32xf32>
    %5 = arith.addf %2, %4 : vector<192x32xf32>
    %cst_5 = arith.constant 0.000000e+00 : f32
    %6 = vector.broadcast %cst_5 : f32 to vector<192x32xf32>
    %7 = arith.maximumf %5, %6 : vector<192x32xf32>
    %8 = arith.truncf %7 : vector<192x32xf32> to vector<192x32xbf16>
    %c0_6 = arith.constant 0 : index
    %c0_7 = arith.constant 0 : index
    %9 = vector.load %arg5[%c0_6, %c0_7] : memref<192x32xbf16, #tpu.memory_space<vmem>>, vector<192x32xbf16>
    tpu.vector_store %arg5[%c0_6, %c0_7], %8 {strides = array<i32>} : memref<192x32xbf16, #tpu.memory_space<vmem>>, vector<192x32xbf16>,
    return
  }
  func.func @transform_0(%arg0: i32, %arg1: i32) -> (i32, i32) {
    %c0_i32 = arith.constant 0 : i32
    %c0_i32_0 = arith.constant 0 : i32
    return %arg0, %c0_i32 : i32, i32
  }
  func.func @transform_1(%arg0: i32, %arg1: i32) -> (i32, i32) {
    %c0_i32 = arith.constant 0 : i32
    %c0_i32_0 = arith.constant 0 : i32
    return %c0_i32, %arg1 : i32, i32
  }
  func.func @transform_2(%arg0: i32, %arg1: i32) -> (i32, i32) {
    %c0_i32 = arith.constant 0 : i32
    %c0_i32_0 = arith.constant 0 : i32
    return %c0_i32, %arg1 : i32, i32
  }
  func.func @transform_3(%arg0: i32, %arg1: i32) -> (i32, i32) {
    %c0_i32 = arith.constant 0 : i32
    return %arg0, %arg1 : i32, i32
  }
}

module attributes {stable_mosaic.version = 11 : i64} {
  func.func @_mm_single_kernel(%arg0: i32, %arg1: i32, %arg2: memref<192x16xbf16, #tpu.memory_space<vmem>>, %arg3: memref<16x32xbf16, #tpu.memory_space<vmem>>, %arg4: memref<1x32xf32, #tpu.memory_space<vmem>>, %arg5: memref<192x32xbf16, #tpu.memory_space<vmem>>) attributes {dimension_semantics = [#tpu.dimension_semantics<parallel>, #tpu.dimension_semantics<parallel>], iteration_bounds = array<i64: 1, 1>, scalar_prefetch = 0 : i64, scratch_operands = 0 : i64, tpu.core_type = #tpu.core_type<tc>, window_params = [{transform_indices = @transform_0, window_bounds = array<i64: 192, 16>}, {transform_indices = @transform_1, window_bounds = array<i64: 16, 32>}, {transform_indices = @transform_2, window_bounds = array<i64: 1, 32>}, {transform_indices = @transform_3, window_bounds = array<i64: 192, 32>}]} {
    %c0 = arith.constant 0 : index
    %c0_0 = arith.constant 0 : index
    %0 = vector.load %arg2[%c0, %c0_0] : memref<192x16xbf16, #tpu.memory_space<vmem>>, vector<192x16xbf16>
    %c0_1 = arith.constant 0 : index
    %c0_2 = arith.constant 0 : index
    %1 = vector.load %arg3[%c0_1, %c0_2] : memref<16x32xbf16, #tpu.memory_space<vmem>>, vector<16x32xbf16>
    %cst = arith.constant dense<0.000000e+00> : vector<192x32xf32>
    %2 = tpu.matmul %0, %1, %cst {dimension_numbers = #tpu.dot_dimension_numbers<[1], [0], [0], [1], [0, 0, 1, 1], [], []>} : vector<192x16xbf16>, vector<16x32xbf16>, vector<192x32xf32> -> vector<192x32xf32>
    %c0_3 = arith.constant 0 : index
    %c0_4 = arith.constant 0 : index
    %3 = vector.load %arg4[%c0_3, %c0_4] : memref<1x32xf32, #tpu.memory_space<vmem>>, vector<1x32xf32>
    %4 = vector.broadcast %3 : vector<1x32xf32> to vector<192x32xf32>
    %5 = arith.addf %2, %4 : vector<192x32xf32>
    %cst_5 = arith.constant 0.000000e+00 : f32
    %cst_6 = arith.constant 6.000000e+00 : f32
    %6 = vector.broadcast %cst_5 : f32 to vector<192x32xf32>
    %7 = arith.maximumf %6, %5 : vector<192x32xf32>
    %8 = vector.broadcast %cst_6 : f32 to vector<192x32xf32>
    %9 = arith.minimumf %8, %7 : vector<192x32xf32>
    %10 = arith.truncf %9 : vector<192x32xf32> to vector<192x32xbf16>
    %c0_7 = arith.constant 0 : index
    %c0_8 = arith.constant 0 : index
    %11 = vector.load %arg5[%c0_7, %c0_8] : memref<192x32xbf16, #tpu.memory_space<vmem>>, vector<192x32xbf16>
    tpu.vector_store %arg5[%c0_7, %c0_8], %10 {strides = array<i32>} : memref<192x32xbf16, #tpu.memory_space<vmem>>, vector<192x32xbf16>,
    return
  }
  func.func @transform_0(%arg0: i32, %arg1: i32) -> (i32, i32) {
    %c0_i32 = arith.constant 0 : i32
    %c0_i32_0 = arith.constant 0 : i32
    return %arg0, %c0_i32 : i32, i32
  }
  func.func @transform_1(%arg0: i32, %arg1: i32) -> (i32, i32) {
    %c0_i32 = arith.constant 0 : i32
    %c0_i32_0 = arith.constant 0 : i32
    return %c0_i32, %arg1 : i32, i32
  }
  func.func @transform_2(%arg0: i32, %arg1: i32) -> (i32, i32) {
    %c0_i32 = arith.constant 0 : i32
    %c0_i32_0 = arith.constant 0 : i32
    return %c0_i32, %arg1 : i32, i32
  }
  func.func @transform_3(%arg0: i32, %arg1: i32) -> (i32, i32) {
    %c0_i32 = arith.constant 0 : i32
    return %arg0, %arg1 : i32, i32
  }
}

module attributes {stable_mosaic.version = 11 : i64} {
  func.func @_mm_single_kernel(%arg0: i32, %arg1: i32, %arg2: memref<192x288xbf16, #tpu.memory_space<vmem>>, %arg3: memref<288x32xbf16, #tpu.memory_space<vmem>>, %arg4: memref<1x32xf32, #tpu.memory_space<vmem>>, %arg5: memref<192x32xbf16, #tpu.memory_space<vmem>>, %arg6: memref<192x32xbf16, #tpu.memory_space<vmem>>) attributes {dimension_semantics = [#tpu.dimension_semantics<parallel>, #tpu.dimension_semantics<parallel>], iteration_bounds = array<i64: 1, 1>, scalar_prefetch = 0 : i64, scratch_operands = 0 : i64, tpu.core_type = #tpu.core_type<tc>, window_params = [{transform_indices = @transform_0, window_bounds = array<i64: 192, 288>}, {transform_indices = @transform_1, window_bounds = array<i64: 288, 32>}, {transform_indices = @transform_2, window_bounds = array<i64: 1, 32>}, {transform_indices = @transform_3, window_bounds = array<i64: 192, 32>}, {transform_indices = @transform_4, window_bounds = array<i64: 192, 32>}]} {
    %c0 = arith.constant 0 : index
    %c0_0 = arith.constant 0 : index
    %0 = vector.load %arg2[%c0, %c0_0] : memref<192x288xbf16, #tpu.memory_space<vmem>>, vector<192x288xbf16>
    %c0_1 = arith.constant 0 : index
    %c0_2 = arith.constant 0 : index
    %1 = vector.load %arg3[%c0_1, %c0_2] : memref<288x32xbf16, #tpu.memory_space<vmem>>, vector<288x32xbf16>
    %cst = arith.constant dense<0.000000e+00> : vector<192x32xf32>
    %2 = tpu.matmul %0, %1, %cst {dimension_numbers = #tpu.dot_dimension_numbers<[1], [0], [0], [1], [0, 0, 1, 1], [], []>} : vector<192x288xbf16>, vector<288x32xbf16>, vector<192x32xf32> -> vector<192x32xf32>
    %c0_3 = arith.constant 0 : index
    %c0_4 = arith.constant 0 : index
    %3 = vector.load %arg4[%c0_3, %c0_4] : memref<1x32xf32, #tpu.memory_space<vmem>>, vector<1x32xf32>
    %4 = vector.broadcast %3 : vector<1x32xf32> to vector<192x32xf32>
    %5 = arith.addf %2, %4 : vector<192x32xf32>
    %c0_5 = arith.constant 0 : index
    %c0_6 = arith.constant 0 : index
    %6 = vector.load %arg5[%c0_5, %c0_6] : memref<192x32xbf16, #tpu.memory_space<vmem>>, vector<192x32xbf16>
    %7 = arith.extf %6 : vector<192x32xbf16> to vector<192x32xf32>
    %8 = arith.addf %5, %7 : vector<192x32xf32>
    %cst_7 = arith.constant 0.000000e+00 : f32
    %9 = vector.broadcast %cst_7 : f32 to vector<192x32xf32>
    %10 = arith.maximumf %8, %9 : vector<192x32xf32>
    %11 = arith.truncf %10 : vector<192x32xf32> to vector<192x32xbf16>
    %c0_8 = arith.constant 0 : index
    %c0_9 = arith.constant 0 : index
    %12 = vector.load %arg6[%c0_8, %c0_9] : memref<192x32xbf16, #tpu.memory_space<vmem>>, vector<192x32xbf16>
    tpu.vector_store %arg6[%c0_8, %c0_9], %11 {strides = array<i32>} : memref<192x32xbf16, #tpu.memory_space<vmem>>, vector<192x32xbf16>,
    return
  }
  func.func @transform_0(%arg0: i32, %arg1: i32) -> (i32, i32) {
    %c0_i32 = arith.constant 0 : i32
    %c0_i32_0 = arith.constant 0 : i32
    return %arg0, %c0_i32 : i32, i32
  }
  func.func @transform_1(%arg0: i32, %arg1: i32) -> (i32, i32) {
    %c0_i32 = arith.constant 0 : i32
    %c0_i32_0 = arith.constant 0 : i32
    return %c0_i32, %arg1 : i32, i32
  }
  func.func @transform_2(%arg0: i32, %arg1: i32) -> (i32, i32) {
    %c0_i32 = arith.constant 0 : i32
    %c0_i32_0 = arith.constant 0 : i32
    return %c0_i32, %arg1 : i32, i32
  }
  func.func @transform_3(%arg0: i32, %arg1: i32) -> (i32, i32) {
    %c0_i32 = arith.constant 0 : i32
    return %arg0, %arg1 : i32, i32
  }
  func.func @transform_4(%arg0: i32, %arg1: i32) -> (i32, i32) {
    %c0_i32 = arith.constant 0 : i32
    return %arg0, %arg1 : i32, i32
  }
}

module attributes {stable_mosaic.version = 11 : i64} {
  func.func @_mm_single_kernel(%arg0: i32, %arg1: i32, %arg2: memref<48x288xbf16, #tpu.memory_space<vmem>>, %arg3: memref<288x64xbf16, #tpu.memory_space<vmem>>, %arg4: memref<1x64xf32, #tpu.memory_space<vmem>>, %arg5: memref<48x64xbf16, #tpu.memory_space<vmem>>) attributes {dimension_semantics = [#tpu.dimension_semantics<parallel>, #tpu.dimension_semantics<parallel>], iteration_bounds = array<i64: 1, 1>, scalar_prefetch = 0 : i64, scratch_operands = 0 : i64, tpu.core_type = #tpu.core_type<tc>, window_params = [{transform_indices = @transform_0, window_bounds = array<i64: 48, 288>}, {transform_indices = @transform_1, window_bounds = array<i64: 288, 64>}, {transform_indices = @transform_2, window_bounds = array<i64: 1, 64>}, {transform_indices = @transform_3, window_bounds = array<i64: 48, 64>}]} {
    %c0 = arith.constant 0 : index
    %c0_0 = arith.constant 0 : index
    %0 = vector.load %arg2[%c0, %c0_0] : memref<48x288xbf16, #tpu.memory_space<vmem>>, vector<48x288xbf16>
    %c0_1 = arith.constant 0 : index
    %c0_2 = arith.constant 0 : index
    %1 = vector.load %arg3[%c0_1, %c0_2] : memref<288x64xbf16, #tpu.memory_space<vmem>>, vector<288x64xbf16>
    %cst = arith.constant dense<0.000000e+00> : vector<48x64xf32>
    %2 = tpu.matmul %0, %1, %cst {dimension_numbers = #tpu.dot_dimension_numbers<[1], [0], [0], [1], [0, 0, 1, 1], [], []>} : vector<48x288xbf16>, vector<288x64xbf16>, vector<48x64xf32> -> vector<48x64xf32>
    %c0_3 = arith.constant 0 : index
    %c0_4 = arith.constant 0 : index
    %3 = vector.load %arg4[%c0_3, %c0_4] : memref<1x64xf32, #tpu.memory_space<vmem>>, vector<1x64xf32>
    %4 = vector.broadcast %3 : vector<1x64xf32> to vector<48x64xf32>
    %5 = arith.addf %2, %4 : vector<48x64xf32>
    %cst_5 = arith.constant 0.000000e+00 : f32
    %6 = vector.broadcast %cst_5 : f32 to vector<48x64xf32>
    %7 = arith.maximumf %5, %6 : vector<48x64xf32>
    %8 = arith.truncf %7 : vector<48x64xf32> to vector<48x64xbf16>
    %c0_6 = arith.constant 0 : index
    %c0_7 = arith.constant 0 : index
    %9 = vector.load %arg5[%c0_6, %c0_7] : memref<48x64xbf16, #tpu.memory_space<vmem>>, vector<48x64xbf16>
    tpu.vector_store %arg5[%c0_6, %c0_7], %8 {strides = array<i32>} : memref<48x64xbf16, #tpu.memory_space<vmem>>, vector<48x64xbf16>,
    return
  }
  func.func @transform_0(%arg0: i32, %arg1: i32) -> (i32, i32) {
    %c0_i32 = arith.constant 0 : i32
    %c0_i32_0 = arith.constant 0 : i32
    return %arg0, %c0_i32 : i32, i32
  }
  func.func @transform_1(%arg0: i32, %arg1: i32) -> (i32, i32) {
    %c0_i32 = arith.constant 0 : i32
    %c0_i32_0 = arith.constant 0 : i32
    return %c0_i32, %arg1 : i32, i32
  }
  func.func @transform_2(%arg0: i32, %arg1: i32) -> (i32, i32) {
    %c0_i32 = arith.constant 0 : i32
    %c0_i32_0 = arith.constant 0 : i32
    return %c0_i32, %arg1 : i32, i32
  }
  func.func @transform_3(%arg0: i32, %arg1: i32) -> (i32, i32) {
    %c0_i32 = arith.constant 0 : i32
    return %arg0, %arg1 : i32, i32
  }
}

module attributes {stable_mosaic.version = 11 : i64} {
  func.func @_mm_single_kernel(%arg0: i32, %arg1: i32, %arg2: memref<48x576xbf16, #tpu.memory_space<vmem>>, %arg3: memref<576x64xbf16, #tpu.memory_space<vmem>>, %arg4: memref<1x64xf32, #tpu.memory_space<vmem>>, %arg5: memref<48x64xbf16, #tpu.memory_space<vmem>>, %arg6: memref<48x64xbf16, #tpu.memory_space<vmem>>) attributes {dimension_semantics = [#tpu.dimension_semantics<parallel>, #tpu.dimension_semantics<parallel>], iteration_bounds = array<i64: 1, 1>, scalar_prefetch = 0 : i64, scratch_operands = 0 : i64, tpu.core_type = #tpu.core_type<tc>, window_params = [{transform_indices = @transform_0, window_bounds = array<i64: 48, 576>}, {transform_indices = @transform_1, window_bounds = array<i64: 576, 64>}, {transform_indices = @transform_2, window_bounds = array<i64: 1, 64>}, {transform_indices = @transform_3, window_bounds = array<i64: 48, 64>}, {transform_indices = @transform_4, window_bounds = array<i64: 48, 64>}]} {
    %c0 = arith.constant 0 : index
    %c0_0 = arith.constant 0 : index
    %0 = vector.load %arg2[%c0, %c0_0] : memref<48x576xbf16, #tpu.memory_space<vmem>>, vector<48x576xbf16>
    %c0_1 = arith.constant 0 : index
    %c0_2 = arith.constant 0 : index
    %1 = vector.load %arg3[%c0_1, %c0_2] : memref<576x64xbf16, #tpu.memory_space<vmem>>, vector<576x64xbf16>
    %cst = arith.constant dense<0.000000e+00> : vector<48x64xf32>
    %2 = tpu.matmul %0, %1, %cst {dimension_numbers = #tpu.dot_dimension_numbers<[1], [0], [0], [1], [0, 0, 1, 1], [], []>} : vector<48x576xbf16>, vector<576x64xbf16>, vector<48x64xf32> -> vector<48x64xf32>
    %c0_3 = arith.constant 0 : index
    %c0_4 = arith.constant 0 : index
    %3 = vector.load %arg4[%c0_3, %c0_4] : memref<1x64xf32, #tpu.memory_space<vmem>>, vector<1x64xf32>
    %4 = vector.broadcast %3 : vector<1x64xf32> to vector<48x64xf32>
    %5 = arith.addf %2, %4 : vector<48x64xf32>
    %c0_5 = arith.constant 0 : index
    %c0_6 = arith.constant 0 : index
    %6 = vector.load %arg5[%c0_5, %c0_6] : memref<48x64xbf16, #tpu.memory_space<vmem>>, vector<48x64xbf16>
    %7 = arith.extf %6 : vector<48x64xbf16> to vector<48x64xf32>
    %8 = arith.addf %5, %7 : vector<48x64xf32>
    %cst_7 = arith.constant 0.000000e+00 : f32
    %9 = vector.broadcast %cst_7 : f32 to vector<48x64xf32>
    %10 = arith.maximumf %8, %9 : vector<48x64xf32>
    %11 = arith.truncf %10 : vector<48x64xf32> to vector<48x64xbf16>
    %c0_8 = arith.constant 0 : index
    %c0_9 = arith.constant 0 : index
    %12 = vector.load %arg6[%c0_8, %c0_9] : memref<48x64xbf16, #tpu.memory_space<vmem>>, vector<48x64xbf16>
    tpu.vector_store %arg6[%c0_8, %c0_9], %11 {strides = array<i32>} : memref<48x64xbf16, #tpu.memory_space<vmem>>, vector<48x64xbf16>,
    return
  }
  func.func @transform_0(%arg0: i32, %arg1: i32) -> (i32, i32) {
    %c0_i32 = arith.constant 0 : i32
    %c0_i32_0 = arith.constant 0 : i32
    return %arg0, %c0_i32 : i32, i32
  }
  func.func @transform_1(%arg0: i32, %arg1: i32) -> (i32, i32) {
    %c0_i32 = arith.constant 0 : i32
    %c0_i32_0 = arith.constant 0 : i32
    return %c0_i32, %arg1 : i32, i32
  }
  func.func @transform_2(%arg0: i32, %arg1: i32) -> (i32, i32) {
    %c0_i32 = arith.constant 0 : i32
    %c0_i32_0 = arith.constant 0 : i32
    return %c0_i32, %arg1 : i32, i32
  }
  func.func @transform_3(%arg0: i32, %arg1: i32) -> (i32, i32) {
    %c0_i32 = arith.constant 0 : i32
    return %arg0, %arg1 : i32, i32
  }
  func.func @transform_4(%arg0: i32, %arg1: i32) -> (i32, i32) {
    %c0_i32 = arith.constant 0 : i32
    return %arg0, %arg1 : i32, i32
  }
}

module attributes {stable_mosaic.version = 11 : i64} {
  func.func @_mm_single_kernel(%arg0: i32, %arg1: i32, %arg2: memref<48x32xbf16, #tpu.memory_space<vmem>>, %arg3: memref<32x64xbf16, #tpu.memory_space<vmem>>, %arg4: memref<1x64xf32, #tpu.memory_space<vmem>>, %arg5: memref<48x64xbf16, #tpu.memory_space<vmem>>) attributes {dimension_semantics = [#tpu.dimension_semantics<parallel>, #tpu.dimension_semantics<parallel>], iteration_bounds = array<i64: 1, 1>, scalar_prefetch = 0 : i64, scratch_operands = 0 : i64, tpu.core_type = #tpu.core_type<tc>, window_params = [{transform_indices = @transform_0, window_bounds = array<i64: 48, 32>}, {transform_indices = @transform_1, window_bounds = array<i64: 32, 64>}, {transform_indices = @transform_2, window_bounds = array<i64: 1, 64>}, {transform_indices = @transform_3, window_bounds = array<i64: 48, 64>}]} {
    %c0 = arith.constant 0 : index
    %c0_0 = arith.constant 0 : index
    %0 = vector.load %arg2[%c0, %c0_0] : memref<48x32xbf16, #tpu.memory_space<vmem>>, vector<48x32xbf16>
    %c0_1 = arith.constant 0 : index
    %c0_2 = arith.constant 0 : index
    %1 = vector.load %arg3[%c0_1, %c0_2] : memref<32x64xbf16, #tpu.memory_space<vmem>>, vector<32x64xbf16>
    %cst = arith.constant dense<0.000000e+00> : vector<48x64xf32>
    %2 = tpu.matmul %0, %1, %cst {dimension_numbers = #tpu.dot_dimension_numbers<[1], [0], [0], [1], [0, 0, 1, 1], [], []>} : vector<48x32xbf16>, vector<32x64xbf16>, vector<48x64xf32> -> vector<48x64xf32>
    %c0_3 = arith.constant 0 : index
    %c0_4 = arith.constant 0 : index
    %3 = vector.load %arg4[%c0_3, %c0_4] : memref<1x64xf32, #tpu.memory_space<vmem>>, vector<1x64xf32>
    %4 = vector.broadcast %3 : vector<1x64xf32> to vector<48x64xf32>
    %5 = arith.addf %2, %4 : vector<48x64xf32>
    %cst_5 = arith.constant 0.000000e+00 : f32
    %cst_6 = arith.constant 6.000000e+00 : f32
    %6 = vector.broadcast %cst_5 : f32 to vector<48x64xf32>
    %7 = arith.maximumf %6, %5 : vector<48x64xf32>
    %8 = vector.broadcast %cst_6 : f32 to vector<48x64xf32>
    %9 = arith.minimumf %8, %7 : vector<48x64xf32>
    %10 = arith.truncf %9 : vector<48x64xf32> to vector<48x64xbf16>
    %c0_7 = arith.constant 0 : index
    %c0_8 = arith.constant 0 : index
    %11 = vector.load %arg5[%c0_7, %c0_8] : memref<48x64xbf16, #tpu.memory_space<vmem>>, vector<48x64xbf16>
    tpu.vector_store %arg5[%c0_7, %c0_8], %10 {strides = array<i32>} : memref<48x64xbf16, #tpu.memory_space<vmem>>, vector<48x64xbf16>,
    return
  }
  func.func @transform_0(%arg0: i32, %arg1: i32) -> (i32, i32) {
    %c0_i32 = arith.constant 0 : i32
    %c0_i32_0 = arith.constant 0 : i32
    return %arg0, %c0_i32 : i32, i32
  }
  func.func @transform_1(%arg0: i32, %arg1: i32) -> (i32, i32) {
    %c0_i32 = arith.constant 0 : i32
    %c0_i32_0 = arith.constant 0 : i32
    return %c0_i32, %arg1 : i32, i32
  }
  func.func @transform_2(%arg0: i32, %arg1: i32) -> (i32, i32) {
    %c0_i32 = arith.constant 0 : i32
    %c0_i32_0 = arith.constant 0 : i32
    return %c0_i32, %arg1 : i32, i32
  }
  func.func @transform_3(%arg0: i32, %arg1: i32) -> (i32, i32) {
    %c0_i32 = arith.constant 0 : i32
    return %arg0, %arg1 : i32, i32
  }
}

module attributes {stable_mosaic.version = 11 : i64} {
  func.func @_mm_single_kernel(%arg0: i32, %arg1: i32, %arg2: memref<16x576xbf16, #tpu.memory_space<vmem>>, %arg3: memref<576x128xbf16, #tpu.memory_space<vmem>>, %arg4: memref<1x128xf32, #tpu.memory_space<vmem>>, %arg5: memref<16x128xbf16, #tpu.memory_space<vmem>>) attributes {dimension_semantics = [#tpu.dimension_semantics<parallel>, #tpu.dimension_semantics<parallel>], iteration_bounds = array<i64: 1, 1>, scalar_prefetch = 0 : i64, scratch_operands = 0 : i64, tpu.core_type = #tpu.core_type<tc>, window_params = [{transform_indices = @transform_0, window_bounds = array<i64: 16, 576>}, {transform_indices = @transform_1, window_bounds = array<i64: 576, 128>}, {transform_indices = @transform_2, window_bounds = array<i64: 1, 128>}, {transform_indices = @transform_3, window_bounds = array<i64: 16, 128>}]} {
    %c0 = arith.constant 0 : index
    %c0_0 = arith.constant 0 : index
    %0 = vector.load %arg2[%c0, %c0_0] : memref<16x576xbf16, #tpu.memory_space<vmem>>, vector<16x576xbf16>
    %c0_1 = arith.constant 0 : index
    %c0_2 = arith.constant 0 : index
    %1 = vector.load %arg3[%c0_1, %c0_2] : memref<576x128xbf16, #tpu.memory_space<vmem>>, vector<576x128xbf16>
    %cst = arith.constant dense<0.000000e+00> : vector<16x128xf32>
    %2 = tpu.matmul %0, %1, %cst {dimension_numbers = #tpu.dot_dimension_numbers<[1], [0], [0], [1], [0, 0, 1, 1], [], []>} : vector<16x576xbf16>, vector<576x128xbf16>, vector<16x128xf32> -> vector<16x128xf32>
    %c0_3 = arith.constant 0 : index
    %c0_4 = arith.constant 0 : index
    %3 = vector.load %arg4[%c0_3, %c0_4] : memref<1x128xf32, #tpu.memory_space<vmem>>, vector<1x128xf32>
    %4 = vector.broadcast %3 : vector<1x128xf32> to vector<16x128xf32>
    %5 = arith.addf %2, %4 : vector<16x128xf32>
    %cst_5 = arith.constant 0.000000e+00 : f32
    %6 = vector.broadcast %cst_5 : f32 to vector<16x128xf32>
    %7 = arith.maximumf %5, %6 : vector<16x128xf32>
    %8 = arith.truncf %7 : vector<16x128xf32> to vector<16x128xbf16>
    %c0_6 = arith.constant 0 : index
    %c0_7 = arith.constant 0 : index
    %9 = vector.load %arg5[%c0_6, %c0_7] : memref<16x128xbf16, #tpu.memory_space<vmem>>, vector<16x128xbf16>
    tpu.vector_store %arg5[%c0_6, %c0_7], %8 {strides = array<i32>} : memref<16x128xbf16, #tpu.memory_space<vmem>>, vector<16x128xbf16>,
    return
  }
  func.func @transform_0(%arg0: i32, %arg1: i32) -> (i32, i32) {
    %c0_i32 = arith.constant 0 : i32
    %c0_i32_0 = arith.constant 0 : i32
    return %arg0, %c0_i32 : i32, i32
  }
  func.func @transform_1(%arg0: i32, %arg1: i32) -> (i32, i32) {
    %c0_i32 = arith.constant 0 : i32
    %c0_i32_0 = arith.constant 0 : i32
    return %c0_i32, %arg1 : i32, i32
  }
  func.func @transform_2(%arg0: i32, %arg1: i32) -> (i32, i32) {
    %c0_i32 = arith.constant 0 : i32
    %c0_i32_0 = arith.constant 0 : i32
    return %c0_i32, %arg1 : i32, i32
  }
  func.func @transform_3(%arg0: i32, %arg1: i32) -> (i32, i32) {
    %c0_i32 = arith.constant 0 : i32
    return %arg0, %arg1 : i32, i32
  }
}

module attributes {stable_mosaic.version = 11 : i64} {
  func.func @_mm_single_kernel(%arg0: i32, %arg1: i32, %arg2: memref<16x64xbf16, #tpu.memory_space<vmem>>, %arg3: memref<64x128xbf16, #tpu.memory_space<vmem>>, %arg4: memref<1x128xf32, #tpu.memory_space<vmem>>, %arg5: memref<16x128xbf16, #tpu.memory_space<vmem>>) attributes {dimension_semantics = [#tpu.dimension_semantics<parallel>, #tpu.dimension_semantics<parallel>], iteration_bounds = array<i64: 1, 1>, scalar_prefetch = 0 : i64, scratch_operands = 0 : i64, tpu.core_type = #tpu.core_type<tc>, window_params = [{transform_indices = @transform_0, window_bounds = array<i64: 16, 64>}, {transform_indices = @transform_1, window_bounds = array<i64: 64, 128>}, {transform_indices = @transform_2, window_bounds = array<i64: 1, 128>}, {transform_indices = @transform_3, window_bounds = array<i64: 16, 128>}]} {
    %c0 = arith.constant 0 : index
    %c0_0 = arith.constant 0 : index
    %0 = vector.load %arg2[%c0, %c0_0] : memref<16x64xbf16, #tpu.memory_space<vmem>>, vector<16x64xbf16>
    %c0_1 = arith.constant 0 : index
    %c0_2 = arith.constant 0 : index
    %1 = vector.load %arg3[%c0_1, %c0_2] : memref<64x128xbf16, #tpu.memory_space<vmem>>, vector<64x128xbf16>
    %cst = arith.constant dense<0.000000e+00> : vector<16x128xf32>
    %2 = tpu.matmul %0, %1, %cst {dimension_numbers = #tpu.dot_dimension_numbers<[1], [0], [0], [1], [0, 0, 1, 1], [], []>} : vector<16x64xbf16>, vector<64x128xbf16>, vector<16x128xf32> -> vector<16x128xf32>
    %c0_3 = arith.constant 0 : index
    %c0_4 = arith.constant 0 : index
    %3 = vector.load %arg4[%c0_3, %c0_4] : memref<1x128xf32, #tpu.memory_space<vmem>>, vector<1x128xf32>
    %4 = vector.broadcast %3 : vector<1x128xf32> to vector<16x128xf32>
    %5 = arith.addf %2, %4 : vector<16x128xf32>
    %cst_5 = arith.constant 0.000000e+00 : f32
    %cst_6 = arith.constant 6.000000e+00 : f32
    %6 = vector.broadcast %cst_5 : f32 to vector<16x128xf32>
    %7 = arith.maximumf %6, %5 : vector<16x128xf32>
    %8 = vector.broadcast %cst_6 : f32 to vector<16x128xf32>
    %9 = arith.minimumf %8, %7 : vector<16x128xf32>
    %10 = arith.truncf %9 : vector<16x128xf32> to vector<16x128xbf16>
    %c0_7 = arith.constant 0 : index
    %c0_8 = arith.constant 0 : index
    %11 = vector.load %arg5[%c0_7, %c0_8] : memref<16x128xbf16, #tpu.memory_space<vmem>>, vector<16x128xbf16>
    tpu.vector_store %arg5[%c0_7, %c0_8], %10 {strides = array<i32>} : memref<16x128xbf16, #tpu.memory_space<vmem>>, vector<16x128xbf16>,
    return
  }
  func.func @transform_0(%arg0: i32, %arg1: i32) -> (i32, i32) {
    %c0_i32 = arith.constant 0 : i32
    %c0_i32_0 = arith.constant 0 : i32
    return %arg0, %c0_i32 : i32, i32
  }
  func.func @transform_1(%arg0: i32, %arg1: i32) -> (i32, i32) {
    %c0_i32 = arith.constant 0 : i32
    %c0_i32_0 = arith.constant 0 : i32
    return %c0_i32, %arg1 : i32, i32
  }
  func.func @transform_2(%arg0: i32, %arg1: i32) -> (i32, i32) {
    %c0_i32 = arith.constant 0 : i32
    %c0_i32_0 = arith.constant 0 : i32
    return %c0_i32, %arg1 : i32, i32
  }
  func.func @transform_3(%arg0: i32, %arg1: i32) -> (i32, i32) {
    %c0_i32 = arith.constant 0 : i32
    return %arg0, %arg1 : i32, i32
  }
}

module attributes {stable_mosaic.version = 11 : i64} {
  func.func @_mm_single_kernel(%arg0: i32, %arg1: i32, %arg2: memref<16x1152xbf16, #tpu.memory_space<vmem>>, %arg3: memref<1152x128xbf16, #tpu.memory_space<vmem>>, %arg4: memref<1x128xf32, #tpu.memory_space<vmem>>, %arg5: memref<16x128xbf16, #tpu.memory_space<vmem>>, %arg6: memref<16x128xbf16, #tpu.memory_space<vmem>>) attributes {dimension_semantics = [#tpu.dimension_semantics<parallel>, #tpu.dimension_semantics<parallel>], iteration_bounds = array<i64: 1, 1>, scalar_prefetch = 0 : i64, scratch_operands = 0 : i64, tpu.core_type = #tpu.core_type<tc>, window_params = [{transform_indices = @transform_0, window_bounds = array<i64: 16, 1152>}, {transform_indices = @transform_1, window_bounds = array<i64: 1152, 128>}, {transform_indices = @transform_2, window_bounds = array<i64: 1, 128>}, {transform_indices = @transform_3, window_bounds = array<i64: 16, 128>}, {transform_indices = @transform_4, window_bounds = array<i64: 16, 128>}]} {
    %c0 = arith.constant 0 : index
    %c0_0 = arith.constant 0 : index
    %0 = vector.load %arg2[%c0, %c0_0] : memref<16x1152xbf16, #tpu.memory_space<vmem>>, vector<16x1152xbf16>
    %c0_1 = arith.constant 0 : index
    %c0_2 = arith.constant 0 : index
    %1 = vector.load %arg3[%c0_1, %c0_2] : memref<1152x128xbf16, #tpu.memory_space<vmem>>, vector<1152x128xbf16>
    %cst = arith.constant dense<0.000000e+00> : vector<16x128xf32>
    %2 = tpu.matmul %0, %1, %cst {dimension_numbers = #tpu.dot_dimension_numbers<[1], [0], [0], [1], [0, 0, 1, 1], [], []>} : vector<16x1152xbf16>, vector<1152x128xbf16>, vector<16x128xf32> -> vector<16x128xf32>
    %c0_3 = arith.constant 0 : index
    %c0_4 = arith.constant 0 : index
    %3 = vector.load %arg4[%c0_3, %c0_4] : memref<1x128xf32, #tpu.memory_space<vmem>>, vector<1x128xf32>
    %4 = vector.broadcast %3 : vector<1x128xf32> to vector<16x128xf32>
    %5 = arith.addf %2, %4 : vector<16x128xf32>
    %c0_5 = arith.constant 0 : index
    %c0_6 = arith.constant 0 : index
    %6 = vector.load %arg5[%c0_5, %c0_6] : memref<16x128xbf16, #tpu.memory_space<vmem>>, vector<16x128xbf16>
    %7 = arith.extf %6 : vector<16x128xbf16> to vector<16x128xf32>
    %8 = arith.addf %5, %7 : vector<16x128xf32>
    %cst_7 = arith.constant 0.000000e+00 : f32
    %9 = vector.broadcast %cst_7 : f32 to vector<16x128xf32>
    %10 = arith.maximumf %8, %9 : vector<16x128xf32>
    %11 = arith.truncf %10 : vector<16x128xf32> to vector<16x128xbf16>
    %c0_8 = arith.constant 0 : index
    %c0_9 = arith.constant 0 : index
    %12 = vector.load %arg6[%c0_8, %c0_9] : memref<16x128xbf16, #tpu.memory_space<vmem>>, vector<16x128xbf16>
    tpu.vector_store %arg6[%c0_8, %c0_9], %11 {strides = array<i32>} : memref<16x128xbf16, #tpu.memory_space<vmem>>, vector<16x128xbf16>,
    return
  }
  func.func @transform_0(%arg0: i32, %arg1: i32) -> (i32, i32) {
    %c0_i32 = arith.constant 0 : i32
    %c0_i32_0 = arith.constant 0 : i32
    return %arg0, %c0_i32 : i32, i32
  }
  func.func @transform_1(%arg0: i32, %arg1: i32) -> (i32, i32) {
    %c0_i32 = arith.constant 0 : i32
    %c0_i32_0 = arith.constant 0 : i32
    return %c0_i32, %arg1 : i32, i32
  }
  func.func @transform_2(%arg0: i32, %arg1: i32) -> (i32, i32) {
    %c0_i32 = arith.constant 0 : i32
    %c0_i32_0 = arith.constant 0 : i32
    return %c0_i32, %arg1 : i32, i32
  }
  func.func @transform_3(%arg0: i32, %arg1: i32) -> (i32, i32) {
    %c0_i32 = arith.constant 0 : i32
    return %arg0, %arg1 : i32, i32
  }
  func.func @transform_4(%arg0: i32, %arg1: i32) -> (i32, i32) {
    %c0_i32 = arith.constant 0 : i32
    return %arg0, %arg1 : i32, i32
  }
}

module attributes {stable_mosaic.version = 11 : i64} {
  func.func @_mm_single_kernel(%arg0: i32, %arg1: i32, %arg2: memref<16x128xbf16, #tpu.memory_space<vmem>>, %arg3: memref<128x32xbf16, #tpu.memory_space<vmem>>, %arg4: memref<1x32xf32, #tpu.memory_space<vmem>>, %arg5: memref<16x32xf32, #tpu.memory_space<vmem>>) attributes {dimension_semantics = [#tpu.dimension_semantics<parallel>, #tpu.dimension_semantics<parallel>], iteration_bounds = array<i64: 1, 1>, scalar_prefetch = 0 : i64, scratch_operands = 0 : i64, tpu.core_type = #tpu.core_type<tc>, window_params = [{transform_indices = @transform_0, window_bounds = array<i64: 16, 128>}, {transform_indices = @transform_1, window_bounds = array<i64: 128, 32>}, {transform_indices = @transform_2, window_bounds = array<i64: 1, 32>}, {transform_indices = @transform_3, window_bounds = array<i64: 16, 32>}]} {
    %c0 = arith.constant 0 : index
    %c0_0 = arith.constant 0 : index
    %0 = vector.load %arg2[%c0, %c0_0] : memref<16x128xbf16, #tpu.memory_space<vmem>>, vector<16x128xbf16>
    %c0_1 = arith.constant 0 : index
    %c0_2 = arith.constant 0 : index
    %1 = vector.load %arg3[%c0_1, %c0_2] : memref<128x32xbf16, #tpu.memory_space<vmem>>, vector<128x32xbf16>
    %cst = arith.constant dense<0.000000e+00> : vector<16x32xf32>
    %2 = tpu.matmul %0, %1, %cst {dimension_numbers = #tpu.dot_dimension_numbers<[1], [0], [0], [1], [0, 0, 1, 1], [], []>} : vector<16x128xbf16>, vector<128x32xbf16>, vector<16x32xf32> -> vector<16x32xf32>
    %c0_3 = arith.constant 0 : index
    %c0_4 = arith.constant 0 : index
    %3 = vector.load %arg4[%c0_3, %c0_4] : memref<1x32xf32, #tpu.memory_space<vmem>>, vector<1x32xf32>
    %4 = vector.broadcast %3 : vector<1x32xf32> to vector<16x32xf32>
    %5 = arith.addf %2, %4 : vector<16x32xf32>
    %c0_5 = arith.constant 0 : index
    %c0_6 = arith.constant 0 : index
    %6 = vector.load %arg5[%c0_5, %c0_6] : memref<16x32xf32, #tpu.memory_space<vmem>>, vector<16x32xf32>
    tpu.vector_store %arg5[%c0_5, %c0_6], %5 {strides = array<i32>} : memref<16x32xf32, #tpu.memory_space<vmem>>, vector<16x32xf32>,
    return
  }
  func.func @transform_0(%arg0: i32, %arg1: i32) -> (i32, i32) {
    %c0_i32 = arith.constant 0 : i32
    %c0_i32_0 = arith.constant 0 : i32
    return %arg0, %c0_i32 : i32, i32
  }
  func.func @transform_1(%arg0: i32, %arg1: i32) -> (i32, i32) {
    %c0_i32 = arith.constant 0 : i32
    %c0_i32_0 = arith.constant 0 : i32
    return %c0_i32, %arg1 : i32, i32
  }
  func.func @transform_2(%arg0: i32, %arg1: i32) -> (i32, i32) {
    %c0_i32 = arith.constant 0 : i32
    %c0_i32_0 = arith.constant 0 : i32
    return %c0_i32, %arg1 : i32, i32
  }
  func.func @transform_3(%arg0: i32, %arg1: i32) -> (i32, i32) {
    %c0_i32 = arith.constant 0 : i32
    return %arg0, %arg1 : i32, i32
  }
}

</mosaic_0001>

<llo_original>
// kernel: _lambda_.13
$region0: #{_lambda_.13}
  #allocation0 [shape = 'u32[]', space=smem, size = 0x4, offset = 0x4, fixed_abs, tag = 'smem constant byte address 0x4 - core index']
  #allocation1 [shape = 'u32[144,128]{1,0:T(1,128)}', space=vmem, size = 0x12000, scoped, tag = 'internal scratch']
  %s0 = inlined_call_operand.vmem [shape: bf16[3072,75], index: 0, kind: input, shape index: {}]
  %s1 = inlined_call_operand.vmem [shape: bf16[75,16], index: 1, kind: input, shape index: {}]
  %s2 = inlined_call_operand.vmem [shape: f32[1,16], index: 2, kind: input, shape index: {}]
  %s3 = inlined_call_operand.vmem [shape: bf16[3072,16], index: 3, kind: output, shape index: {}]
  %s4 = sld [smem:[#allocation0]]
  $region45: #{_lambda_.13} parent=0
    _
  %s6 = ssub.s32 1, %s4
  %s7 = scalar_select 0, %s6, %s4
  loop: start=0, step=1, limit=8
  $region2: #{_lambda_.13} parent=0 // loop_pre_header
    _
  $region3: #{_lambda_.13} parent=0 // loop_header
    %s9 = sphi 0, %s13
    %p10 = scmp.ge.s32.totalorder %s9, 8
    %s16 = sphi 0, %s28
    %s17 = sphi 0, %s24
    %s18 = sphi 0, %s16
    %s19 = sphi 0, %s17
    %s20 = sphi 0, %s18
    %s21 = sphi 0, %s19
    %s31 = sphi 0, %s33
    %s34 = sphi 0, %s31
    %s35 = sphi 0, %s34
    %s51 = sphi 0, %s35
    %s57 = sphi 0, %s59
    %s60 = sphi 0, %s57
    %s61 = sphi 0, %s60
    %s77 = sphi 0, %s61
    %s83 = sphi 0, %s85
    %s86 = sphi 0, %s83
    %s87 = sphi 0, %s86
    %s103 = sphi 0, %s87
    %s111 = sphi 0, %s113
    %s114 = sphi 0, %s111
    %s115 = sphi 0, %s114
    %s131 = sphi 0, %s115
  $region4: #{_lambda_.13} parent=0 // loop_header_branch
    %12 = sbr.rel (%p10) target = $region8
  $region5: #{_lambda_.13} parent=0 // loop_body
    %s14 = ssub.s32 %s9, 1
    %s15 = ssub.s32 %s9, 2
    %s22 = sadd.s32 1, %s17
    %p23 = scmp.ge.s32.totalorder %s22, 1
    %s24 = scalar_select %p23, 0, %s22
    %s25 = sadd.s32 1, %s16
    %s26 = scalar_select %p23, %s25, %s16
    %p27 = scmp.ge.s32.totalorder %s26, 6
    %s28 = scalar_select %p27, 0, %s26
    %s29 = ssub.s32 %s16, %s28
    %p30 = scmp.eq.s32.totalorder %s29, 0
    %s32 = sadd.s32 %s31, 1
    %s33 = scalar_select %p30, %s31, %s32
    %p36 = pneg %p30
    %p37 = scmp.eq.s32.totalorder %s9, 5
    %p38 = por %p36, %p37
    %p39 = scmp.ne.s32.totalorder %s31, %s34
    %p40 = scmp.eq.s32.totalorder %s9, 0
    %p41 = por %p39, %p40
    %p42 = scmp.ne.s32.totalorder %s31, %s34
    %p43 = scmp.eq.s32.totalorder %s14, 5
    %p44 = por %p42, %p43
    %p45 = scmp.ne.s32.totalorder %s34, %s35
    %p46 = scmp.eq.s32.totalorder %s14, 0
    %p47 = por %p45, %p46
    %p48 = scmp.ne.s32.totalorder %s34, %s35
    %p49 = scmp.eq.s32.totalorder %s15, 5
    %p50 = por %p48, %p49
    %p52 = scmp.ne.s32.totalorder %s35, %s51
    %p53 = scmp.eq.s32.totalorder %s15, 0
    %p54 = por %p52, %p53
    %s55 = ssub.s32 %s17, %s24
    %p56 = scmp.eq.s32.totalorder %s55, 0
    %s58 = sadd.s32 %s57, 1
    %s59 = scalar_select %p56, %s57, %s58
    %p62 = pneg %p56
    %p63 = scmp.eq.s32.totalorder %s9, 5
    %p64 = por %p62, %p63
    %p65 = scmp.ne.s32.totalorder %s57, %s60
    %p66 = scmp.eq.s32.totalorder %s9, 0
    %p67 = por %p65, %p66
    %p68 = scmp.ne.s32.totalorder %s57, %s60
    %p69 = scmp.eq.s32.totalorder %s14, 5
    %p70 = por %p68, %p69
    %p71 = scmp.ne.s32.totalorder %s60, %s61
    %p72 = scmp.eq.s32.totalorder %s14, 0
    %p73 = por %p71, %p72
    %p74 = scmp.ne.s32.totalorder %s60, %s61
    %p75 = scmp.eq.s32.totalorder %s15, 5
    %p76 = por %p74, %p75
    %p78 = scmp.ne.s32.totalorder %s61, %s77
    %p79 = scmp.eq.s32.totalorder %s15, 0
    %p80 = por %p78, %p79
    %s81 = ssub.s32 %s17, %s24
    %p82 = scmp.eq.s32.totalorder %s81, 0
    %s84 = sadd.s32 %s83, 1
    %s85 = scalar_select %p82, %s83, %s84
    %p88 = pneg %p82
    %p89 = scmp.eq.s32.totalorder %s9, 5
    %p90 = por %p88, %p89
    %p91 = scmp.ne.s32.totalorder %s83, %s86
    %p92 = scmp.eq.s32.totalorder %s9, 0
    %p93 = por %p91, %p92
    %p94 = scmp.ne.s32.totalorder %s83, %s86
    %p95 = scmp.eq.s32.totalorder %s14, 5
    %p96 = por %p94, %p95
    %p97 = scmp.ne.s32.totalorder %s86, %s87
    %p98 = scmp.eq.s32.totalorder %s14, 0
    %p99 = por %p97, %p98
    %p100 = scmp.ne.s32.totalorder %s86, %s87
    %p101 = scmp.eq.s32.totalorder %s15, 5
    %p102 = por %p100, %p101
    %p104 = scmp.ne.s32.totalorder %s87, %s103
    %p105 = scmp.eq.s32.totalorder %s15, 0
    %p106 = por %p104, %p105
    %s107 = ssub.s32 %s16, %s28
    %s108 = ssub.s32 %s17, %s24
    %s109 = sor.u32 %s107, %s108
    %p110 = scmp.eq.s32.totalorder %s109, 0
    %s112 = sadd.s32 %s111, 1
    %s113 = scalar_select %p110, %s111, %s112
    %p116 = pneg %p110
    %p117 = scmp.eq.s32.totalorder %s9, 5
    %p118 = por %p116, %p117
    %p119 = scmp.ne.s32.totalorder %s111, %s114
    %p120 = scmp.eq.s32.totalorder %s9, 0
    %p121 = por %p119, %p120
    %p122 = scmp.ne.s32.totalorder %s111, %s114
    %p123 = scmp.eq.s32.totalorder %s14, 5
    %p124 = por %p122, %p123
    %p125 = scmp.ne.s32.totalorder %s114, %s115
    %p126 = scmp.eq.s32.totalorder %s14, 0
    %p127 = por %p125, %p126
    %p128 = scmp.ne.s32.totalorder %s114, %s115
    %p129 = scmp.eq.s32.totalorder %s15, 5
    %p130 = por %p128, %p129
    %p132 = scmp.ne.s32.totalorder %s115, %s131
    %p133 = scmp.eq.s32.totalorder %s15, 0
    %p134 = por %p132, %p133
    %p135 = scmp.le.s32.totalorder 1, %s9
    %p136 = scmp.lt.s32.totalorder %s9, 7
    %p137 = pnand %p135, %p136
    %p138 = pneg %p137
    // Predicated region
    $region9: #{_lambda_.13} parent=5 // pred_check
      _
    $region10: #{_lambda_.13} parent=5 // pred_check_branch
      %140 = sbr.rel (%p137) target = $region12
    $region11: #{_lambda_.13} parent=5 // pred_region
      %s141 = ssub.s32 %s9, 1
      // Predicated region
      $region13: #{_lambda_.13} parent=11 // pred_check
        %p142 = pneg %p73
      $region14: #{_lambda_.13} parent=11 // pred_check_branch
        %144 = sbr.rel (%p142) target = $region16
      $region15: #{_lambda_.13} parent=11 // pred_region
        %p145 = scmp.lt.s32.totalorder %s19, 0
        %s146 = scalar_select %p145, %s19, 0
        %s147 = smul.addr %s146, 4
        %s148 = scalar_lea.vmem %s1, %s147
      $region16: #{_lambda_.13} parent=11 // pred_fallthru
        _
      // Predicated region
      $region17: #{_lambda_.13} parent=11 // pred_check
        %p149 = pneg %p99
      $region18: #{_lambda_.13} parent=11 // pred_check_branch
        %151 = sbr.rel (%p149) target = $region20
      $region19: #{_lambda_.13} parent=11 // pred_region
        %p152 = scmp.lt.s32.totalorder %s19, 0
        %s153 = scalar_select %p152, %s19, 0
        %s154 = scalar_lea.vmem %s2, %s153
      $region20: #{_lambda_.13} parent=11 // pred_fallthru
        _
    $region12: #{_lambda_.13} parent=5 // pred_fallthru
      _
    %p155 = scmp.lt.s32.totalorder %s9, 6
    // Predicated region
    $region21: #{_lambda_.13} parent=5 // pred_check
      %p156 = pneg %p155
    $region22: #{_lambda_.13} parent=5 // pred_check_branch
      %158 = sbr.rel (%p156) target = $region24
    $region23: #{_lambda_.13} parent=5 // pred_region
      // Predicated region
      $region25: #{_lambda_.13} parent=23 // pred_check
        %p159 = pneg %p41
      $region26: #{_lambda_.13} parent=23 // pred_check_branch
        %161 = sbr.rel (%p159) target = $region28
      $region27: #{_lambda_.13} parent=23 // pred_region
        %s162 = smul.u32 64, %s16
        %p163 = scmp.lt.s32.totalorder %s162, 383
        %s164 = scalar_select %p163, %s162, 383
        %s165 = smul.addr %s164, 4
        %s166 = scalar_lea.vmem %s0, %s165
        %s167 = smul.u32 64, %s16
      $region28: #{_lambda_.13} parent=23 // pred_fallthru
        _
    $region24: #{_lambda_.13} parent=5 // pred_fallthru
      _
    %p168 = scmp.le.s32.totalorder 1, %s9
    %p169 = scmp.lt.s32.totalorder %s9, 7
    %p170 = pnand %p168, %p169
    %p171 = pneg %p170
    // Predicated region
    $region29: #{_lambda_.13} parent=5 // pred_check
      _
    $region30: #{_lambda_.13} parent=5 // pred_check_branch
      %173 = sbr.rel (%p170) target = $region32
    $region31: #{_lambda_.13} parent=5 // pred_region
      %s174 = ssub.s32 %s9, 1
      %s175 = smul.u32 64, %s18
      %p176 = scmp.lt.s32.totalorder %s175, 383
      %s177 = scalar_select %p176, %s175, 383
      %s178 = smul.addr %s177, 4
      %s179 = scalar_lea.vmem %s0, %s178
      %p180 = pneg %p47
      %p181 = pneg %p44
      %p182 = scmp.lt.s32.totalorder %s19, 0
      %s183 = scalar_select %p182, %s19, 0
      %s184 = smul.addr %s183, 4
      %s185 = scalar_lea.vmem %s1, %s184
      %p186 = pneg %p73
      %p187 = pneg %p70
      %p188 = scmp.lt.s32.totalorder %s19, 0
      %s189 = scalar_select %p188, %s19, 0
      %s190 = scalar_lea.vmem %s2, %s189
      %p191 = pneg %p99
      %p192 = pneg %p96
      %p193 = pneg %p127
      %p194 = pneg %p124
      %s195 = smul.u32 64, %s18
      %p196 = scmp.lt.s32.totalorder %s195, 383
      %s197 = scalar_select %p196, %s195, 383
      %p198 = scmp.lt.s32.totalorder %s19, 0
      %s199 = scalar_select %p198, %s19, 0
      %s200 = sadd.s32 %s199, %s197
      %s201 = smul.addr %s200, 4
      %s202 = scalar_lea.vmem %s3, %s201
      %s203 = smul.u32 64, %s18
      %p204 = scmp.lt.s32.totalorder %s203, 383
      %s205 = scalar_select %p204, %s203, 383
      %s206 = smul.addr %s205, 4
      %s207 = scalar_lea.vmem %s0, %s206
      %s208 = smul.u32 64, %s18
      %p209 = scmp.lt.s32.totalorder %s19, 0
      %s210 = scalar_select %p209, %s19, 0
      %s211 = smul.addr %s210, 4
      %s212 = scalar_lea.vmem %s1, %s211
      %p213 = scmp.lt.s32.totalorder %s19, 0
      %s214 = scalar_select %p213, %s19, 0
      %s215 = scalar_lea.vmem %s2, %s214
      %s216 = smul.u32 64, %s18
      %p217 = scmp.lt.s32.totalorder %s216, 383
      %s218 = scalar_select %p217, %s216, 383
      %p219 = scmp.lt.s32.totalorder %s19, 0
      %s220 = scalar_select %p219, %s19, 0
      %s221 = sadd.s32 %s220, %s218
      %s222 = smul.addr %s221, 4
      %s223 = scalar_lea.vmem %s3, %s222
      %s224 = smul.u32 64, %s18
      %v226 = vld [vmem:[%s207] sm:$0xf]
      %v227 = vld [vmem:[%s207 + $0x4] sm:$0xf]
      %v228 = vld [vmem:[%s207 + $0x8] sm:$0xf]
      %v229 = vld [vmem:[%s207 + $0xc] sm:$0xf]
      %v230 = vld [vmem:[%s207 + $0x10] sm:$0xf]
      %v231 = vld [vmem:[%s207 + $0x14] sm:$0xf]
      %v232 = vld [vmem:[%s207 + $0x18] sm:$0xf]
      %v233 = vld [vmem:[%s207 + $0x1c] sm:$0xf]
      %v234 = vld [vmem:[%s207 + $0x20] sm:$0xf]
      %v235 = vld [vmem:[%s207 + $0x24] sm:$0xf]
      %v236 = vld [vmem:[%s207 + $0x28] sm:$0xf]
      %v237 = vld [vmem:[%s207 + $0x2c] sm:$0xf]
      %v238 = vld [vmem:[%s207 + $0x30] sm:$0xf]
      %v239 = vld [vmem:[%s207 + $0x34] sm:$0xf]
      %v240 = vld [vmem:[%s207 + $0x38] sm:$0xf]
      %v241 = vld [vmem:[%s207 + $0x3c] sm:$0xf]
      %v242 = vld [vmem:[%s207 + $0x40] sm:$0xf]
      %v243 = vld [vmem:[%s207 + $0x44] sm:$0xf]
      %v244 = vld [vmem:[%s207 + $0x48] sm:$0xf]
      %v245 = vld [vmem:[%s207 + $0x4c] sm:$0xf]
      %v246 = vld [vmem:[%s207 + $0x50] sm:$0xf]
      %v247 = vld [vmem:[%s207 + $0x54] sm:$0xf]
      %v248 = vld [vmem:[%s207 + $0x58] sm:$0xf]
      %v249 = vld [vmem:[%s207 + $0x5c] sm:$0xf]
      %v250 = vld [vmem:[%s207 + $0x60] sm:$0xf]
      %v251 = vld [vmem:[%s207 + $0x64] sm:$0xf]
      %v252 = vld [vmem:[%s207 + $0x68] sm:$0xf]
      %v253 = vld [vmem:[%s207 + $0x6c] sm:$0xf]
      %v254 = vld [vmem:[%s207 + $0x70] sm:$0xf]
      %v255 = vld [vmem:[%s207 + $0x74] sm:$0xf]
      %v256 = vld [vmem:[%s207 + $0x78] sm:$0xf]
      %v257 = vld [vmem:[%s207 + $0x7c] sm:$0xf]
      %v258 = vld [vmem:[%s207 + $0x80] sm:$0xf]
      %v259 = vld [vmem:[%s207 + $0x84] sm:$0xf]
      %v260 = vld [vmem:[%s207 + $0x88] sm:$0xf]
      %v261 = vld [vmem:[%s207 + $0x8c] sm:$0xf]
      %v262 = vld [vmem:[%s207 + $0x90] sm:$0xf]
      %v263 = vld [vmem:[%s207 + $0x94] sm:$0xf]
      %v264 = vld [vmem:[%s207 + $0x98] sm:$0xf]
      %v265 = vld [vmem:[%s207 + $0x9c] sm:$0xf]
      %v266 = vld [vmem:[%s207 + $0xa0] sm:$0xf]
      %v267 = vld [vmem:[%s207 + $0xa4] sm:$0xf]
      %v268 = vld [vmem:[%s207 + $0xa8] sm:$0xf]
      %v269 = vld [vmem:[%s207 + $0xac] sm:$0xf]
      %v270 = vld [vmem:[%s207 + $0xb0] sm:$0xf]
      %v271 = vld [vmem:[%s207 + $0xb4] sm:$0xf]
      %v272 = vld [vmem:[%s207 + $0xb8] sm:$0xf]
      %v273 = vld [vmem:[%s207 + $0xbc] sm:$0xf]
      %v274 = vld [vmem:[%s207 + $0xc0] sm:$0xf]
      %v275 = vld [vmem:[%s207 + $0xc4] sm:$0xf]
      %v276 = vld [vmem:[%s207 + $0xc8] sm:$0xf]
      %v277 = vld [vmem:[%s207 + $0xcc] sm:$0xf]
      %v278 = vld [vmem:[%s207 + $0xd0] sm:$0xf]
      %v279 = vld [vmem:[%s207 + $0xd4] sm:$0xf]
      %v280 = vld [vmem:[%s207 + $0xd8] sm:$0xf]
      %v281 = vld [vmem:[%s207 + $0xdc] sm:$0xf]
      %v282 = vld [vmem:[%s207 + $0xe0] sm:$0xf]
      %v283 = vld [vmem:[%s207 + $0xe4] sm:$0xf]
      %v284 = vld [vmem:[%s207 + $0xe8] sm:$0xf]
      %v285 = vld [vmem:[%s207 + $0xec] sm:$0xf]
      %v286 = vld [vmem:[%s207 + $0xf0] sm:$0xf]
      %v287 = vld [vmem:[%s207 + $0xf4] sm:$0xf]
      %v288 = vld [vmem:[%s207 + $0xf8] sm:$0xf]
      %v289 = vld [vmem:[%s207 + $0xfc] sm:$0xf]
      %v290 = vld [vmem:[%s212] sm:$0xf]
      %v291 = vld [vmem:[%s212 + $0x4] sm:$0xf]
      %v292 = vld [vmem:[%s212 + $0x8] sm:$0xf]
      %v293 = vld [vmem:[%s212 + $0xc] sm:$0xf]
      %v294 = vld [vmem:[%s212 + $0x10] sm:$0xf]
      %v295 = vld [vmem:[%s212 + $0x14] sm:$0xf]
      %v296 = vld [vmem:[%s212 + $0x18] sm:$0xf]
      %v297 = vld [vmem:[%s212 + $0x1c] sm:$0xf]
      %v298 = vld [vmem:[%s212 + $0x20] sm:$0xf]
      %v299 = vld [vmem:[%s212 + $0x24] sm:$0x3]
      %v300 = vld [vmem:[%s215] sm:$0x1]
      %v302 = vlaneseq
      %v303 = vshrl.u32 %v302, 7
      %v304 = vsub.s32 0, %v303
      %v305 = vrot.slane %v300, %v304
      %v371 = vunpack.c.l.b16 %v226
      %v372 = vunpack.c.l.b16 %v227
      %v373 = vunpack.c.l.b16 %v228
      %v374 = vunpack.c.l.b16 %v229
      %v375 = vunpack.c.l.b16 %v230
      %v376 = vunpack.c.l.b16 %v231
      %v377 = vunpack.c.l.b16 %v232
      %v378 = vunpack.c.l.b16 %v233
      %v379 = vunpack.c.l.b16 %v234
      %v380 = vunpack.c.l.b16 %v235
      %v381 = vunpack.c.l.b16 %v236
      %v382 = vunpack.c.l.b16 %v237
      %v383 = vunpack.c.l.b16 %v238
      %v384 = vunpack.c.l.b16 %v239
      %v385 = vunpack.c.l.b16 %v240
      %v386 = vunpack.c.l.b16 %v241
      %v387 = vunpack.c.l.b16 %v242
      %v388 = vunpack.c.l.b16 %v243
      %v389 = vunpack.c.l.b16 %v244
      %v390 = vunpack.c.l.b16 %v245
      %v391 = vunpack.c.l.b16 %v246
      %v392 = vunpack.c.l.b16 %v247
      %v393 = vunpack.c.l.b16 %v248
      %v394 = vunpack.c.l.b16 %v249
      %v395 = vunpack.c.l.b16 %v250
      %v396 = vunpack.c.l.b16 %v251
      %v397 = vunpack.c.l.b16 %v252
      %v398 = vunpack.c.l.b16 %v253
      %v399 = vunpack.c.l.b16 %v254
      %v400 = vunpack.c.l.b16 %v255
      %v401 = vunpack.c.l.b16 %v256
      %v402 = vunpack.c.l.b16 %v257
      %v403 = vunpack.c.l.b16 %v258
      %v404 = vunpack.c.l.b16 %v259
      %v405 = vunpack.c.l.b16 %v260
      %v406 = vunpack.c.l.b16 %v261
      %v407 = vunpack.c.l.b16 %v262
      %v408 = vunpack.c.l.b16 %v263
      %v409 = vunpack.c.l.b16 %v264
      %v410 = vunpack.c.l.b16 %v265
      %v411 = vunpack.c.l.b16 %v266
      %v412 = vunpack.c.l.b16 %v267
      %v413 = vunpack.c.l.b16 %v268
      %v414 = vunpack.c.l.b16 %v269
      %v415 = vunpack.c.l.b16 %v270
      %v416 = vunpack.c.l.b16 %v271
      %v417 = vunpack.c.l.b16 %v272
      %v418 = vunpack.c.l.b16 %v273
      %v419 = vunpack.c.l.b16 %v274
      %v420 = vunpack.c.l.b16 %v275
      %v421 = vunpack.c.l.b16 %v276
      %v422 = vunpack.c.l.b16 %v277
      %v423 = vunpack.c.l.b16 %v278
      %v424 = vunpack.c.l.b16 %v279
      %v425 = vunpack.c.l.b16 %v280
      %v426 = vunpack.c.l.b16 %v281
      %v427 = vunpack.c.l.b16 %v282
      %v428 = vunpack.c.l.b16 %v283
      %v429 = vunpack.c.l.b16 %v284
      %v430 = vunpack.c.l.b16 %v285
      %v431 = vunpack.c.l.b16 %v286
      %v432 = vunpack.c.l.b16 %v287
      %v433 = vunpack.c.l.b16 %v288
      %v434 = vunpack.c.l.b16 %v289
      %v435 = vpack.c.b16 %v372, %v371
      %v436 = vpack.c.b16 %v374, %v373
      %v437 = vpack.c.b16 %v376, %v375
      %v438 = vpack.c.b16 %v378, %v377
      %v439 = vpack.c.b16 %v380, %v379
      %v440 = vpack.c.b16 %v382, %v381
      %v441 = vpack.c.b16 %v384, %v383
      %v442 = vpack.c.b16 %v386, %v385
      %v443 = vpack.c.b16 %v388, %v387
      %v444 = vpack.c.b16 %v390, %v389
      %v445 = vpack.c.b16 %v392, %v391
      %v446 = vpack.c.b16 %v394, %v393
      %v447 = vpack.c.b16 %v396, %v395
      %v448 = vpack.c.b16 %v398, %v397
      %v449 = vpack.c.b16 %v400, %v399
      %v450 = vpack.c.b16 %v402, %v401
      %v451 = vpack.c.b16 %v404, %v403
      %v452 = vpack.c.b16 %v406, %v405
      %v453 = vpack.c.b16 %v408, %v407
      %v454 = vpack.c.b16 %v410, %v409
      %v455 = vpack.c.b16 %v412, %v411
      %v456 = vpack.c.b16 %v414, %v413
      %v457 = vpack.c.b16 %v416, %v415
      %v458 = vpack.c.b16 %v418, %v417
      %v459 = vpack.c.b16 %v420, %v419
      %v460 = vpack.c.b16 %v422, %v421
      %v461 = vpack.c.b16 %v424, %v423
      %v462 = vpack.c.b16 %v426, %v425
      %v463 = vpack.c.b16 %v428, %v427
      %v464 = vpack.c.b16 %v430, %v429
      %v465 = vpack.c.b16 %v432, %v431
      %v466 = vpack.c.b16 %v434, %v433
      %v477 = vunpack.c.l.b16 %v290
      %v478 = vunpack.c.l.b16 %v291
      %v479 = vunpack.c.l.b16 %v292
      %v480 = vunpack.c.l.b16 %v293
      %v481 = vunpack.c.l.b16 %v294
      %v482 = vunpack.c.l.b16 %v295
      %v483 = vunpack.c.l.b16 %v296
      %v484 = vunpack.c.l.b16 %v297
      %v485 = vunpack.c.l.b16 %v298
      %v486 = vunpack.c.l.b16 %v299
      %v487 = vpack.c.b16 %v478, %v477
      %v488 = vpack.c.b16 %v480, %v479
      %v489 = vpack.c.b16 %v482, %v481
      %v490 = vpack.c.b16 %v484, %v483
      %v491 = vpack.c.b16 %v486, %v485
      %vm496 = vcmask 613376
      %v498 = vsel %vm496, %v435, 0
      %v501 = vsel %vm496, %v436, 0
      %v504 = vsel %vm496, %v437, 0
      %v507 = vsel %vm496, %v438, 0
      %v510 = vsel %vm496, %v439, 0
      %v513 = vsel %vm496, %v440, 0
      %v516 = vsel %vm496, %v441, 0
      %v519 = vsel %vm496, %v442, 0
      %v522 = vsel %vm496, %v443, 0
      %v525 = vsel %vm496, %v444, 0
      %v528 = vsel %vm496, %v445, 0
      %v531 = vsel %vm496, %v446, 0
      %v534 = vsel %vm496, %v447, 0
      %v537 = vsel %vm496, %v448, 0
      %v540 = vsel %vm496, %v449, 0
      %v543 = vsel %vm496, %v450, 0
      %v546 = vsel %vm496, %v451, 0
      %v549 = vsel %vm496, %v452, 0
      %v552 = vsel %vm496, %v453, 0
      %v555 = vsel %vm496, %v454, 0
      %v558 = vsel %vm496, %v455, 0
      %v561 = vsel %vm496, %v456, 0
      %v564 = vsel %vm496, %v457, 0
      %v567 = vsel %vm496, %v458, 0
      %v570 = vsel %vm496, %v459, 0
      %v573 = vsel %vm496, %v460, 0
      %v576 = vsel %vm496, %v461, 0
      %v579 = vsel %vm496, %v462, 0
      %v582 = vsel %vm496, %v463, 0
      %v585 = vsel %vm496, %v464, 0
      %v588 = vsel %vm496, %v465, 0
      %v591 = vsel %vm496, %v466, 0
      %vm593 = vcmask 1044480
      %vm594 = vcmask 1045504
      %v595 = vsel %vm593, 4294967295, 65535
      %v596 = vsel %vm594, %v595, 0
      %v598 = vand.u32 %v491, %v596
      %600 = vmatprep.subr.bf16.mxu0 0
      %601 = vmatpush1.bf16.msra.mxu0 %v487
      %602 = vmatprep.subr.bf16.mxu0 0
      %603 = vmatpush1.bf16.msra.mxu0 %v488
      %604 = vmatprep.subr.bf16.mxu0 0
      %605 = vmatpush1.bf16.msra.mxu0 %v489
      %606 = vmatprep.subr.bf16.mxu0 0
      %607 = vmatpush1.bf16.msra.mxu0 %v490
      %608 = vmatprep.subr.bf16.mxu0 0
      %609 = vmatpush1.bf16.msra.mxu0 %v598
      %610 = vmatprep.subr.bf16.mxu0 0
      %611 = vmatpush1.bf16.msra.mxu0 0
      %612 = vmatprep.subr.bf16.mxu0 0
      %613 = vmatpush1.bf16.msra.mxu0 0
      %614 = vmatprep.subr.bf16.mxu0 0
      %615 = vmatpush1.bf16.msra.mxu0 0
      %616 = vmatprep.subr.bf16.mxu0 0
      %617 = vmatpush1.bf16.msra.mxu0 0
      %618 = vmatprep.subr.bf16.mxu0 0
      %619 = vmatpush1.bf16.msra.mxu0 0
      %620 = vmatprep.subr.bf16.mxu0 0
      %621 = vmatpush1.bf16.msra.mxu0 0
      %622 = vmatprep.subr.bf16.mxu0 0
      %623 = vmatpush1.bf16.msra.mxu0 0
      %624 = vmatprep.subr.bf16.mxu0 0
      %625 = vmatpush1.bf16.msra.mxu0 0
      %626 = vmatprep.subr.bf16.mxu0 0
      %627 = vmatpush1.bf16.msra.mxu0 0
      %628 = vmatprep.subr.bf16.mxu0 0
      %629 = vmatpush1.bf16.msra.mxu0 0
      %630 = vmatprep.subr.bf16.mxu0 0
      %631 = vmatpush1.bf16.msra.mxu0 0
      %632 = vmatprep.mubr.bf16.mxu0 0
      %633 = vmatmul.mubr.bf16.gmra.mrb[0].mxu0 %v498
      %v634 = vpop.f32.mrb[0].mxu0
      %v635 = vadd.f32 %v305, %v634
      %v636 = vpop.f32.mrb[0].mxu0
      %v637 = vpop.f32.mrb[0].mxu0
      %v638 = vadd.f32 %v305, %v637
      %v639 = vpop.f32.mrb[0].mxu0
      %640 = vmatprep.mubr.bf16.mxu0 0
      %641 = vmatmul.mubr.bf16.gmra.mrb[0].mxu0 %v501
      %v642 = vpop.f32.mrb[0].mxu0
      %v643 = vadd.f32 %v305, %v642
      %v644 = vpop.f32.mrb[0].mxu0
      %v645 = vpop.f32.mrb[0].mxu0
      %v646 = vadd.f32 %v305, %v645
      %v647 = vpop.f32.mrb[0].mxu0
      %648 = vmatprep.mubr.bf16.mxu0 0
      %649 = vmatmul.mubr.bf16.gmra.mrb[0].mxu0 %v504
      %v650 = vpop.f32.mrb[0].mxu0
      %v651 = vadd.f32 %v305, %v650
      %v652 = vpop.f32.mrb[0].mxu0
      %v653 = vpop.f32.mrb[0].mxu0
      %v654 = vadd.f32 %v305, %v653
      %v655 = vpop.f32.mrb[0].mxu0
      %656 = vmatprep.mubr.bf16.mxu0 0
      %657 = vmatmul.mubr.bf16.gmra.mrb[0].mxu0 %v507
      %v658 = vpop.f32.mrb[0].mxu0
      %v659 = vadd.f32 %v305, %v658
      %v660 = vpop.f32.mrb[0].mxu0
      %v661 = vpop.f32.mrb[0].mxu0
      %v662 = vadd.f32 %v305, %v661
      %v663 = vpop.f32.mrb[0].mxu0
      %664 = vmatprep.mubr.bf16.mxu0 0
      %665 = vmatmul.mubr.bf16.gmra.mrb[0].mxu0 %v510
      %v666 = vpop.f32.mrb[0].mxu0
      %v667 = vadd.f32 %v305, %v666
      %v668 = vpop.f32.mrb[0].mxu0
      %v669 = vpop.f32.mrb[0].mxu0
      %v670 = vadd.f32 %v305, %v669
      %v671 = vpop.f32.mrb[0].mxu0
      %672 = vmatprep.mubr.bf16.mxu0 0
      %673 = vmatmul.mubr.bf16.gmra.mrb[0].mxu0 %v513
      %v674 = vpop.f32.mrb[0].mxu0
      %v675 = vadd.f32 %v305, %v674
      %v676 = vpop.f32.mrb[0].mxu0
      %v677 = vpop.f32.mrb[0].mxu0
      %v678 = vadd.f32 %v305, %v677
      %v679 = vpop.f32.mrb[0].mxu0
      %680 = vmatprep.mubr.bf16.mxu0 0
      %681 = vmatmul.mubr.bf16.gmra.mrb[0].mxu0 %v516
      %v682 = vpop.f32.mrb[0].mxu0
      %v683 = vadd.f32 %v305, %v682
      %v684 = vpop.f32.mrb[0].mxu0
      %v685 = vpop.f32.mrb[0].mxu0
      %v686 = vadd.f32 %v305, %v685
      %v687 = vpop.f32.mrb[0].mxu0
      %688 = vmatprep.mubr.bf16.mxu0 0
      %689 = vmatmul.mubr.bf16.gmra.mrb[0].mxu0 %v519
      %v690 = vpop.f32.mrb[0].mxu0
      %v691 = vadd.f32 %v305, %v690
      %v692 = vpop.f32.mrb[0].mxu0
      %v693 = vpop.f32.mrb[0].mxu0
      %v694 = vadd.f32 %v305, %v693
      %v695 = vpop.f32.mrb[0].mxu0
      %696 = vmatprep.mubr.bf16.mxu0 0
      %697 = vmatmul.mubr.bf16.gmra.mrb[0].mxu0 %v522
      %v698 = vpop.f32.mrb[0].mxu0
      %v699 = vadd.f32 %v305, %v698
      %v700 = vpop.f32.mrb[0].mxu0
      %v701 = vpop.f32.mrb[0].mxu0
      %v702 = vadd.f32 %v305, %v701
      %v703 = vpop.f32.mrb[0].mxu0
      %704 = vmatprep.mubr.bf16.mxu0 0
      %705 = vmatmul.mubr.bf16.gmra.mrb[0].mxu0 %v525
      %v706 = vpop.f32.mrb[0].mxu0
      %v707 = vadd.f32 %v305, %v706
      %v708 = vpop.f32.mrb[0].mxu0
      %v709 = vpop.f32.mrb[0].mxu0
      %v710 = vadd.f32 %v305, %v709
      %v711 = vpop.f32.mrb[0].mxu0
      %712 = vmatprep.mubr.bf16.mxu0 0
      %713 = vmatmul.mubr.bf16.gmra.mrb[0].mxu0 %v528
      %v714 = vpop.f32.mrb[0].mxu0
      %v715 = vadd.f32 %v305, %v714
      %v716 = vpop.f32.mrb[0].mxu0
      %v717 = vpop.f32.mrb[0].mxu0
      %v718 = vadd.f32 %v305, %v717
      %v719 = vpop.f32.mrb[0].mxu0
      %720 = vmatprep.mubr.bf16.mxu0 0
      %721 = vmatmul.mubr.bf16.gmra.mrb[0].mxu0 %v531
      %v722 = vpop.f32.mrb[0].mxu0
      %v723 = vadd.f32 %v305, %v722
      %v724 = vpop.f32.mrb[0].mxu0
      %v725 = vpop.f32.mrb[0].mxu0
      %v726 = vadd.f32 %v305, %v725
      %v727 = vpop.f32.mrb[0].mxu0
      %728 = vmatprep.mubr.bf16.mxu0 0
      %729 = vmatmul.mubr.bf16.gmra.mrb[0].mxu0 %v534
      %v730 = vpop.f32.mrb[0].mxu0
      %v731 = vadd.f32 %v305, %v730
      %v732 = vpop.f32.mrb[0].mxu0
      %v733 = vpop.f32.mrb[0].mxu0
      %v734 = vadd.f32 %v305, %v733
      %v735 = vpop.f32.mrb[0].mxu0
      %736 = vmatprep.mubr.bf16.mxu0 0
      %737 = vmatmul.mubr.bf16.gmra.mrb[0].mxu0 %v537
      %v738 = vpop.f32.mrb[0].mxu0
      %v739 = vadd.f32 %v305, %v738
      %v740 = vpop.f32.mrb[0].mxu0
      %v741 = vpop.f32.mrb[0].mxu0
      %v742 = vadd.f32 %v305, %v741
      %v743 = vpop.f32.mrb[0].mxu0
      %744 = vmatprep.mubr.bf16.mxu0 0
      %745 = vmatmul.mubr.bf16.gmra.mrb[0].mxu0 %v540
      %v746 = vpop.f32.mrb[0].mxu0
      %v747 = vadd.f32 %v305, %v746
      %v748 = vpop.f32.mrb[0].mxu0
      %v749 = vpop.f32.mrb[0].mxu0
      %v750 = vadd.f32 %v305, %v749
      %v751 = vpop.f32.mrb[0].mxu0
      %752 = vmatprep.mubr.bf16.mxu0 0
      %753 = vmatmul.mubr.bf16.gmra.mrb[0].mxu0 %v543
      %v754 = vpop.f32.mrb[0].mxu0
      %v755 = vadd.f32 %v305, %v754
      %v756 = vpop.f32.mrb[0].mxu0
      %v757 = vpop.f32.mrb[0].mxu0
      %v758 = vadd.f32 %v305, %v757
      %v759 = vpop.f32.mrb[0].mxu0
      %760 = vmatprep.mubr.bf16.mxu0 0
      %761 = vmatmul.mubr.bf16.gmra.mrb[0].mxu0 %v546
      %v762 = vpop.f32.mrb[0].mxu0
      %v763 = vadd.f32 %v305, %v762
      %v764 = vpop.f32.mrb[0].mxu0
      %v765 = vpop.f32.mrb[0].mxu0
      %v766 = vadd.f32 %v305, %v765
      %v767 = vpop.f32.mrb[0].mxu0
      %768 = vmatprep.mubr.bf16.mxu0 0
      %769 = vmatmul.mubr.bf16.gmra.mrb[0].mxu0 %v549
      %v770 = vpop.f32.mrb[0].mxu0
      %v771 = vadd.f32 %v305, %v770
      %v772 = vpop.f32.mrb[0].mxu0
      %v773 = vpop.f32.mrb[0].mxu0
      %v774 = vadd.f32 %v305, %v773
      %v775 = vpop.f32.mrb[0].mxu0
      %776 = vmatprep.mubr.bf16.mxu0 0
      %777 = vmatmul.mubr.bf16.gmra.mrb[0].mxu0 %v552
      %v778 = vpop.f32.mrb[0].mxu0
      %v779 = vadd.f32 %v305, %v778
      %v780 = vpop.f32.mrb[0].mxu0
      %v781 = vpop.f32.mrb[0].mxu0
      %v782 = vadd.f32 %v305, %v781
      %v783 = vpop.f32.mrb[0].mxu0
      %784 = vmatprep.mubr.bf16.mxu0 0
      %785 = vmatmul.mubr.bf16.gmra.mrb[0].mxu0 %v555
      %v786 = vpop.f32.mrb[0].mxu0
      %v787 = vadd.f32 %v305, %v786
      %v788 = vpop.f32.mrb[0].mxu0
      %v789 = vpop.f32.mrb[0].mxu0
      %v790 = vadd.f32 %v305, %v789
      %v791 = vpop.f32.mrb[0].mxu0
      %792 = vmatprep.mubr.bf16.mxu0 0
      %793 = vmatmul.mubr.bf16.gmra.mrb[0].mxu0 %v558
      %v794 = vpop.f32.mrb[0].mxu0
      %v795 = vadd.f32 %v305, %v794
      %v796 = vpop.f32.mrb[0].mxu0
      %v797 = vpop.f32.mrb[0].mxu0
      %v798 = vadd.f32 %v305, %v797
      %v799 = vpop.f32.mrb[0].mxu0
      %800 = vmatprep.mubr.bf16.mxu0 0
      %801 = vmatmul.mubr.bf16.gmra.mrb[0].mxu0 %v561
      %v802 = vpop.f32.mrb[0].mxu0
      %v803 = vadd.f32 %v305, %v802
      %v804 = vpop.f32.mrb[0].mxu0
      %v805 = vpop.f32.mrb[0].mxu0
      %v806 = vadd.f32 %v305, %v805
      %v807 = vpop.f32.mrb[0].mxu0
      %808 = vmatprep.mubr.bf16.mxu0 0
      %809 = vmatmul.mubr.bf16.gmra.mrb[0].mxu0 %v564
      %v810 = vpop.f32.mrb[0].mxu0
      %v811 = vadd.f32 %v305, %v810
      %v812 = vpop.f32.mrb[0].mxu0
      %v813 = vpop.f32.mrb[0].mxu0
      %v814 = vadd.f32 %v305, %v813
      %v815 = vpop.f32.mrb[0].mxu0
      %816 = vmatprep.mubr.bf16.mxu0 0
      %817 = vmatmul.mubr.bf16.gmra.mrb[0].mxu0 %v567
      %v818 = vpop.f32.mrb[0].mxu0
      %v819 = vadd.f32 %v305, %v818
      %v820 = vpop.f32.mrb[0].mxu0
      %v821 = vpop.f32.mrb[0].mxu0
      %v822 = vadd.f32 %v305, %v821
      %v823 = vpop.f32.mrb[0].mxu0
      %824 = vmatprep.mubr.bf16.mxu0 0
      %825 = vmatmul.mubr.bf16.gmra.mrb[0].mxu0 %v570
      %v826 = vpop.f32.mrb[0].mxu0
      %v827 = vadd.f32 %v305, %v826
      %v828 = vpop.f32.mrb[0].mxu0
      %v829 = vpop.f32.mrb[0].mxu0
      %v830 = vadd.f32 %v305, %v829
      %v831 = vpop.f32.mrb[0].mxu0
      %832 = vmatprep.mubr.bf16.mxu0 0
      %833 = vmatmul.mubr.bf16.gmra.mrb[0].mxu0 %v573
      %v834 = vpop.f32.mrb[0].mxu0
      %v835 = vadd.f32 %v305, %v834
      %v836 = vpop.f32.mrb[0].mxu0
      %v837 = vpop.f32.mrb[0].mxu0
      %v838 = vadd.f32 %v305, %v837
      %v839 = vpop.f32.mrb[0].mxu0
      %840 = vmatprep.mubr.bf16.mxu0 0
      %841 = vmatmul.mubr.bf16.gmra.mrb[0].mxu0 %v576
      %v842 = vpop.f32.mrb[0].mxu0
      %v843 = vadd.f32 %v305, %v842
      %v844 = vpop.f32.mrb[0].mxu0
      %v845 = vpop.f32.mrb[0].mxu0
      %v846 = vadd.f32 %v305, %v845
      %v847 = vpop.f32.mrb[0].mxu0
      %848 = vmatprep.mubr.bf16.mxu0 0
      %849 = vmatmul.mubr.bf16.gmra.mrb[0].mxu0 %v579
      %v850 = vpop.f32.mrb[0].mxu0
      %v851 = vadd.f32 %v305, %v850
      %v852 = vpop.f32.mrb[0].mxu0
      %v853 = vpop.f32.mrb[0].mxu0
      %v854 = vadd.f32 %v305, %v853
      %v855 = vpop.f32.mrb[0].mxu0
      %856 = vmatprep.mubr.bf16.mxu0 0
      %857 = vmatmul.mubr.bf16.gmra.mrb[0].mxu0 %v582
      %v858 = vpop.f32.mrb[0].mxu0
      %v859 = vadd.f32 %v305, %v858
      %v860 = vpop.f32.mrb[0].mxu0
      %v861 = vpop.f32.mrb[0].mxu0
      %v862 = vadd.f32 %v305, %v861
      %v863 = vpop.f32.mrb[0].mxu0
      %864 = vmatprep.mubr.bf16.mxu0 0
      %865 = vmatmul.mubr.bf16.gmra.mrb[0].mxu0 %v585
      %v866 = vpop.f32.mrb[0].mxu0
      %v867 = vadd.f32 %v305, %v866
      %v868 = vpop.f32.mrb[0].mxu0
      %v869 = vpop.f32.mrb[0].mxu0
      %v870 = vadd.f32 %v305, %v869
      %v871 = vpop.f32.mrb[0].mxu0
      %872 = vmatprep.mubr.bf16.mxu0 0
      %873 = vmatmul.mubr.bf16.gmra.mrb[0].mxu0 %v588
      %v874 = vpop.f32.mrb[0].mxu0
      %v875 = vadd.f32 %v305, %v874
      %v876 = vpop.f32.mrb[0].mxu0
      %v877 = vpop.f32.mrb[0].mxu0
      %v878 = vadd.f32 %v305, %v877
      %v879 = vpop.f32.mrb[0].mxu0
      %880 = vmatprep.mubr.bf16.mxu0 0
      %881 = vmatmul.mubr.bf16.gmra.mrb[0].mxu0 %v591
      %v882 = vpop.f32.mrb[0].mxu0
      %v883 = vadd.f32 %v305, %v882
      %v884 = vpop.f32.mrb[0].mxu0
      %v885 = vpop.f32.mrb[0].mxu0
      %v886 = vadd.f32 %v305, %v885
      %v887 = vpop.f32.mrb[0].mxu0
      %888 = vdwg.mxu0
      %v889 = vmax.f32 %v635, 0.0
      %v890 = vmax.f32 %v638, 0.0
      %v891 = vmax.f32 %v643, 0.0
      %v892 = vmax.f32 %v646, 0.0
      %v893 = vmax.f32 %v651, 0.0
      %v894 = vmax.f32 %v654, 0.0
      %v895 = vmax.f32 %v659, 0.0
      %v896 = vmax.f32 %v662, 0.0
      %v897 = vmax.f32 %v667, 0.0
      %v898 = vmax.f32 %v670, 0.0
      %v899 = vmax.f32 %v675, 0.0
      %v900 = vmax.f32 %v678, 0.0
      %v901 = vmax.f32 %v683, 0.0
      %v902 = vmax.f32 %v686, 0.0
      %v903 = vmax.f32 %v691, 0.0
      %v904 = vmax.f32 %v694, 0.0
      %v905 = vmax.f32 %v699, 0.0
      %v906 = vmax.f32 %v702, 0.0
      %v907 = vmax.f32 %v707, 0.0
      %v908 = vmax.f32 %v710, 0.0
      %v909 = vmax.f32 %v715, 0.0
      %v910 = vmax.f32 %v718, 0.0
      %v911 = vmax.f32 %v723, 0.0
      %v912 = vmax.f32 %v726, 0.0
      %v913 = vmax.f32 %v731, 0.0
      %v914 = vmax.f32 %v734, 0.0
      %v915 = vmax.f32 %v739, 0.0
      %v916 = vmax.f32 %v742, 0.0
      %v917 = vmax.f32 %v747, 0.0
      %v918 = vmax.f32 %v750, 0.0
      %v919 = vmax.f32 %v755, 0.0
      %v920 = vmax.f32 %v758, 0.0
      %v921 = vmax.f32 %v763, 0.0
      %v922 = vmax.f32 %v766, 0.0
      %v923 = vmax.f32 %v771, 0.0
      %v924 = vmax.f32 %v774, 0.0
      %v925 = vmax.f32 %v779, 0.0
      %v926 = vmax.f32 %v782, 0.0
      %v927 = vmax.f32 %v787, 0.0
      %v928 = vmax.f32 %v790, 0.0
      %v929 = vmax.f32 %v795, 0.0
      %v930 = vmax.f32 %v798, 0.0
      %v931 = vmax.f32 %v803, 0.0
      %v932 = vmax.f32 %v806, 0.0
      %v933 = vmax.f32 %v811, 0.0
      %v934 = vmax.f32 %v814, 0.0
      %v935 = vmax.f32 %v819, 0.0
      %v936 = vmax.f32 %v822, 0.0
      %v937 = vmax.f32 %v827, 0.0
      %v938 = vmax.f32 %v830, 0.0
      %v939 = vmax.f32 %v835, 0.0
      %v940 = vmax.f32 %v838, 0.0
      %v941 = vmax.f32 %v843, 0.0
      %v942 = vmax.f32 %v846, 0.0
      %v943 = vmax.f32 %v851, 0.0
      %v944 = vmax.f32 %v854, 0.0
      %v945 = vmax.f32 %v859, 0.0
      %v946 = vmax.f32 %v862, 0.0
      %v947 = vmax.f32 %v867, 0.0
      %v948 = vmax.f32 %v870, 0.0
      %v949 = vmax.f32 %v875, 0.0
      %v950 = vmax.f32 %v878, 0.0
      %v951 = vmax.f32 %v883, 0.0
      %v952 = vmax.f32 %v886, 0.0
      %v953 = vmin.f32 %v889, 6.0
      %v954 = vmin.f32 %v890, 6.0
      %v955 = vmin.f32 %v891, 6.0
      %v956 = vmin.f32 %v892, 6.0
      %v957 = vmin.f32 %v893, 6.0
      %v958 = vmin.f32 %v894, 6.0
      %v959 = vmin.f32 %v895, 6.0
      %v960 = vmin.f32 %v896, 6.0
      %v961 = vmin.f32 %v897, 6.0
      %v962 = vmin.f32 %v898, 6.0
      %v963 = vmin.f32 %v899, 6.0
      %v964 = vmin.f32 %v900, 6.0
      %v965 = vmin.f32 %v901, 6.0
      %v966 = vmin.f32 %v902, 6.0
      %v967 = vmin.f32 %v903, 6.0
      %v968 = vmin.f32 %v904, 6.0
      %v969 = vmin.f32 %v905, 6.0
      %v970 = vmin.f32 %v906, 6.0
      %v971 = vmin.f32 %v907, 6.0
      %v972 = vmin.f32 %v908, 6.0
      %v973 = vmin.f32 %v909, 6.0
      %v974 = vmin.f32 %v910, 6.0
      %v975 = vmin.f32 %v911, 6.0
      %v976 = vmin.f32 %v912, 6.0
      %v977 = vmin.f32 %v913, 6.0
      %v978 = vmin.f32 %v914, 6.0
      %v979 = vmin.f32 %v915, 6.0
      %v980 = vmin.f32 %v916, 6.0
      %v981 = vmin.f32 %v917, 6.0
      %v982 = vmin.f32 %v918, 6.0
      %v983 = vmin.f32 %v919, 6.0
      %v984 = vmin.f32 %v920, 6.0
      %v985 = vmin.f32 %v921, 6.0
      %v986 = vmin.f32 %v922, 6.0
      %v987 = vmin.f32 %v923, 6.0
      %v988 = vmin.f32 %v924, 6.0
      %v989 = vmin.f32 %v925, 6.0
      %v990 = vmin.f32 %v926, 6.0
      %v991 = vmin.f32 %v927, 6.0
      %v992 = vmin.f32 %v928, 6.0
      %v993 = vmin.f32 %v929, 6.0
      %v994 = vmin.f32 %v930, 6.0
      %v995 = vmin.f32 %v931, 6.0
      %v996 = vmin.f32 %v932, 6.0
      %v997 = vmin.f32 %v933, 6.0
      %v998 = vmin.f32 %v934, 6.0
      %v999 = vmin.f32 %v935, 6.0
      %v1000 = vmin.f32 %v936, 6.0
      %v1001 = vmin.f32 %v937, 6.0
      %v1002 = vmin.f32 %v938, 6.0
      %v1003 = vmin.f32 %v939, 6.0
      %v1004 = vmin.f32 %v940, 6.0
      %v1005 = vmin.f32 %v941, 6.0
      %v1006 = vmin.f32 %v942, 6.0
      %v1007 = vmin.f32 %v943, 6.0
      %v1008 = vmin.f32 %v944, 6.0
      %v1009 = vmin.f32 %v945, 6.0
      %v1010 = vmin.f32 %v946, 6.0
      %v1011 = vmin.f32 %v947, 6.0
      %v1012 = vmin.f32 %v948, 6.0
      %v1013 = vmin.f32 %v949, 6.0
      %v1014 = vmin.f32 %v950, 6.0
      %v1015 = vmin.f32 %v951, 6.0
      %v1016 = vmin.f32 %v952, 6.0
      %v1017 = vpack.c.bf16 %v954, %v953
      %v1018 = vpack.c.bf16 %v956, %v955
      %v1019 = vpack.c.bf16 %v958, %v957
      %v1020 = vpack.c.bf16 %v960, %v959
      %v1021 = vpack.c.bf16 %v962, %v961
      %v1022 = vpack.c.bf16 %v964, %v963
      %v1023 = vpack.c.bf16 %v966, %v965
      %v1024 = vpack.c.bf16 %v968, %v967
      %v1025 = vpack.c.bf16 %v970, %v969
      %v1026 = vpack.c.bf16 %v972, %v971
      %v1027 = vpack.c.bf16 %v974, %v973
      %v1028 = vpack.c.bf16 %v976, %v975
      %v1029 = vpack.c.bf16 %v978, %v977
      %v1030 = vpack.c.bf16 %v980, %v979
      %v1031 = vpack.c.bf16 %v982, %v981
      %v1032 = vpack.c.bf16 %v984, %v983
      %v1033 = vpack.c.bf16 %v986, %v985
      %v1034 = vpack.c.bf16 %v988, %v987
      %v1035 = vpack.c.bf16 %v990, %v989
      %v1036 = vpack.c.bf16 %v992, %v991
      %v1037 = vpack.c.bf16 %v994, %v993
      %v1038 = vpack.c.bf16 %v996, %v995
      %v1039 = vpack.c.bf16 %v998, %v997
      %v1040 = vpack.c.bf16 %v1000, %v999
      %v1041 = vpack.c.bf16 %v1002, %v1001
      %v1042 = vpack.c.bf16 %v1004, %v1003
      %v1043 = vpack.c.bf16 %v1006, %v1005
      %v1044 = vpack.c.bf16 %v1008, %v1007
      %v1045 = vpack.c.bf16 %v1010, %v1009
      %v1046 = vpack.c.bf16 %v1012, %v1011
      %v1047 = vpack.c.bf16 %v1014, %v1013
      %v1048 = vpack.c.bf16 %v1016, %v1015
      %v1081 = vunpack.c.l.b16 %v1017
      %v1082 = vunpack.c.h.b16 %v1017
      %v1083 = vunpack.c.l.b16 %v1018
      %v1084 = vunpack.c.h.b16 %v1018
      %v1085 = vunpack.c.l.b16 %v1019
      %v1086 = vunpack.c.h.b16 %v1019
      %v1087 = vunpack.c.l.b16 %v1020
      %v1088 = vunpack.c.h.b16 %v1020
      %v1089 = vunpack.c.l.b16 %v1021
      %v1090 = vunpack.c.h.b16 %v1021
      %v1091 = vunpack.c.l.b16 %v1022
      %v1092 = vunpack.c.h.b16 %v1022
      %v1093 = vunpack.c.l.b16 %v1023
      %v1094 = vunpack.c.h.b16 %v1023
      %v1095 = vunpack.c.l.b16 %v1024
      %v1096 = vunpack.c.h.b16 %v1024
      %v1097 = vunpack.c.l.b16 %v1025
      %v1098 = vunpack.c.h.b16 %v1025
      %v1099 = vunpack.c.l.b16 %v1026
      %v1100 = vunpack.c.h.b16 %v1026
      %v1101 = vunpack.c.l.b16 %v1027
      %v1102 = vunpack.c.h.b16 %v1027
      %v1103 = vunpack.c.l.b16 %v1028
      %v1104 = vunpack.c.h.b16 %v1028
      %v1105 = vunpack.c.l.b16 %v1029
      %v1106 = vunpack.c.h.b16 %v1029
      %v1107 = vunpack.c.l.b16 %v1030
      %v1108 = vunpack.c.h.b16 %v1030
      %v1109 = vunpack.c.l.b16 %v1031
      %v1110 = vunpack.c.h.b16 %v1031
      %v1111 = vunpack.c.l.b16 %v1032
      %v1112 = vunpack.c.h.b16 %v1032
      %v1113 = vunpack.c.l.b16 %v1033
      %v1114 = vunpack.c.h.b16 %v1033
      %v1115 = vunpack.c.l.b16 %v1034
      %v1116 = vunpack.c.h.b16 %v1034
      %v1117 = vunpack.c.l.b16 %v1035
      %v1118 = vunpack.c.h.b16 %v1035
      %v1119 = vunpack.c.l.b16 %v1036
      %v1120 = vunpack.c.h.b16 %v1036
      %v1121 = vunpack.c.l.b16 %v1037
      %v1122 = vunpack.c.h.b16 %v1037
      %v1123 = vunpack.c.l.b16 %v1038
      %v1124 = vunpack.c.h.b16 %v1038
      %v1125 = vunpack.c.l.b16 %v1039
      %v1126 = vunpack.c.h.b16 %v1039
      %v1127 = vunpack.c.l.b16 %v1040
      %v1128 = vunpack.c.h.b16 %v1040
      %v1129 = vunpack.c.l.b16 %v1041
      %v1130 = vunpack.c.h.b16 %v1041
      %v1131 = vunpack.c.l.b16 %v1042
      %v1132 = vunpack.c.h.b16 %v1042
      %v1133 = vunpack.c.l.b16 %v1043
      %v1134 = vunpack.c.h.b16 %v1043
      %v1135 = vunpack.c.l.b16 %v1044
      %v1136 = vunpack.c.h.b16 %v1044
      %v1137 = vunpack.c.l.b16 %v1045
      %v1138 = vunpack.c.h.b16 %v1045
      %v1139 = vunpack.c.l.b16 %v1046
      %v1140 = vunpack.c.h.b16 %v1046
      %v1141 = vunpack.c.l.b16 %v1047
      %v1142 = vunpack.c.h.b16 %v1047
      %v1143 = vunpack.c.l.b16 %v1048
      %v1144 = vunpack.c.h.b16 %v1048
      %v1145 = vpack.c.b16 %v1081, %v1081
      %v1146 = vpack.c.b16 %v1082, %v1082
      %v1147 = vpack.c.b16 %v1083, %v1083
      %v1148 = vpack.c.b16 %v1084, %v1084
      %v1149 = vpack.c.b16 %v1085, %v1085
      %v1150 = vpack.c.b16 %v1086, %v1086
      %v1151 = vpack.c.b16 %v1087, %v1087
      %v1152 = vpack.c.b16 %v1088, %v1088
      %v1153 = vpack.c.b16 %v1089, %v1089
      %v1154 = vpack.c.b16 %v1090, %v1090
      %v1155 = vpack.c.b16 %v1091, %v1091
      %v1156 = vpack.c.b16 %v1092, %v1092
      %v1157 = vpack.c.b16 %v1093, %v1093
      %v1158 = vpack.c.b16 %v1094, %v1094
      %v1159 = vpack.c.b16 %v1095, %v1095
      %v1160 = vpack.c.b16 %v1096, %v1096
      %v1161 = vpack.c.b16 %v1097, %v1097
      %v1162 = vpack.c.b16 %v1098, %v1098
      %v1163 = vpack.c.b16 %v1099, %v1099
      %v1164 = vpack.c.b16 %v1100, %v1100
      %v1165 = vpack.c.b16 %v1101, %v1101
      %v1166 = vpack.c.b16 %v1102, %v1102
      %v1167 = vpack.c.b16 %v1103, %v1103
      %v1168 = vpack.c.b16 %v1104, %v1104
      %v1169 = vpack.c.b16 %v1105, %v1105
      %v1170 = vpack.c.b16 %v1106, %v1106
      %v1171 = vpack.c.b16 %v1107, %v1107
      %v1172 = vpack.c.b16 %v1108, %v1108
      %v1173 = vpack.c.b16 %v1109, %v1109
      %v1174 = vpack.c.b16 %v1110, %v1110
      %v1175 = vpack.c.b16 %v1111, %v1111
      %v1176 = vpack.c.b16 %v1112, %v1112
      %v1177 = vpack.c.b16 %v1113, %v1113
      %v1178 = vpack.c.b16 %v1114, %v1114
      %v1179 = vpack.c.b16 %v1115, %v1115
      %v1180 = vpack.c.b16 %v1116, %v1116
      %v1181 = vpack.c.b16 %v1117, %v1117
      %v1182 = vpack.c.b16 %v1118, %v1118
      %v1183 = vpack.c.b16 %v1119, %v1119
      %v1184 = vpack.c.b16 %v1120, %v1120
      %v1185 = vpack.c.b16 %v1121, %v1121
      %v1186 = vpack.c.b16 %v1122, %v1122
      %v1187 = vpack.c.b16 %v1123, %v1123
      %v1188 = vpack.c.b16 %v1124, %v1124
      %v1189 = vpack.c.b16 %v1125, %v1125
      %v1190 = vpack.c.b16 %v1126, %v1126
      %v1191 = vpack.c.b16 %v1127, %v1127
      %v1192 = vpack.c.b16 %v1128, %v1128
      %v1193 = vpack.c.b16 %v1129, %v1129
      %v1194 = vpack.c.b16 %v1130, %v1130
      %v1195 = vpack.c.b16 %v1131, %v1131
      %v1196 = vpack.c.b16 %v1132, %v1132
      %v1197 = vpack.c.b16 %v1133, %v1133
      %v1198 = vpack.c.b16 %v1134, %v1134
      %v1199 = vpack.c.b16 %v1135, %v1135
      %v1200 = vpack.c.b16 %v1136, %v1136
      %v1201 = vpack.c.b16 %v1137, %v1137
      %v1202 = vpack.c.b16 %v1138, %v1138
      %v1203 = vpack.c.b16 %v1139, %v1139
      %v1204 = vpack.c.b16 %v1140, %v1140
      %v1205 = vpack.c.b16 %v1141, %v1141
      %v1206 = vpack.c.b16 %v1142, %v1142
      %v1207 = vpack.c.b16 %v1143, %v1143
      %v1208 = vpack.c.b16 %v1144, %v1144
      %vm1273 = vcmask 125952
      %1274 = vst.msk [vmem:[%s223] sm:$0xf] %vm1273, %v1145
      %1275 = vst.msk [vmem:[%s223 + $0x4] sm:$0xf] %vm1273, %v1146
      %1276 = vst.msk [vmem:[%s223 + $0x8] sm:$0xf] %vm1273, %v1147
      %1277 = vst.msk [vmem:[%s223 + $0xc] sm:$0xf] %vm1273, %v1148
      %1278 = vst.msk [vmem:[%s223 + $0x10] sm:$0xf] %vm1273, %v1149
      %1279 = vst.msk [vmem:[%s223 + $0x14] sm:$0xf] %vm1273, %v1150
      %1280 = vst.msk [vmem:[%s223 + $0x18] sm:$0xf] %vm1273, %v1151
      %1281 = vst.msk [vmem:[%s223 + $0x1c] sm:$0xf] %vm1273, %v1152
      %1282 = vst.msk [vmem:[%s223 + $0x20] sm:$0xf] %vm1273, %v1153
      %1283 = vst.msk [vmem:[%s223 + $0x24] sm:$0xf] %vm1273, %v1154
      %1284 = vst.msk [vmem:[%s223 + $0x28] sm:$0xf] %vm1273, %v1155
      %1285 = vst.msk [vmem:[%s223 + $0x2c] sm:$0xf] %vm1273, %v1156
      %1286 = vst.msk [vmem:[%s223 + $0x30] sm:$0xf] %vm1273, %v1157
      %1287 = vst.msk [vmem:[%s223 + $0x34] sm:$0xf] %vm1273, %v1158
      %1288 = vst.msk [vmem:[%s223 + $0x38] sm:$0xf] %vm1273, %v1159
      %1289 = vst.msk [vmem:[%s223 + $0x3c] sm:$0xf] %vm1273, %v1160
      %1290 = vst.msk [vmem:[%s223 + $0x40] sm:$0xf] %vm1273, %v1161
      %1291 = vst.msk [vmem:[%s223 + $0x44] sm:$0xf] %vm1273, %v1162
      %1292 = vst.msk [vmem:[%s223 + $0x48] sm:$0xf] %vm1273, %v1163
      %1293 = vst.msk [vmem:[%s223 + $0x4c] sm:$0xf] %vm1273, %v1164
      %1294 = vst.msk [vmem:[%s223 + $0x50] sm:$0xf] %vm1273, %v1165
      %1295 = vst.msk [vmem:[%s223 + $0x54] sm:$0xf] %vm1273, %v1166
      %1296 = vst.msk [vmem:[%s223 + $0x58] sm:$0xf] %vm1273, %v1167
      %1297 = vst.msk [vmem:[%s223 + $0x5c] sm:$0xf] %vm1273, %v1168
      %1298 = vst.msk [vmem:[%s223 + $0x60] sm:$0xf] %vm1273, %v1169
      %1299 = vst.msk [vmem:[%s223 + $0x64] sm:$0xf] %vm1273, %v1170
      %1300 = vst.msk [vmem:[%s223 + $0x68] sm:$0xf] %vm1273, %v1171
      %1301 = vst.msk [vmem:[%s223 + $0x6c] sm:$0xf] %vm1273, %v1172
      %1302 = vst.msk [vmem:[%s223 + $0x70] sm:$0xf] %vm1273, %v1173
      %1303 = vst.msk [vmem:[%s223 + $0x74] sm:$0xf] %vm1273, %v1174
      %1304 = vst.msk [vmem:[%s223 + $0x78] sm:$0xf] %vm1273, %v1175
      %1305 = vst.msk [vmem:[%s223 + $0x7c] sm:$0xf] %vm1273, %v1176
      %1306 = vst.msk [vmem:[%s223 + $0x80] sm:$0xf] %vm1273, %v1177
      %1307 = vst.msk [vmem:[%s223 + $0x84] sm:$0xf] %vm1273, %v1178
      %1308 = vst.msk [vmem:[%s223 + $0x88] sm:$0xf] %vm1273, %v1179
      %1309 = vst.msk [vmem:[%s223 + $0x8c] sm:$0xf] %vm1273, %v1180
      %1310 = vst.msk [vmem:[%s223 + $0x90] sm:$0xf] %vm1273, %v1181
      %1311 = vst.msk [vmem:[%s223 + $0x94] sm:$0xf] %vm1273, %v1182
      %1312 = vst.msk [vmem:[%s223 + $0x98] sm:$0xf] %vm1273, %v1183
      %1313 = vst.msk [vmem:[%s223 + $0x9c] sm:$0xf] %vm1273, %v1184
      %1314 = vst.msk [vmem:[%s223 + $0xa0] sm:$0xf] %vm1273, %v1185
      %1315 = vst.msk [vmem:[%s223 + $0xa4] sm:$0xf] %vm1273, %v1186
      %1316 = vst.msk [vmem:[%s223 + $0xa8] sm:$0xf] %vm1273, %v1187
      %1317 = vst.msk [vmem:[%s223 + $0xac] sm:$0xf] %vm1273, %v1188
      %1318 = vst.msk [vmem:[%s223 + $0xb0] sm:$0xf] %vm1273, %v1189
      %1319 = vst.msk [vmem:[%s223 + $0xb4] sm:$0xf] %vm1273, %v1190
      %1320 = vst.msk [vmem:[%s223 + $0xb8] sm:$0xf] %vm1273, %v1191
      %1321 = vst.msk [vmem:[%s223 + $0xbc] sm:$0xf] %vm1273, %v1192
      %1322 = vst.msk [vmem:[%s223 + $0xc0] sm:$0xf] %vm1273, %v1193
      %1323 = vst.msk [vmem:[%s223 + $0xc4] sm:$0xf] %vm1273, %v1194
      %1324 = vst.msk [vmem:[%s223 + $0xc8] sm:$0xf] %vm1273, %v1195
      %1325 = vst.msk [vmem:[%s223 + $0xcc] sm:$0xf] %vm1273, %v1196
      %1326 = vst.msk [vmem:[%s223 + $0xd0] sm:$0xf] %vm1273, %v1197
      %1327 = vst.msk [vmem:[%s223 + $0xd4] sm:$0xf] %vm1273, %v1198
      %1328 = vst.msk [vmem:[%s223 + $0xd8] sm:$0xf] %vm1273, %v1199
      %1329 = vst.msk [vmem:[%s223 + $0xdc] sm:$0xf] %vm1273, %v1200
      %1330 = vst.msk [vmem:[%s223 + $0xe0] sm:$0xf] %vm1273, %v1201
      %1331 = vst.msk [vmem:[%s223 + $0xe4] sm:$0xf] %vm1273, %v1202
      %1332 = vst.msk [vmem:[%s223 + $0xe8] sm:$0xf] %vm1273, %v1203
      %1333 = vst.msk [vmem:[%s223 + $0xec] sm:$0xf] %vm1273, %v1204
      %1334 = vst.msk [vmem:[%s223 + $0xf0] sm:$0xf] %vm1273, %v1205
      %1335 = vst.msk [vmem:[%s223 + $0xf4] sm:$0xf] %vm1273, %v1206
      %1336 = vst.msk [vmem:[%s223 + $0xf8] sm:$0xf] %vm1273, %v1207
      %1337 = vst.msk [vmem:[%s223 + $0xfc] sm:$0xf] %vm1273, %v1208
      %s1338 = smul.u32 64, %s18
      %p1339 = scmp.lt.s32.totalorder %s1338, 383
      %s1340 = scalar_select %p1339, %s1338, 383
      %p1341 = scmp.lt.s32.totalorder %s19, 0
      %s1342 = scalar_select %p1341, %s19, 0
      %s1343 = sadd.s32 %s1342, %s1340
      %s1344 = smul.addr %s1343, 4
      %s1345 = scalar_lea.vmem %s3, %s1344
      // Predicated region
      $region33: #{_lambda_.13} parent=31 // pred_check
        %p1346 = pneg %p124
      $region34: #{_lambda_.13} parent=31 // pred_check_branch
        %1348 = sbr.rel (%p1346) target = $region36
      $region35: #{_lambda_.13} parent=31 // pred_region
        %s1349 = smul.u32 64, %s18
      $region36: #{_lambda_.13} parent=31 // pred_fallthru
        _
    $region32: #{_lambda_.13} parent=5 // pred_fallthru
      _
    %p1350 = scmp.le.s32.totalorder 2, %s9
    // Predicated region
    $region37: #{_lambda_.13} parent=5 // pred_check
      %p1351 = pneg %p1350
    $region38: #{_lambda_.13} parent=5 // pred_check_branch
      %1353 = sbr.rel (%p1351) target = $region40
    $region39: #{_lambda_.13} parent=5 // pred_region
      %s1354 = ssub.s32 %s9, 2
      // Predicated region
      $region41: #{_lambda_.13} parent=39 // pred_check
        %p1355 = pneg %p130
      $region42: #{_lambda_.13} parent=39 // pred_check_branch
        %1357 = sbr.rel (%p1355) target = $region44
      $region43: #{_lambda_.13} parent=39 // pred_region
        %s1358 = smul.u32 64, %s20
        %p1359 = scmp.lt.s32.totalorder %s1358, 383
        %s1360 = scalar_select %p1359, %s1358, 383
        %p1361 = scmp.lt.s32.totalorder %s21, 0
        %s1362 = scalar_select %p1361, %s21, 0
        %s1363 = sadd.s32 %s1362, %s1360
        %s1364 = smul.addr %s1363, 4
        %s1365 = scalar_lea.vmem %s3, %s1364
      $region44: #{_lambda_.13} parent=39 // pred_fallthru
        _
    $region40: #{_lambda_.13} parent=5 // pred_fallthru
      _
  $region6: #{_lambda_.13} parent=0 // loop_footer
    %s13 = sadd.s32 1, %s9
  $region7: #{_lambda_.13} parent=0 // loop_footer_branch
    %8 = sbr.rel target = $region3
  $region8: #{_lambda_.13} parent=0 // loop_exit
    _

// kernel: _lambda_.14
$region0: #{_lambda_.14}
  #allocation0 [shape = 'u32[]', space=smem, size = 0x4, offset = 0x4, fixed_abs, tag = 'smem constant byte address 0x4 - core index']
  #allocation1 [shape = 'u32[144,128]{1,0:T(1,128)}', space=vmem, size = 0x12000, scoped, tag = 'internal scratch']
  %s0 = inlined_call_operand.vmem [shape: bf16[768,144], index: 0, kind: input, shape index: {}]
  %s1 = inlined_call_operand.vmem [shape: bf16[144,16], index: 1, kind: input, shape index: {}]
  %s2 = inlined_call_operand.vmem [shape: f32[1,16], index: 2, kind: input, shape index: {}]
  %s3 = inlined_call_operand.vmem [shape: bf16[768,16], index: 3, kind: output, shape index: {}]
  %s4 = sld [smem:[#allocation0]]
  $region45: #{_lambda_.14} parent=0
    _
  %s6 = ssub.s32 1, %s4
  %s7 = scalar_select 0, %s6, %s4
  loop: start=0, step=1, limit=5
  $region2: #{_lambda_.14} parent=0 // loop_pre_header
    _
  $region3: #{_lambda_.14} parent=0 // loop_header
    %s9 = sphi 0, %s13
    %p10 = scmp.ge.s32.totalorder %s9, 5
    %s16 = sphi 0, %s28
    %s17 = sphi 0, %s24
    %s18 = sphi 0, %s16
    %s19 = sphi 0, %s17
    %s20 = sphi 0, %s18
    %s21 = sphi 0, %s19
    %s31 = sphi 0, %s33
    %s34 = sphi 0, %s31
    %s35 = sphi 0, %s34
    %s51 = sphi 0, %s35
    %s57 = sphi 0, %s59
    %s60 = sphi 0, %s57
    %s61 = sphi 0, %s60
    %s77 = sphi 0, %s61
    %s83 = sphi 0, %s85
    %s86 = sphi 0, %s83
    %s87 = sphi 0, %s86
    %s103 = sphi 0, %s87
    %s111 = sphi 0, %s113
    %s114 = sphi 0, %s111
    %s115 = sphi 0, %s114
    %s131 = sphi 0, %s115
  $region4: #{_lambda_.14} parent=0 // loop_header_branch
    %12 = sbr.rel (%p10) target = $region8
  $region5: #{_lambda_.14} parent=0 // loop_body
    %s14 = ssub.s32 %s9, 1
    %s15 = ssub.s32 %s9, 2
    %s22 = sadd.s32 1, %s17
    %p23 = scmp.ge.s32.totalorder %s22, 1
    %s24 = scalar_select %p23, 0, %s22
    %s25 = sadd.s32 1, %s16
    %s26 = scalar_select %p23, %s25, %s16
    %p27 = scmp.ge.s32.totalorder %s26, 3
    %s28 = scalar_select %p27, 0, %s26
    %s29 = ssub.s32 %s16, %s28
    %p30 = scmp.eq.s32.totalorder %s29, 0
    %s32 = sadd.s32 %s31, 1
    %s33 = scalar_select %p30, %s31, %s32
    %p36 = pneg %p30
    %p37 = scmp.eq.s32.totalorder %s9, 2
    %p38 = por %p36, %p37
    %p39 = scmp.ne.s32.totalorder %s31, %s34
    %p40 = scmp.eq.s32.totalorder %s9, 0
    %p41 = por %p39, %p40
    %p42 = scmp.ne.s32.totalorder %s31, %s34
    %p43 = scmp.eq.s32.totalorder %s14, 2
    %p44 = por %p42, %p43
    %p45 = scmp.ne.s32.totalorder %s34, %s35
    %p46 = scmp.eq.s32.totalorder %s14, 0
    %p47 = por %p45, %p46
    %p48 = scmp.ne.s32.totalorder %s34, %s35
    %p49 = scmp.eq.s32.totalorder %s15, 2
    %p50 = por %p48, %p49
    %p52 = scmp.ne.s32.totalorder %s35, %s51
    %p53 = scmp.eq.s32.totalorder %s15, 0
    %p54 = por %p52, %p53
    %s55 = ssub.s32 %s17, %s24
    %p56 = scmp.eq.s32.totalorder %s55, 0
    %s58 = sadd.s32 %s57, 1
    %s59 = scalar_select %p56, %s57, %s58
    %p62 = pneg %p56
    %p63 = scmp.eq.s32.totalorder %s9, 2
    %p64 = por %p62, %p63
    %p65 = scmp.ne.s32.totalorder %s57, %s60
    %p66 = scmp.eq.s32.totalorder %s9, 0
    %p67 = por %p65, %p66
    %p68 = scmp.ne.s32.totalorder %s57, %s60
    %p69 = scmp.eq.s32.totalorder %s14, 2
    %p70 = por %p68, %p69
    %p71 = scmp.ne.s32.totalorder %s60, %s61
    %p72 = scmp.eq.s32.totalorder %s14, 0
    %p73 = por %p71, %p72
    %p74 = scmp.ne.s32.totalorder %s60, %s61
    %p75 = scmp.eq.s32.totalorder %s15, 2
    %p76 = por %p74, %p75
    %p78 = scmp.ne.s32.totalorder %s61, %s77
    %p79 = scmp.eq.s32.totalorder %s15, 0
    %p80 = por %p78, %p79
    %s81 = ssub.s32 %s17, %s24
    %p82 = scmp.eq.s32.totalorder %s81, 0
    %s84 = sadd.s32 %s83, 1
    %s85 = scalar_select %p82, %s83, %s84
    %p88 = pneg %p82
    %p89 = scmp.eq.s32.totalorder %s9, 2
    %p90 = por %p88, %p89
    %p91 = scmp.ne.s32.totalorder %s83, %s86
    %p92 = scmp.eq.s32.totalorder %s9, 0
    %p93 = por %p91, %p92
    %p94 = scmp.ne.s32.totalorder %s83, %s86
    %p95 = scmp.eq.s32.totalorder %s14, 2
    %p96 = por %p94, %p95
    %p97 = scmp.ne.s32.totalorder %s86, %s87
    %p98 = scmp.eq.s32.totalorder %s14, 0
    %p99 = por %p97, %p98
    %p100 = scmp.ne.s32.totalorder %s86, %s87
    %p101 = scmp.eq.s32.totalorder %s15, 2
    %p102 = por %p100, %p101
    %p104 = scmp.ne.s32.totalorder %s87, %s103
    %p105 = scmp.eq.s32.totalorder %s15, 0
    %p106 = por %p104, %p105
    %s107 = ssub.s32 %s16, %s28
    %s108 = ssub.s32 %s17, %s24
    %s109 = sor.u32 %s107, %s108
    %p110 = scmp.eq.s32.totalorder %s109, 0
    %s112 = sadd.s32 %s111, 1
    %s113 = scalar_select %p110, %s111, %s112
    %p116 = pneg %p110
    %p117 = scmp.eq.s32.totalorder %s9, 2
    %p118 = por %p116, %p117
    %p119 = scmp.ne.s32.totalorder %s111, %s114
    %p120 = scmp.eq.s32.totalorder %s9, 0
    %p121 = por %p119, %p120
    %p122 = scmp.ne.s32.totalorder %s111, %s114
    %p123 = scmp.eq.s32.totalorder %s14, 2
    %p124 = por %p122, %p123
    %p125 = scmp.ne.s32.totalorder %s114, %s115
    %p126 = scmp.eq.s32.totalorder %s14, 0
    %p127 = por %p125, %p126
    %p128 = scmp.ne.s32.totalorder %s114, %s115
    %p129 = scmp.eq.s32.totalorder %s15, 2
    %p130 = por %p128, %p129
    %p132 = scmp.ne.s32.totalorder %s115, %s131
    %p133 = scmp.eq.s32.totalorder %s15, 0
    %p134 = por %p132, %p133
    %p135 = scmp.le.s32.totalorder 1, %s9
    %p136 = scmp.lt.s32.totalorder %s9, 4
    %p137 = pnand %p135, %p136
    %p138 = pneg %p137
    // Predicated region
    $region9: #{_lambda_.14} parent=5 // pred_check
      _
    $region10: #{_lambda_.14} parent=5 // pred_check_branch
      %140 = sbr.rel (%p137) target = $region12
    $region11: #{_lambda_.14} parent=5 // pred_region
      %s141 = ssub.s32 %s9, 1
      // Predicated region
      $region13: #{_lambda_.14} parent=11 // pred_check
        %p142 = pneg %p73
      $region14: #{_lambda_.14} parent=11 // pred_check_branch
        %144 = sbr.rel (%p142) target = $region16
      $region15: #{_lambda_.14} parent=11 // pred_region
        %p145 = scmp.lt.s32.totalorder %s19, 0
        %s146 = scalar_select %p145, %s19, 0
        %s147 = smul.addr %s146, 4
        %s148 = scalar_lea.vmem %s1, %s147
      $region16: #{_lambda_.14} parent=11 // pred_fallthru
        _
      // Predicated region
      $region17: #{_lambda_.14} parent=11 // pred_check
        %p149 = pneg %p99
      $region18: #{_lambda_.14} parent=11 // pred_check_branch
        %151 = sbr.rel (%p149) target = $region20
      $region19: #{_lambda_.14} parent=11 // pred_region
        %p152 = scmp.lt.s32.totalorder %s19, 0
        %s153 = scalar_select %p152, %s19, 0
        %s154 = scalar_lea.vmem %s2, %s153
      $region20: #{_lambda_.14} parent=11 // pred_fallthru
        _
    $region12: #{_lambda_.14} parent=5 // pred_fallthru
      _
    %p155 = scmp.lt.s32.totalorder %s9, 3
    // Predicated region
    $region21: #{_lambda_.14} parent=5 // pred_check
      %p156 = pneg %p155
    $region22: #{_lambda_.14} parent=5 // pred_check_branch
      %158 = sbr.rel (%p156) target = $region24
    $region23: #{_lambda_.14} parent=5 // pred_region
      // Predicated region
      $region25: #{_lambda_.14} parent=23 // pred_check
        %p159 = pneg %p41
      $region26: #{_lambda_.14} parent=23 // pred_check_branch
        %161 = sbr.rel (%p159) target = $region28
      $region27: #{_lambda_.14} parent=23 // pred_region
        %s162 = smul.u32 32, %s16
        %p163 = scmp.lt.s32.totalorder %s162, 95
        %s164 = scalar_select %p163, %s162, 95
        %s165 = smul.addr %s164, 2
        %s166 = smul.addr %s165, 4
        %s167 = scalar_lea.vmem %s0, %s166
        %s168 = smul.u32 32, %s16
      $region28: #{_lambda_.14} parent=23 // pred_fallthru
        _
    $region24: #{_lambda_.14} parent=5 // pred_fallthru
      _
    %p169 = scmp.le.s32.totalorder 1, %s9
    %p170 = scmp.lt.s32.totalorder %s9, 4
    %p171 = pnand %p169, %p170
    %p172 = pneg %p171
    // Predicated region
    $region29: #{_lambda_.14} parent=5 // pred_check
      _
    $region30: #{_lambda_.14} parent=5 // pred_check_branch
      %174 = sbr.rel (%p171) target = $region32
    $region31: #{_lambda_.14} parent=5 // pred_region
      %s175 = ssub.s32 %s9, 1
      %s176 = smul.u32 32, %s18
      %p177 = scmp.lt.s32.totalorder %s176, 95
      %s178 = scalar_select %p177, %s176, 95
      %s179 = smul.addr %s178, 2
      %s180 = smul.addr %s179, 4
      %s181 = scalar_lea.vmem %s0, %s180
      %p182 = pneg %p47
      %p183 = pneg %p44
      %p184 = scmp.lt.s32.totalorder %s19, 0
      %s185 = scalar_select %p184, %s19, 0
      %s186 = smul.addr %s185, 4
      %s187 = scalar_lea.vmem %s1, %s186
      %p188 = pneg %p73
      %p189 = pneg %p70
      %p190 = scmp.lt.s32.totalorder %s19, 0
      %s191 = scalar_select %p190, %s19, 0
      %s192 = scalar_lea.vmem %s2, %s191
      %p193 = pneg %p99
      %p194 = pneg %p96
      %p195 = pneg %p127
      %p196 = pneg %p124
      %s197 = smul.u32 32, %s18
      %p198 = scmp.lt.s32.totalorder %s197, 95
      %s199 = scalar_select %p198, %s197, 95
      %p200 = scmp.lt.s32.totalorder %s19, 0
      %s201 = scalar_select %p200, %s19, 0
      %s202 = sadd.s32 %s201, %s199
      %s203 = smul.addr %s202, 4
      %s204 = scalar_lea.vmem %s3, %s203
      %s205 = smul.u32 32, %s18
      %p206 = scmp.lt.s32.totalorder %s205, 95
      %s207 = scalar_select %p206, %s205, 95
      %s208 = smul.addr %s207, 2
      %s209 = smul.addr %s208, 4
      %s210 = scalar_lea.vmem %s0, %s209
      %s211 = smul.u32 32, %s18
      %p212 = scmp.lt.s32.totalorder %s19, 0
      %s213 = scalar_select %p212, %s19, 0
      %s214 = smul.addr %s213, 4
      %s215 = scalar_lea.vmem %s1, %s214
      %p216 = scmp.lt.s32.totalorder %s19, 0
      %s217 = scalar_select %p216, %s19, 0
      %s218 = scalar_lea.vmem %s2, %s217
      %s219 = smul.u32 32, %s18
      %p220 = scmp.lt.s32.totalorder %s219, 95
      %s221 = scalar_select %p220, %s219, 95
      %p222 = scmp.lt.s32.totalorder %s19, 0
      %s223 = scalar_select %p222, %s19, 0
      %s224 = sadd.s32 %s223, %s221
      %s225 = smul.addr %s224, 4
      %s226 = scalar_lea.vmem %s3, %s225
      %s227 = smul.u32 32, %s18
      %v229 = vld [vmem:[%s210] sm:$0xff]
      %v230 = vld [vmem:[%s210 + $0x8] sm:$0xff]
      %v231 = vld [vmem:[%s210 + $0x10] sm:$0xff]
      %v232 = vld [vmem:[%s210 + $0x18] sm:$0xff]
      %v233 = vld [vmem:[%s210 + $0x20] sm:$0xff]
      %v234 = vld [vmem:[%s210 + $0x28] sm:$0xff]
      %v235 = vld [vmem:[%s210 + $0x30] sm:$0xff]
      %v236 = vld [vmem:[%s210 + $0x38] sm:$0xff]
      %v237 = vld [vmem:[%s210 + $0x40] sm:$0xff]
      %v238 = vld [vmem:[%s210 + $0x48] sm:$0xff]
      %v239 = vld [vmem:[%s210 + $0x50] sm:$0xff]
      %v240 = vld [vmem:[%s210 + $0x58] sm:$0xff]
      %v241 = vld [vmem:[%s210 + $0x60] sm:$0xff]
      %v242 = vld [vmem:[%s210 + $0x68] sm:$0xff]
      %v243 = vld [vmem:[%s210 + $0x70] sm:$0xff]
      %v244 = vld [vmem:[%s210 + $0x78] sm:$0xff]
      %v245 = vld [vmem:[%s210 + $0x80] sm:$0xff]
      %v246 = vld [vmem:[%s210 + $0x88] sm:$0xff]
      %v247 = vld [vmem:[%s210 + $0x90] sm:$0xff]
      %v248 = vld [vmem:[%s210 + $0x98] sm:$0xff]
      %v249 = vld [vmem:[%s210 + $0xa0] sm:$0xff]
      %v250 = vld [vmem:[%s210 + $0xa8] sm:$0xff]
      %v251 = vld [vmem:[%s210 + $0xb0] sm:$0xff]
      %v252 = vld [vmem:[%s210 + $0xb8] sm:$0xff]
      %v253 = vld [vmem:[%s210 + $0xc0] sm:$0xff]
      %v254 = vld [vmem:[%s210 + $0xc8] sm:$0xff]
      %v255 = vld [vmem:[%s210 + $0xd0] sm:$0xff]
      %v256 = vld [vmem:[%s210 + $0xd8] sm:$0xff]
      %v257 = vld [vmem:[%s210 + $0xe0] sm:$0xff]
      %v258 = vld [vmem:[%s210 + $0xe8] sm:$0xff]
      %v259 = vld [vmem:[%s210 + $0xf0] sm:$0xff]
      %v260 = vld [vmem:[%s210 + $0xf8] sm:$0xff]
      %v261 = vld [vmem:[%s215] sm:$0xf]
      %v262 = vld [vmem:[%s215 + $0x4] sm:$0xf]
      %v263 = vld [vmem:[%s215 + $0x8] sm:$0xf]
      %v264 = vld [vmem:[%s215 + $0xc] sm:$0xf]
      %v265 = vld [vmem:[%s215 + $0x10] sm:$0xf]
      %v266 = vld [vmem:[%s215 + $0x14] sm:$0xf]
      %v267 = vld [vmem:[%s215 + $0x18] sm:$0xf]
      %v268 = vld [vmem:[%s215 + $0x1c] sm:$0xf]
      %v269 = vld [vmem:[%s215 + $0x20] sm:$0xf]
      %v270 = vld [vmem:[%s215 + $0x24] sm:$0xf]
      %v271 = vld [vmem:[%s215 + $0x28] sm:$0xf]
      %v272 = vld [vmem:[%s215 + $0x2c] sm:$0xf]
      %v273 = vld [vmem:[%s215 + $0x30] sm:$0xf]
      %v274 = vld [vmem:[%s215 + $0x34] sm:$0xf]
      %v275 = vld [vmem:[%s215 + $0x38] sm:$0xf]
      %v276 = vld [vmem:[%s215 + $0x3c] sm:$0xf]
      %v277 = vld [vmem:[%s215 + $0x40] sm:$0xf]
      %v278 = vld [vmem:[%s215 + $0x44] sm:$0xf]
      %v279 = vld [vmem:[%s218] sm:$0x1]
      %v281 = vlaneseq
      %v282 = vshrl.u32 %v281, 7
      %v283 = vsub.s32 0, %v282
      %v284 = vrot.slane %v279, %v283
      %v318 = vunpack.c.l.b16 %v229
      %v319 = vunpack.c.h.b16 %v229
      %v320 = vunpack.c.l.b16 %v230
      %v321 = vunpack.c.h.b16 %v230
      %v322 = vunpack.c.l.b16 %v231
      %v323 = vunpack.c.h.b16 %v231
      %v324 = vunpack.c.l.b16 %v232
      %v325 = vunpack.c.h.b16 %v232
      %v326 = vunpack.c.l.b16 %v233
      %v327 = vunpack.c.h.b16 %v233
      %v328 = vunpack.c.l.b16 %v234
      %v329 = vunpack.c.h.b16 %v234
      %v330 = vunpack.c.l.b16 %v235
      %v331 = vunpack.c.h.b16 %v235
      %v332 = vunpack.c.l.b16 %v236
      %v333 = vunpack.c.h.b16 %v236
      %v334 = vunpack.c.l.b16 %v237
      %v335 = vunpack.c.h.b16 %v237
      %v336 = vunpack.c.l.b16 %v238
      %v337 = vunpack.c.h.b16 %v238
      %v338 = vunpack.c.l.b16 %v239
      %v339 = vunpack.c.h.b16 %v239
      %v340 = vunpack.c.l.b16 %v240
      %v341 = vunpack.c.h.b16 %v240
      %v342 = vunpack.c.l.b16 %v241
      %v343 = vunpack.c.h.b16 %v241
      %v344 = vunpack.c.l.b16 %v242
      %v345 = vunpack.c.h.b16 %v242
      %v346 = vunpack.c.l.b16 %v243
      %v347 = vunpack.c.h.b16 %v243
      %v348 = vunpack.c.l.b16 %v244
      %v349 = vunpack.c.h.b16 %v244
      %v350 = vunpack.c.l.b16 %v245
      %v351 = vunpack.c.h.b16 %v245
      %v352 = vunpack.c.l.b16 %v246
      %v353 = vunpack.c.h.b16 %v246
      %v354 = vunpack.c.l.b16 %v247
      %v355 = vunpack.c.h.b16 %v247
      %v356 = vunpack.c.l.b16 %v248
      %v357 = vunpack.c.h.b16 %v248
      %v358 = vunpack.c.l.b16 %v249
      %v359 = vunpack.c.h.b16 %v249
      %v360 = vunpack.c.l.b16 %v250
      %v361 = vunpack.c.h.b16 %v250
      %v362 = vunpack.c.l.b16 %v251
      %v363 = vunpack.c.h.b16 %v251
      %v364 = vunpack.c.l.b16 %v252
      %v365 = vunpack.c.h.b16 %v252
      %v366 = vunpack.c.l.b16 %v253
      %v367 = vunpack.c.h.b16 %v253
      %v368 = vunpack.c.l.b16 %v254
      %v369 = vunpack.c.h.b16 %v254
      %v370 = vunpack.c.l.b16 %v255
      %v371 = vunpack.c.h.b16 %v255
      %v372 = vunpack.c.l.b16 %v256
      %v373 = vunpack.c.h.b16 %v256
      %v374 = vunpack.c.l.b16 %v257
      %v375 = vunpack.c.h.b16 %v257
      %v376 = vunpack.c.l.b16 %v258
      %v377 = vunpack.c.h.b16 %v258
      %v378 = vunpack.c.l.b16 %v259
      %v379 = vunpack.c.h.b16 %v259
      %v380 = vunpack.c.l.b16 %v260
      %v381 = vunpack.c.h.b16 %v260
      %v382 = vpack.c.b16 %v320, %v318
      %v383 = vpack.c.b16 %v321, %v319
      %v384 = vpack.c.b16 %v324, %v322
      %v385 = vpack.c.b16 %v325, %v323
      %v386 = vpack.c.b16 %v328, %v326
      %v387 = vpack.c.b16 %v329, %v327
      %v388 = vpack.c.b16 %v332, %v330
      %v389 = vpack.c.b16 %v333, %v331
      %v390 = vpack.c.b16 %v336, %v334
      %v391 = vpack.c.b16 %v337, %v335
      %v392 = vpack.c.b16 %v340, %v338
      %v393 = vpack.c.b16 %v341, %v339
      %v394 = vpack.c.b16 %v344, %v342
      %v395 = vpack.c.b16 %v345, %v343
      %v396 = vpack.c.b16 %v348, %v346
      %v397 = vpack.c.b16 %v349, %v347
      %v398 = vpack.c.b16 %v352, %v350
      %v399 = vpack.c.b16 %v353, %v351
      %v400 = vpack.c.b16 %v356, %v354
      %v401 = vpack.c.b16 %v357, %v355
      %v402 = vpack.c.b16 %v360, %v358
      %v403 = vpack.c.b16 %v361, %v359
      %v404 = vpack.c.b16 %v364, %v362
      %v405 = vpack.c.b16 %v365, %v363
      %v406 = vpack.c.b16 %v368, %v366
      %v407 = vpack.c.b16 %v369, %v367
      %v408 = vpack.c.b16 %v372, %v370
      %v409 = vpack.c.b16 %v373, %v371
      %v410 = vpack.c.b16 %v376, %v374
      %v411 = vpack.c.b16 %v377, %v375
      %v412 = vpack.c.b16 %v380, %v378
      %v413 = vpack.c.b16 %v381, %v379
      %v448 = vunpack.c.l.b16 %v261
      %v449 = vunpack.c.l.b16 %v262
      %v450 = vunpack.c.l.b16 %v263
      %v451 = vunpack.c.l.b16 %v264
      %v452 = vunpack.c.l.b16 %v265
      %v453 = vunpack.c.l.b16 %v266
      %v454 = vunpack.c.l.b16 %v267
      %v455 = vunpack.c.l.b16 %v268
      %v456 = vunpack.c.l.b16 %v269
      %v457 = vunpack.c.l.b16 %v270
      %v458 = vunpack.c.l.b16 %v271
      %v459 = vunpack.c.l.b16 %v272
      %v460 = vunpack.c.l.b16 %v273
      %v461 = vunpack.c.l.b16 %v274
      %v462 = vunpack.c.l.b16 %v275
      %v463 = vunpack.c.l.b16 %v276
      %v464 = vunpack.c.l.b16 %v277
      %v465 = vunpack.c.l.b16 %v278
      %v466 = vpack.c.b16 %v449, %v448
      %v467 = vpack.c.b16 %v451, %v450
      %v468 = vpack.c.b16 %v453, %v452
      %v469 = vpack.c.b16 %v455, %v454
      %v470 = vpack.c.b16 %v457, %v456
      %v471 = vpack.c.b16 %v459, %v458
      %v472 = vpack.c.b16 %v461, %v460
      %v473 = vpack.c.b16 %v463, %v462
      %v474 = vpack.c.b16 %v465, %v464
      %vm484 = vcmask 130048
      %v486 = vsel %vm484, %v383, 0
      %v489 = vsel %vm484, %v385, 0
      %v492 = vsel %vm484, %v387, 0
      %v495 = vsel %vm484, %v389, 0
      %v498 = vsel %vm484, %v391, 0
      %v501 = vsel %vm484, %v393, 0
      %v504 = vsel %vm484, %v395, 0
      %v507 = vsel %vm484, %v397, 0
      %v510 = vsel %vm484, %v399, 0
      %v513 = vsel %vm484, %v401, 0
      %v516 = vsel %vm484, %v403, 0
      %v519 = vsel %vm484, %v405, 0
      %v522 = vsel %vm484, %v407, 0
      %v525 = vsel %vm484, %v409, 0
      %v528 = vsel %vm484, %v411, 0
      %v531 = vsel %vm484, %v413, 0
      %533 = vmatprep.subr.bf16.mxu0 0
      %534 = vmatpush1.bf16.msra.mxu0 %v466
      %535 = vmatprep.subr.bf16.mxu0 0
      %536 = vmatpush1.bf16.msra.mxu0 %v467
      %537 = vmatprep.subr.bf16.mxu0 0
      %538 = vmatpush1.bf16.msra.mxu0 %v468
      %539 = vmatprep.subr.bf16.mxu0 0
      %540 = vmatpush1.bf16.msra.mxu0 %v469
      %541 = vmatprep.subr.bf16.mxu0 0
      %542 = vmatpush1.bf16.msra.mxu0 %v470
      %543 = vmatprep.subr.bf16.mxu0 0
      %544 = vmatpush1.bf16.msra.mxu0 %v471
      %545 = vmatprep.subr.bf16.mxu0 0
      %546 = vmatpush1.bf16.msra.mxu0 %v472
      %547 = vmatprep.subr.bf16.mxu0 0
      %548 = vmatpush1.bf16.msra.mxu0 %v473
      %549 = vmatprep.subr.bf16.mxu0 0
      %550 = vmatpush1.bf16.msra.mxu0 %v474
      %551 = vmatprep.subr.bf16.mxu0 0
      %552 = vmatpush1.bf16.msra.mxu0 0
      %553 = vmatprep.subr.bf16.mxu0 0
      %554 = vmatpush1.bf16.msra.mxu0 0
      %555 = vmatprep.subr.bf16.mxu0 0
      %556 = vmatpush1.bf16.msra.mxu0 0
      %557 = vmatprep.subr.bf16.mxu0 0
      %558 = vmatpush1.bf16.msra.mxu0 0
      %559 = vmatprep.subr.bf16.mxu0 0
      %560 = vmatpush1.bf16.msra.mxu0 0
      %561 = vmatprep.subr.bf16.mxu0 0
      %562 = vmatpush1.bf16.msra.mxu0 0
      %563 = vmatprep.subr.bf16.mxu0 0
      %564 = vmatpush1.bf16.msra.mxu0 0
      %565 = vmatprep.mubr.bf16.mxu0 %v486
      %566 = vmatmul.mubr.bf16.gmra.mrb[0].mxu0 %v382
      %v567 = vpop.f32.mrb[0].mxu0
      %v568 = vadd.f32 %v284, %v567
      %v569 = vpop.f32.mrb[0].mxu0
      %v570 = vpop.f32.mrb[0].mxu0
      %v571 = vadd.f32 %v284, %v570
      %v572 = vpop.f32.mrb[0].mxu0
      %573 = vmatprep.mubr.bf16.mxu0 %v489
      %574 = vmatmul.mubr.bf16.gmra.mrb[0].mxu0 %v384
      %v575 = vpop.f32.mrb[0].mxu0
      %v576 = vadd.f32 %v284, %v575
      %v577 = vpop.f32.mrb[0].mxu0
      %v578 = vpop.f32.mrb[0].mxu0
      %v579 = vadd.f32 %v284, %v578
      %v580 = vpop.f32.mrb[0].mxu0
      %581 = vmatprep.mubr.bf16.mxu0 %v492
      %582 = vmatmul.mubr.bf16.gmra.mrb[0].mxu0 %v386
      %v583 = vpop.f32.mrb[0].mxu0
      %v584 = vadd.f32 %v284, %v583
      %v585 = vpop.f32.mrb[0].mxu0
      %v586 = vpop.f32.mrb[0].mxu0
      %v587 = vadd.f32 %v284, %v586
      %v588 = vpop.f32.mrb[0].mxu0
      %589 = vmatprep.mubr.bf16.mxu0 %v495
      %590 = vmatmul.mubr.bf16.gmra.mrb[0].mxu0 %v388
      %v591 = vpop.f32.mrb[0].mxu0
      %v592 = vadd.f32 %v284, %v591
      %v593 = vpop.f32.mrb[0].mxu0
      %v594 = vpop.f32.mrb[0].mxu0
      %v595 = vadd.f32 %v284, %v594
      %v596 = vpop.f32.mrb[0].mxu0
      %597 = vmatprep.mubr.bf16.mxu0 %v498
      %598 = vmatmul.mubr.bf16.gmra.mrb[0].mxu0 %v390
      %v599 = vpop.f32.mrb[0].mxu0
      %v600 = vadd.f32 %v284, %v599
      %v601 = vpop.f32.mrb[0].mxu0
      %v602 = vpop.f32.mrb[0].mxu0
      %v603 = vadd.f32 %v284, %v602
      %v604 = vpop.f32.mrb[0].mxu0
      %605 = vmatprep.mubr.bf16.mxu0 %v501
      %606 = vmatmul.mubr.bf16.gmra.mrb[0].mxu0 %v392
      %v607 = vpop.f32.mrb[0].mxu0
      %v608 = vadd.f32 %v284, %v607
      %v609 = vpop.f32.mrb[0].mxu0
      %v610 = vpop.f32.mrb[0].mxu0
      %v611 = vadd.f32 %v284, %v610
      %v612 = vpop.f32.mrb[0].mxu0
      %613 = vmatprep.mubr.bf16.mxu0 %v504
      %614 = vmatmul.mubr.bf16.gmra.mrb[0].mxu0 %v394
      %v615 = vpop.f32.mrb[0].mxu0
      %v616 = vadd.f32 %v284, %v615
      %v617 = vpop.f32.mrb[0].mxu0
      %v618 = vpop.f32.mrb[0].mxu0
      %v619 = vadd.f32 %v284, %v618
      %v620 = vpop.f32.mrb[0].mxu0
      %621 = vmatprep.mubr.bf16.mxu0 %v507
      %622 = vmatmul.mubr.bf16.gmra.mrb[0].mxu0 %v396
      %v623 = vpop.f32.mrb[0].mxu0
      %v624 = vadd.f32 %v284, %v623
      %v625 = vpop.f32.mrb[0].mxu0
      %v626 = vpop.f32.mrb[0].mxu0
      %v627 = vadd.f32 %v284, %v626
      %v628 = vpop.f32.mrb[0].mxu0
      %629 = vmatprep.mubr.bf16.mxu0 %v510
      %630 = vmatmul.mubr.bf16.gmra.mrb[0].mxu0 %v398
      %v631 = vpop.f32.mrb[0].mxu0
      %v632 = vadd.f32 %v284, %v631
      %v633 = vpop.f32.mrb[0].mxu0
      %v634 = vpop.f32.mrb[0].mxu0
      %v635 = vadd.f32 %v284, %v634
      %v636 = vpop.f32.mrb[0].mxu0
      %637 = vmatprep.mubr.bf16.mxu0 %v513
      %638 = vmatmul.mubr.bf16.gmra.mrb[0].mxu0 %v400
      %v639 = vpop.f32.mrb[0].mxu0
      %v640 = vadd.f32 %v284, %v639
      %v641 = vpop.f32.mrb[0].mxu0
      %v642 = vpop.f32.mrb[0].mxu0
      %v643 = vadd.f32 %v284, %v642
      %v644 = vpop.f32.mrb[0].mxu0
      %645 = vmatprep.mubr.bf16.mxu0 %v516
      %646 = vmatmul.mubr.bf16.gmra.mrb[0].mxu0 %v402
      %v647 = vpop.f32.mrb[0].mxu0
      %v648 = vadd.f32 %v284, %v647
      %v649 = vpop.f32.mrb[0].mxu0
      %v650 = vpop.f32.mrb[0].mxu0
      %v651 = vadd.f32 %v284, %v650
      %v652 = vpop.f32.mrb[0].mxu0
      %653 = vmatprep.mubr.bf16.mxu0 %v519
      %654 = vmatmul.mubr.bf16.gmra.mrb[0].mxu0 %v404
      %v655 = vpop.f32.mrb[0].mxu0
      %v656 = vadd.f32 %v284, %v655
      %v657 = vpop.f32.mrb[0].mxu0
      %v658 = vpop.f32.mrb[0].mxu0
      %v659 = vadd.f32 %v284, %v658
      %v660 = vpop.f32.mrb[0].mxu0
      %661 = vmatprep.mubr.bf16.mxu0 %v522
      %662 = vmatmul.mubr.bf16.gmra.mrb[0].mxu0 %v406
      %v663 = vpop.f32.mrb[0].mxu0
      %v664 = vadd.f32 %v284, %v663
      %v665 = vpop.f32.mrb[0].mxu0
      %v666 = vpop.f32.mrb[0].mxu0
      %v667 = vadd.f32 %v284, %v666
      %v668 = vpop.f32.mrb[0].mxu0
      %669 = vmatprep.mubr.bf16.mxu0 %v525
      %670 = vmatmul.mubr.bf16.gmra.mrb[0].mxu0 %v408
      %v671 = vpop.f32.mrb[0].mxu0
      %v672 = vadd.f32 %v284, %v671
      %v673 = vpop.f32.mrb[0].mxu0
      %v674 = vpop.f32.mrb[0].mxu0
      %v675 = vadd.f32 %v284, %v674
      %v676 = vpop.f32.mrb[0].mxu0
      %677 = vmatprep.mubr.bf16.mxu0 %v528
      %678 = vmatmul.mubr.bf16.gmra.mrb[0].mxu0 %v410
      %v679 = vpop.f32.mrb[0].mxu0
      %v680 = vadd.f32 %v284, %v679
      %v681 = vpop.f32.mrb[0].mxu0
      %v682 = vpop.f32.mrb[0].mxu0
      %v683 = vadd.f32 %v284, %v682
      %v684 = vpop.f32.mrb[0].mxu0
      %685 = vmatprep.mubr.bf16.mxu0 %v531
      %686 = vmatmul.mubr.bf16.gmra.mrb[0].mxu0 %v412
      %v687 = vpop.f32.mrb[0].mxu0
      %v688 = vadd.f32 %v284, %v687
      %v689 = vpop.f32.mrb[0].mxu0
      %v690 = vpop.f32.mrb[0].mxu0
      %v691 = vadd.f32 %v284, %v690
      %v692 = vpop.f32.mrb[0].mxu0
      %693 = vdwg.mxu0
      %v694 = vmax.f32 %v568, 0.0
      %v695 = vmax.f32 %v571, 0.0
      %v696 = vmax.f32 %v576, 0.0
      %v697 = vmax.f32 %v579, 0.0
      %v698 = vmax.f32 %v584, 0.0
      %v699 = vmax.f32 %v587, 0.0
      %v700 = vmax.f32 %v592, 0.0
      %v701 = vmax.f32 %v595, 0.0
      %v702 = vmax.f32 %v600, 0.0
      %v703 = vmax.f32 %v603, 0.0
      %v704 = vmax.f32 %v608, 0.0
      %v705 = vmax.f32 %v611, 0.0
      %v706 = vmax.f32 %v616, 0.0
      %v707 = vmax.f32 %v619, 0.0
      %v708 = vmax.f32 %v624, 0.0
      %v709 = vmax.f32 %v627, 0.0
      %v710 = vmax.f32 %v632, 0.0
      %v711 = vmax.f32 %v635, 0.0
      %v712 = vmax.f32 %v640, 0.0
      %v713 = vmax.f32 %v643, 0.0
      %v714 = vmax.f32 %v648, 0.0
      %v715 = vmax.f32 %v651, 0.0
      %v716 = vmax.f32 %v656, 0.0
      %v717 = vmax.f32 %v659, 0.0
      %v718 = vmax.f32 %v664, 0.0
      %v719 = vmax.f32 %v667, 0.0
      %v720 = vmax.f32 %v672, 0.0
      %v721 = vmax.f32 %v675, 0.0
      %v722 = vmax.f32 %v680, 0.0
      %v723 = vmax.f32 %v683, 0.0
      %v724 = vmax.f32 %v688, 0.0
      %v725 = vmax.f32 %v691, 0.0
      %v726 = vpack.c.bf16 %v695, %v694
      %v727 = vpack.c.bf16 %v697, %v696
      %v728 = vpack.c.bf16 %v699, %v698
      %v729 = vpack.c.bf16 %v701, %v700
      %v730 = vpack.c.bf16 %v703, %v702
      %v731 = vpack.c.bf16 %v705, %v704
      %v732 = vpack.c.bf16 %v707, %v706
      %v733 = vpack.c.bf16 %v709, %v708
      %v734 = vpack.c.bf16 %v711, %v710
      %v735 = vpack.c.bf16 %v713, %v712
      %v736 = vpack.c.bf16 %v715, %v714
      %v737 = vpack.c.bf16 %v717, %v716
      %v738 = vpack.c.bf16 %v719, %v718
      %v739 = vpack.c.bf16 %v721, %v720
      %v740 = vpack.c.bf16 %v723, %v722
      %v741 = vpack.c.bf16 %v725, %v724
      %v758 = vunpack.c.l.b16 %v726
      %v759 = vunpack.c.h.b16 %v726
      %v760 = vunpack.c.l.b16 %v727
      %v761 = vunpack.c.h.b16 %v727
      %v762 = vunpack.c.l.b16 %v728
      %v763 = vunpack.c.h.b16 %v728
      %v764 = vunpack.c.l.b16 %v729
      %v765 = vunpack.c.h.b16 %v729
      %v766 = vunpack.c.l.b16 %v730
      %v767 = vunpack.c.h.b16 %v730
      %v768 = vunpack.c.l.b16 %v731
      %v769 = vunpack.c.h.b16 %v731
      %v770 = vunpack.c.l.b16 %v732
      %v771 = vunpack.c.h.b16 %v732
      %v772 = vunpack.c.l.b16 %v733
      %v773 = vunpack.c.h.b16 %v733
      %v774 = vunpack.c.l.b16 %v734
      %v775 = vunpack.c.h.b16 %v734
      %v776 = vunpack.c.l.b16 %v735
      %v777 = vunpack.c.h.b16 %v735
      %v778 = vunpack.c.l.b16 %v736
      %v779 = vunpack.c.h.b16 %v736
      %v780 = vunpack.c.l.b16 %v737
      %v781 = vunpack.c.h.b16 %v737
      %v782 = vunpack.c.l.b16 %v738
      %v783 = vunpack.c.h.b16 %v738
      %v784 = vunpack.c.l.b16 %v739
      %v785 = vunpack.c.h.b16 %v739
      %v786 = vunpack.c.l.b16 %v740
      %v787 = vunpack.c.h.b16 %v740
      %v788 = vunpack.c.l.b16 %v741
      %v789 = vunpack.c.h.b16 %v741
      %v790 = vpack.c.b16 %v758, %v758
      %v791 = vpack.c.b16 %v759, %v759
      %v792 = vpack.c.b16 %v760, %v760
      %v793 = vpack.c.b16 %v761, %v761
      %v794 = vpack.c.b16 %v762, %v762
      %v795 = vpack.c.b16 %v763, %v763
      %v796 = vpack.c.b16 %v764, %v764
      %v797 = vpack.c.b16 %v765, %v765
      %v798 = vpack.c.b16 %v766, %v766
      %v799 = vpack.c.b16 %v767, %v767
      %v800 = vpack.c.b16 %v768, %v768
      %v801 = vpack.c.b16 %v769, %v769
      %v802 = vpack.c.b16 %v770, %v770
      %v803 = vpack.c.b16 %v771, %v771
      %v804 = vpack.c.b16 %v772, %v772
      %v805 = vpack.c.b16 %v773, %v773
      %v806 = vpack.c.b16 %v774, %v774
      %v807 = vpack.c.b16 %v775, %v775
      %v808 = vpack.c.b16 %v776, %v776
      %v809 = vpack.c.b16 %v777, %v777
      %v810 = vpack.c.b16 %v778, %v778
      %v811 = vpack.c.b16 %v779, %v779
      %v812 = vpack.c.b16 %v780, %v780
      %v813 = vpack.c.b16 %v781, %v781
      %v814 = vpack.c.b16 %v782, %v782
      %v815 = vpack.c.b16 %v783, %v783
      %v816 = vpack.c.b16 %v784, %v784
      %v817 = vpack.c.b16 %v785, %v785
      %v818 = vpack.c.b16 %v786, %v786
      %v819 = vpack.c.b16 %v787, %v787
      %v820 = vpack.c.b16 %v788, %v788
      %v821 = vpack.c.b16 %v789, %v789
      %vm854 = vcmask 125952
      %855 = vst.msk [vmem:[%s226] sm:$0xf] %vm854, %v790
      %856 = vst.msk [vmem:[%s226 + $0x4] sm:$0xf] %vm854, %v791
      %857 = vst.msk [vmem:[%s226 + $0x8] sm:$0xf] %vm854, %v792
      %858 = vst.msk [vmem:[%s226 + $0xc] sm:$0xf] %vm854, %v793
      %859 = vst.msk [vmem:[%s226 + $0x10] sm:$0xf] %vm854, %v794
      %860 = vst.msk [vmem:[%s226 + $0x14] sm:$0xf] %vm854, %v795
      %861 = vst.msk [vmem:[%s226 + $0x18] sm:$0xf] %vm854, %v796
      %862 = vst.msk [vmem:[%s226 + $0x1c] sm:$0xf] %vm854, %v797
      %863 = vst.msk [vmem:[%s226 + $0x20] sm:$0xf] %vm854, %v798
      %864 = vst.msk [vmem:[%s226 + $0x24] sm:$0xf] %vm854, %v799
      %865 = vst.msk [vmem:[%s226 + $0x28] sm:$0xf] %vm854, %v800
      %866 = vst.msk [vmem:[%s226 + $0x2c] sm:$0xf] %vm854, %v801
      %867 = vst.msk [vmem:[%s226 + $0x30] sm:$0xf] %vm854, %v802
      %868 = vst.msk [vmem:[%s226 + $0x34] sm:$0xf] %vm854, %v803
      %869 = vst.msk [vmem:[%s226 + $0x38] sm:$0xf] %vm854, %v804
      %870 = vst.msk [vmem:[%s226 + $0x3c] sm:$0xf] %vm854, %v805
      %871 = vst.msk [vmem:[%s226 + $0x40] sm:$0xf] %vm854, %v806
      %872 = vst.msk [vmem:[%s226 + $0x44] sm:$0xf] %vm854, %v807
      %873 = vst.msk [vmem:[%s226 + $0x48] sm:$0xf] %vm854, %v808
      %874 = vst.msk [vmem:[%s226 + $0x4c] sm:$0xf] %vm854, %v809
      %875 = vst.msk [vmem:[%s226 + $0x50] sm:$0xf] %vm854, %v810
      %876 = vst.msk [vmem:[%s226 + $0x54] sm:$0xf] %vm854, %v811
      %877 = vst.msk [vmem:[%s226 + $0x58] sm:$0xf] %vm854, %v812
      %878 = vst.msk [vmem:[%s226 + $0x5c] sm:$0xf] %vm854, %v813
      %879 = vst.msk [vmem:[%s226 + $0x60] sm:$0xf] %vm854, %v814
      %880 = vst.msk [vmem:[%s226 + $0x64] sm:$0xf] %vm854, %v815
      %881 = vst.msk [vmem:[%s226 + $0x68] sm:$0xf] %vm854, %v816
      %882 = vst.msk [vmem:[%s226 + $0x6c] sm:$0xf] %vm854, %v817
      %883 = vst.msk [vmem:[%s226 + $0x70] sm:$0xf] %vm854, %v818
      %884 = vst.msk [vmem:[%s226 + $0x74] sm:$0xf] %vm854, %v819
      %885 = vst.msk [vmem:[%s226 + $0x78] sm:$0xf] %vm854, %v820
      %886 = vst.msk [vmem:[%s226 + $0x7c] sm:$0xf] %vm854, %v821
      %s887 = smul.u32 32, %s18
      %p888 = scmp.lt.s32.totalorder %s887, 95
      %s889 = scalar_select %p888, %s887, 95
      %p890 = scmp.lt.s32.totalorder %s19, 0
      %s891 = scalar_select %p890, %s19, 0
      %s892 = sadd.s32 %s891, %s889
      %s893 = smul.addr %s892, 4
      %s894 = scalar_lea.vmem %s3, %s893
      // Predicated region
      $region33: #{_lambda_.14} parent=31 // pred_check
        %p895 = pneg %p124
      $region34: #{_lambda_.14} parent=31 // pred_check_branch
        %897 = sbr.rel (%p895) target = $region36
      $region35: #{_lambda_.14} parent=31 // pred_region
        %s898 = smul.u32 32, %s18
      $region36: #{_lambda_.14} parent=31 // pred_fallthru
        _
    $region32: #{_lambda_.14} parent=5 // pred_fallthru
      _
    %p899 = scmp.le.s32.totalorder 2, %s9
    // Predicated region
    $region37: #{_lambda_.14} parent=5 // pred_check
      %p900 = pneg %p899
    $region38: #{_lambda_.14} parent=5 // pred_check_branch
      %902 = sbr.rel (%p900) target = $region40
    $region39: #{_lambda_.14} parent=5 // pred_region
      %s903 = ssub.s32 %s9, 2
      // Predicated region
      $region41: #{_lambda_.14} parent=39 // pred_check
        %p904 = pneg %p130
      $region42: #{_lambda_.14} parent=39 // pred_check_branch
        %906 = sbr.rel (%p904) target = $region44
      $region43: #{_lambda_.14} parent=39 // pred_region
        %s907 = smul.u32 32, %s20
        %p908 = scmp.lt.s32.totalorder %s907, 95
        %s909 = scalar_select %p908, %s907, 95
        %p910 = scmp.lt.s32.totalorder %s21, 0
        %s911 = scalar_select %p910, %s21, 0
        %s912 = sadd.s32 %s911, %s909
        %s913 = smul.addr %s912, 4
        %s914 = scalar_lea.vmem %s3, %s913
      $region44: #{_lambda_.14} parent=39 // pred_fallthru
        _
    $region40: #{_lambda_.14} parent=5 // pred_fallthru
      _
  $region6: #{_lambda_.14} parent=0 // loop_footer
    %s13 = sadd.s32 1, %s9
  $region7: #{_lambda_.14} parent=0 // loop_footer_branch
    %8 = sbr.rel target = $region3
  $region8: #{_lambda_.14} parent=0 // loop_exit
    _

// kernel: _lambda_.15
$region0: #{_lambda_.15}
  #allocation0 [shape = 'u32[]', space=smem, size = 0x4, offset = 0x4, fixed_abs, tag = 'smem constant byte address 0x4 - core index']
  #allocation1 [shape = 'u32[144,128]{1,0:T(1,128)}', space=vmem, size = 0x12000, scoped, tag = 'internal scratch']
  %s0 = inlined_call_operand.vmem [shape: bf16[768,144], index: 0, kind: input, shape index: {}]
  %s1 = inlined_call_operand.vmem [shape: bf16[144,16], index: 1, kind: input, shape index: {}]
  %s2 = inlined_call_operand.vmem [shape: f32[1,16], index: 2, kind: input, shape index: {}]
  %s3 = inlined_call_operand.vmem [shape: bf16[768,16], index: 3, kind: input, shape index: {}]
  %s4 = inlined_call_operand.vmem [shape: bf16[768,16], index: 4, kind: output, shape index: {}]
  %s5 = sld [smem:[#allocation0]]
  $region49: #{_lambda_.15} parent=0
    _
  %s7 = ssub.s32 1, %s5
  %s8 = scalar_select 0, %s7, %s5
  loop: start=0, step=1, limit=5
  $region2: #{_lambda_.15} parent=0 // loop_pre_header
    _
  $region3: #{_lambda_.15} parent=0 // loop_header
    %s10 = sphi 0, %s14
    %p11 = scmp.ge.s32.totalorder %s10, 5
    %s17 = sphi 0, %s29
    %s18 = sphi 0, %s25
    %s19 = sphi 0, %s17
    %s20 = sphi 0, %s18
    %s21 = sphi 0, %s19
    %s22 = sphi 0, %s20
    %s32 = sphi 0, %s34
    %s35 = sphi 0, %s32
    %s36 = sphi 0, %s35
    %s52 = sphi 0, %s36
    %s58 = sphi 0, %s60
    %s61 = sphi 0, %s58
    %s62 = sphi 0, %s61
    %s78 = sphi 0, %s62
    %s84 = sphi 0, %s86
    %s87 = sphi 0, %s84
    %s88 = sphi 0, %s87
    %s104 = sphi 0, %s88
    %s112 = sphi 0, %s114
    %s115 = sphi 0, %s112
    %s116 = sphi 0, %s115
    %s132 = sphi 0, %s116
    %s140 = sphi 0, %s142
    %s143 = sphi 0, %s140
    %s144 = sphi 0, %s143
    %s160 = sphi 0, %s144
  $region4: #{_lambda_.15} parent=0 // loop_header_branch
    %13 = sbr.rel (%p11) target = $region8
  $region5: #{_lambda_.15} parent=0 // loop_body
    %s15 = ssub.s32 %s10, 1
    %s16 = ssub.s32 %s10, 2
    %s23 = sadd.s32 1, %s18
    %p24 = scmp.ge.s32.totalorder %s23, 1
    %s25 = scalar_select %p24, 0, %s23
    %s26 = sadd.s32 1, %s17
    %s27 = scalar_select %p24, %s26, %s17
    %p28 = scmp.ge.s32.totalorder %s27, 3
    %s29 = scalar_select %p28, 0, %s27
    %s30 = ssub.s32 %s17, %s29
    %p31 = scmp.eq.s32.totalorder %s30, 0
    %s33 = sadd.s32 %s32, 1
    %s34 = scalar_select %p31, %s32, %s33
    %p37 = pneg %p31
    %p38 = scmp.eq.s32.totalorder %s10, 2
    %p39 = por %p37, %p38
    %p40 = scmp.ne.s32.totalorder %s32, %s35
    %p41 = scmp.eq.s32.totalorder %s10, 0
    %p42 = por %p40, %p41
    %p43 = scmp.ne.s32.totalorder %s32, %s35
    %p44 = scmp.eq.s32.totalorder %s15, 2
    %p45 = por %p43, %p44
    %p46 = scmp.ne.s32.totalorder %s35, %s36
    %p47 = scmp.eq.s32.totalorder %s15, 0
    %p48 = por %p46, %p47
    %p49 = scmp.ne.s32.totalorder %s35, %s36
    %p50 = scmp.eq.s32.totalorder %s16, 2
    %p51 = por %p49, %p50
    %p53 = scmp.ne.s32.totalorder %s36, %s52
    %p54 = scmp.eq.s32.totalorder %s16, 0
    %p55 = por %p53, %p54
    %s56 = ssub.s32 %s18, %s25
    %p57 = scmp.eq.s32.totalorder %s56, 0
    %s59 = sadd.s32 %s58, 1
    %s60 = scalar_select %p57, %s58, %s59
    %p63 = pneg %p57
    %p64 = scmp.eq.s32.totalorder %s10, 2
    %p65 = por %p63, %p64
    %p66 = scmp.ne.s32.totalorder %s58, %s61
    %p67 = scmp.eq.s32.totalorder %s10, 0
    %p68 = por %p66, %p67
    %p69 = scmp.ne.s32.totalorder %s58, %s61
    %p70 = scmp.eq.s32.totalorder %s15, 2
    %p71 = por %p69, %p70
    %p72 = scmp.ne.s32.totalorder %s61, %s62
    %p73 = scmp.eq.s32.totalorder %s15, 0
    %p74 = por %p72, %p73
    %p75 = scmp.ne.s32.totalorder %s61, %s62
    %p76 = scmp.eq.s32.totalorder %s16, 2
    %p77 = por %p75, %p76
    %p79 = scmp.ne.s32.totalorder %s62, %s78
    %p80 = scmp.eq.s32.totalorder %s16, 0
    %p81 = por %p79, %p80
    %s82 = ssub.s32 %s18, %s25
    %p83 = scmp.eq.s32.totalorder %s82, 0
    %s85 = sadd.s32 %s84, 1
    %s86 = scalar_select %p83, %s84, %s85
    %p89 = pneg %p83
    %p90 = scmp.eq.s32.totalorder %s10, 2
    %p91 = por %p89, %p90
    %p92 = scmp.ne.s32.totalorder %s84, %s87
    %p93 = scmp.eq.s32.totalorder %s10, 0
    %p94 = por %p92, %p93
    %p95 = scmp.ne.s32.totalorder %s84, %s87
    %p96 = scmp.eq.s32.totalorder %s15, 2
    %p97 = por %p95, %p96
    %p98 = scmp.ne.s32.totalorder %s87, %s88
    %p99 = scmp.eq.s32.totalorder %s15, 0
    %p100 = por %p98, %p99
    %p101 = scmp.ne.s32.totalorder %s87, %s88
    %p102 = scmp.eq.s32.totalorder %s16, 2
    %p103 = por %p101, %p102
    %p105 = scmp.ne.s32.totalorder %s88, %s104
    %p106 = scmp.eq.s32.totalorder %s16, 0
    %p107 = por %p105, %p106
    %s108 = ssub.s32 %s17, %s29
    %s109 = ssub.s32 %s18, %s25
    %s110 = sor.u32 %s108, %s109
    %p111 = scmp.eq.s32.totalorder %s110, 0
    %s113 = sadd.s32 %s112, 1
    %s114 = scalar_select %p111, %s112, %s113
    %p117 = pneg %p111
    %p118 = scmp.eq.s32.totalorder %s10, 2
    %p119 = por %p117, %p118
    %p120 = scmp.ne.s32.totalorder %s112, %s115
    %p121 = scmp.eq.s32.totalorder %s10, 0
    %p122 = por %p120, %p121
    %p123 = scmp.ne.s32.totalorder %s112, %s115
    %p124 = scmp.eq.s32.totalorder %s15, 2
    %p125 = por %p123, %p124
    %p126 = scmp.ne.s32.totalorder %s115, %s116
    %p127 = scmp.eq.s32.totalorder %s15, 0
    %p128 = por %p126, %p127
    %p129 = scmp.ne.s32.totalorder %s115, %s116
    %p130 = scmp.eq.s32.totalorder %s16, 2
    %p131 = por %p129, %p130
    %p133 = scmp.ne.s32.totalorder %s116, %s132
    %p134 = scmp.eq.s32.totalorder %s16, 0
    %p135 = por %p133, %p134
    %s136 = ssub.s32 %s17, %s29
    %s137 = ssub.s32 %s18, %s25
    %s138 = sor.u32 %s136, %s137
    %p139 = scmp.eq.s32.totalorder %s138, 0
    %s141 = sadd.s32 %s140, 1
    %s142 = scalar_select %p139, %s140, %s141
    %p145 = pneg %p139
    %p146 = scmp.eq.s32.totalorder %s10, 2
    %p147 = por %p145, %p146
    %p148 = scmp.ne.s32.totalorder %s140, %s143
    %p149 = scmp.eq.s32.totalorder %s10, 0
    %p150 = por %p148, %p149
    %p151 = scmp.ne.s32.totalorder %s140, %s143
    %p152 = scmp.eq.s32.totalorder %s15, 2
    %p153 = por %p151, %p152
    %p154 = scmp.ne.s32.totalorder %s143, %s144
    %p155 = scmp.eq.s32.totalorder %s15, 0
    %p156 = por %p154, %p155
    %p157 = scmp.ne.s32.totalorder %s143, %s144
    %p158 = scmp.eq.s32.totalorder %s16, 2
    %p159 = por %p157, %p158
    %p161 = scmp.ne.s32.totalorder %s144, %s160
    %p162 = scmp.eq.s32.totalorder %s16, 0
    %p163 = por %p161, %p162
    %p164 = scmp.le.s32.totalorder 1, %s10
    %p165 = scmp.lt.s32.totalorder %s10, 4
    %p166 = pnand %p164, %p165
    %p167 = pneg %p166
    // Predicated region
    $region9: #{_lambda_.15} parent=5 // pred_check
      _
    $region10: #{_lambda_.15} parent=5 // pred_check_branch
      %169 = sbr.rel (%p166) target = $region12
    $region11: #{_lambda_.15} parent=5 // pred_region
      %s170 = ssub.s32 %s10, 1
      // Predicated region
      $region13: #{_lambda_.15} parent=11 // pred_check
        %p171 = pneg %p74
      $region14: #{_lambda_.15} parent=11 // pred_check_branch
        %173 = sbr.rel (%p171) target = $region16
      $region15: #{_lambda_.15} parent=11 // pred_region
        %p174 = scmp.lt.s32.totalorder %s20, 0
        %s175 = scalar_select %p174, %s20, 0
        %s176 = smul.addr %s175, 4
        %s177 = scalar_lea.vmem %s1, %s176
      $region16: #{_lambda_.15} parent=11 // pred_fallthru
        _
      // Predicated region
      $region17: #{_lambda_.15} parent=11 // pred_check
        %p178 = pneg %p100
      $region18: #{_lambda_.15} parent=11 // pred_check_branch
        %180 = sbr.rel (%p178) target = $region20
      $region19: #{_lambda_.15} parent=11 // pred_region
        %p181 = scmp.lt.s32.totalorder %s20, 0
        %s182 = scalar_select %p181, %s20, 0
        %s183 = scalar_lea.vmem %s2, %s182
      $region20: #{_lambda_.15} parent=11 // pred_fallthru
        _
    $region12: #{_lambda_.15} parent=5 // pred_fallthru
      _
    %p184 = scmp.lt.s32.totalorder %s10, 3
    // Predicated region
    $region21: #{_lambda_.15} parent=5 // pred_check
      %p185 = pneg %p184
    $region22: #{_lambda_.15} parent=5 // pred_check_branch
      %187 = sbr.rel (%p185) target = $region24
    $region23: #{_lambda_.15} parent=5 // pred_region
      // Predicated region
      $region25: #{_lambda_.15} parent=23 // pred_check
        %p188 = pneg %p42
      $region26: #{_lambda_.15} parent=23 // pred_check_branch
        %190 = sbr.rel (%p188) target = $region28
      $region27: #{_lambda_.15} parent=23 // pred_region
        %s191 = smul.u32 32, %s17
        %p192 = scmp.lt.s32.totalorder %s191, 95
        %s193 = scalar_select %p192, %s191, 95
        %s194 = smul.addr %s193, 2
        %s195 = smul.addr %s194, 4
        %s196 = scalar_lea.vmem %s0, %s195
        %s197 = smul.u32 32, %s17
      $region28: #{_lambda_.15} parent=23 // pred_fallthru
        _
      // Predicated region
      $region29: #{_lambda_.15} parent=23 // pred_check
        %p198 = pneg %p122
      $region30: #{_lambda_.15} parent=23 // pred_check_branch
        %200 = sbr.rel (%p198) target = $region32
      $region31: #{_lambda_.15} parent=23 // pred_region
        %s201 = smul.u32 32, %s17
        %p202 = scmp.lt.s32.totalorder %s201, 95
        %s203 = scalar_select %p202, %s201, 95
        %p204 = scmp.lt.s32.totalorder %s18, 0
        %s205 = scalar_select %p204, %s18, 0
        %s206 = sadd.s32 %s205, %s203
        %s207 = smul.addr %s206, 4
        %s208 = scalar_lea.vmem %s3, %s207
        %s209 = smul.u32 32, %s17
      $region32: #{_lambda_.15} parent=23 // pred_fallthru
        _
    $region24: #{_lambda_.15} parent=5 // pred_fallthru
      _
    %p210 = scmp.le.s32.totalorder 1, %s10
    %p211 = scmp.lt.s32.totalorder %s10, 4
    %p212 = pnand %p210, %p211
    %p213 = pneg %p212
    // Predicated region
    $region33: #{_lambda_.15} parent=5 // pred_check
      _
    $region34: #{_lambda_.15} parent=5 // pred_check_branch
      %215 = sbr.rel (%p212) target = $region36
    $region35: #{_lambda_.15} parent=5 // pred_region
      %s216 = ssub.s32 %s10, 1
      %s217 = smul.u32 32, %s19
      %p218 = scmp.lt.s32.totalorder %s217, 95
      %s219 = scalar_select %p218, %s217, 95
      %s220 = smul.addr %s219, 2
      %s221 = smul.addr %s220, 4
      %s222 = scalar_lea.vmem %s0, %s221
      %p223 = pneg %p48
      %p224 = pneg %p45
      %p225 = scmp.lt.s32.totalorder %s20, 0
      %s226 = scalar_select %p225, %s20, 0
      %s227 = smul.addr %s226, 4
      %s228 = scalar_lea.vmem %s1, %s227
      %p229 = pneg %p74
      %p230 = pneg %p71
      %p231 = scmp.lt.s32.totalorder %s20, 0
      %s232 = scalar_select %p231, %s20, 0
      %s233 = scalar_lea.vmem %s2, %s232
      %p234 = pneg %p100
      %p235 = pneg %p97
      %s236 = smul.u32 32, %s19
      %p237 = scmp.lt.s32.totalorder %s236, 95
      %s238 = scalar_select %p237, %s236, 95
      %p239 = scmp.lt.s32.totalorder %s20, 0
      %s240 = scalar_select %p239, %s20, 0
      %s241 = sadd.s32 %s240, %s238
      %s242 = smul.addr %s241, 4
      %s243 = scalar_lea.vmem %s3, %s242
      %p244 = pneg %p128
      %p245 = pneg %p125
      %p246 = pneg %p156
      %p247 = pneg %p153
      %s248 = smul.u32 32, %s19
      %p249 = scmp.lt.s32.totalorder %s248, 95
      %s250 = scalar_select %p249, %s248, 95
      %p251 = scmp.lt.s32.totalorder %s20, 0
      %s252 = scalar_select %p251, %s20, 0
      %s253 = sadd.s32 %s252, %s250
      %s254 = smul.addr %s253, 4
      %s255 = scalar_lea.vmem %s4, %s254
      %s256 = smul.u32 32, %s19
      %p257 = scmp.lt.s32.totalorder %s256, 95
      %s258 = scalar_select %p257, %s256, 95
      %s259 = smul.addr %s258, 2
      %s260 = smul.addr %s259, 4
      %s261 = scalar_lea.vmem %s0, %s260
      %s262 = smul.u32 32, %s19
      %p263 = scmp.lt.s32.totalorder %s20, 0
      %s264 = scalar_select %p263, %s20, 0
      %s265 = smul.addr %s264, 4
      %s266 = scalar_lea.vmem %s1, %s265
      %p267 = scmp.lt.s32.totalorder %s20, 0
      %s268 = scalar_select %p267, %s20, 0
      %s269 = scalar_lea.vmem %s2, %s268
      %s270 = smul.u32 32, %s19
      %p271 = scmp.lt.s32.totalorder %s270, 95
      %s272 = scalar_select %p271, %s270, 95
      %p273 = scmp.lt.s32.totalorder %s20, 0
      %s274 = scalar_select %p273, %s20, 0
      %s275 = sadd.s32 %s274, %s272
      %s276 = smul.addr %s275, 4
      %s277 = scalar_lea.vmem %s3, %s276
      %s278 = smul.u32 32, %s19
      %s279 = smul.u32 32, %s19
      %p280 = scmp.lt.s32.totalorder %s279, 95
      %s281 = scalar_select %p280, %s279, 95
      %p282 = scmp.lt.s32.totalorder %s20, 0
      %s283 = scalar_select %p282, %s20, 0
      %s284 = sadd.s32 %s283, %s281
      %s285 = smul.addr %s284, 4
      %s286 = scalar_lea.vmem %s4, %s285
      %s287 = smul.u32 32, %s19
      %v289 = vld [vmem:[%s261] sm:$0xff]
      %v290 = vld [vmem:[%s261 + $0x8] sm:$0xff]
      %v291 = vld [vmem:[%s261 + $0x10] sm:$0xff]
      %v292 = vld [vmem:[%s261 + $0x18] sm:$0xff]
      %v293 = vld [vmem:[%s261 + $0x20] sm:$0xff]
      %v294 = vld [vmem:[%s261 + $0x28] sm:$0xff]
      %v295 = vld [vmem:[%s261 + $0x30] sm:$0xff]
      %v296 = vld [vmem:[%s261 + $0x38] sm:$0xff]
      %v297 = vld [vmem:[%s261 + $0x40] sm:$0xff]
      %v298 = vld [vmem:[%s261 + $0x48] sm:$0xff]
      %v299 = vld [vmem:[%s261 + $0x50] sm:$0xff]
      %v300 = vld [vmem:[%s261 + $0x58] sm:$0xff]
      %v301 = vld [vmem:[%s261 + $0x60] sm:$0xff]
      %v302 = vld [vmem:[%s261 + $0x68] sm:$0xff]
      %v303 = vld [vmem:[%s261 + $0x70] sm:$0xff]
      %v304 = vld [vmem:[%s261 + $0x78] sm:$0xff]
      %v305 = vld [vmem:[%s261 + $0x80] sm:$0xff]
      %v306 = vld [vmem:[%s261 + $0x88] sm:$0xff]
      %v307 = vld [vmem:[%s261 + $0x90] sm:$0xff]
      %v308 = vld [vmem:[%s261 + $0x98] sm:$0xff]
      %v309 = vld [vmem:[%s261 + $0xa0] sm:$0xff]
      %v310 = vld [vmem:[%s261 + $0xa8] sm:$0xff]
      %v311 = vld [vmem:[%s261 + $0xb0] sm:$0xff]
      %v312 = vld [vmem:[%s261 + $0xb8] sm:$0xff]
      %v313 = vld [vmem:[%s261 + $0xc0] sm:$0xff]
      %v314 = vld [vmem:[%s261 + $0xc8] sm:$0xff]
      %v315 = vld [vmem:[%s261 + $0xd0] sm:$0xff]
      %v316 = vld [vmem:[%s261 + $0xd8] sm:$0xff]
      %v317 = vld [vmem:[%s261 + $0xe0] sm:$0xff]
      %v318 = vld [vmem:[%s261 + $0xe8] sm:$0xff]
      %v319 = vld [vmem:[%s261 + $0xf0] sm:$0xff]
      %v320 = vld [vmem:[%s261 + $0xf8] sm:$0xff]
      %v321 = vld [vmem:[%s266] sm:$0xf]
      %v322 = vld [vmem:[%s266 + $0x4] sm:$0xf]
      %v323 = vld [vmem:[%s266 + $0x8] sm:$0xf]
      %v324 = vld [vmem:[%s266 + $0xc] sm:$0xf]
      %v325 = vld [vmem:[%s266 + $0x10] sm:$0xf]
      %v326 = vld [vmem:[%s266 + $0x14] sm:$0xf]
      %v327 = vld [vmem:[%s266 + $0x18] sm:$0xf]
      %v328 = vld [vmem:[%s266 + $0x1c] sm:$0xf]
      %v329 = vld [vmem:[%s266 + $0x20] sm:$0xf]
      %v330 = vld [vmem:[%s266 + $0x24] sm:$0xf]
      %v331 = vld [vmem:[%s266 + $0x28] sm:$0xf]
      %v332 = vld [vmem:[%s266 + $0x2c] sm:$0xf]
      %v333 = vld [vmem:[%s266 + $0x30] sm:$0xf]
      %v334 = vld [vmem:[%s266 + $0x34] sm:$0xf]
      %v335 = vld [vmem:[%s266 + $0x38] sm:$0xf]
      %v336 = vld [vmem:[%s266 + $0x3c] sm:$0xf]
      %v337 = vld [vmem:[%s266 + $0x40] sm:$0xf]
      %v338 = vld [vmem:[%s266 + $0x44] sm:$0xf]
      %v339 = vld [vmem:[%s269] sm:$0x1]
      %v341 = vlaneseq
      %v342 = vshrl.u32 %v341, 7
      %v343 = vsub.s32 0, %v342
      %v344 = vrot.slane %v339, %v343
      %v378 = vunpack.c.l.b16 %v289
      %v379 = vunpack.c.h.b16 %v289
      %v380 = vunpack.c.l.b16 %v290
      %v381 = vunpack.c.h.b16 %v290
      %v382 = vunpack.c.l.b16 %v291
      %v383 = vunpack.c.h.b16 %v291
      %v384 = vunpack.c.l.b16 %v292
      %v385 = vunpack.c.h.b16 %v292
      %v386 = vunpack.c.l.b16 %v293
      %v387 = vunpack.c.h.b16 %v293
      %v388 = vunpack.c.l.b16 %v294
      %v389 = vunpack.c.h.b16 %v294
      %v390 = vunpack.c.l.b16 %v295
      %v391 = vunpack.c.h.b16 %v295
      %v392 = vunpack.c.l.b16 %v296
      %v393 = vunpack.c.h.b16 %v296
      %v394 = vunpack.c.l.b16 %v297
      %v395 = vunpack.c.h.b16 %v297
      %v396 = vunpack.c.l.b16 %v298
      %v397 = vunpack.c.h.b16 %v298
      %v398 = vunpack.c.l.b16 %v299
      %v399 = vunpack.c.h.b16 %v299
      %v400 = vunpack.c.l.b16 %v300
      %v401 = vunpack.c.h.b16 %v300
      %v402 = vunpack.c.l.b16 %v301
      %v403 = vunpack.c.h.b16 %v301
      %v404 = vunpack.c.l.b16 %v302
      %v405 = vunpack.c.h.b16 %v302
      %v406 = vunpack.c.l.b16 %v303
      %v407 = vunpack.c.h.b16 %v303
      %v408 = vunpack.c.l.b16 %v304
      %v409 = vunpack.c.h.b16 %v304
      %v410 = vunpack.c.l.b16 %v305
      %v411 = vunpack.c.h.b16 %v305
      %v412 = vunpack.c.l.b16 %v306
      %v413 = vunpack.c.h.b16 %v306
      %v414 = vunpack.c.l.b16 %v307
      %v415 = vunpack.c.h.b16 %v307
      %v416 = vunpack.c.l.b16 %v308
      %v417 = vunpack.c.h.b16 %v308
      %v418 = vunpack.c.l.b16 %v309
      %v419 = vunpack.c.h.b16 %v309
      %v420 = vunpack.c.l.b16 %v310
      %v421 = vunpack.c.h.b16 %v310
      %v422 = vunpack.c.l.b16 %v311
      %v423 = vunpack.c.h.b16 %v311
      %v424 = vunpack.c.l.b16 %v312
      %v425 = vunpack.c.h.b16 %v312
      %v426 = vunpack.c.l.b16 %v313
      %v427 = vunpack.c.h.b16 %v313
      %v428 = vunpack.c.l.b16 %v314
      %v429 = vunpack.c.h.b16 %v314
      %v430 = vunpack.c.l.b16 %v315
      %v431 = vunpack.c.h.b16 %v315
      %v432 = vunpack.c.l.b16 %v316
      %v433 = vunpack.c.h.b16 %v316
      %v434 = vunpack.c.l.b16 %v317
      %v435 = vunpack.c.h.b16 %v317
      %v436 = vunpack.c.l.b16 %v318
      %v437 = vunpack.c.h.b16 %v318
      %v438 = vunpack.c.l.b16 %v319
      %v439 = vunpack.c.h.b16 %v319
      %v440 = vunpack.c.l.b16 %v320
      %v441 = vunpack.c.h.b16 %v320
      %v442 = vpack.c.b16 %v380, %v378
      %v443 = vpack.c.b16 %v381, %v379
      %v444 = vpack.c.b16 %v384, %v382
      %v445 = vpack.c.b16 %v385, %v383
      %v446 = vpack.c.b16 %v388, %v386
      %v447 = vpack.c.b16 %v389, %v387
      %v448 = vpack.c.b16 %v392, %v390
      %v449 = vpack.c.b16 %v393, %v391
      %v450 = vpack.c.b16 %v396, %v394
      %v451 = vpack.c.b16 %v397, %v395
      %v452 = vpack.c.b16 %v400, %v398
      %v453 = vpack.c.b16 %v401, %v399
      %v454 = vpack.c.b16 %v404, %v402
      %v455 = vpack.c.b16 %v405, %v403
      %v456 = vpack.c.b16 %v408, %v406
      %v457 = vpack.c.b16 %v409, %v407
      %v458 = vpack.c.b16 %v412, %v410
      %v459 = vpack.c.b16 %v413, %v411
      %v460 = vpack.c.b16 %v416, %v414
      %v461 = vpack.c.b16 %v417, %v415
      %v462 = vpack.c.b16 %v420, %v418
      %v463 = vpack.c.b16 %v421, %v419
      %v464 = vpack.c.b16 %v424, %v422
      %v465 = vpack.c.b16 %v425, %v423
      %v466 = vpack.c.b16 %v428, %v426
      %v467 = vpack.c.b16 %v429, %v427
      %v468 = vpack.c.b16 %v432, %v430
      %v469 = vpack.c.b16 %v433, %v431
      %v470 = vpack.c.b16 %v436, %v434
      %v471 = vpack.c.b16 %v437, %v435
      %v472 = vpack.c.b16 %v440, %v438
      %v473 = vpack.c.b16 %v441, %v439
      %v508 = vunpack.c.l.b16 %v321
      %v509 = vunpack.c.l.b16 %v322
      %v510 = vunpack.c.l.b16 %v323
      %v511 = vunpack.c.l.b16 %v324
      %v512 = vunpack.c.l.b16 %v325
      %v513 = vunpack.c.l.b16 %v326
      %v514 = vunpack.c.l.b16 %v327
      %v515 = vunpack.c.l.b16 %v328
      %v516 = vunpack.c.l.b16 %v329
      %v517 = vunpack.c.l.b16 %v330
      %v518 = vunpack.c.l.b16 %v331
      %v519 = vunpack.c.l.b16 %v332
      %v520 = vunpack.c.l.b16 %v333
      %v521 = vunpack.c.l.b16 %v334
      %v522 = vunpack.c.l.b16 %v335
      %v523 = vunpack.c.l.b16 %v336
      %v524 = vunpack.c.l.b16 %v337
      %v525 = vunpack.c.l.b16 %v338
      %v526 = vpack.c.b16 %v509, %v508
      %v527 = vpack.c.b16 %v511, %v510
      %v528 = vpack.c.b16 %v513, %v512
      %v529 = vpack.c.b16 %v515, %v514
      %v530 = vpack.c.b16 %v517, %v516
      %v531 = vpack.c.b16 %v519, %v518
      %v532 = vpack.c.b16 %v521, %v520
      %v533 = vpack.c.b16 %v523, %v522
      %v534 = vpack.c.b16 %v525, %v524
      %vm544 = vcmask 130048
      %v546 = vsel %vm544, %v443, 0
      %v549 = vsel %vm544, %v445, 0
      %v552 = vsel %vm544, %v447, 0
      %v555 = vsel %vm544, %v449, 0
      %v558 = vsel %vm544, %v451, 0
      %v561 = vsel %vm544, %v453, 0
      %v564 = vsel %vm544, %v455, 0
      %v567 = vsel %vm544, %v457, 0
      %v570 = vsel %vm544, %v459, 0
      %v573 = vsel %vm544, %v461, 0
      %v576 = vsel %vm544, %v463, 0
      %v579 = vsel %vm544, %v465, 0
      %v582 = vsel %vm544, %v467, 0
      %v585 = vsel %vm544, %v469, 0
      %v588 = vsel %vm544, %v471, 0
      %v591 = vsel %vm544, %v473, 0
      %593 = vmatprep.subr.bf16.mxu0 0
      %594 = vmatpush1.bf16.msra.mxu0 %v526
      %595 = vmatprep.subr.bf16.mxu0 0
      %596 = vmatpush1.bf16.msra.mxu0 %v527
      %597 = vmatprep.subr.bf16.mxu0 0
      %598 = vmatpush1.bf16.msra.mxu0 %v528
      %599 = vmatprep.subr.bf16.mxu0 0
      %600 = vmatpush1.bf16.msra.mxu0 %v529
      %601 = vmatprep.subr.bf16.mxu0 0
      %602 = vmatpush1.bf16.msra.mxu0 %v530
      %603 = vmatprep.subr.bf16.mxu0 0
      %604 = vmatpush1.bf16.msra.mxu0 %v531
      %605 = vmatprep.subr.bf16.mxu0 0
      %606 = vmatpush1.bf16.msra.mxu0 %v532
      %607 = vmatprep.subr.bf16.mxu0 0
      %608 = vmatpush1.bf16.msra.mxu0 %v533
      %609 = vmatprep.subr.bf16.mxu0 0
      %610 = vmatpush1.bf16.msra.mxu0 %v534
      %611 = vmatprep.subr.bf16.mxu0 0
      %612 = vmatpush1.bf16.msra.mxu0 0
      %613 = vmatprep.subr.bf16.mxu0 0
      %614 = vmatpush1.bf16.msra.mxu0 0
      %615 = vmatprep.subr.bf16.mxu0 0
      %616 = vmatpush1.bf16.msra.mxu0 0
      %617 = vmatprep.subr.bf16.mxu0 0
      %618 = vmatpush1.bf16.msra.mxu0 0
      %619 = vmatprep.subr.bf16.mxu0 0
      %620 = vmatpush1.bf16.msra.mxu0 0
      %621 = vmatprep.subr.bf16.mxu0 0
      %622 = vmatpush1.bf16.msra.mxu0 0
      %623 = vmatprep.subr.bf16.mxu0 0
      %624 = vmatpush1.bf16.msra.mxu0 0
      %625 = vmatprep.mubr.bf16.mxu0 %v546
      %626 = vmatmul.mubr.bf16.gmra.mrb[0].mxu0 %v442
      %v627 = vpop.f32.mrb[0].mxu0
      %v628 = vadd.f32 %v344, %v627
      %v629 = vpop.f32.mrb[0].mxu0
      %v630 = vpop.f32.mrb[0].mxu0
      %v631 = vadd.f32 %v344, %v630
      %v632 = vpop.f32.mrb[0].mxu0
      %633 = vmatprep.mubr.bf16.mxu0 %v549
      %634 = vmatmul.mubr.bf16.gmra.mrb[0].mxu0 %v444
      %v635 = vpop.f32.mrb[0].mxu0
      %v636 = vadd.f32 %v344, %v635
      %v637 = vpop.f32.mrb[0].mxu0
      %v638 = vpop.f32.mrb[0].mxu0
      %v639 = vadd.f32 %v344, %v638
      %v640 = vpop.f32.mrb[0].mxu0
      %641 = vmatprep.mubr.bf16.mxu0 %v552
      %642 = vmatmul.mubr.bf16.gmra.mrb[0].mxu0 %v446
      %v643 = vpop.f32.mrb[0].mxu0
      %v644 = vadd.f32 %v344, %v643
      %v645 = vpop.f32.mrb[0].mxu0
      %v646 = vpop.f32.mrb[0].mxu0
      %v647 = vadd.f32 %v344, %v646
      %v648 = vpop.f32.mrb[0].mxu0
      %649 = vmatprep.mubr.bf16.mxu0 %v555
      %650 = vmatmul.mubr.bf16.gmra.mrb[0].mxu0 %v448
      %v651 = vpop.f32.mrb[0].mxu0
      %v652 = vadd.f32 %v344, %v651
      %v653 = vpop.f32.mrb[0].mxu0
      %v654 = vpop.f32.mrb[0].mxu0
      %v655 = vadd.f32 %v344, %v654
      %v656 = vpop.f32.mrb[0].mxu0
      %657 = vmatprep.mubr.bf16.mxu0 %v558
      %658 = vmatmul.mubr.bf16.gmra.mrb[0].mxu0 %v450
      %v659 = vpop.f32.mrb[0].mxu0
      %v660 = vadd.f32 %v344, %v659
      %v661 = vpop.f32.mrb[0].mxu0
      %v662 = vpop.f32.mrb[0].mxu0
      %v663 = vadd.f32 %v344, %v662
      %v664 = vpop.f32.mrb[0].mxu0
      %665 = vmatprep.mubr.bf16.mxu0 %v561
      %666 = vmatmul.mubr.bf16.gmra.mrb[0].mxu0 %v452
      %v667 = vpop.f32.mrb[0].mxu0
      %v668 = vadd.f32 %v344, %v667
      %v669 = vpop.f32.mrb[0].mxu0
      %v670 = vpop.f32.mrb[0].mxu0
      %v671 = vadd.f32 %v344, %v670
      %v672 = vpop.f32.mrb[0].mxu0
      %673 = vmatprep.mubr.bf16.mxu0 %v564
      %674 = vmatmul.mubr.bf16.gmra.mrb[0].mxu0 %v454
      %v675 = vpop.f32.mrb[0].mxu0
      %v676 = vadd.f32 %v344, %v675
      %v677 = vpop.f32.mrb[0].mxu0
      %v678 = vpop.f32.mrb[0].mxu0
      %v679 = vadd.f32 %v344, %v678
      %v680 = vpop.f32.mrb[0].mxu0
      %681 = vmatprep.mubr.bf16.mxu0 %v567
      %682 = vmatmul.mubr.bf16.gmra.mrb[0].mxu0 %v456
      %v683 = vpop.f32.mrb[0].mxu0
      %v684 = vadd.f32 %v344, %v683
      %v685 = vpop.f32.mrb[0].mxu0
      %v686 = vpop.f32.mrb[0].mxu0
      %v687 = vadd.f32 %v344, %v686
      %v688 = vpop.f32.mrb[0].mxu0
      %689 = vmatprep.mubr.bf16.mxu0 %v570
      %690 = vmatmul.mubr.bf16.gmra.mrb[0].mxu0 %v458
      %v691 = vpop.f32.mrb[0].mxu0
      %v692 = vadd.f32 %v344, %v691
      %v693 = vpop.f32.mrb[0].mxu0
      %v694 = vpop.f32.mrb[0].mxu0
      %v695 = vadd.f32 %v344, %v694
      %v696 = vpop.f32.mrb[0].mxu0
      %697 = vmatprep.mubr.bf16.mxu0 %v573
      %698 = vmatmul.mubr.bf16.gmra.mrb[0].mxu0 %v460
      %v699 = vpop.f32.mrb[0].mxu0
      %v700 = vadd.f32 %v344, %v699
      %v701 = vpop.f32.mrb[0].mxu0
      %v702 = vpop.f32.mrb[0].mxu0
      %v703 = vadd.f32 %v344, %v702
      %v704 = vpop.f32.mrb[0].mxu0
      %705 = vmatprep.mubr.bf16.mxu0 %v576
      %706 = vmatmul.mubr.bf16.gmra.mrb[0].mxu0 %v462
      %v707 = vpop.f32.mrb[0].mxu0
      %v708 = vadd.f32 %v344, %v707
      %v709 = vpop.f32.mrb[0].mxu0
      %v710 = vpop.f32.mrb[0].mxu0
      %v711 = vadd.f32 %v344, %v710
      %v712 = vpop.f32.mrb[0].mxu0
      %713 = vmatprep.mubr.bf16.mxu0 %v579
      %714 = vmatmul.mubr.bf16.gmra.mrb[0].mxu0 %v464
      %v715 = vpop.f32.mrb[0].mxu0
      %v716 = vadd.f32 %v344, %v715
      %v717 = vpop.f32.mrb[0].mxu0
      %v718 = vpop.f32.mrb[0].mxu0
      %v719 = vadd.f32 %v344, %v718
      %v720 = vpop.f32.mrb[0].mxu0
      %721 = vmatprep.mubr.bf16.mxu0 %v582
      %722 = vmatmul.mubr.bf16.gmra.mrb[0].mxu0 %v466
      %v723 = vpop.f32.mrb[0].mxu0
      %v724 = vadd.f32 %v344, %v723
      %v725 = vpop.f32.mrb[0].mxu0
      %v726 = vpop.f32.mrb[0].mxu0
      %v727 = vadd.f32 %v344, %v726
      %v728 = vpop.f32.mrb[0].mxu0
      %729 = vmatprep.mubr.bf16.mxu0 %v585
      %730 = vmatmul.mubr.bf16.gmra.mrb[0].mxu0 %v468
      %v731 = vpop.f32.mrb[0].mxu0
      %v732 = vadd.f32 %v344, %v731
      %v733 = vpop.f32.mrb[0].mxu0
      %v734 = vpop.f32.mrb[0].mxu0
      %v735 = vadd.f32 %v344, %v734
      %v736 = vpop.f32.mrb[0].mxu0
      %737 = vmatprep.mubr.bf16.mxu0 %v588
      %738 = vmatmul.mubr.bf16.gmra.mrb[0].mxu0 %v470
      %v739 = vpop.f32.mrb[0].mxu0
      %v740 = vadd.f32 %v344, %v739
      %v741 = vpop.f32.mrb[0].mxu0
      %v742 = vpop.f32.mrb[0].mxu0
      %v743 = vadd.f32 %v344, %v742
      %v744 = vpop.f32.mrb[0].mxu0
      %745 = vmatprep.mubr.bf16.mxu0 %v591
      %746 = vmatmul.mubr.bf16.gmra.mrb[0].mxu0 %v472
      %v747 = vpop.f32.mrb[0].mxu0
      %v748 = vadd.f32 %v344, %v747
      %v749 = vpop.f32.mrb[0].mxu0
      %v750 = vpop.f32.mrb[0].mxu0
      %v751 = vadd.f32 %v344, %v750
      %v752 = vpop.f32.mrb[0].mxu0
      %753 = vdwg.mxu0
      %v754 = vld [vmem:[%s277] sm:$0xf]
      %v755 = vld [vmem:[%s277 + $0x4] sm:$0xf]
      %v756 = vld [vmem:[%s277 + $0x8] sm:$0xf]
      %v757 = vld [vmem:[%s277 + $0xc] sm:$0xf]
      %v758 = vld [vmem:[%s277 + $0x10] sm:$0xf]
      %v759 = vld [vmem:[%s277 + $0x14] sm:$0xf]
      %v760 = vld [vmem:[%s277 + $0x18] sm:$0xf]
      %v761 = vld [vmem:[%s277 + $0x1c] sm:$0xf]
      %v762 = vld [vmem:[%s277 + $0x20] sm:$0xf]
      %v763 = vld [vmem:[%s277 + $0x24] sm:$0xf]
      %v764 = vld [vmem:[%s277 + $0x28] sm:$0xf]
      %v765 = vld [vmem:[%s277 + $0x2c] sm:$0xf]
      %v766 = vld [vmem:[%s277 + $0x30] sm:$0xf]
      %v767 = vld [vmem:[%s277 + $0x34] sm:$0xf]
      %v768 = vld [vmem:[%s277 + $0x38] sm:$0xf]
      %v769 = vld [vmem:[%s277 + $0x3c] sm:$0xf]
      %v770 = vld [vmem:[%s277 + $0x40] sm:$0xf]
      %v771 = vld [vmem:[%s277 + $0x44] sm:$0xf]
      %v772 = vld [vmem:[%s277 + $0x48] sm:$0xf]
      %v773 = vld [vmem:[%s277 + $0x4c] sm:$0xf]
      %v774 = vld [vmem:[%s277 + $0x50] sm:$0xf]
      %v775 = vld [vmem:[%s277 + $0x54] sm:$0xf]
      %v776 = vld [vmem:[%s277 + $0x58] sm:$0xf]
      %v777 = vld [vmem:[%s277 + $0x5c] sm:$0xf]
      %v778 = vld [vmem:[%s277 + $0x60] sm:$0xf]
      %v779 = vld [vmem:[%s277 + $0x64] sm:$0xf]
      %v780 = vld [vmem:[%s277 + $0x68] sm:$0xf]
      %v781 = vld [vmem:[%s277 + $0x6c] sm:$0xf]
      %v782 = vld [vmem:[%s277 + $0x70] sm:$0xf]
      %v783 = vld [vmem:[%s277 + $0x74] sm:$0xf]
      %v784 = vld [vmem:[%s277 + $0x78] sm:$0xf]
      %v785 = vld [vmem:[%s277 + $0x7c] sm:$0xf]
      %v786 = vunpack.c.l.bf16 %v754
      %v787 = vunpack.c.l.bf16 %v755
      %v788 = vunpack.c.l.bf16 %v756
      %v789 = vunpack.c.l.bf16 %v757
      %v790 = vunpack.c.l.bf16 %v758
      %v791 = vunpack.c.l.bf16 %v759
      %v792 = vunpack.c.l.bf16 %v760
      %v793 = vunpack.c.l.bf16 %v761
      %v794 = vunpack.c.l.bf16 %v762
      %v795 = vunpack.c.l.bf16 %v763
      %v796 = vunpack.c.l.bf16 %v764
      %v797 = vunpack.c.l.bf16 %v765
      %v798 = vunpack.c.l.bf16 %v766
      %v799 = vunpack.c.l.bf16 %v767
      %v800 = vunpack.c.l.bf16 %v768
      %v801 = vunpack.c.l.bf16 %v769
      %v802 = vunpack.c.l.bf16 %v770
      %v803 = vunpack.c.l.bf16 %v771
      %v804 = vunpack.c.l.bf16 %v772
      %v805 = vunpack.c.l.bf16 %v773
      %v806 = vunpack.c.l.bf16 %v774
      %v807 = vunpack.c.l.bf16 %v775
      %v808 = vunpack.c.l.bf16 %v776
      %v809 = vunpack.c.l.bf16 %v777
      %v810 = vunpack.c.l.bf16 %v778
      %v811 = vunpack.c.l.bf16 %v779
      %v812 = vunpack.c.l.bf16 %v780
      %v813 = vunpack.c.l.bf16 %v781
      %v814 = vunpack.c.l.bf16 %v782
      %v815 = vunpack.c.l.bf16 %v783
      %v816 = vunpack.c.l.bf16 %v784
      %v817 = vunpack.c.l.bf16 %v785
      %v818 = vadd.f32 %v628, %v786
      %v819 = vadd.f32 %v631, %v787
      %v820 = vadd.f32 %v636, %v788
      %v821 = vadd.f32 %v639, %v789
      %v822 = vadd.f32 %v644, %v790
      %v823 = vadd.f32 %v647, %v791
      %v824 = vadd.f32 %v652, %v792
      %v825 = vadd.f32 %v655, %v793
      %v826 = vadd.f32 %v660, %v794
      %v827 = vadd.f32 %v663, %v795
      %v828 = vadd.f32 %v668, %v796
      %v829 = vadd.f32 %v671, %v797
      %v830 = vadd.f32 %v676, %v798
      %v831 = vadd.f32 %v679, %v799
      %v832 = vadd.f32 %v684, %v800
      %v833 = vadd.f32 %v687, %v801
      %v834 = vadd.f32 %v692, %v802
      %v835 = vadd.f32 %v695, %v803
      %v836 = vadd.f32 %v700, %v804
      %v837 = vadd.f32 %v703, %v805
      %v838 = vadd.f32 %v708, %v806
      %v839 = vadd.f32 %v711, %v807
      %v840 = vadd.f32 %v716, %v808
      %v841 = vadd.f32 %v719, %v809
      %v842 = vadd.f32 %v724, %v810
      %v843 = vadd.f32 %v727, %v811
      %v844 = vadd.f32 %v732, %v812
      %v845 = vadd.f32 %v735, %v813
      %v846 = vadd.f32 %v740, %v814
      %v847 = vadd.f32 %v743, %v815
      %v848 = vadd.f32 %v748, %v816
      %v849 = vadd.f32 %v751, %v817
      %v850 = vmax.f32 %v818, 0.0
      %v851 = vmax.f32 %v819, 0.0
      %v852 = vmax.f32 %v820, 0.0
      %v853 = vmax.f32 %v821, 0.0
      %v854 = vmax.f32 %v822, 0.0
      %v855 = vmax.f32 %v823, 0.0
      %v856 = vmax.f32 %v824, 0.0
      %v857 = vmax.f32 %v825, 0.0
      %v858 = vmax.f32 %v826, 0.0
      %v859 = vmax.f32 %v827, 0.0
      %v860 = vmax.f32 %v828, 0.0
      %v861 = vmax.f32 %v829, 0.0
      %v862 = vmax.f32 %v830, 0.0
      %v863 = vmax.f32 %v831, 0.0
      %v864 = vmax.f32 %v832, 0.0
      %v865 = vmax.f32 %v833, 0.0
      %v866 = vmax.f32 %v834, 0.0
      %v867 = vmax.f32 %v835, 0.0
      %v868 = vmax.f32 %v836, 0.0
      %v869 = vmax.f32 %v837, 0.0
      %v870 = vmax.f32 %v838, 0.0
      %v871 = vmax.f32 %v839, 0.0
      %v872 = vmax.f32 %v840, 0.0
      %v873 = vmax.f32 %v841, 0.0
      %v874 = vmax.f32 %v842, 0.0
      %v875 = vmax.f32 %v843, 0.0
      %v876 = vmax.f32 %v844, 0.0
      %v877 = vmax.f32 %v845, 0.0
      %v878 = vmax.f32 %v846, 0.0
      %v879 = vmax.f32 %v847, 0.0
      %v880 = vmax.f32 %v848, 0.0
      %v881 = vmax.f32 %v849, 0.0
      %v882 = vpack.c.bf16 %v851, %v850
      %v883 = vpack.c.bf16 %v853, %v852
      %v884 = vpack.c.bf16 %v855, %v854
      %v885 = vpack.c.bf16 %v857, %v856
      %v886 = vpack.c.bf16 %v859, %v858
      %v887 = vpack.c.bf16 %v861, %v860
      %v888 = vpack.c.bf16 %v863, %v862
      %v889 = vpack.c.bf16 %v865, %v864
      %v890 = vpack.c.bf16 %v867, %v866
      %v891 = vpack.c.bf16 %v869, %v868
      %v892 = vpack.c.bf16 %v871, %v870
      %v893 = vpack.c.bf16 %v873, %v872
      %v894 = vpack.c.bf16 %v875, %v874
      %v895 = vpack.c.bf16 %v877, %v876
      %v896 = vpack.c.bf16 %v879, %v878
      %v897 = vpack.c.bf16 %v881, %v880
      %v914 = vunpack.c.l.b16 %v882
      %v915 = vunpack.c.h.b16 %v882
      %v916 = vunpack.c.l.b16 %v883
      %v917 = vunpack.c.h.b16 %v883
      %v918 = vunpack.c.l.b16 %v884
      %v919 = vunpack.c.h.b16 %v884
      %v920 = vunpack.c.l.b16 %v885
      %v921 = vunpack.c.h.b16 %v885
      %v922 = vunpack.c.l.b16 %v886
      %v923 = vunpack.c.h.b16 %v886
      %v924 = vunpack.c.l.b16 %v887
      %v925 = vunpack.c.h.b16 %v887
      %v926 = vunpack.c.l.b16 %v888
      %v927 = vunpack.c.h.b16 %v888
      %v928 = vunpack.c.l.b16 %v889
      %v929 = vunpack.c.h.b16 %v889
      %v930 = vunpack.c.l.b16 %v890
      %v931 = vunpack.c.h.b16 %v890
      %v932 = vunpack.c.l.b16 %v891
      %v933 = vunpack.c.h.b16 %v891
      %v934 = vunpack.c.l.b16 %v892
      %v935 = vunpack.c.h.b16 %v892
      %v936 = vunpack.c.l.b16 %v893
      %v937 = vunpack.c.h.b16 %v893
      %v938 = vunpack.c.l.b16 %v894
      %v939 = vunpack.c.h.b16 %v894
      %v940 = vunpack.c.l.b16 %v895
      %v941 = vunpack.c.h.b16 %v895
      %v942 = vunpack.c.l.b16 %v896
      %v943 = vunpack.c.h.b16 %v896
      %v944 = vunpack.c.l.b16 %v897
      %v945 = vunpack.c.h.b16 %v897
      %v946 = vpack.c.b16 %v914, %v914
      %v947 = vpack.c.b16 %v915, %v915
      %v948 = vpack.c.b16 %v916, %v916
      %v949 = vpack.c.b16 %v917, %v917
      %v950 = vpack.c.b16 %v918, %v918
      %v951 = vpack.c.b16 %v919, %v919
      %v952 = vpack.c.b16 %v920, %v920
      %v953 = vpack.c.b16 %v921, %v921
      %v954 = vpack.c.b16 %v922, %v922
      %v955 = vpack.c.b16 %v923, %v923
      %v956 = vpack.c.b16 %v924, %v924
      %v957 = vpack.c.b16 %v925, %v925
      %v958 = vpack.c.b16 %v926, %v926
      %v959 = vpack.c.b16 %v927, %v927
      %v960 = vpack.c.b16 %v928, %v928
      %v961 = vpack.c.b16 %v929, %v929
      %v962 = vpack.c.b16 %v930, %v930
      %v963 = vpack.c.b16 %v931, %v931
      %v964 = vpack.c.b16 %v932, %v932
      %v965 = vpack.c.b16 %v933, %v933
      %v966 = vpack.c.b16 %v934, %v934
      %v967 = vpack.c.b16 %v935, %v935
      %v968 = vpack.c.b16 %v936, %v936
      %v969 = vpack.c.b16 %v937, %v937
      %v970 = vpack.c.b16 %v938, %v938
      %v971 = vpack.c.b16 %v939, %v939
      %v972 = vpack.c.b16 %v940, %v940
      %v973 = vpack.c.b16 %v941, %v941
      %v974 = vpack.c.b16 %v942, %v942
      %v975 = vpack.c.b16 %v943, %v943
      %v976 = vpack.c.b16 %v944, %v944
      %v977 = vpack.c.b16 %v945, %v945
      %vm1010 = vcmask 125952
      %1011 = vst.msk [vmem:[%s286] sm:$0xf] %vm1010, %v946
      %1012 = vst.msk [vmem:[%s286 + $0x4] sm:$0xf] %vm1010, %v947
      %1013 = vst.msk [vmem:[%s286 + $0x8] sm:$0xf] %vm1010, %v948
      %1014 = vst.msk [vmem:[%s286 + $0xc] sm:$0xf] %vm1010, %v949
      %1015 = vst.msk [vmem:[%s286 + $0x10] sm:$0xf] %vm1010, %v950
      %1016 = vst.msk [vmem:[%s286 + $0x14] sm:$0xf] %vm1010, %v951
      %1017 = vst.msk [vmem:[%s286 + $0x18] sm:$0xf] %vm1010, %v952
      %1018 = vst.msk [vmem:[%s286 + $0x1c] sm:$0xf] %vm1010, %v953
      %1019 = vst.msk [vmem:[%s286 + $0x20] sm:$0xf] %vm1010, %v954
      %1020 = vst.msk [vmem:[%s286 + $0x24] sm:$0xf] %vm1010, %v955
      %1021 = vst.msk [vmem:[%s286 + $0x28] sm:$0xf] %vm1010, %v956
      %1022 = vst.msk [vmem:[%s286 + $0x2c] sm:$0xf] %vm1010, %v957
      %1023 = vst.msk [vmem:[%s286 + $0x30] sm:$0xf] %vm1010, %v958
      %1024 = vst.msk [vmem:[%s286 + $0x34] sm:$0xf] %vm1010, %v959
      %1025 = vst.msk [vmem:[%s286 + $0x38] sm:$0xf] %vm1010, %v960
      %1026 = vst.msk [vmem:[%s286 + $0x3c] sm:$0xf] %vm1010, %v961
      %1027 = vst.msk [vmem:[%s286 + $0x40] sm:$0xf] %vm1010, %v962
      %1028 = vst.msk [vmem:[%s286 + $0x44] sm:$0xf] %vm1010, %v963
      %1029 = vst.msk [vmem:[%s286 + $0x48] sm:$0xf] %vm1010, %v964
      %1030 = vst.msk [vmem:[%s286 + $0x4c] sm:$0xf] %vm1010, %v965
      %1031 = vst.msk [vmem:[%s286 + $0x50] sm:$0xf] %vm1010, %v966
      %1032 = vst.msk [vmem:[%s286 + $0x54] sm:$0xf] %vm1010, %v967
      %1033 = vst.msk [vmem:[%s286 + $0x58] sm:$0xf] %vm1010, %v968
      %1034 = vst.msk [vmem:[%s286 + $0x5c] sm:$0xf] %vm1010, %v969
      %1035 = vst.msk [vmem:[%s286 + $0x60] sm:$0xf] %vm1010, %v970
      %1036 = vst.msk [vmem:[%s286 + $0x64] sm:$0xf] %vm1010, %v971
      %1037 = vst.msk [vmem:[%s286 + $0x68] sm:$0xf] %vm1010, %v972
      %1038 = vst.msk [vmem:[%s286 + $0x6c] sm:$0xf] %vm1010, %v973
      %1039 = vst.msk [vmem:[%s286 + $0x70] sm:$0xf] %vm1010, %v974
      %1040 = vst.msk [vmem:[%s286 + $0x74] sm:$0xf] %vm1010, %v975
      %1041 = vst.msk [vmem:[%s286 + $0x78] sm:$0xf] %vm1010, %v976
      %1042 = vst.msk [vmem:[%s286 + $0x7c] sm:$0xf] %vm1010, %v977
      %s1043 = smul.u32 32, %s19
      %p1044 = scmp.lt.s32.totalorder %s1043, 95
      %s1045 = scalar_select %p1044, %s1043, 95
      %p1046 = scmp.lt.s32.totalorder %s20, 0
      %s1047 = scalar_select %p1046, %s20, 0
      %s1048 = sadd.s32 %s1047, %s1045
      %s1049 = smul.addr %s1048, 4
      %s1050 = scalar_lea.vmem %s4, %s1049
      // Predicated region
      $region37: #{_lambda_.15} parent=35 // pred_check
        %p1051 = pneg %p153
      $region38: #{_lambda_.15} parent=35 // pred_check_branch
        %1053 = sbr.rel (%p1051) target = $region40
      $region39: #{_lambda_.15} parent=35 // pred_region
        %s1054 = smul.u32 32, %s19
      $region40: #{_lambda_.15} parent=35 // pred_fallthru
        _
    $region36: #{_lambda_.15} parent=5 // pred_fallthru
      _
    %p1055 = scmp.le.s32.totalorder 2, %s10
    // Predicated region
    $region41: #{_lambda_.15} parent=5 // pred_check
      %p1056 = pneg %p1055
    $region42: #{_lambda_.15} parent=5 // pred_check_branch
      %1058 = sbr.rel (%p1056) target = $region44
    $region43: #{_lambda_.15} parent=5 // pred_region
      %s1059 = ssub.s32 %s10, 2
      // Predicated region
      $region45: #{_lambda_.15} parent=43 // pred_check
        %p1060 = pneg %p159
      $region46: #{_lambda_.15} parent=43 // pred_check_branch
        %1062 = sbr.rel (%p1060) target = $region48
      $region47: #{_lambda_.15} parent=43 // pred_region
        %s1063 = smul.u32 32, %s21
        %p1064 = scmp.lt.s32.totalorder %s1063, 95
        %s1065 = scalar_select %p1064, %s1063, 95
        %p1066 = scmp.lt.s32.totalorder %s22, 0
        %s1067 = scalar_select %p1066, %s22, 0
        %s1068 = sadd.s32 %s1067, %s1065
        %s1069 = smul.addr %s1068, 4
        %s1070 = scalar_lea.vmem %s4, %s1069
      $region48: #{_lambda_.15} parent=43 // pred_fallthru
        _
    $region44: #{_lambda_.15} parent=5 // pred_fallthru
      _
  $region6: #{_lambda_.15} parent=0 // loop_footer
    %s14 = sadd.s32 1, %s10
  $region7: #{_lambda_.15} parent=0 // loop_footer_branch
    %9 = sbr.rel target = $region3
  $region8: #{_lambda_.15} parent=0 // loop_exit
    _

// kernel: _lambda_.16
$region0: #{_lambda_.16}
  #allocation0 [shape = 'u32[]', space=smem, size = 0x4, offset = 0x4, fixed_abs, tag = 'smem constant byte address 0x4 - core index']
  #allocation1 [shape = 'u32[144,128]{1,0:T(1,128)}', space=vmem, size = 0x12000, scoped, tag = 'internal scratch']
  %s0 = inlined_call_operand.vmem [shape: bf16[192,144], index: 0, kind: input, shape index: {}]
  %s1 = inlined_call_operand.vmem [shape: bf16[144,32], index: 1, kind: input, shape index: {}]
  %s2 = inlined_call_operand.vmem [shape: f32[1,32], index: 2, kind: input, shape index: {}]
  %s3 = inlined_call_operand.vmem [shape: bf16[192,32], index: 3, kind: output, shape index: {}]
  %s4 = sld [smem:[#allocation0]]
  $region22: #{_lambda_.16} parent=0
    _
  %s6 = ssub.s32 1, %s4
  %s7 = scalar_select 0, %s6, %s4
  // Predicated region
  $region2: #{_lambda_.16} parent=0 // pred_check
    _
  $region3: #{_lambda_.16} parent=0 // pred_check_branch
    %9 = sbr.rel (0) target = $region5
  $region4: #{_lambda_.16} parent=0 // pred_region
    _
  $region5: #{_lambda_.16} parent=0 // pred_fallthru
    _
  // Predicated region
  $region6: #{_lambda_.16} parent=0 // pred_check
    _
  $region7: #{_lambda_.16} parent=0 // pred_check_branch
    %11 = sbr.rel (0) target = $region9
  $region8: #{_lambda_.16} parent=0 // pred_region
    _
  $region9: #{_lambda_.16} parent=0 // pred_fallthru
    _
  // Predicated region
  $region10: #{_lambda_.16} parent=0 // pred_check
    _
  $region11: #{_lambda_.16} parent=0 // pred_check_branch
    %13 = sbr.rel (0) target = $region13
  $region12: #{_lambda_.16} parent=0 // pred_region
    _
  $region13: #{_lambda_.16} parent=0 // pred_fallthru
    _
  %v15 = vld [vmem:[%s0] sm:$0xff]
  %v16 = vld [vmem:[%s0 + $0x8] sm:$0xff]
  %v17 = vld [vmem:[%s0 + $0x10] sm:$0xff]
  %v18 = vld [vmem:[%s0 + $0x18] sm:$0xff]
  %v19 = vld [vmem:[%s0 + $0x20] sm:$0xff]
  %v20 = vld [vmem:[%s0 + $0x28] sm:$0xff]
  %v21 = vld [vmem:[%s0 + $0x30] sm:$0xff]
  %v22 = vld [vmem:[%s0 + $0x38] sm:$0xff]
  %v23 = vld [vmem:[%s0 + $0x40] sm:$0xff]
  %v24 = vld [vmem:[%s0 + $0x48] sm:$0xff]
  %v25 = vld [vmem:[%s0 + $0x50] sm:$0xff]
  %v26 = vld [vmem:[%s0 + $0x58] sm:$0xff]
  %v27 = vld [vmem:[%s0 + $0x60] sm:$0xff]
  %v28 = vld [vmem:[%s0 + $0x68] sm:$0xff]
  %v29 = vld [vmem:[%s0 + $0x70] sm:$0xff]
  %v30 = vld [vmem:[%s0 + $0x78] sm:$0xff]
  %v31 = vld [vmem:[%s0 + $0x80] sm:$0xff]
  %v32 = vld [vmem:[%s0 + $0x88] sm:$0xff]
  %v33 = vld [vmem:[%s0 + $0x90] sm:$0xff]
  %v34 = vld [vmem:[%s0 + $0x98] sm:$0xff]
  %v35 = vld [vmem:[%s0 + $0xa0] sm:$0xff]
  %v36 = vld [vmem:[%s0 + $0xa8] sm:$0xff]
  %v37 = vld [vmem:[%s0 + $0xb0] sm:$0xff]
  %v38 = vld [vmem:[%s0 + $0xb8] sm:$0xff]
  %v39 = vld [vmem:[%s1] sm:$0xf]
  %v40 = vld [vmem:[%s1 + $0x4] sm:$0xf]
  %v41 = vld [vmem:[%s1 + $0x8] sm:$0xf]
  %v42 = vld [vmem:[%s1 + $0xc] sm:$0xf]
  %v43 = vld [vmem:[%s1 + $0x10] sm:$0xf]
  %v44 = vld [vmem:[%s1 + $0x14] sm:$0xf]
  %v45 = vld [vmem:[%s1 + $0x18] sm:$0xf]
  %v46 = vld [vmem:[%s1 + $0x1c] sm:$0xf]
  %v47 = vld [vmem:[%s1 + $0x20] sm:$0xf]
  %v48 = vld [vmem:[%s1 + $0x24] sm:$0xf]
  %v49 = vld [vmem:[%s1 + $0x28] sm:$0xf]
  %v50 = vld [vmem:[%s1 + $0x2c] sm:$0xf]
  %v51 = vld [vmem:[%s1 + $0x30] sm:$0xf]
  %v52 = vld [vmem:[%s1 + $0x34] sm:$0xf]
  %v53 = vld [vmem:[%s1 + $0x38] sm:$0xf]
  %v54 = vld [vmem:[%s1 + $0x3c] sm:$0xf]
  %v55 = vld [vmem:[%s1 + $0x40] sm:$0xf]
  %v56 = vld [vmem:[%s1 + $0x44] sm:$0xf]
  %v57 = vld [vmem:[%s2] sm:$0x1]
  %v59 = vlaneseq
  %v60 = vshrl.u32 %v59, 7
  %v61 = vsub.s32 0, %v60
  %v62 = vrot.slane %v57, %v61
  %v88 = vunpack.c.l.b16 %v15
  %v89 = vunpack.c.h.b16 %v15
  %v90 = vunpack.c.l.b16 %v16
  %v91 = vunpack.c.h.b16 %v16
  %v92 = vunpack.c.l.b16 %v17
  %v93 = vunpack.c.h.b16 %v17
  %v94 = vunpack.c.l.b16 %v18
  %v95 = vunpack.c.h.b16 %v18
  %v96 = vunpack.c.l.b16 %v19
  %v97 = vunpack.c.h.b16 %v19
  %v98 = vunpack.c.l.b16 %v20
  %v99 = vunpack.c.h.b16 %v20
  %v100 = vunpack.c.l.b16 %v21
  %v101 = vunpack.c.h.b16 %v21
  %v102 = vunpack.c.l.b16 %v22
  %v103 = vunpack.c.h.b16 %v22
  %v104 = vunpack.c.l.b16 %v23
  %v105 = vunpack.c.h.b16 %v23
  %v106 = vunpack.c.l.b16 %v24
  %v107 = vunpack.c.h.b16 %v24
  %v108 = vunpack.c.l.b16 %v25
  %v109 = vunpack.c.h.b16 %v25
  %v110 = vunpack.c.l.b16 %v26
  %v111 = vunpack.c.h.b16 %v26
  %v112 = vunpack.c.l.b16 %v27
  %v113 = vunpack.c.h.b16 %v27
  %v114 = vunpack.c.l.b16 %v28
  %v115 = vunpack.c.h.b16 %v28
  %v116 = vunpack.c.l.b16 %v29
  %v117 = vunpack.c.h.b16 %v29
  %v118 = vunpack.c.l.b16 %v30
  %v119 = vunpack.c.h.b16 %v30
  %v120 = vunpack.c.l.b16 %v31
  %v121 = vunpack.c.h.b16 %v31
  %v122 = vunpack.c.l.b16 %v32
  %v123 = vunpack.c.h.b16 %v32
  %v124 = vunpack.c.l.b16 %v33
  %v125 = vunpack.c.h.b16 %v33
  %v126 = vunpack.c.l.b16 %v34
  %v127 = vunpack.c.h.b16 %v34
  %v128 = vunpack.c.l.b16 %v35
  %v129 = vunpack.c.h.b16 %v35
  %v130 = vunpack.c.l.b16 %v36
  %v131 = vunpack.c.h.b16 %v36
  %v132 = vunpack.c.l.b16 %v37
  %v133 = vunpack.c.h.b16 %v37
  %v134 = vunpack.c.l.b16 %v38
  %v135 = vunpack.c.h.b16 %v38
  %v136 = vpack.c.b16 %v90, %v88
  %v137 = vpack.c.b16 %v91, %v89
  %v138 = vpack.c.b16 %v94, %v92
  %v139 = vpack.c.b16 %v95, %v93
  %v140 = vpack.c.b16 %v98, %v96
  %v141 = vpack.c.b16 %v99, %v97
  %v142 = vpack.c.b16 %v102, %v100
  %v143 = vpack.c.b16 %v103, %v101
  %v144 = vpack.c.b16 %v106, %v104
  %v145 = vpack.c.b16 %v107, %v105
  %v146 = vpack.c.b16 %v110, %v108
  %v147 = vpack.c.b16 %v111, %v109
  %v148 = vpack.c.b16 %v114, %v112
  %v149 = vpack.c.b16 %v115, %v113
  %v150 = vpack.c.b16 %v118, %v116
  %v151 = vpack.c.b16 %v119, %v117
  %v152 = vpack.c.b16 %v122, %v120
  %v153 = vpack.c.b16 %v123, %v121
  %v154 = vpack.c.b16 %v126, %v124
  %v155 = vpack.c.b16 %v127, %v125
  %v156 = vpack.c.b16 %v130, %v128
  %v157 = vpack.c.b16 %v131, %v129
  %v158 = vpack.c.b16 %v134, %v132
  %v159 = vpack.c.b16 %v135, %v133
  %v190 = vunpack.c.l.b16 %v39
  %v191 = vunpack.c.l.b16 %v40
  %v192 = vunpack.c.l.b16 %v41
  %v193 = vunpack.c.l.b16 %v42
  %v194 = vunpack.c.l.b16 %v43
  %v195 = vunpack.c.l.b16 %v44
  %v196 = vunpack.c.l.b16 %v45
  %v197 = vunpack.c.l.b16 %v46
  %v198 = vunpack.c.l.b16 %v47
  %v199 = vunpack.c.l.b16 %v48
  %v200 = vunpack.c.l.b16 %v49
  %v201 = vunpack.c.l.b16 %v50
  %v202 = vunpack.c.l.b16 %v51
  %v203 = vunpack.c.l.b16 %v52
  %v204 = vunpack.c.l.b16 %v53
  %v205 = vunpack.c.l.b16 %v54
  %v206 = vunpack.c.l.b16 %v55
  %v207 = vunpack.c.l.b16 %v56
  %v208 = vpack.c.b16 %v191, %v190
  %v209 = vpack.c.b16 %v193, %v192
  %v210 = vpack.c.b16 %v195, %v194
  %v211 = vpack.c.b16 %v197, %v196
  %v212 = vpack.c.b16 %v199, %v198
  %v213 = vpack.c.b16 %v201, %v200
  %v214 = vpack.c.b16 %v203, %v202
  %v215 = vpack.c.b16 %v205, %v204
  %v216 = vpack.c.b16 %v207, %v206
  %vm226 = vcmask 130048
  %v228 = vsel %vm226, %v137, 0
  %v231 = vsel %vm226, %v139, 0
  %v234 = vsel %vm226, %v141, 0
  %v237 = vsel %vm226, %v143, 0
  %v240 = vsel %vm226, %v145, 0
  %v243 = vsel %vm226, %v147, 0
  %v246 = vsel %vm226, %v149, 0
  %v249 = vsel %vm226, %v151, 0
  %v252 = vsel %vm226, %v153, 0
  %v255 = vsel %vm226, %v155, 0
  %v258 = vsel %vm226, %v157, 0
  %v261 = vsel %vm226, %v159, 0
  %263 = vmatprep.subr.bf16.mxu0 0
  %264 = vmatpush1.bf16.msra.mxu0 %v208
  %265 = vmatprep.subr.bf16.mxu0 0
  %266 = vmatpush1.bf16.msra.mxu0 %v209
  %267 = vmatprep.subr.bf16.mxu0 0
  %268 = vmatpush1.bf16.msra.mxu0 %v210
  %269 = vmatprep.subr.bf16.mxu0 0
  %270 = vmatpush1.bf16.msra.mxu0 %v211
  %271 = vmatprep.subr.bf16.mxu0 0
  %272 = vmatpush1.bf16.msra.mxu0 %v212
  %273 = vmatprep.subr.bf16.mxu0 0
  %274 = vmatpush1.bf16.msra.mxu0 %v213
  %275 = vmatprep.subr.bf16.mxu0 0
  %276 = vmatpush1.bf16.msra.mxu0 %v214
  %277 = vmatprep.subr.bf16.mxu0 0
  %278 = vmatpush1.bf16.msra.mxu0 %v215
  %279 = vmatprep.subr.bf16.mxu0 0
  %280 = vmatpush1.bf16.msra.mxu0 %v216
  %281 = vmatprep.subr.bf16.mxu0 0
  %282 = vmatpush1.bf16.msra.mxu0 0
  %283 = vmatprep.subr.bf16.mxu0 0
  %284 = vmatpush1.bf16.msra.mxu0 0
  %285 = vmatprep.subr.bf16.mxu0 0
  %286 = vmatpush1.bf16.msra.mxu0 0
  %287 = vmatprep.subr.bf16.mxu0 0
  %288 = vmatpush1.bf16.msra.mxu0 0
  %289 = vmatprep.subr.bf16.mxu0 0
  %290 = vmatpush1.bf16.msra.mxu0 0
  %291 = vmatprep.subr.bf16.mxu0 0
  %292 = vmatpush1.bf16.msra.mxu0 0
  %293 = vmatprep.subr.bf16.mxu0 0
  %294 = vmatpush1.bf16.msra.mxu0 0
  %295 = vmatprep.mubr.bf16.mxu0 %v228
  %296 = vmatmul.mubr.bf16.gmra.mrb[0].mxu0 %v136
  %v297 = vpop.f32.mrb[0].mxu0
  %v298 = vadd.f32 %v62, %v297
  %v299 = vpop.f32.mrb[0].mxu0
  %v300 = vpop.f32.mrb[0].mxu0
  %v301 = vadd.f32 %v62, %v300
  %v302 = vpop.f32.mrb[0].mxu0
  %303 = vmatprep.mubr.bf16.mxu0 %v231
  %304 = vmatmul.mubr.bf16.gmra.mrb[0].mxu0 %v138
  %v305 = vpop.f32.mrb[0].mxu0
  %v306 = vadd.f32 %v62, %v305
  %v307 = vpop.f32.mrb[0].mxu0
  %v308 = vpop.f32.mrb[0].mxu0
  %v309 = vadd.f32 %v62, %v308
  %v310 = vpop.f32.mrb[0].mxu0
  %311 = vmatprep.mubr.bf16.mxu0 %v234
  %312 = vmatmul.mubr.bf16.gmra.mrb[0].mxu0 %v140
  %v313 = vpop.f32.mrb[0].mxu0
  %v314 = vadd.f32 %v62, %v313
  %v315 = vpop.f32.mrb[0].mxu0
  %v316 = vpop.f32.mrb[0].mxu0
  %v317 = vadd.f32 %v62, %v316
  %v318 = vpop.f32.mrb[0].mxu0
  %319 = vmatprep.mubr.bf16.mxu0 %v237
  %320 = vmatmul.mubr.bf16.gmra.mrb[0].mxu0 %v142
  %v321 = vpop.f32.mrb[0].mxu0
  %v322 = vadd.f32 %v62, %v321
  %v323 = vpop.f32.mrb[0].mxu0
  %v324 = vpop.f32.mrb[0].mxu0
  %v325 = vadd.f32 %v62, %v324
  %v326 = vpop.f32.mrb[0].mxu0
  %327 = vmatprep.mubr.bf16.mxu0 %v240
  %328 = vmatmul.mubr.bf16.gmra.mrb[0].mxu0 %v144
  %v329 = vpop.f32.mrb[0].mxu0
  %v330 = vadd.f32 %v62, %v329
  %v331 = vpop.f32.mrb[0].mxu0
  %v332 = vpop.f32.mrb[0].mxu0
  %v333 = vadd.f32 %v62, %v332
  %v334 = vpop.f32.mrb[0].mxu0
  %335 = vmatprep.mubr.bf16.mxu0 %v243
  %336 = vmatmul.mubr.bf16.gmra.mrb[0].mxu0 %v146
  %v337 = vpop.f32.mrb[0].mxu0
  %v338 = vadd.f32 %v62, %v337
  %v339 = vpop.f32.mrb[0].mxu0
  %v340 = vpop.f32.mrb[0].mxu0
  %v341 = vadd.f32 %v62, %v340
  %v342 = vpop.f32.mrb[0].mxu0
  %343 = vmatprep.mubr.bf16.mxu0 %v246
  %344 = vmatmul.mubr.bf16.gmra.mrb[0].mxu0 %v148
  %v345 = vpop.f32.mrb[0].mxu0
  %v346 = vadd.f32 %v62, %v345
  %v347 = vpop.f32.mrb[0].mxu0
  %v348 = vpop.f32.mrb[0].mxu0
  %v349 = vadd.f32 %v62, %v348
  %v350 = vpop.f32.mrb[0].mxu0
  %351 = vmatprep.mubr.bf16.mxu0 %v249
  %352 = vmatmul.mubr.bf16.gmra.mrb[0].mxu0 %v150
  %v353 = vpop.f32.mrb[0].mxu0
  %v354 = vadd.f32 %v62, %v353
  %v355 = vpop.f32.mrb[0].mxu0
  %v356 = vpop.f32.mrb[0].mxu0
  %v357 = vadd.f32 %v62, %v356
  %v358 = vpop.f32.mrb[0].mxu0
  %359 = vmatprep.mubr.bf16.mxu0 %v252
  %360 = vmatmul.mubr.bf16.gmra.mrb[0].mxu0 %v152
  %v361 = vpop.f32.mrb[0].mxu0
  %v362 = vadd.f32 %v62, %v361
  %v363 = vpop.f32.mrb[0].mxu0
  %v364 = vpop.f32.mrb[0].mxu0
  %v365 = vadd.f32 %v62, %v364
  %v366 = vpop.f32.mrb[0].mxu0
  %367 = vmatprep.mubr.bf16.mxu0 %v255
  %368 = vmatmul.mubr.bf16.gmra.mrb[0].mxu0 %v154
  %v369 = vpop.f32.mrb[0].mxu0
  %v370 = vadd.f32 %v62, %v369
  %v371 = vpop.f32.mrb[0].mxu0
  %v372 = vpop.f32.mrb[0].mxu0
  %v373 = vadd.f32 %v62, %v372
  %v374 = vpop.f32.mrb[0].mxu0
  %375 = vmatprep.mubr.bf16.mxu0 %v258
  %376 = vmatmul.mubr.bf16.gmra.mrb[0].mxu0 %v156
  %v377 = vpop.f32.mrb[0].mxu0
  %v378 = vadd.f32 %v62, %v377
  %v379 = vpop.f32.mrb[0].mxu0
  %v380 = vpop.f32.mrb[0].mxu0
  %v381 = vadd.f32 %v62, %v380
  %v382 = vpop.f32.mrb[0].mxu0
  %383 = vmatprep.mubr.bf16.mxu0 %v261
  %384 = vmatmul.mubr.bf16.gmra.mrb[0].mxu0 %v158
  %v385 = vpop.f32.mrb[0].mxu0
  %v386 = vadd.f32 %v62, %v385
  %v387 = vpop.f32.mrb[0].mxu0
  %v388 = vpop.f32.mrb[0].mxu0
  %v389 = vadd.f32 %v62, %v388
  %v390 = vpop.f32.mrb[0].mxu0
  %391 = vdwg.mxu0
  %v392 = vmax.f32 %v298, 0.0
  %v393 = vmax.f32 %v301, 0.0
  %v394 = vmax.f32 %v306, 0.0
  %v395 = vmax.f32 %v309, 0.0
  %v396 = vmax.f32 %v314, 0.0
  %v397 = vmax.f32 %v317, 0.0
  %v398 = vmax.f32 %v322, 0.0
  %v399 = vmax.f32 %v325, 0.0
  %v400 = vmax.f32 %v330, 0.0
  %v401 = vmax.f32 %v333, 0.0
  %v402 = vmax.f32 %v338, 0.0
  %v403 = vmax.f32 %v341, 0.0
  %v404 = vmax.f32 %v346, 0.0
  %v405 = vmax.f32 %v349, 0.0
  %v406 = vmax.f32 %v354, 0.0
  %v407 = vmax.f32 %v357, 0.0
  %v408 = vmax.f32 %v362, 0.0
  %v409 = vmax.f32 %v365, 0.0
  %v410 = vmax.f32 %v370, 0.0
  %v411 = vmax.f32 %v373, 0.0
  %v412 = vmax.f32 %v378, 0.0
  %v413 = vmax.f32 %v381, 0.0
  %v414 = vmax.f32 %v386, 0.0
  %v415 = vmax.f32 %v389, 0.0
  %v416 = vpack.c.bf16 %v393, %v392
  %v417 = vpack.c.bf16 %v395, %v394
  %v418 = vpack.c.bf16 %v397, %v396
  %v419 = vpack.c.bf16 %v399, %v398
  %v420 = vpack.c.bf16 %v401, %v400
  %v421 = vpack.c.bf16 %v403, %v402
  %v422 = vpack.c.bf16 %v405, %v404
  %v423 = vpack.c.bf16 %v407, %v406
  %v424 = vpack.c.bf16 %v409, %v408
  %v425 = vpack.c.bf16 %v411, %v410
  %v426 = vpack.c.bf16 %v413, %v412
  %v427 = vpack.c.bf16 %v415, %v414
  %v440 = vunpack.c.l.b16 %v416
  %v441 = vunpack.c.h.b16 %v416
  %v442 = vunpack.c.l.b16 %v417
  %v443 = vunpack.c.h.b16 %v417
  %v444 = vunpack.c.l.b16 %v418
  %v445 = vunpack.c.h.b16 %v418
  %v446 = vunpack.c.l.b16 %v419
  %v447 = vunpack.c.h.b16 %v419
  %v448 = vunpack.c.l.b16 %v420
  %v449 = vunpack.c.h.b16 %v420
  %v450 = vunpack.c.l.b16 %v421
  %v451 = vunpack.c.h.b16 %v421
  %v452 = vunpack.c.l.b16 %v422
  %v453 = vunpack.c.h.b16 %v422
  %v454 = vunpack.c.l.b16 %v423
  %v455 = vunpack.c.h.b16 %v423
  %v456 = vunpack.c.l.b16 %v424
  %v457 = vunpack.c.h.b16 %v424
  %v458 = vunpack.c.l.b16 %v425
  %v459 = vunpack.c.h.b16 %v425
  %v460 = vunpack.c.l.b16 %v426
  %v461 = vunpack.c.h.b16 %v426
  %v462 = vunpack.c.l.b16 %v427
  %v463 = vunpack.c.h.b16 %v427
  %v464 = vpack.c.b16 %v440, %v440
  %v465 = vpack.c.b16 %v441, %v441
  %v466 = vpack.c.b16 %v442, %v442
  %v467 = vpack.c.b16 %v443, %v443
  %v468 = vpack.c.b16 %v444, %v444
  %v469 = vpack.c.b16 %v445, %v445
  %v470 = vpack.c.b16 %v446, %v446
  %v471 = vpack.c.b16 %v447, %v447
  %v472 = vpack.c.b16 %v448, %v448
  %v473 = vpack.c.b16 %v449, %v449
  %v474 = vpack.c.b16 %v450, %v450
  %v475 = vpack.c.b16 %v451, %v451
  %v476 = vpack.c.b16 %v452, %v452
  %v477 = vpack.c.b16 %v453, %v453
  %v478 = vpack.c.b16 %v454, %v454
  %v479 = vpack.c.b16 %v455, %v455
  %v480 = vpack.c.b16 %v456, %v456
  %v481 = vpack.c.b16 %v457, %v457
  %v482 = vpack.c.b16 %v458, %v458
  %v483 = vpack.c.b16 %v459, %v459
  %v484 = vpack.c.b16 %v460, %v460
  %v485 = vpack.c.b16 %v461, %v461
  %v486 = vpack.c.b16 %v462, %v462
  %v487 = vpack.c.b16 %v463, %v463
  %vm512 = vcmask 257024
  %513 = vst.msk [vmem:[%s3] sm:$0xf] %vm512, %v464
  %514 = vst.msk [vmem:[%s3 + $0x4] sm:$0xf] %vm512, %v465
  %515 = vst.msk [vmem:[%s3 + $0x8] sm:$0xf] %vm512, %v466
  %516 = vst.msk [vmem:[%s3 + $0xc] sm:$0xf] %vm512, %v467
  %517 = vst.msk [vmem:[%s3 + $0x10] sm:$0xf] %vm512, %v468
  %518 = vst.msk [vmem:[%s3 + $0x14] sm:$0xf] %vm512, %v469
  %519 = vst.msk [vmem:[%s3 + $0x18] sm:$0xf] %vm512, %v470
  %520 = vst.msk [vmem:[%s3 + $0x1c] sm:$0xf] %vm512, %v471
  %521 = vst.msk [vmem:[%s3 + $0x20] sm:$0xf] %vm512, %v472
  %522 = vst.msk [vmem:[%s3 + $0x24] sm:$0xf] %vm512, %v473
  %523 = vst.msk [vmem:[%s3 + $0x28] sm:$0xf] %vm512, %v474
  %524 = vst.msk [vmem:[%s3 + $0x2c] sm:$0xf] %vm512, %v475
  %525 = vst.msk [vmem:[%s3 + $0x30] sm:$0xf] %vm512, %v476
  %526 = vst.msk [vmem:[%s3 + $0x34] sm:$0xf] %vm512, %v477
  %527 = vst.msk [vmem:[%s3 + $0x38] sm:$0xf] %vm512, %v478
  %528 = vst.msk [vmem:[%s3 + $0x3c] sm:$0xf] %vm512, %v479
  %529 = vst.msk [vmem:[%s3 + $0x40] sm:$0xf] %vm512, %v480
  %530 = vst.msk [vmem:[%s3 + $0x44] sm:$0xf] %vm512, %v481
  %531 = vst.msk [vmem:[%s3 + $0x48] sm:$0xf] %vm512, %v482
  %532 = vst.msk [vmem:[%s3 + $0x4c] sm:$0xf] %vm512, %v483
  %533 = vst.msk [vmem:[%s3 + $0x50] sm:$0xf] %vm512, %v484
  %534 = vst.msk [vmem:[%s3 + $0x54] sm:$0xf] %vm512, %v485
  %535 = vst.msk [vmem:[%s3 + $0x58] sm:$0xf] %vm512, %v486
  %536 = vst.msk [vmem:[%s3 + $0x5c] sm:$0xf] %vm512, %v487
  // Predicated region
  $region14: #{_lambda_.16} parent=0 // pred_check
    _
  $region15: #{_lambda_.16} parent=0 // pred_check_branch
    %538 = sbr.rel (0) target = $region17
  $region16: #{_lambda_.16} parent=0 // pred_region
    _
  $region17: #{_lambda_.16} parent=0 // pred_fallthru
    _
  // Predicated region
  $region18: #{_lambda_.16} parent=0 // pred_check
    _
  $region19: #{_lambda_.16} parent=0 // pred_check_branch
    %540 = sbr.rel (0) target = $region21
  $region20: #{_lambda_.16} parent=0 // pred_region
    _
  $region21: #{_lambda_.16} parent=0 // pred_fallthru
    _

// kernel: _lambda_.17
$region0: #{_lambda_.17}
  #allocation0 [shape = 'u32[]', space=smem, size = 0x4, offset = 0x4, fixed_abs, tag = 'smem constant byte address 0x4 - core index']
  #allocation1 [shape = 'u32[144,128]{1,0:T(1,128)}', space=vmem, size = 0x12000, scoped, tag = 'internal scratch']
  %s0 = inlined_call_operand.vmem [shape: bf16[192,16], index: 0, kind: input, shape index: {}]
  %s1 = inlined_call_operand.vmem [shape: bf16[16,32], index: 1, kind: input, shape index: {}]
  %s2 = inlined_call_operand.vmem [shape: f32[1,32], index: 2, kind: input, shape index: {}]
  %s3 = inlined_call_operand.vmem [shape: bf16[192,32], index: 3, kind: output, shape index: {}]
  %s4 = sld [smem:[#allocation0]]
  $region22: #{_lambda_.17} parent=0
    _
  %s6 = ssub.s32 1, %s4
  %s7 = scalar_select 0, %s6, %s4
  // Predicated region
  $region2: #{_lambda_.17} parent=0 // pred_check
    _
  $region3: #{_lambda_.17} parent=0 // pred_check_branch
    %9 = sbr.rel (0) target = $region5
  $region4: #{_lambda_.17} parent=0 // pred_region
    _
  $region5: #{_lambda_.17} parent=0 // pred_fallthru
    _
  // Predicated region
  $region6: #{_lambda_.17} parent=0 // pred_check
    _
  $region7: #{_lambda_.17} parent=0 // pred_check_branch
    %11 = sbr.rel (0) target = $region9
  $region8: #{_lambda_.17} parent=0 // pred_region
    _
  $region9: #{_lambda_.17} parent=0 // pred_fallthru
    _
  // Predicated region
  $region10: #{_lambda_.17} parent=0 // pred_check
    _
  $region11: #{_lambda_.17} parent=0 // pred_check_branch
    %13 = sbr.rel (0) target = $region13
  $region12: #{_lambda_.17} parent=0 // pred_region
    _
  $region13: #{_lambda_.17} parent=0 // pred_fallthru
    _
  %v15 = vld [vmem:[%s0] sm:$0xf]
  %v16 = vld [vmem:[%s0 + $0x4] sm:$0xf]
  %v17 = vld [vmem:[%s0 + $0x8] sm:$0xf]
  %v18 = vld [vmem:[%s0 + $0xc] sm:$0xf]
  %v19 = vld [vmem:[%s0 + $0x10] sm:$0xf]
  %v20 = vld [vmem:[%s0 + $0x14] sm:$0xf]
  %v21 = vld [vmem:[%s0 + $0x18] sm:$0xf]
  %v22 = vld [vmem:[%s0 + $0x1c] sm:$0xf]
  %v23 = vld [vmem:[%s0 + $0x20] sm:$0xf]
  %v24 = vld [vmem:[%s0 + $0x24] sm:$0xf]
  %v25 = vld [vmem:[%s0 + $0x28] sm:$0xf]
  %v26 = vld [vmem:[%s0 + $0x2c] sm:$0xf]
  %v27 = vld [vmem:[%s0 + $0x30] sm:$0xf]
  %v28 = vld [vmem:[%s0 + $0x34] sm:$0xf]
  %v29 = vld [vmem:[%s0 + $0x38] sm:$0xf]
  %v30 = vld [vmem:[%s0 + $0x3c] sm:$0xf]
  %v31 = vld [vmem:[%s0 + $0x40] sm:$0xf]
  %v32 = vld [vmem:[%s0 + $0x44] sm:$0xf]
  %v33 = vld [vmem:[%s0 + $0x48] sm:$0xf]
  %v34 = vld [vmem:[%s0 + $0x4c] sm:$0xf]
  %v35 = vld [vmem:[%s0 + $0x50] sm:$0xf]
  %v36 = vld [vmem:[%s0 + $0x54] sm:$0xf]
  %v37 = vld [vmem:[%s0 + $0x58] sm:$0xf]
  %v38 = vld [vmem:[%s0 + $0x5c] sm:$0xf]
  %v39 = vld [vmem:[%s1] sm:$0xf]
  %v40 = vld [vmem:[%s1 + $0x4] sm:$0xf]
  %v41 = vld [vmem:[%s2] sm:$0x1]
  %v43 = vlaneseq
  %v44 = vshrl.u32 %v43, 7
  %v45 = vsub.s32 0, %v44
  %v46 = vrot.slane %v41, %v45
  %v72 = vunpack.c.l.b16 %v15
  %v73 = vunpack.c.l.b16 %v16
  %v74 = vunpack.c.l.b16 %v17
  %v75 = vunpack.c.l.b16 %v18
  %v76 = vunpack.c.l.b16 %v19
  %v77 = vunpack.c.l.b16 %v20
  %v78 = vunpack.c.l.b16 %v21
  %v79 = vunpack.c.l.b16 %v22
  %v80 = vunpack.c.l.b16 %v23
  %v81 = vunpack.c.l.b16 %v24
  %v82 = vunpack.c.l.b16 %v25
  %v83 = vunpack.c.l.b16 %v26
  %v84 = vunpack.c.l.b16 %v27
  %v85 = vunpack.c.l.b16 %v28
  %v86 = vunpack.c.l.b16 %v29
  %v87 = vunpack.c.l.b16 %v30
  %v88 = vunpack.c.l.b16 %v31
  %v89 = vunpack.c.l.b16 %v32
  %v90 = vunpack.c.l.b16 %v33
  %v91 = vunpack.c.l.b16 %v34
  %v92 = vunpack.c.l.b16 %v35
  %v93 = vunpack.c.l.b16 %v36
  %v94 = vunpack.c.l.b16 %v37
  %v95 = vunpack.c.l.b16 %v38
  %v96 = vpack.c.b16 %v73, %v72
  %v97 = vpack.c.b16 %v75, %v74
  %v98 = vpack.c.b16 %v77, %v76
  %v99 = vpack.c.b16 %v79, %v78
  %v100 = vpack.c.b16 %v81, %v80
  %v101 = vpack.c.b16 %v83, %v82
  %v102 = vpack.c.b16 %v85, %v84
  %v103 = vpack.c.b16 %v87, %v86
  %v104 = vpack.c.b16 %v89, %v88
  %v105 = vpack.c.b16 %v91, %v90
  %v106 = vpack.c.b16 %v93, %v92
  %v107 = vpack.c.b16 %v95, %v94
  %v110 = vunpack.c.l.b16 %v39
  %v111 = vunpack.c.l.b16 %v40
  %v112 = vpack.c.b16 %v111, %v110
  %vm114 = vcmask 130048
  %v116 = vsel %vm114, %v96, 0
  %v119 = vsel %vm114, %v97, 0
  %v122 = vsel %vm114, %v98, 0
  %v125 = vsel %vm114, %v99, 0
  %v128 = vsel %vm114, %v100, 0
  %v131 = vsel %vm114, %v101, 0
  %v134 = vsel %vm114, %v102, 0
  %v137 = vsel %vm114, %v103, 0
  %v140 = vsel %vm114, %v104, 0
  %v143 = vsel %vm114, %v105, 0
  %v146 = vsel %vm114, %v106, 0
  %v149 = vsel %vm114, %v107, 0
  %151 = vmatprep.subr.bf16.mxu0 0
  %152 = vmatpush1.bf16.msra.mxu0 %v112
  %153 = vmatprep.subr.bf16.mxu0 0
  %154 = vmatpush1.bf16.msra.mxu0 0
  %155 = vmatprep.subr.bf16.mxu0 0
  %156 = vmatpush1.bf16.msra.mxu0 0
  %157 = vmatprep.subr.bf16.mxu0 0
  %158 = vmatpush1.bf16.msra.mxu0 0
  %159 = vmatprep.subr.bf16.mxu0 0
  %160 = vmatpush1.bf16.msra.mxu0 0
  %161 = vmatprep.subr.bf16.mxu0 0
  %162 = vmatpush1.bf16.msra.mxu0 0
  %163 = vmatprep.subr.bf16.mxu0 0
  %164 = vmatpush1.bf16.msra.mxu0 0
  %165 = vmatprep.subr.bf16.mxu0 0
  %166 = vmatpush1.bf16.msra.mxu0 0
  %167 = vmatprep.subr.bf16.mxu0 0
  %168 = vmatpush1.bf16.msra.mxu0 0
  %169 = vmatprep.subr.bf16.mxu0 0
  %170 = vmatpush1.bf16.msra.mxu0 0
  %171 = vmatprep.subr.bf16.mxu0 0
  %172 = vmatpush1.bf16.msra.mxu0 0
  %173 = vmatprep.subr.bf16.mxu0 0
  %174 = vmatpush1.bf16.msra.mxu0 0
  %175 = vmatprep.subr.bf16.mxu0 0
  %176 = vmatpush1.bf16.msra.mxu0 0
  %177 = vmatprep.subr.bf16.mxu0 0
  %178 = vmatpush1.bf16.msra.mxu0 0
  %179 = vmatprep.subr.bf16.mxu0 0
  %180 = vmatpush1.bf16.msra.mxu0 0
  %181 = vmatprep.subr.bf16.mxu0 0
  %182 = vmatpush1.bf16.msra.mxu0 0
  %183 = vmatprep.mubr.bf16.mxu0 0
  %184 = vmatmul.mubr.bf16.gmra.mrb[0].mxu0 %v116
  %v185 = vpop.f32.mrb[0].mxu0
  %v186 = vadd.f32 %v46, %v185
  %v187 = vpop.f32.mrb[0].mxu0
  %v188 = vpop.f32.mrb[0].mxu0
  %v189 = vadd.f32 %v46, %v188
  %v190 = vpop.f32.mrb[0].mxu0
  %191 = vmatprep.mubr.bf16.mxu0 0
  %192 = vmatmul.mubr.bf16.gmra.mrb[0].mxu0 %v119
  %v193 = vpop.f32.mrb[0].mxu0
  %v194 = vadd.f32 %v46, %v193
  %v195 = vpop.f32.mrb[0].mxu0
  %v196 = vpop.f32.mrb[0].mxu0
  %v197 = vadd.f32 %v46, %v196
  %v198 = vpop.f32.mrb[0].mxu0
  %199 = vmatprep.mubr.bf16.mxu0 0
  %200 = vmatmul.mubr.bf16.gmra.mrb[0].mxu0 %v122
  %v201 = vpop.f32.mrb[0].mxu0
  %v202 = vadd.f32 %v46, %v201
  %v203 = vpop.f32.mrb[0].mxu0
  %v204 = vpop.f32.mrb[0].mxu0
  %v205 = vadd.f32 %v46, %v204
  %v206 = vpop.f32.mrb[0].mxu0
  %207 = vmatprep.mubr.bf16.mxu0 0
  %208 = vmatmul.mubr.bf16.gmra.mrb[0].mxu0 %v125
  %v209 = vpop.f32.mrb[0].mxu0
  %v210 = vadd.f32 %v46, %v209
  %v211 = vpop.f32.mrb[0].mxu0
  %v212 = vpop.f32.mrb[0].mxu0
  %v213 = vadd.f32 %v46, %v212
  %v214 = vpop.f32.mrb[0].mxu0
  %215 = vmatprep.mubr.bf16.mxu0 0
  %216 = vmatmul.mubr.bf16.gmra.mrb[0].mxu0 %v128
  %v217 = vpop.f32.mrb[0].mxu0
  %v218 = vadd.f32 %v46, %v217
  %v219 = vpop.f32.mrb[0].mxu0
  %v220 = vpop.f32.mrb[0].mxu0
  %v221 = vadd.f32 %v46, %v220
  %v222 = vpop.f32.mrb[0].mxu0
  %223 = vmatprep.mubr.bf16.mxu0 0
  %224 = vmatmul.mubr.bf16.gmra.mrb[0].mxu0 %v131
  %v225 = vpop.f32.mrb[0].mxu0
  %v226 = vadd.f32 %v46, %v225
  %v227 = vpop.f32.mrb[0].mxu0
  %v228 = vpop.f32.mrb[0].mxu0
  %v229 = vadd.f32 %v46, %v228
  %v230 = vpop.f32.mrb[0].mxu0
  %231 = vmatprep.mubr.bf16.mxu0 0
  %232 = vmatmul.mubr.bf16.gmra.mrb[0].mxu0 %v134
  %v233 = vpop.f32.mrb[0].mxu0
  %v234 = vadd.f32 %v46, %v233
  %v235 = vpop.f32.mrb[0].mxu0
  %v236 = vpop.f32.mrb[0].mxu0
  %v237 = vadd.f32 %v46, %v236
  %v238 = vpop.f32.mrb[0].mxu0
  %239 = vmatprep.mubr.bf16.mxu0 0
  %240 = vmatmul.mubr.bf16.gmra.mrb[0].mxu0 %v137
  %v241 = vpop.f32.mrb[0].mxu0
  %v242 = vadd.f32 %v46, %v241
  %v243 = vpop.f32.mrb[0].mxu0
  %v244 = vpop.f32.mrb[0].mxu0
  %v245 = vadd.f32 %v46, %v244
  %v246 = vpop.f32.mrb[0].mxu0
  %247 = vmatprep.mubr.bf16.mxu0 0
  %248 = vmatmul.mubr.bf16.gmra.mrb[0].mxu0 %v140
  %v249 = vpop.f32.mrb[0].mxu0
  %v250 = vadd.f32 %v46, %v249
  %v251 = vpop.f32.mrb[0].mxu0
  %v252 = vpop.f32.mrb[0].mxu0
  %v253 = vadd.f32 %v46, %v252
  %v254 = vpop.f32.mrb[0].mxu0
  %255 = vmatprep.mubr.bf16.mxu0 0
  %256 = vmatmul.mubr.bf16.gmra.mrb[0].mxu0 %v143
  %v257 = vpop.f32.mrb[0].mxu0
  %v258 = vadd.f32 %v46, %v257
  %v259 = vpop.f32.mrb[0].mxu0
  %v260 = vpop.f32.mrb[0].mxu0
  %v261 = vadd.f32 %v46, %v260
  %v262 = vpop.f32.mrb[0].mxu0
  %263 = vmatprep.mubr.bf16.mxu0 0
  %264 = vmatmul.mubr.bf16.gmra.mrb[0].mxu0 %v146
  %v265 = vpop.f32.mrb[0].mxu0
  %v266 = vadd.f32 %v46, %v265
  %v267 = vpop.f32.mrb[0].mxu0
  %v268 = vpop.f32.mrb[0].mxu0
  %v269 = vadd.f32 %v46, %v268
  %v270 = vpop.f32.mrb[0].mxu0
  %271 = vmatprep.mubr.bf16.mxu0 0
  %272 = vmatmul.mubr.bf16.gmra.mrb[0].mxu0 %v149
  %v273 = vpop.f32.mrb[0].mxu0
  %v274 = vadd.f32 %v46, %v273
  %v275 = vpop.f32.mrb[0].mxu0
  %v276 = vpop.f32.mrb[0].mxu0
  %v277 = vadd.f32 %v46, %v276
  %v278 = vpop.f32.mrb[0].mxu0
  %279 = vdwg.mxu0
  %v280 = vmax.f32 %v186, 0.0
  %v281 = vmax.f32 %v189, 0.0
  %v282 = vmax.f32 %v194, 0.0
  %v283 = vmax.f32 %v197, 0.0
  %v284 = vmax.f32 %v202, 0.0
  %v285 = vmax.f32 %v205, 0.0
  %v286 = vmax.f32 %v210, 0.0
  %v287 = vmax.f32 %v213, 0.0
  %v288 = vmax.f32 %v218, 0.0
  %v289 = vmax.f32 %v221, 0.0
  %v290 = vmax.f32 %v226, 0.0
  %v291 = vmax.f32 %v229, 0.0
  %v292 = vmax.f32 %v234, 0.0
  %v293 = vmax.f32 %v237, 0.0
  %v294 = vmax.f32 %v242, 0.0
  %v295 = vmax.f32 %v245, 0.0
  %v296 = vmax.f32 %v250, 0.0
  %v297 = vmax.f32 %v253, 0.0
  %v298 = vmax.f32 %v258, 0.0
  %v299 = vmax.f32 %v261, 0.0
  %v300 = vmax.f32 %v266, 0.0
  %v301 = vmax.f32 %v269, 0.0
  %v302 = vmax.f32 %v274, 0.0
  %v303 = vmax.f32 %v277, 0.0
  %v304 = vmin.f32 %v280, 6.0
  %v305 = vmin.f32 %v281, 6.0
  %v306 = vmin.f32 %v282, 6.0
  %v307 = vmin.f32 %v283, 6.0
  %v308 = vmin.f32 %v284, 6.0
  %v309 = vmin.f32 %v285, 6.0
  %v310 = vmin.f32 %v286, 6.0
  %v311 = vmin.f32 %v287, 6.0
  %v312 = vmin.f32 %v288, 6.0
  %v313 = vmin.f32 %v289, 6.0
  %v314 = vmin.f32 %v290, 6.0
  %v315 = vmin.f32 %v291, 6.0
  %v316 = vmin.f32 %v292, 6.0
  %v317 = vmin.f32 %v293, 6.0
  %v318 = vmin.f32 %v294, 6.0
  %v319 = vmin.f32 %v295, 6.0
  %v320 = vmin.f32 %v296, 6.0
  %v321 = vmin.f32 %v297, 6.0
  %v322 = vmin.f32 %v298, 6.0
  %v323 = vmin.f32 %v299, 6.0
  %v324 = vmin.f32 %v300, 6.0
  %v325 = vmin.f32 %v301, 6.0
  %v326 = vmin.f32 %v302, 6.0
  %v327 = vmin.f32 %v303, 6.0
  %v328 = vpack.c.bf16 %v305, %v304
  %v329 = vpack.c.bf16 %v307, %v306
  %v330 = vpack.c.bf16 %v309, %v308
  %v331 = vpack.c.bf16 %v311, %v310
  %v332 = vpack.c.bf16 %v313, %v312
  %v333 = vpack.c.bf16 %v315, %v314
  %v334 = vpack.c.bf16 %v317, %v316
  %v335 = vpack.c.bf16 %v319, %v318
  %v336 = vpack.c.bf16 %v321, %v320
  %v337 = vpack.c.bf16 %v323, %v322
  %v338 = vpack.c.bf16 %v325, %v324
  %v339 = vpack.c.bf16 %v327, %v326
  %v352 = vunpack.c.l.b16 %v328
  %v353 = vunpack.c.h.b16 %v328
  %v354 = vunpack.c.l.b16 %v329
  %v355 = vunpack.c.h.b16 %v329
  %v356 = vunpack.c.l.b16 %v330
  %v357 = vunpack.c.h.b16 %v330
  %v358 = vunpack.c.l.b16 %v331
  %v359 = vunpack.c.h.b16 %v331
  %v360 = vunpack.c.l.b16 %v332
  %v361 = vunpack.c.h.b16 %v332
  %v362 = vunpack.c.l.b16 %v333
  %v363 = vunpack.c.h.b16 %v333
  %v364 = vunpack.c.l.b16 %v334
  %v365 = vunpack.c.h.b16 %v334
  %v366 = vunpack.c.l.b16 %v335
  %v367 = vunpack.c.h.b16 %v335
  %v368 = vunpack.c.l.b16 %v336
  %v369 = vunpack.c.h.b16 %v336
  %v370 = vunpack.c.l.b16 %v337
  %v371 = vunpack.c.h.b16 %v337
  %v372 = vunpack.c.l.b16 %v338
  %v373 = vunpack.c.h.b16 %v338
  %v374 = vunpack.c.l.b16 %v339
  %v375 = vunpack.c.h.b16 %v339
  %v376 = vpack.c.b16 %v352, %v352
  %v377 = vpack.c.b16 %v353, %v353
  %v378 = vpack.c.b16 %v354, %v354
  %v379 = vpack.c.b16 %v355, %v355
  %v380 = vpack.c.b16 %v356, %v356
  %v381 = vpack.c.b16 %v357, %v357
  %v382 = vpack.c.b16 %v358, %v358
  %v383 = vpack.c.b16 %v359, %v359
  %v384 = vpack.c.b16 %v360, %v360
  %v385 = vpack.c.b16 %v361, %v361
  %v386 = vpack.c.b16 %v362, %v362
  %v387 = vpack.c.b16 %v363, %v363
  %v388 = vpack.c.b16 %v364, %v364
  %v389 = vpack.c.b16 %v365, %v365
  %v390 = vpack.c.b16 %v366, %v366
  %v391 = vpack.c.b16 %v367, %v367
  %v392 = vpack.c.b16 %v368, %v368
  %v393 = vpack.c.b16 %v369, %v369
  %v394 = vpack.c.b16 %v370, %v370
  %v395 = vpack.c.b16 %v371, %v371
  %v396 = vpack.c.b16 %v372, %v372
  %v397 = vpack.c.b16 %v373, %v373
  %v398 = vpack.c.b16 %v374, %v374
  %v399 = vpack.c.b16 %v375, %v375
  %vm424 = vcmask 257024
  %425 = vst.msk [vmem:[%s3] sm:$0xf] %vm424, %v376
  %426 = vst.msk [vmem:[%s3 + $0x4] sm:$0xf] %vm424, %v377
  %427 = vst.msk [vmem:[%s3 + $0x8] sm:$0xf] %vm424, %v378
  %428 = vst.msk [vmem:[%s3 + $0xc] sm:$0xf] %vm424, %v379
  %429 = vst.msk [vmem:[%s3 + $0x10] sm:$0xf] %vm424, %v380
  %430 = vst.msk [vmem:[%s3 + $0x14] sm:$0xf] %vm424, %v381
  %431 = vst.msk [vmem:[%s3 + $0x18] sm:$0xf] %vm424, %v382
  %432 = vst.msk [vmem:[%s3 + $0x1c] sm:$0xf] %vm424, %v383
  %433 = vst.msk [vmem:[%s3 + $0x20] sm:$0xf] %vm424, %v384
  %434 = vst.msk [vmem:[%s3 + $0x24] sm:$0xf] %vm424, %v385
  %435 = vst.msk [vmem:[%s3 + $0x28] sm:$0xf] %vm424, %v386
  %436 = vst.msk [vmem:[%s3 + $0x2c] sm:$0xf] %vm424, %v387
  %437 = vst.msk [vmem:[%s3 + $0x30] sm:$0xf] %vm424, %v388
  %438 = vst.msk [vmem:[%s3 + $0x34] sm:$0xf] %vm424, %v389
  %439 = vst.msk [vmem:[%s3 + $0x38] sm:$0xf] %vm424, %v390
  %440 = vst.msk [vmem:[%s3 + $0x3c] sm:$0xf] %vm424, %v391
  %441 = vst.msk [vmem:[%s3 + $0x40] sm:$0xf] %vm424, %v392
  %442 = vst.msk [vmem:[%s3 + $0x44] sm:$0xf] %vm424, %v393
  %443 = vst.msk [vmem:[%s3 + $0x48] sm:$0xf] %vm424, %v394
  %444 = vst.msk [vmem:[%s3 + $0x4c] sm:$0xf] %vm424, %v395
  %445 = vst.msk [vmem:[%s3 + $0x50] sm:$0xf] %vm424, %v396
  %446 = vst.msk [vmem:[%s3 + $0x54] sm:$0xf] %vm424, %v397
  %447 = vst.msk [vmem:[%s3 + $0x58] sm:$0xf] %vm424, %v398
  %448 = vst.msk [vmem:[%s3 + $0x5c] sm:$0xf] %vm424, %v399
  // Predicated region
  $region14: #{_lambda_.17} parent=0 // pred_check
    _
  $region15: #{_lambda_.17} parent=0 // pred_check_branch
    %450 = sbr.rel (0) target = $region17
  $region16: #{_lambda_.17} parent=0 // pred_region
    _
  $region17: #{_lambda_.17} parent=0 // pred_fallthru
    _
  // Predicated region
  $region18: #{_lambda_.17} parent=0 // pred_check
    _
  $region19: #{_lambda_.17} parent=0 // pred_check_branch
    %452 = sbr.rel (0) target = $region21
  $region20: #{_lambda_.17} parent=0 // pred_region
    _
  $region21: #{_lambda_.17} parent=0 // pred_fallthru
    _

// kernel: _lambda_.18
$region0: #{_lambda_.18}
  #allocation0 [shape = 'u32[]', space=smem, size = 0x4, offset = 0x4, fixed_abs, tag = 'smem constant byte address 0x4 - core index']
  #allocation1 [shape = 'u32[144,128]{1,0:T(1,128)}', space=vmem, size = 0x12000, scoped, tag = 'internal scratch']
  %s0 = inlined_call_operand.vmem [shape: bf16[192,288], index: 0, kind: input, shape index: {}]
  %s1 = inlined_call_operand.vmem [shape: bf16[288,32], index: 1, kind: input, shape index: {}]
  %s2 = inlined_call_operand.vmem [shape: f32[1,32], index: 2, kind: input, shape index: {}]
  %s3 = inlined_call_operand.vmem [shape: bf16[192,32], index: 3, kind: input, shape index: {}]
  %s4 = inlined_call_operand.vmem [shape: bf16[192,32], index: 4, kind: output, shape index: {}]
  %s5 = sld [smem:[#allocation0]]
  $region26: #{_lambda_.18} parent=0
    _
  %s7 = ssub.s32 1, %s5
  %s8 = scalar_select 0, %s7, %s5
  // Predicated region
  $region2: #{_lambda_.18} parent=0 // pred_check
    _
  $region3: #{_lambda_.18} parent=0 // pred_check_branch
    %10 = sbr.rel (0) target = $region5
  $region4: #{_lambda_.18} parent=0 // pred_region
    _
  $region5: #{_lambda_.18} parent=0 // pred_fallthru
    _
  // Predicated region
  $region6: #{_lambda_.18} parent=0 // pred_check
    _
  $region7: #{_lambda_.18} parent=0 // pred_check_branch
    %12 = sbr.rel (0) target = $region9
  $region8: #{_lambda_.18} parent=0 // pred_region
    _
  $region9: #{_lambda_.18} parent=0 // pred_fallthru
    _
  // Predicated region
  $region10: #{_lambda_.18} parent=0 // pred_check
    _
  $region11: #{_lambda_.18} parent=0 // pred_check_branch
    %14 = sbr.rel (0) target = $region13
  $region12: #{_lambda_.18} parent=0 // pred_region
    _
  $region13: #{_lambda_.18} parent=0 // pred_fallthru
    _
  // Predicated region
  $region14: #{_lambda_.18} parent=0 // pred_check
    _
  $region15: #{_lambda_.18} parent=0 // pred_check_branch
    %16 = sbr.rel (0) target = $region17
  $region16: #{_lambda_.18} parent=0 // pred_region
    _
  $region17: #{_lambda_.18} parent=0 // pred_fallthru
    _
  %v18 = vld [vmem:[%s0] sm:$0xff]
  %v19 = vld [vmem:[%s0 + $0x8] sm:$0xf]
  %v20 = vld [vmem:[%s0 + $0xc] sm:$0xff]
  %v21 = vld [vmem:[%s0 + $0x14] sm:$0xf]
  %v22 = vld [vmem:[%s0 + $0x18] sm:$0xff]
  %v23 = vld [vmem:[%s0 + $0x20] sm:$0xf]
  %v24 = vld [vmem:[%s0 + $0x24] sm:$0xff]
  %v25 = vld [vmem:[%s0 + $0x2c] sm:$0xf]
  %v26 = vld [vmem:[%s0 + $0x30] sm:$0xff]
  %v27 = vld [vmem:[%s0 + $0x38] sm:$0xf]
  %v28 = vld [vmem:[%s0 + $0x3c] sm:$0xff]
  %v29 = vld [vmem:[%s0 + $0x44] sm:$0xf]
  %v30 = vld [vmem:[%s0 + $0x48] sm:$0xff]
  %v31 = vld [vmem:[%s0 + $0x50] sm:$0xf]
  %v32 = vld [vmem:[%s0 + $0x54] sm:$0xff]
  %v33 = vld [vmem:[%s0 + $0x5c] sm:$0xf]
  %v34 = vld [vmem:[%s0 + $0x60] sm:$0xff]
  %v35 = vld [vmem:[%s0 + $0x68] sm:$0xf]
  %v36 = vld [vmem:[%s0 + $0x6c] sm:$0xff]
  %v37 = vld [vmem:[%s0 + $0x74] sm:$0xf]
  %v38 = vld [vmem:[%s0 + $0x78] sm:$0xff]
  %v39 = vld [vmem:[%s0 + $0x80] sm:$0xf]
  %v40 = vld [vmem:[%s0 + $0x84] sm:$0xff]
  %v41 = vld [vmem:[%s0 + $0x8c] sm:$0xf]
  %v42 = vld [vmem:[%s0 + $0x90] sm:$0xff]
  %v43 = vld [vmem:[%s0 + $0x98] sm:$0xf]
  %v44 = vld [vmem:[%s0 + $0x9c] sm:$0xff]
  %v45 = vld [vmem:[%s0 + $0xa4] sm:$0xf]
  %v46 = vld [vmem:[%s0 + $0xa8] sm:$0xff]
  %v47 = vld [vmem:[%s0 + $0xb0] sm:$0xf]
  %v48 = vld [vmem:[%s0 + $0xb4] sm:$0xff]
  %v49 = vld [vmem:[%s0 + $0xbc] sm:$0xf]
  %v50 = vld [vmem:[%s0 + $0xc0] sm:$0xff]
  %v51 = vld [vmem:[%s0 + $0xc8] sm:$0xf]
  %v52 = vld [vmem:[%s0 + $0xcc] sm:$0xff]
  %v53 = vld [vmem:[%s0 + $0xd4] sm:$0xf]
  %v54 = vld [vmem:[%s0 + $0xd8] sm:$0xff]
  %v55 = vld [vmem:[%s0 + $0xe0] sm:$0xf]
  %v56 = vld [vmem:[%s0 + $0xe4] sm:$0xff]
  %v57 = vld [vmem:[%s0 + $0xec] sm:$0xf]
  %v58 = vld [vmem:[%s0 + $0xf0] sm:$0xff]
  %v59 = vld [vmem:[%s0 + $0xf8] sm:$0xf]
  %v60 = vld [vmem:[%s0 + $0xfc] sm:$0xff]
  %v61 = vld [vmem:[%s0 + $0x104] sm:$0xf]
  %v62 = vld [vmem:[%s0 + $0x108] sm:$0xff]
  %v63 = vld [vmem:[%s0 + $0x110] sm:$0xf]
  %v64 = vld [vmem:[%s0 + $0x114] sm:$0xff]
  %v65 = vld [vmem:[%s0 + $0x11c] sm:$0xf]
  %v66 = vld [vmem:[%s1] sm:$0xf]
  %v67 = vld [vmem:[%s1 + $0x4] sm:$0xf]
  %v68 = vld [vmem:[%s1 + $0x8] sm:$0xf]
  %v69 = vld [vmem:[%s1 + $0xc] sm:$0xf]
  %v70 = vld [vmem:[%s1 + $0x10] sm:$0xf]
  %v71 = vld [vmem:[%s1 + $0x14] sm:$0xf]
  %v72 = vld [vmem:[%s1 + $0x18] sm:$0xf]
  %v73 = vld [vmem:[%s1 + $0x1c] sm:$0xf]
  %v74 = vld [vmem:[%s1 + $0x20] sm:$0xf]
  %v75 = vld [vmem:[%s1 + $0x24] sm:$0xf]
  %v76 = vld [vmem:[%s1 + $0x28] sm:$0xf]
  %v77 = vld [vmem:[%s1 + $0x2c] sm:$0xf]
  %v78 = vld [vmem:[%s1 + $0x30] sm:$0xf]
  %v79 = vld [vmem:[%s1 + $0x34] sm:$0xf]
  %v80 = vld [vmem:[%s1 + $0x38] sm:$0xf]
  %v81 = vld [vmem:[%s1 + $0x3c] sm:$0xf]
  %v82 = vld [vmem:[%s1 + $0x40] sm:$0xf]
  %v83 = vld [vmem:[%s1 + $0x44] sm:$0xf]
  %v84 = vld [vmem:[%s1 + $0x48] sm:$0xf]
  %v85 = vld [vmem:[%s1 + $0x4c] sm:$0xf]
  %v86 = vld [vmem:[%s1 + $0x50] sm:$0xf]
  %v87 = vld [vmem:[%s1 + $0x54] sm:$0xf]
  %v88 = vld [vmem:[%s1 + $0x58] sm:$0xf]
  %v89 = vld [vmem:[%s1 + $0x5c] sm:$0xf]
  %v90 = vld [vmem:[%s1 + $0x60] sm:$0xf]
  %v91 = vld [vmem:[%s1 + $0x64] sm:$0xf]
  %v92 = vld [vmem:[%s1 + $0x68] sm:$0xf]
  %v93 = vld [vmem:[%s1 + $0x6c] sm:$0xf]
  %v94 = vld [vmem:[%s1 + $0x70] sm:$0xf]
  %v95 = vld [vmem:[%s1 + $0x74] sm:$0xf]
  %v96 = vld [vmem:[%s1 + $0x78] sm:$0xf]
  %v97 = vld [vmem:[%s1 + $0x7c] sm:$0xf]
  %v98 = vld [vmem:[%s1 + $0x80] sm:$0xf]
  %v99 = vld [vmem:[%s1 + $0x84] sm:$0xf]
  %v100 = vld [vmem:[%s1 + $0x88] sm:$0xf]
  %v101 = vld [vmem:[%s1 + $0x8c] sm:$0xf]
  %v102 = vld [vmem:[%s2] sm:$0x1]
  %v104 = vlaneseq
  %v105 = vshrl.u32 %v104, 7
  %v106 = vsub.s32 0, %v105
  %v107 = vrot.slane %v102, %v106
  %v157 = vunpack.c.l.b16 %v18
  %v158 = vunpack.c.h.b16 %v18
  %v159 = vunpack.c.l.b16 %v19
  %v160 = vunpack.c.l.b16 %v20
  %v161 = vunpack.c.h.b16 %v20
  %v162 = vunpack.c.l.b16 %v21
  %v163 = vunpack.c.l.b16 %v22
  %v164 = vunpack.c.h.b16 %v22
  %v165 = vunpack.c.l.b16 %v23
  %v166 = vunpack.c.l.b16 %v24
  %v167 = vunpack.c.h.b16 %v24
  %v168 = vunpack.c.l.b16 %v25
  %v169 = vunpack.c.l.b16 %v26
  %v170 = vunpack.c.h.b16 %v26
  %v171 = vunpack.c.l.b16 %v27
  %v172 = vunpack.c.l.b16 %v28
  %v173 = vunpack.c.h.b16 %v28
  %v174 = vunpack.c.l.b16 %v29
  %v175 = vunpack.c.l.b16 %v30
  %v176 = vunpack.c.h.b16 %v30
  %v177 = vunpack.c.l.b16 %v31
  %v178 = vunpack.c.l.b16 %v32
  %v179 = vunpack.c.h.b16 %v32
  %v180 = vunpack.c.l.b16 %v33
  %v181 = vunpack.c.l.b16 %v34
  %v182 = vunpack.c.h.b16 %v34
  %v183 = vunpack.c.l.b16 %v35
  %v184 = vunpack.c.l.b16 %v36
  %v185 = vunpack.c.h.b16 %v36
  %v186 = vunpack.c.l.b16 %v37
  %v187 = vunpack.c.l.b16 %v38
  %v188 = vunpack.c.h.b16 %v38
  %v189 = vunpack.c.l.b16 %v39
  %v190 = vunpack.c.l.b16 %v40
  %v191 = vunpack.c.h.b16 %v40
  %v192 = vunpack.c.l.b16 %v41
  %v193 = vunpack.c.l.b16 %v42
  %v194 = vunpack.c.h.b16 %v42
  %v195 = vunpack.c.l.b16 %v43
  %v196 = vunpack.c.l.b16 %v44
  %v197 = vunpack.c.h.b16 %v44
  %v198 = vunpack.c.l.b16 %v45
  %v199 = vunpack.c.l.b16 %v46
  %v200 = vunpack.c.h.b16 %v46
  %v201 = vunpack.c.l.b16 %v47
  %v202 = vunpack.c.l.b16 %v48
  %v203 = vunpack.c.h.b16 %v48
  %v204 = vunpack.c.l.b16 %v49
  %v205 = vunpack.c.l.b16 %v50
  %v206 = vunpack.c.h.b16 %v50
  %v207 = vunpack.c.l.b16 %v51
  %v208 = vunpack.c.l.b16 %v52
  %v209 = vunpack.c.h.b16 %v52
  %v210 = vunpack.c.l.b16 %v53
  %v211 = vunpack.c.l.b16 %v54
  %v212 = vunpack.c.h.b16 %v54
  %v213 = vunpack.c.l.b16 %v55
  %v214 = vunpack.c.l.b16 %v56
  %v215 = vunpack.c.h.b16 %v56
  %v216 = vunpack.c.l.b16 %v57
  %v217 = vunpack.c.l.b16 %v58
  %v218 = vunpack.c.h.b16 %v58
  %v219 = vunpack.c.l.b16 %v59
  %v220 = vunpack.c.l.b16 %v60
  %v221 = vunpack.c.h.b16 %v60
  %v222 = vunpack.c.l.b16 %v61
  %v223 = vunpack.c.l.b16 %v62
  %v224 = vunpack.c.h.b16 %v62
  %v225 = vunpack.c.l.b16 %v63
  %v226 = vunpack.c.l.b16 %v64
  %v227 = vunpack.c.h.b16 %v64
  %v228 = vunpack.c.l.b16 %v65
  %v229 = vpack.c.b16 %v160, %v157
  %v230 = vpack.c.b16 %v161, %v158
  %v231 = vpack.c.b16 %v162, %v159
  %v232 = vpack.c.b16 %v166, %v163
  %v233 = vpack.c.b16 %v167, %v164
  %v234 = vpack.c.b16 %v168, %v165
  %v235 = vpack.c.b16 %v172, %v169
  %v236 = vpack.c.b16 %v173, %v170
  %v237 = vpack.c.b16 %v174, %v171
  %v238 = vpack.c.b16 %v178, %v175
  %v239 = vpack.c.b16 %v179, %v176
  %v240 = vpack.c.b16 %v180, %v177
  %v241 = vpack.c.b16 %v184, %v181
  %v242 = vpack.c.b16 %v185, %v182
  %v243 = vpack.c.b16 %v186, %v183
  %v244 = vpack.c.b16 %v190, %v187
  %v245 = vpack.c.b16 %v191, %v188
  %v246 = vpack.c.b16 %v192, %v189
  %v247 = vpack.c.b16 %v196, %v193
  %v248 = vpack.c.b16 %v197, %v194
  %v249 = vpack.c.b16 %v198, %v195
  %v250 = vpack.c.b16 %v202, %v199
  %v251 = vpack.c.b16 %v203, %v200
  %v252 = vpack.c.b16 %v204, %v201
  %v253 = vpack.c.b16 %v208, %v205
  %v254 = vpack.c.b16 %v209, %v206
  %v255 = vpack.c.b16 %v210, %v207
  %v256 = vpack.c.b16 %v214, %v211
  %v257 = vpack.c.b16 %v215, %v212
  %v258 = vpack.c.b16 %v216, %v213
  %v259 = vpack.c.b16 %v220, %v217
  %v260 = vpack.c.b16 %v221, %v218
  %v261 = vpack.c.b16 %v222, %v219
  %v262 = vpack.c.b16 %v226, %v223
  %v263 = vpack.c.b16 %v227, %v224
  %v264 = vpack.c.b16 %v228, %v225
  %v325 = vunpack.c.l.b16 %v66
  %v326 = vunpack.c.l.b16 %v67
  %v327 = vunpack.c.l.b16 %v68
  %v328 = vunpack.c.l.b16 %v69
  %v329 = vunpack.c.l.b16 %v70
  %v330 = vunpack.c.l.b16 %v71
  %v331 = vunpack.c.l.b16 %v72
  %v332 = vunpack.c.l.b16 %v73
  %v333 = vunpack.c.l.b16 %v74
  %v334 = vunpack.c.l.b16 %v75
  %v335 = vunpack.c.l.b16 %v76
  %v336 = vunpack.c.l.b16 %v77
  %v337 = vunpack.c.l.b16 %v78
  %v338 = vunpack.c.l.b16 %v79
  %v339 = vunpack.c.l.b16 %v80
  %v340 = vunpack.c.l.b16 %v81
  %v341 = vunpack.c.l.b16 %v82
  %v342 = vunpack.c.l.b16 %v83
  %v343 = vunpack.c.l.b16 %v84
  %v344 = vunpack.c.l.b16 %v85
  %v345 = vunpack.c.l.b16 %v86
  %v346 = vunpack.c.l.b16 %v87
  %v347 = vunpack.c.l.b16 %v88
  %v348 = vunpack.c.l.b16 %v89
  %v349 = vunpack.c.l.b16 %v90
  %v350 = vunpack.c.l.b16 %v91
  %v351 = vunpack.c.l.b16 %v92
  %v352 = vunpack.c.l.b16 %v93
  %v353 = vunpack.c.l.b16 %v94
  %v354 = vunpack.c.l.b16 %v95
  %v355 = vunpack.c.l.b16 %v96
  %v356 = vunpack.c.l.b16 %v97
  %v357 = vunpack.c.l.b16 %v98
  %v358 = vunpack.c.l.b16 %v99
  %v359 = vunpack.c.l.b16 %v100
  %v360 = vunpack.c.l.b16 %v101
  %v361 = vpack.c.b16 %v326, %v325
  %v362 = vpack.c.b16 %v328, %v327
  %v363 = vpack.c.b16 %v330, %v329
  %v364 = vpack.c.b16 %v332, %v331
  %v365 = vpack.c.b16 %v334, %v333
  %v366 = vpack.c.b16 %v336, %v335
  %v367 = vpack.c.b16 %v338, %v337
  %v368 = vpack.c.b16 %v340, %v339
  %v369 = vpack.c.b16 %v342, %v341
  %v370 = vpack.c.b16 %v344, %v343
  %v371 = vpack.c.b16 %v346, %v345
  %v372 = vpack.c.b16 %v348, %v347
  %v373 = vpack.c.b16 %v350, %v349
  %v374 = vpack.c.b16 %v352, %v351
  %v375 = vpack.c.b16 %v354, %v353
  %v376 = vpack.c.b16 %v356, %v355
  %v377 = vpack.c.b16 %v358, %v357
  %v378 = vpack.c.b16 %v360, %v359
  %vm397 = vcmask 261120
  %v399 = vsel %vm397, %v231, 0
  %v402 = vsel %vm397, %v234, 0
  %v405 = vsel %vm397, %v237, 0
  %v408 = vsel %vm397, %v240, 0
  %v411 = vsel %vm397, %v243, 0
  %v414 = vsel %vm397, %v246, 0
  %v417 = vsel %vm397, %v249, 0
  %v420 = vsel %vm397, %v252, 0
  %v423 = vsel %vm397, %v255, 0
  %v426 = vsel %vm397, %v258, 0
  %v429 = vsel %vm397, %v261, 0
  %v432 = vsel %vm397, %v264, 0
  %434 = vmatprep.subr.bf16.mxu0 0
  %435 = vmatpush1.bf16.msra.mxu0 %v361
  %436 = vmatprep.subr.bf16.mxu0 0
  %437 = vmatpush1.bf16.msra.mxu0 %v362
  %438 = vmatprep.subr.bf16.mxu0 0
  %439 = vmatpush1.bf16.msra.mxu0 %v363
  %440 = vmatprep.subr.bf16.mxu0 0
  %441 = vmatpush1.bf16.msra.mxu0 %v364
  %442 = vmatprep.subr.bf16.mxu0 0
  %443 = vmatpush1.bf16.msra.mxu0 %v365
  %444 = vmatprep.subr.bf16.mxu0 0
  %445 = vmatpush1.bf16.msra.mxu0 %v366
  %446 = vmatprep.subr.bf16.mxu0 0
  %447 = vmatpush1.bf16.msra.mxu0 %v367
  %448 = vmatprep.subr.bf16.mxu0 0
  %449 = vmatpush1.bf16.msra.mxu0 %v368
  %450 = vmatprep.subr.bf16.mxu0 0
  %451 = vmatpush1.bf16.msra.mxu0 %v369
  %452 = vmatprep.subr.bf16.mxu0 0
  %453 = vmatpush1.bf16.msra.mxu0 %v370
  %454 = vmatprep.subr.bf16.mxu0 0
  %455 = vmatpush1.bf16.msra.mxu0 %v371
  %456 = vmatprep.subr.bf16.mxu0 0
  %457 = vmatpush1.bf16.msra.mxu0 %v372
  %458 = vmatprep.subr.bf16.mxu0 0
  %459 = vmatpush1.bf16.msra.mxu0 %v373
  %460 = vmatprep.subr.bf16.mxu0 0
  %461 = vmatpush1.bf16.msra.mxu0 %v374
  %462 = vmatprep.subr.bf16.mxu0 0
  %463 = vmatpush1.bf16.msra.mxu0 %v375
  %464 = vmatprep.subr.bf16.mxu0 0
  %465 = vmatpush1.bf16.msra.mxu0 %v376
  %466 = vmatprep.mubr.bf16.mxu0 %v230
  %467 = vmatmul.mubr.bf16.gmra.mrb[0].mxu0 %v229
  %v468 = vpop.f32.mrb[0].mxu0
  %v469 = vadd.f32 %v107, %v468
  %v470 = vpop.f32.mrb[0].mxu0
  %v471 = vpop.f32.mrb[0].mxu0
  %v472 = vadd.f32 %v107, %v471
  %v473 = vpop.f32.mrb[0].mxu0
  %474 = vmatprep.mubr.bf16.mxu0 %v233
  %475 = vmatmul.mubr.bf16.gmra.mrb[0].mxu0 %v232
  %v476 = vpop.f32.mrb[0].mxu0
  %v477 = vadd.f32 %v107, %v476
  %v478 = vpop.f32.mrb[0].mxu0
  %v479 = vpop.f32.mrb[0].mxu0
  %v480 = vadd.f32 %v107, %v479
  %v481 = vpop.f32.mrb[0].mxu0
  %482 = vmatprep.mubr.bf16.mxu0 %v236
  %483 = vmatmul.mubr.bf16.gmra.mrb[0].mxu0 %v235
  %v484 = vpop.f32.mrb[0].mxu0
  %v485 = vadd.f32 %v107, %v484
  %v486 = vpop.f32.mrb[0].mxu0
  %v487 = vpop.f32.mrb[0].mxu0
  %v488 = vadd.f32 %v107, %v487
  %v489 = vpop.f32.mrb[0].mxu0
  %490 = vmatprep.mubr.bf16.mxu0 %v239
  %491 = vmatmul.mubr.bf16.gmra.mrb[0].mxu0 %v238
  %v492 = vpop.f32.mrb[0].mxu0
  %v493 = vadd.f32 %v107, %v492
  %v494 = vpop.f32.mrb[0].mxu0
  %v495 = vpop.f32.mrb[0].mxu0
  %v496 = vadd.f32 %v107, %v495
  %v497 = vpop.f32.mrb[0].mxu0
  %498 = vmatprep.mubr.bf16.mxu0 %v242
  %499 = vmatmul.mubr.bf16.gmra.mrb[0].mxu0 %v241
  %v500 = vpop.f32.mrb[0].mxu0
  %v501 = vadd.f32 %v107, %v500
  %v502 = vpop.f32.mrb[0].mxu0
  %v503 = vpop.f32.mrb[0].mxu0
  %v504 = vadd.f32 %v107, %v503
  %v505 = vpop.f32.mrb[0].mxu0
  %506 = vmatprep.mubr.bf16.mxu0 %v245
  %507 = vmatmul.mubr.bf16.gmra.mrb[0].mxu0 %v244
  %v508 = vpop.f32.mrb[0].mxu0
  %v509 = vadd.f32 %v107, %v508
  %v510 = vpop.f32.mrb[0].mxu0
  %v511 = vpop.f32.mrb[0].mxu0
  %v512 = vadd.f32 %v107, %v511
  %v513 = vpop.f32.mrb[0].mxu0
  %514 = vmatprep.mubr.bf16.mxu0 %v248
  %515 = vmatmul.mubr.bf16.gmra.mrb[0].mxu0 %v247
  %v516 = vpop.f32.mrb[0].mxu0
  %v517 = vadd.f32 %v107, %v516
  %v518 = vpop.f32.mrb[0].mxu0
  %v519 = vpop.f32.mrb[0].mxu0
  %v520 = vadd.f32 %v107, %v519
  %v521 = vpop.f32.mrb[0].mxu0
  %522 = vmatprep.mubr.bf16.mxu0 %v251
  %523 = vmatmul.mubr.bf16.gmra.mrb[0].mxu0 %v250
  %v524 = vpop.f32.mrb[0].mxu0
  %v525 = vadd.f32 %v107, %v524
  %v526 = vpop.f32.mrb[0].mxu0
  %v527 = vpop.f32.mrb[0].mxu0
  %v528 = vadd.f32 %v107, %v527
  %v529 = vpop.f32.mrb[0].mxu0
  %530 = vmatprep.mubr.bf16.mxu0 %v254
  %531 = vmatmul.mubr.bf16.gmra.mrb[0].mxu0 %v253
  %v532 = vpop.f32.mrb[0].mxu0
  %v533 = vadd.f32 %v107, %v532
  %v534 = vpop.f32.mrb[0].mxu0
  %v535 = vpop.f32.mrb[0].mxu0
  %v536 = vadd.f32 %v107, %v535
  %v537 = vpop.f32.mrb[0].mxu0
  %538 = vmatprep.mubr.bf16.mxu0 %v257
  %539 = vmatmul.mubr.bf16.gmra.mrb[0].mxu0 %v256
  %v540 = vpop.f32.mrb[0].mxu0
  %v541 = vadd.f32 %v107, %v540
  %v542 = vpop.f32.mrb[0].mxu0
  %v543 = vpop.f32.mrb[0].mxu0
  %v544 = vadd.f32 %v107, %v543
  %v545 = vpop.f32.mrb[0].mxu0
  %546 = vmatprep.mubr.bf16.mxu0 %v260
  %547 = vmatmul.mubr.bf16.gmra.mrb[0].mxu0 %v259
  %v548 = vpop.f32.mrb[0].mxu0
  %v549 = vadd.f32 %v107, %v548
  %v550 = vpop.f32.mrb[0].mxu0
  %v551 = vpop.f32.mrb[0].mxu0
  %v552 = vadd.f32 %v107, %v551
  %v553 = vpop.f32.mrb[0].mxu0
  %554 = vmatprep.mubr.bf16.mxu0 %v263
  %555 = vmatmul.mubr.bf16.gmra.mrb[0].mxu0 %v262
  %v556 = vpop.f32.mrb[0].mxu0
  %v557 = vadd.f32 %v107, %v556
  %v558 = vpop.f32.mrb[0].mxu0
  %v559 = vpop.f32.mrb[0].mxu0
  %v560 = vadd.f32 %v107, %v559
  %v561 = vpop.f32.mrb[0].mxu0
  %562 = vdwg.mxu0
  %563 = vmatprep.subr.bf16.mxu0 0
  %564 = vmatpush1.bf16.msra.mxu0 %v377
  %565 = vmatprep.subr.bf16.mxu0 0
  %566 = vmatpush1.bf16.msra.mxu0 %v378
  %567 = vmatprep.subr.bf16.mxu0 0
  %568 = vmatpush1.bf16.msra.mxu0 0
  %569 = vmatprep.subr.bf16.mxu0 0
  %570 = vmatpush1.bf16.msra.mxu0 0
  %571 = vmatprep.subr.bf16.mxu0 0
  %572 = vmatpush1.bf16.msra.mxu0 0
  %573 = vmatprep.subr.bf16.mxu0 0
  %574 = vmatpush1.bf16.msra.mxu0 0
  %575 = vmatprep.subr.bf16.mxu0 0
  %576 = vmatpush1.bf16.msra.mxu0 0
  %577 = vmatprep.subr.bf16.mxu0 0
  %578 = vmatpush1.bf16.msra.mxu0 0
  %579 = vmatprep.subr.bf16.mxu0 0
  %580 = vmatpush1.bf16.msra.mxu0 0
  %581 = vmatprep.subr.bf16.mxu0 0
  %582 = vmatpush1.bf16.msra.mxu0 0
  %583 = vmatprep.subr.bf16.mxu0 0
  %584 = vmatpush1.bf16.msra.mxu0 0
  %585 = vmatprep.subr.bf16.mxu0 0
  %586 = vmatpush1.bf16.msra.mxu0 0
  %587 = vmatprep.subr.bf16.mxu0 0
  %588 = vmatpush1.bf16.msra.mxu0 0
  %589 = vmatprep.subr.bf16.mxu0 0
  %590 = vmatpush1.bf16.msra.mxu0 0
  %591 = vmatprep.subr.bf16.mxu0 0
  %592 = vmatpush1.bf16.msra.mxu0 0
  %593 = vmatprep.subr.bf16.mxu0 0
  %594 = vmatpush1.bf16.msra.mxu0 0
  %595 = vmatprep.mubr.bf16.mxu0 0
  %596 = vmatmul.mubr.bf16.gmra.mrb[0].mxu0 %v399
  %v597 = vpop.f32.mrb[0].mxu0
  %v598 = vadd.f32 %v469, %v597
  %v599 = vpop.f32.mrb[0].mxu0
  %v600 = vpop.f32.mrb[0].mxu0
  %v601 = vadd.f32 %v472, %v600
  %v602 = vpop.f32.mrb[0].mxu0
  %603 = vmatprep.mubr.bf16.mxu0 0
  %604 = vmatmul.mubr.bf16.gmra.mrb[0].mxu0 %v402
  %v605 = vpop.f32.mrb[0].mxu0
  %v606 = vadd.f32 %v477, %v605
  %v607 = vpop.f32.mrb[0].mxu0
  %v608 = vpop.f32.mrb[0].mxu0
  %v609 = vadd.f32 %v480, %v608
  %v610 = vpop.f32.mrb[0].mxu0
  %611 = vmatprep.mubr.bf16.mxu0 0
  %612 = vmatmul.mubr.bf16.gmra.mrb[0].mxu0 %v405
  %v613 = vpop.f32.mrb[0].mxu0
  %v614 = vadd.f32 %v485, %v613
  %v615 = vpop.f32.mrb[0].mxu0
  %v616 = vpop.f32.mrb[0].mxu0
  %v617 = vadd.f32 %v488, %v616
  %v618 = vpop.f32.mrb[0].mxu0
  %619 = vmatprep.mubr.bf16.mxu0 0
  %620 = vmatmul.mubr.bf16.gmra.mrb[0].mxu0 %v408
  %v621 = vpop.f32.mrb[0].mxu0
  %v622 = vadd.f32 %v493, %v621
  %v623 = vpop.f32.mrb[0].mxu0
  %v624 = vpop.f32.mrb[0].mxu0
  %v625 = vadd.f32 %v496, %v624
  %v626 = vpop.f32.mrb[0].mxu0
  %627 = vmatprep.mubr.bf16.mxu0 0
  %628 = vmatmul.mubr.bf16.gmra.mrb[0].mxu0 %v411
  %v629 = vpop.f32.mrb[0].mxu0
  %v630 = vadd.f32 %v501, %v629
  %v631 = vpop.f32.mrb[0].mxu0
  %v632 = vpop.f32.mrb[0].mxu0
  %v633 = vadd.f32 %v504, %v632
  %v634 = vpop.f32.mrb[0].mxu0
  %635 = vmatprep.mubr.bf16.mxu0 0
  %636 = vmatmul.mubr.bf16.gmra.mrb[0].mxu0 %v414
  %v637 = vpop.f32.mrb[0].mxu0
  %v638 = vadd.f32 %v509, %v637
  %v639 = vpop.f32.mrb[0].mxu0
  %v640 = vpop.f32.mrb[0].mxu0
  %v641 = vadd.f32 %v512, %v640
  %v642 = vpop.f32.mrb[0].mxu0
  %643 = vmatprep.mubr.bf16.mxu0 0
  %644 = vmatmul.mubr.bf16.gmra.mrb[0].mxu0 %v417
  %v645 = vpop.f32.mrb[0].mxu0
  %v646 = vadd.f32 %v517, %v645
  %v647 = vpop.f32.mrb[0].mxu0
  %v648 = vpop.f32.mrb[0].mxu0
  %v649 = vadd.f32 %v520, %v648
  %v650 = vpop.f32.mrb[0].mxu0
  %651 = vmatprep.mubr.bf16.mxu0 0
  %652 = vmatmul.mubr.bf16.gmra.mrb[0].mxu0 %v420
  %v653 = vpop.f32.mrb[0].mxu0
  %v654 = vadd.f32 %v525, %v653
  %v655 = vpop.f32.mrb[0].mxu0
  %v656 = vpop.f32.mrb[0].mxu0
  %v657 = vadd.f32 %v528, %v656
  %v658 = vpop.f32.mrb[0].mxu0
  %659 = vmatprep.mubr.bf16.mxu0 0
  %660 = vmatmul.mubr.bf16.gmra.mrb[0].mxu0 %v423
  %v661 = vpop.f32.mrb[0].mxu0
  %v662 = vadd.f32 %v533, %v661
  %v663 = vpop.f32.mrb[0].mxu0
  %v664 = vpop.f32.mrb[0].mxu0
  %v665 = vadd.f32 %v536, %v664
  %v666 = vpop.f32.mrb[0].mxu0
  %667 = vmatprep.mubr.bf16.mxu0 0
  %668 = vmatmul.mubr.bf16.gmra.mrb[0].mxu0 %v426
  %v669 = vpop.f32.mrb[0].mxu0
  %v670 = vadd.f32 %v541, %v669
  %v671 = vpop.f32.mrb[0].mxu0
  %v672 = vpop.f32.mrb[0].mxu0
  %v673 = vadd.f32 %v544, %v672
  %v674 = vpop.f32.mrb[0].mxu0
  %675 = vmatprep.mubr.bf16.mxu0 0
  %676 = vmatmul.mubr.bf16.gmra.mrb[0].mxu0 %v429
  %v677 = vpop.f32.mrb[0].mxu0
  %v678 = vadd.f32 %v549, %v677
  %v679 = vpop.f32.mrb[0].mxu0
  %v680 = vpop.f32.mrb[0].mxu0
  %v681 = vadd.f32 %v552, %v680
  %v682 = vpop.f32.mrb[0].mxu0
  %683 = vmatprep.mubr.bf16.mxu0 0
  %684 = vmatmul.mubr.bf16.gmra.mrb[0].mxu0 %v432
  %v685 = vpop.f32.mrb[0].mxu0
  %v686 = vadd.f32 %v557, %v685
  %v687 = vpop.f32.mrb[0].mxu0
  %v688 = vpop.f32.mrb[0].mxu0
  %v689 = vadd.f32 %v560, %v688
  %v690 = vpop.f32.mrb[0].mxu0
  %691 = vdwg.mxu0
  %v692 = vld [vmem:[%s3] sm:$0xf]
  %v693 = vld [vmem:[%s3 + $0x4] sm:$0xf]
  %v694 = vld [vmem:[%s3 + $0x8] sm:$0xf]
  %v695 = vld [vmem:[%s3 + $0xc] sm:$0xf]
  %v696 = vld [vmem:[%s3 + $0x10] sm:$0xf]
  %v697 = vld [vmem:[%s3 + $0x14] sm:$0xf]
  %v698 = vld [vmem:[%s3 + $0x18] sm:$0xf]
  %v699 = vld [vmem:[%s3 + $0x1c] sm:$0xf]
  %v700 = vld [vmem:[%s3 + $0x20] sm:$0xf]
  %v701 = vld [vmem:[%s3 + $0x24] sm:$0xf]
  %v702 = vld [vmem:[%s3 + $0x28] sm:$0xf]
  %v703 = vld [vmem:[%s3 + $0x2c] sm:$0xf]
  %v704 = vld [vmem:[%s3 + $0x30] sm:$0xf]
  %v705 = vld [vmem:[%s3 + $0x34] sm:$0xf]
  %v706 = vld [vmem:[%s3 + $0x38] sm:$0xf]
  %v707 = vld [vmem:[%s3 + $0x3c] sm:$0xf]
  %v708 = vld [vmem:[%s3 + $0x40] sm:$0xf]
  %v709 = vld [vmem:[%s3 + $0x44] sm:$0xf]
  %v710 = vld [vmem:[%s3 + $0x48] sm:$0xf]
  %v711 = vld [vmem:[%s3 + $0x4c] sm:$0xf]
  %v712 = vld [vmem:[%s3 + $0x50] sm:$0xf]
  %v713 = vld [vmem:[%s3 + $0x54] sm:$0xf]
  %v714 = vld [vmem:[%s3 + $0x58] sm:$0xf]
  %v715 = vld [vmem:[%s3 + $0x5c] sm:$0xf]
  %v716 = vunpack.c.l.bf16 %v692
  %v717 = vunpack.c.l.bf16 %v693
  %v718 = vunpack.c.l.bf16 %v694
  %v719 = vunpack.c.l.bf16 %v695
  %v720 = vunpack.c.l.bf16 %v696
  %v721 = vunpack.c.l.bf16 %v697
  %v722 = vunpack.c.l.bf16 %v698
  %v723 = vunpack.c.l.bf16 %v699
  %v724 = vunpack.c.l.bf16 %v700
  %v725 = vunpack.c.l.bf16 %v701
  %v726 = vunpack.c.l.bf16 %v702
  %v727 = vunpack.c.l.bf16 %v703
  %v728 = vunpack.c.l.bf16 %v704
  %v729 = vunpack.c.l.bf16 %v705
  %v730 = vunpack.c.l.bf16 %v706
  %v731 = vunpack.c.l.bf16 %v707
  %v732 = vunpack.c.l.bf16 %v708
  %v733 = vunpack.c.l.bf16 %v709
  %v734 = vunpack.c.l.bf16 %v710
  %v735 = vunpack.c.l.bf16 %v711
  %v736 = vunpack.c.l.bf16 %v712
  %v737 = vunpack.c.l.bf16 %v713
  %v738 = vunpack.c.l.bf16 %v714
  %v739 = vunpack.c.l.bf16 %v715
  %v740 = vadd.f32 %v598, %v716
  %v741 = vadd.f32 %v601, %v717
  %v742 = vadd.f32 %v606, %v718
  %v743 = vadd.f32 %v609, %v719
  %v744 = vadd.f32 %v614, %v720
  %v745 = vadd.f32 %v617, %v721
  %v746 = vadd.f32 %v622, %v722
  %v747 = vadd.f32 %v625, %v723
  %v748 = vadd.f32 %v630, %v724
  %v749 = vadd.f32 %v633, %v725
  %v750 = vadd.f32 %v638, %v726
  %v751 = vadd.f32 %v641, %v727
  %v752 = vadd.f32 %v646, %v728
  %v753 = vadd.f32 %v649, %v729
  %v754 = vadd.f32 %v654, %v730
  %v755 = vadd.f32 %v657, %v731
  %v756 = vadd.f32 %v662, %v732
  %v757 = vadd.f32 %v665, %v733
  %v758 = vadd.f32 %v670, %v734
  %v759 = vadd.f32 %v673, %v735
  %v760 = vadd.f32 %v678, %v736
  %v761 = vadd.f32 %v681, %v737
  %v762 = vadd.f32 %v686, %v738
  %v763 = vadd.f32 %v689, %v739
  %v764 = vmax.f32 %v740, 0.0
  %v765 = vmax.f32 %v741, 0.0
  %v766 = vmax.f32 %v742, 0.0
  %v767 = vmax.f32 %v743, 0.0
  %v768 = vmax.f32 %v744, 0.0
  %v769 = vmax.f32 %v745, 0.0
  %v770 = vmax.f32 %v746, 0.0
  %v771 = vmax.f32 %v747, 0.0
  %v772 = vmax.f32 %v748, 0.0
  %v773 = vmax.f32 %v749, 0.0
  %v774 = vmax.f32 %v750, 0.0
  %v775 = vmax.f32 %v751, 0.0
  %v776 = vmax.f32 %v752, 0.0
  %v777 = vmax.f32 %v753, 0.0
  %v778 = vmax.f32 %v754, 0.0
  %v779 = vmax.f32 %v755, 0.0
  %v780 = vmax.f32 %v756, 0.0
  %v781 = vmax.f32 %v757, 0.0
  %v782 = vmax.f32 %v758, 0.0
  %v783 = vmax.f32 %v759, 0.0
  %v784 = vmax.f32 %v760, 0.0
  %v785 = vmax.f32 %v761, 0.0
  %v786 = vmax.f32 %v762, 0.0
  %v787 = vmax.f32 %v763, 0.0
  %v788 = vpack.c.bf16 %v765, %v764
  %v789 = vpack.c.bf16 %v767, %v766
  %v790 = vpack.c.bf16 %v769, %v768
  %v791 = vpack.c.bf16 %v771, %v770
  %v792 = vpack.c.bf16 %v773, %v772
  %v793 = vpack.c.bf16 %v775, %v774
  %v794 = vpack.c.bf16 %v777, %v776
  %v795 = vpack.c.bf16 %v779, %v778
  %v796 = vpack.c.bf16 %v781, %v780
  %v797 = vpack.c.bf16 %v783, %v782
  %v798 = vpack.c.bf16 %v785, %v784
  %v799 = vpack.c.bf16 %v787, %v786
  %v812 = vunpack.c.l.b16 %v788
  %v813 = vunpack.c.h.b16 %v788
  %v814 = vunpack.c.l.b16 %v789
  %v815 = vunpack.c.h.b16 %v789
  %v816 = vunpack.c.l.b16 %v790
  %v817 = vunpack.c.h.b16 %v790
  %v818 = vunpack.c.l.b16 %v791
  %v819 = vunpack.c.h.b16 %v791
  %v820 = vunpack.c.l.b16 %v792
  %v821 = vunpack.c.h.b16 %v792
  %v822 = vunpack.c.l.b16 %v793
  %v823 = vunpack.c.h.b16 %v793
  %v824 = vunpack.c.l.b16 %v794
  %v825 = vunpack.c.h.b16 %v794
  %v826 = vunpack.c.l.b16 %v795
  %v827 = vunpack.c.h.b16 %v795
  %v828 = vunpack.c.l.b16 %v796
  %v829 = vunpack.c.h.b16 %v796
  %v830 = vunpack.c.l.b16 %v797
  %v831 = vunpack.c.h.b16 %v797
  %v832 = vunpack.c.l.b16 %v798
  %v833 = vunpack.c.h.b16 %v798
  %v834 = vunpack.c.l.b16 %v799
  %v835 = vunpack.c.h.b16 %v799
  %v836 = vpack.c.b16 %v812, %v812
  %v837 = vpack.c.b16 %v813, %v813
  %v838 = vpack.c.b16 %v814, %v814
  %v839 = vpack.c.b16 %v815, %v815
  %v840 = vpack.c.b16 %v816, %v816
  %v841 = vpack.c.b16 %v817, %v817
  %v842 = vpack.c.b16 %v818, %v818
  %v843 = vpack.c.b16 %v819, %v819
  %v844 = vpack.c.b16 %v820, %v820
  %v845 = vpack.c.b16 %v821, %v821
  %v846 = vpack.c.b16 %v822, %v822
  %v847 = vpack.c.b16 %v823, %v823
  %v848 = vpack.c.b16 %v824, %v824
  %v849 = vpack.c.b16 %v825, %v825
  %v850 = vpack.c.b16 %v826, %v826
  %v851 = vpack.c.b16 %v827, %v827
  %v852 = vpack.c.b16 %v828, %v828
  %v853 = vpack.c.b16 %v829, %v829
  %v854 = vpack.c.b16 %v830, %v830
  %v855 = vpack.c.b16 %v831, %v831
  %v856 = vpack.c.b16 %v832, %v832
  %v857 = vpack.c.b16 %v833, %v833
  %v858 = vpack.c.b16 %v834, %v834
  %v859 = vpack.c.b16 %v835, %v835
  %vm884 = vcmask 257024
  %885 = vst.msk [vmem:[%s4] sm:$0xf] %vm884, %v836
  %886 = vst.msk [vmem:[%s4 + $0x4] sm:$0xf] %vm884, %v837
  %887 = vst.msk [vmem:[%s4 + $0x8] sm:$0xf] %vm884, %v838
  %888 = vst.msk [vmem:[%s4 + $0xc] sm:$0xf] %vm884, %v839
  %889 = vst.msk [vmem:[%s4 + $0x10] sm:$0xf] %vm884, %v840
  %890 = vst.msk [vmem:[%s4 + $0x14] sm:$0xf] %vm884, %v841
  %891 = vst.msk [vmem:[%s4 + $0x18] sm:$0xf] %vm884, %v842
  %892 = vst.msk [vmem:[%s4 + $0x1c] sm:$0xf] %vm884, %v843
  %893 = vst.msk [vmem:[%s4 + $0x20] sm:$0xf] %vm884, %v844
  %894 = vst.msk [vmem:[%s4 + $0x24] sm:$0xf] %vm884, %v845
  %895 = vst.msk [vmem:[%s4 + $0x28] sm:$0xf] %vm884, %v846
  %896 = vst.msk [vmem:[%s4 + $0x2c] sm:$0xf] %vm884, %v847
  %897 = vst.msk [vmem:[%s4 + $0x30] sm:$0xf] %vm884, %v848
  %898 = vst.msk [vmem:[%s4 + $0x34] sm:$0xf] %vm884, %v849
  %899 = vst.msk [vmem:[%s4 + $0x38] sm:$0xf] %vm884, %v850
  %900 = vst.msk [vmem:[%s4 + $0x3c] sm:$0xf] %vm884, %v851
  %901 = vst.msk [vmem:[%s4 + $0x40] sm:$0xf] %vm884, %v852
  %902 = vst.msk [vmem:[%s4 + $0x44] sm:$0xf] %vm884, %v853
  %903 = vst.msk [vmem:[%s4 + $0x48] sm:$0xf] %vm884, %v854
  %904 = vst.msk [vmem:[%s4 + $0x4c] sm:$0xf] %vm884, %v855
  %905 = vst.msk [vmem:[%s4 + $0x50] sm:$0xf] %vm884, %v856
  %906 = vst.msk [vmem:[%s4 + $0x54] sm:$0xf] %vm884, %v857
  %907 = vst.msk [vmem:[%s4 + $0x58] sm:$0xf] %vm884, %v858
  %908 = vst.msk [vmem:[%s4 + $0x5c] sm:$0xf] %vm884, %v859
  // Predicated region
  $region18: #{_lambda_.18} parent=0 // pred_check
    _
  $region19: #{_lambda_.18} parent=0 // pred_check_branch
    %910 = sbr.rel (0) target = $region21
  $region20: #{_lambda_.18} parent=0 // pred_region
    _
  $region21: #{_lambda_.18} parent=0 // pred_fallthru
    _
  // Predicated region
  $region22: #{_lambda_.18} parent=0 // pred_check
    _
  $region23: #{_lambda_.18} parent=0 // pred_check_branch
    %912 = sbr.rel (0) target = $region25
  $region24: #{_lambda_.18} parent=0 // pred_region
    _
  $region25: #{_lambda_.18} parent=0 // pred_fallthru
    _

// kernel: _lambda_.19
$region0: #{_lambda_.19}
  #allocation0 [shape = 'u32[]', space=smem, size = 0x4, offset = 0x4, fixed_abs, tag = 'smem constant byte address 0x4 - core index']
  #allocation1 [shape = 'u32[144,128]{1,0:T(1,128)}', space=vmem, size = 0x12000, scoped, tag = 'internal scratch']
  %s0 = inlined_call_operand.vmem [shape: bf16[48,288], index: 0, kind: input, shape index: {}]
  %s1 = inlined_call_operand.vmem [shape: bf16[288,64], index: 1, kind: input, shape index: {}]
  %s2 = inlined_call_operand.vmem [shape: f32[1,64], index: 2, kind: input, shape index: {}]
  %s3 = inlined_call_operand.vmem [shape: bf16[48,64], index: 3, kind: output, shape index: {}]
  %s4 = sld [smem:[#allocation0]]
  $region22: #{_lambda_.19} parent=0
    _
  %s6 = ssub.s32 1, %s4
  %s7 = scalar_select 0, %s6, %s4
  // Predicated region
  $region2: #{_lambda_.19} parent=0 // pred_check
    _
  $region3: #{_lambda_.19} parent=0 // pred_check_branch
    %9 = sbr.rel (0) target = $region5
  $region4: #{_lambda_.19} parent=0 // pred_region
    _
  $region5: #{_lambda_.19} parent=0 // pred_fallthru
    _
  // Predicated region
  $region6: #{_lambda_.19} parent=0 // pred_check
    _
  $region7: #{_lambda_.19} parent=0 // pred_check_branch
    %11 = sbr.rel (0) target = $region9
  $region8: #{_lambda_.19} parent=0 // pred_region
    _
  $region9: #{_lambda_.19} parent=0 // pred_fallthru
    _
  // Predicated region
  $region10: #{_lambda_.19} parent=0 // pred_check
    _
  $region11: #{_lambda_.19} parent=0 // pred_check_branch
    %13 = sbr.rel (0) target = $region13
  $region12: #{_lambda_.19} parent=0 // pred_region
    _
  $region13: #{_lambda_.19} parent=0 // pred_fallthru
    _
  %v15 = vld [vmem:[%s0] sm:$0xff]
  %v16 = vld [vmem:[%s0 + $0x8] sm:$0xf]
  %v17 = vld [vmem:[%s0 + $0xc] sm:$0xff]
  %v18 = vld [vmem:[%s0 + $0x14] sm:$0xf]
  %v19 = vld [vmem:[%s0 + $0x18] sm:$0xff]
  %v20 = vld [vmem:[%s0 + $0x20] sm:$0xf]
  %v21 = vld [vmem:[%s0 + $0x24] sm:$0xff]
  %v22 = vld [vmem:[%s0 + $0x2c] sm:$0xf]
  %v23 = vld [vmem:[%s0 + $0x30] sm:$0xff]
  %v24 = vld [vmem:[%s0 + $0x38] sm:$0xf]
  %v25 = vld [vmem:[%s0 + $0x3c] sm:$0xff]
  %v26 = vld [vmem:[%s0 + $0x44] sm:$0xf]
  %v27 = vld [vmem:[%s1] sm:$0xf]
  %v28 = vld [vmem:[%s1 + $0x4] sm:$0xf]
  %v29 = vld [vmem:[%s1 + $0x8] sm:$0xf]
  %v30 = vld [vmem:[%s1 + $0xc] sm:$0xf]
  %v31 = vld [vmem:[%s1 + $0x10] sm:$0xf]
  %v32 = vld [vmem:[%s1 + $0x14] sm:$0xf]
  %v33 = vld [vmem:[%s1 + $0x18] sm:$0xf]
  %v34 = vld [vmem:[%s1 + $0x1c] sm:$0xf]
  %v35 = vld [vmem:[%s1 + $0x20] sm:$0xf]
  %v36 = vld [vmem:[%s1 + $0x24] sm:$0xf]
  %v37 = vld [vmem:[%s1 + $0x28] sm:$0xf]
  %v38 = vld [vmem:[%s1 + $0x2c] sm:$0xf]
  %v39 = vld [vmem:[%s1 + $0x30] sm:$0xf]
  %v40 = vld [vmem:[%s1 + $0x34] sm:$0xf]
  %v41 = vld [vmem:[%s1 + $0x38] sm:$0xf]
  %v42 = vld [vmem:[%s1 + $0x3c] sm:$0xf]
  %v43 = vld [vmem:[%s1 + $0x40] sm:$0xf]
  %v44 = vld [vmem:[%s1 + $0x44] sm:$0xf]
  %v45 = vld [vmem:[%s1 + $0x48] sm:$0xf]
  %v46 = vld [vmem:[%s1 + $0x4c] sm:$0xf]
  %v47 = vld [vmem:[%s1 + $0x50] sm:$0xf]
  %v48 = vld [vmem:[%s1 + $0x54] sm:$0xf]
  %v49 = vld [vmem:[%s1 + $0x58] sm:$0xf]
  %v50 = vld [vmem:[%s1 + $0x5c] sm:$0xf]
  %v51 = vld [vmem:[%s1 + $0x60] sm:$0xf]
  %v52 = vld [vmem:[%s1 + $0x64] sm:$0xf]
  %v53 = vld [vmem:[%s1 + $0x68] sm:$0xf]
  %v54 = vld [vmem:[%s1 + $0x6c] sm:$0xf]
  %v55 = vld [vmem:[%s1 + $0x70] sm:$0xf]
  %v56 = vld [vmem:[%s1 + $0x74] sm:$0xf]
  %v57 = vld [vmem:[%s1 + $0x78] sm:$0xf]
  %v58 = vld [vmem:[%s1 + $0x7c] sm:$0xf]
  %v59 = vld [vmem:[%s1 + $0x80] sm:$0xf]
  %v60 = vld [vmem:[%s1 + $0x84] sm:$0xf]
  %v61 = vld [vmem:[%s1 + $0x88] sm:$0xf]
  %v62 = vld [vmem:[%s1 + $0x8c] sm:$0xf]
  %v63 = vld [vmem:[%s2] sm:$0x1]
  %v65 = vlaneseq
  %v66 = vshrl.u32 %v65, 7
  %v67 = vsub.s32 0, %v66
  %v68 = vrot.slane %v63, %v67
  %v82 = vunpack.c.l.b16 %v15
  %v83 = vunpack.c.h.b16 %v15
  %v84 = vunpack.c.l.b16 %v16
  %v85 = vunpack.c.l.b16 %v17
  %v86 = vunpack.c.h.b16 %v17
  %v87 = vunpack.c.l.b16 %v18
  %v88 = vunpack.c.l.b16 %v19
  %v89 = vunpack.c.h.b16 %v19
  %v90 = vunpack.c.l.b16 %v20
  %v91 = vunpack.c.l.b16 %v21
  %v92 = vunpack.c.h.b16 %v21
  %v93 = vunpack.c.l.b16 %v22
  %v94 = vunpack.c.l.b16 %v23
  %v95 = vunpack.c.h.b16 %v23
  %v96 = vunpack.c.l.b16 %v24
  %v97 = vunpack.c.l.b16 %v25
  %v98 = vunpack.c.h.b16 %v25
  %v99 = vunpack.c.l.b16 %v26
  %v100 = vpack.c.b16 %v85, %v82
  %v101 = vpack.c.b16 %v86, %v83
  %v102 = vpack.c.b16 %v87, %v84
  %v103 = vpack.c.b16 %v91, %v88
  %v104 = vpack.c.b16 %v92, %v89
  %v105 = vpack.c.b16 %v93, %v90
  %v106 = vpack.c.b16 %v97, %v94
  %v107 = vpack.c.b16 %v98, %v95
  %v108 = vpack.c.b16 %v99, %v96
  %v151 = vunpack.c.l.b16 %v27
  %v152 = vunpack.c.l.b16 %v28
  %v153 = vunpack.c.l.b16 %v29
  %v154 = vunpack.c.l.b16 %v30
  %v155 = vunpack.c.l.b16 %v31
  %v156 = vunpack.c.l.b16 %v32
  %v157 = vunpack.c.l.b16 %v33
  %v158 = vunpack.c.l.b16 %v34
  %v159 = vunpack.c.l.b16 %v35
  %v160 = vunpack.c.l.b16 %v36
  %v161 = vunpack.c.l.b16 %v37
  %v162 = vunpack.c.l.b16 %v38
  %v163 = vunpack.c.l.b16 %v39
  %v164 = vunpack.c.l.b16 %v40
  %v165 = vunpack.c.l.b16 %v41
  %v166 = vunpack.c.l.b16 %v42
  %v167 = vunpack.c.l.b16 %v43
  %v168 = vunpack.c.l.b16 %v44
  %v169 = vunpack.c.l.b16 %v45
  %v170 = vunpack.c.l.b16 %v46
  %v171 = vunpack.c.l.b16 %v47
  %v172 = vunpack.c.l.b16 %v48
  %v173 = vunpack.c.l.b16 %v49
  %v174 = vunpack.c.l.b16 %v50
  %v175 = vunpack.c.l.b16 %v51
  %v176 = vunpack.c.l.b16 %v52
  %v177 = vunpack.c.l.b16 %v53
  %v178 = vunpack.c.l.b16 %v54
  %v179 = vunpack.c.l.b16 %v55
  %v180 = vunpack.c.l.b16 %v56
  %v181 = vunpack.c.l.b16 %v57
  %v182 = vunpack.c.l.b16 %v58
  %v183 = vunpack.c.l.b16 %v59
  %v184 = vunpack.c.l.b16 %v60
  %v185 = vunpack.c.l.b16 %v61
  %v186 = vunpack.c.l.b16 %v62
  %v187 = vpack.c.b16 %v152, %v151
  %v188 = vpack.c.b16 %v154, %v153
  %v189 = vpack.c.b16 %v156, %v155
  %v190 = vpack.c.b16 %v158, %v157
  %v191 = vpack.c.b16 %v160, %v159
  %v192 = vpack.c.b16 %v162, %v161
  %v193 = vpack.c.b16 %v164, %v163
  %v194 = vpack.c.b16 %v166, %v165
  %v195 = vpack.c.b16 %v168, %v167
  %v196 = vpack.c.b16 %v170, %v169
  %v197 = vpack.c.b16 %v172, %v171
  %v198 = vpack.c.b16 %v174, %v173
  %v199 = vpack.c.b16 %v176, %v175
  %v200 = vpack.c.b16 %v178, %v177
  %v201 = vpack.c.b16 %v180, %v179
  %v202 = vpack.c.b16 %v182, %v181
  %v203 = vpack.c.b16 %v184, %v183
  %v204 = vpack.c.b16 %v186, %v185
  %vm223 = vcmask 261120
  %v225 = vsel %vm223, %v102, 0
  %v228 = vsel %vm223, %v105, 0
  %v231 = vsel %vm223, %v108, 0
  %233 = vmatprep.subr.bf16.mxu0 0
  %234 = vmatpush1.bf16.msra.mxu0 %v187
  %235 = vmatprep.subr.bf16.mxu0 0
  %236 = vmatpush1.bf16.msra.mxu0 %v188
  %237 = vmatprep.subr.bf16.mxu0 0
  %238 = vmatpush1.bf16.msra.mxu0 %v189
  %239 = vmatprep.subr.bf16.mxu0 0
  %240 = vmatpush1.bf16.msra.mxu0 %v190
  %241 = vmatprep.subr.bf16.mxu0 0
  %242 = vmatpush1.bf16.msra.mxu0 %v191
  %243 = vmatprep.subr.bf16.mxu0 0
  %244 = vmatpush1.bf16.msra.mxu0 %v192
  %245 = vmatprep.subr.bf16.mxu0 0
  %246 = vmatpush1.bf16.msra.mxu0 %v193
  %247 = vmatprep.subr.bf16.mxu0 0
  %248 = vmatpush1.bf16.msra.mxu0 %v194
  %249 = vmatprep.subr.bf16.mxu0 0
  %250 = vmatpush1.bf16.msra.mxu0 %v195
  %251 = vmatprep.subr.bf16.mxu0 0
  %252 = vmatpush1.bf16.msra.mxu0 %v196
  %253 = vmatprep.subr.bf16.mxu0 0
  %254 = vmatpush1.bf16.msra.mxu0 %v197
  %255 = vmatprep.subr.bf16.mxu0 0
  %256 = vmatpush1.bf16.msra.mxu0 %v198
  %257 = vmatprep.subr.bf16.mxu0 0
  %258 = vmatpush1.bf16.msra.mxu0 %v199
  %259 = vmatprep.subr.bf16.mxu0 0
  %260 = vmatpush1.bf16.msra.mxu0 %v200
  %261 = vmatprep.subr.bf16.mxu0 0
  %262 = vmatpush1.bf16.msra.mxu0 %v201
  %263 = vmatprep.subr.bf16.mxu0 0
  %264 = vmatpush1.bf16.msra.mxu0 %v202
  %265 = vmatprep.mubr.bf16.mxu0 %v101
  %266 = vmatmul.mubr.bf16.gmra.mrb[0].mxu0 %v100
  %v267 = vpop.f32.mrb[0].mxu0
  %v268 = vadd.f32 %v68, %v267
  %v269 = vpop.f32.mrb[0].mxu0
  %v270 = vpop.f32.mrb[0].mxu0
  %v271 = vadd.f32 %v68, %v270
  %v272 = vpop.f32.mrb[0].mxu0
  %273 = vmatprep.mubr.bf16.mxu0 %v104
  %274 = vmatmul.mubr.bf16.gmra.mrb[0].mxu0 %v103
  %v275 = vpop.f32.mrb[0].mxu0
  %v276 = vadd.f32 %v68, %v275
  %v277 = vpop.f32.mrb[0].mxu0
  %v278 = vpop.f32.mrb[0].mxu0
  %v279 = vadd.f32 %v68, %v278
  %v280 = vpop.f32.mrb[0].mxu0
  %281 = vmatprep.mubr.bf16.mxu0 %v107
  %282 = vmatmul.mubr.bf16.gmra.mrb[0].mxu0 %v106
  %v283 = vpop.f32.mrb[0].mxu0
  %v284 = vadd.f32 %v68, %v283
  %v285 = vpop.f32.mrb[0].mxu0
  %v286 = vpop.f32.mrb[0].mxu0
  %v287 = vadd.f32 %v68, %v286
  %v288 = vpop.f32.mrb[0].mxu0
  %289 = vdwg.mxu0
  %290 = vmatprep.subr.bf16.mxu0 0
  %291 = vmatpush1.bf16.msra.mxu0 %v203
  %292 = vmatprep.subr.bf16.mxu0 0
  %293 = vmatpush1.bf16.msra.mxu0 %v204
  %294 = vmatprep.subr.bf16.mxu0 0
  %295 = vmatpush1.bf16.msra.mxu0 0
  %296 = vmatprep.subr.bf16.mxu0 0
  %297 = vmatpush1.bf16.msra.mxu0 0
  %298 = vmatprep.subr.bf16.mxu0 0
  %299 = vmatpush1.bf16.msra.mxu0 0
  %300 = vmatprep.subr.bf16.mxu0 0
  %301 = vmatpush1.bf16.msra.mxu0 0
  %302 = vmatprep.subr.bf16.mxu0 0
  %303 = vmatpush1.bf16.msra.mxu0 0
  %304 = vmatprep.subr.bf16.mxu0 0
  %305 = vmatpush1.bf16.msra.mxu0 0
  %306 = vmatprep.subr.bf16.mxu0 0
  %307 = vmatpush1.bf16.msra.mxu0 0
  %308 = vmatprep.subr.bf16.mxu0 0
  %309 = vmatpush1.bf16.msra.mxu0 0
  %310 = vmatprep.subr.bf16.mxu0 0
  %311 = vmatpush1.bf16.msra.mxu0 0
  %312 = vmatprep.subr.bf16.mxu0 0
  %313 = vmatpush1.bf16.msra.mxu0 0
  %314 = vmatprep.subr.bf16.mxu0 0
  %315 = vmatpush1.bf16.msra.mxu0 0
  %316 = vmatprep.subr.bf16.mxu0 0
  %317 = vmatpush1.bf16.msra.mxu0 0
  %318 = vmatprep.subr.bf16.mxu0 0
  %319 = vmatpush1.bf16.msra.mxu0 0
  %320 = vmatprep.subr.bf16.mxu0 0
  %321 = vmatpush1.bf16.msra.mxu0 0
  %322 = vmatprep.mubr.bf16.mxu0 0
  %323 = vmatmul.mubr.bf16.gmra.mrb[0].mxu0 %v225
  %v324 = vpop.f32.mrb[0].mxu0
  %v325 = vadd.f32 %v268, %v324
  %v326 = vpop.f32.mrb[0].mxu0
  %v327 = vpop.f32.mrb[0].mxu0
  %v328 = vadd.f32 %v271, %v327
  %v329 = vpop.f32.mrb[0].mxu0
  %330 = vmatprep.mubr.bf16.mxu0 0
  %331 = vmatmul.mubr.bf16.gmra.mrb[0].mxu0 %v228
  %v332 = vpop.f32.mrb[0].mxu0
  %v333 = vadd.f32 %v276, %v332
  %v334 = vpop.f32.mrb[0].mxu0
  %v335 = vpop.f32.mrb[0].mxu0
  %v336 = vadd.f32 %v279, %v335
  %v337 = vpop.f32.mrb[0].mxu0
  %338 = vmatprep.mubr.bf16.mxu0 0
  %339 = vmatmul.mubr.bf16.gmra.mrb[0].mxu0 %v231
  %v340 = vpop.f32.mrb[0].mxu0
  %v341 = vadd.f32 %v284, %v340
  %v342 = vpop.f32.mrb[0].mxu0
  %v343 = vpop.f32.mrb[0].mxu0
  %v344 = vadd.f32 %v287, %v343
  %v345 = vpop.f32.mrb[0].mxu0
  %346 = vdwg.mxu0
  %v347 = vmax.f32 %v325, 0.0
  %v348 = vmax.f32 %v328, 0.0
  %v349 = vmax.f32 %v333, 0.0
  %v350 = vmax.f32 %v336, 0.0
  %v351 = vmax.f32 %v341, 0.0
  %v352 = vmax.f32 %v344, 0.0
  %v353 = vpack.c.bf16 %v348, %v347
  %v354 = vpack.c.bf16 %v350, %v349
  %v355 = vpack.c.bf16 %v352, %v351
  %v359 = vunpack.c.l.b16 %v353
  %v360 = vunpack.c.h.b16 %v353
  %v361 = vunpack.c.l.b16 %v354
  %v362 = vunpack.c.h.b16 %v354
  %v363 = vunpack.c.l.b16 %v355
  %v364 = vunpack.c.h.b16 %v355
  %v365 = vpack.c.b16 %v359, %v359
  %v366 = vpack.c.b16 %v360, %v360
  %v367 = vpack.c.b16 %v361, %v361
  %v368 = vpack.c.b16 %v362, %v362
  %v369 = vpack.c.b16 %v363, %v363
  %v370 = vpack.c.b16 %v364, %v364
  %vm377 = vcmask 519168
  %378 = vst.msk [vmem:[%s3] sm:$0xf] %vm377, %v365
  %379 = vst.msk [vmem:[%s3 + $0x4] sm:$0xf] %vm377, %v366
  %380 = vst.msk [vmem:[%s3 + $0x8] sm:$0xf] %vm377, %v367
  %381 = vst.msk [vmem:[%s3 + $0xc] sm:$0xf] %vm377, %v368
  %382 = vst.msk [vmem:[%s3 + $0x10] sm:$0xf] %vm377, %v369
  %383 = vst.msk [vmem:[%s3 + $0x14] sm:$0xf] %vm377, %v370
  // Predicated region
  $region14: #{_lambda_.19} parent=0 // pred_check
    _
  $region15: #{_lambda_.19} parent=0 // pred_check_branch
    %385 = sbr.rel (0) target = $region17
  $region16: #{_lambda_.19} parent=0 // pred_region
    _
  $region17: #{_lambda_.19} parent=0 // pred_fallthru
    _
  // Predicated region
  $region18: #{_lambda_.19} parent=0 // pred_check
    _
  $region19: #{_lambda_.19} parent=0 // pred_check_branch
    %387 = sbr.rel (0) target = $region21
  $region20: #{_lambda_.19} parent=0 // pred_region
    _
  $region21: #{_lambda_.19} parent=0 // pred_fallthru
    _

// kernel: _lambda_.20
$region0: #{_lambda_.20}
  #allocation0 [shape = 'u32[]', space=smem, size = 0x4, offset = 0x4, fixed_abs, tag = 'smem constant byte address 0x4 - core index']
  #allocation1 [shape = 'u32[144,128]{1,0:T(1,128)}', space=vmem, size = 0x12000, scoped, tag = 'internal scratch']
  %s0 = inlined_call_operand.vmem [shape: bf16[48,32], index: 0, kind: input, shape index: {}]
  %s1 = inlined_call_operand.vmem [shape: bf16[32,64], index: 1, kind: input, shape index: {}]
  %s2 = inlined_call_operand.vmem [shape: f32[1,64], index: 2, kind: input, shape index: {}]
  %s3 = inlined_call_operand.vmem [shape: bf16[48,64], index: 3, kind: output, shape index: {}]
  %s4 = sld [smem:[#allocation0]]
  $region22: #{_lambda_.20} parent=0
    _
  %s6 = ssub.s32 1, %s4
  %s7 = scalar_select 0, %s6, %s4
  // Predicated region
  $region2: #{_lambda_.20} parent=0 // pred_check
    _
  $region3: #{_lambda_.20} parent=0 // pred_check_branch
    %9 = sbr.rel (0) target = $region5
  $region4: #{_lambda_.20} parent=0 // pred_region
    _
  $region5: #{_lambda_.20} parent=0 // pred_fallthru
    _
  // Predicated region
  $region6: #{_lambda_.20} parent=0 // pred_check
    _
  $region7: #{_lambda_.20} parent=0 // pred_check_branch
    %11 = sbr.rel (0) target = $region9
  $region8: #{_lambda_.20} parent=0 // pred_region
    _
  $region9: #{_lambda_.20} parent=0 // pred_fallthru
    _
  // Predicated region
  $region10: #{_lambda_.20} parent=0 // pred_check
    _
  $region11: #{_lambda_.20} parent=0 // pred_check_branch
    %13 = sbr.rel (0) target = $region13
  $region12: #{_lambda_.20} parent=0 // pred_region
    _
  $region13: #{_lambda_.20} parent=0 // pred_fallthru
    _
  %v15 = vld [vmem:[%s0] sm:$0xf]
  %v16 = vld [vmem:[%s0 + $0x4] sm:$0xf]
  %v17 = vld [vmem:[%s0 + $0x8] sm:$0xf]
  %v18 = vld [vmem:[%s0 + $0xc] sm:$0xf]
  %v19 = vld [vmem:[%s0 + $0x10] sm:$0xf]
  %v20 = vld [vmem:[%s0 + $0x14] sm:$0xf]
  %v21 = vld [vmem:[%s1] sm:$0xf]
  %v22 = vld [vmem:[%s1 + $0x4] sm:$0xf]
  %v23 = vld [vmem:[%s1 + $0x8] sm:$0xf]
  %v24 = vld [vmem:[%s1 + $0xc] sm:$0xf]
  %v25 = vld [vmem:[%s2] sm:$0x1]
  %v27 = vlaneseq
  %v28 = vshrl.u32 %v27, 7
  %v29 = vsub.s32 0, %v28
  %v30 = vrot.slane %v25, %v29
  %v38 = vunpack.c.l.b16 %v15
  %v39 = vunpack.c.l.b16 %v16
  %v40 = vunpack.c.l.b16 %v17
  %v41 = vunpack.c.l.b16 %v18
  %v42 = vunpack.c.l.b16 %v19
  %v43 = vunpack.c.l.b16 %v20
  %v44 = vpack.c.b16 %v39, %v38
  %v45 = vpack.c.b16 %v41, %v40
  %v46 = vpack.c.b16 %v43, %v42
  %v51 = vunpack.c.l.b16 %v21
  %v52 = vunpack.c.l.b16 %v22
  %v53 = vunpack.c.l.b16 %v23
  %v54 = vunpack.c.l.b16 %v24
  %v55 = vpack.c.b16 %v52, %v51
  %v56 = vpack.c.b16 %v54, %v53
  %vm59 = vcmask 261120
  %v61 = vsel %vm59, %v44, 0
  %v64 = vsel %vm59, %v45, 0
  %v67 = vsel %vm59, %v46, 0
  %69 = vmatprep.subr.bf16.mxu0 0
  %70 = vmatpush1.bf16.msra.mxu0 %v55
  %71 = vmatprep.subr.bf16.mxu0 0
  %72 = vmatpush1.bf16.msra.mxu0 %v56
  %73 = vmatprep.subr.bf16.mxu0 0
  %74 = vmatpush1.bf16.msra.mxu0 0
  %75 = vmatprep.subr.bf16.mxu0 0
  %76 = vmatpush1.bf16.msra.mxu0 0
  %77 = vmatprep.subr.bf16.mxu0 0
  %78 = vmatpush1.bf16.msra.mxu0 0
  %79 = vmatprep.subr.bf16.mxu0 0
  %80 = vmatpush1.bf16.msra.mxu0 0
  %81 = vmatprep.subr.bf16.mxu0 0
  %82 = vmatpush1.bf16.msra.mxu0 0
  %83 = vmatprep.subr.bf16.mxu0 0
  %84 = vmatpush1.bf16.msra.mxu0 0
  %85 = vmatprep.subr.bf16.mxu0 0
  %86 = vmatpush1.bf16.msra.mxu0 0
  %87 = vmatprep.subr.bf16.mxu0 0
  %88 = vmatpush1.bf16.msra.mxu0 0
  %89 = vmatprep.subr.bf16.mxu0 0
  %90 = vmatpush1.bf16.msra.mxu0 0
  %91 = vmatprep.subr.bf16.mxu0 0
  %92 = vmatpush1.bf16.msra.mxu0 0
  %93 = vmatprep.subr.bf16.mxu0 0
  %94 = vmatpush1.bf16.msra.mxu0 0
  %95 = vmatprep.subr.bf16.mxu0 0
  %96 = vmatpush1.bf16.msra.mxu0 0
  %97 = vmatprep.subr.bf16.mxu0 0
  %98 = vmatpush1.bf16.msra.mxu0 0
  %99 = vmatprep.subr.bf16.mxu0 0
  %100 = vmatpush1.bf16.msra.mxu0 0
  %101 = vmatprep.mubr.bf16.mxu0 0
  %102 = vmatmul.mubr.bf16.gmra.mrb[0].mxu0 %v61
  %v103 = vpop.f32.mrb[0].mxu0
  %v104 = vadd.f32 %v30, %v103
  %v105 = vpop.f32.mrb[0].mxu0
  %v106 = vpop.f32.mrb[0].mxu0
  %v107 = vadd.f32 %v30, %v106
  %v108 = vpop.f32.mrb[0].mxu0
  %109 = vmatprep.mubr.bf16.mxu0 0
  %110 = vmatmul.mubr.bf16.gmra.mrb[0].mxu0 %v64
  %v111 = vpop.f32.mrb[0].mxu0
  %v112 = vadd.f32 %v30, %v111
  %v113 = vpop.f32.mrb[0].mxu0
  %v114 = vpop.f32.mrb[0].mxu0
  %v115 = vadd.f32 %v30, %v114
  %v116 = vpop.f32.mrb[0].mxu0
  %117 = vmatprep.mubr.bf16.mxu0 0
  %118 = vmatmul.mubr.bf16.gmra.mrb[0].mxu0 %v67
  %v119 = vpop.f32.mrb[0].mxu0
  %v120 = vadd.f32 %v30, %v119
  %v121 = vpop.f32.mrb[0].mxu0
  %v122 = vpop.f32.mrb[0].mxu0
  %v123 = vadd.f32 %v30, %v122
  %v124 = vpop.f32.mrb[0].mxu0
  %125 = vdwg.mxu0
  %v126 = vmax.f32 %v104, 0.0
  %v127 = vmax.f32 %v107, 0.0
  %v128 = vmax.f32 %v112, 0.0
  %v129 = vmax.f32 %v115, 0.0
  %v130 = vmax.f32 %v120, 0.0
  %v131 = vmax.f32 %v123, 0.0
  %v132 = vmin.f32 %v126, 6.0
  %v133 = vmin.f32 %v127, 6.0
  %v134 = vmin.f32 %v128, 6.0
  %v135 = vmin.f32 %v129, 6.0
  %v136 = vmin.f32 %v130, 6.0
  %v137 = vmin.f32 %v131, 6.0
  %v138 = vpack.c.bf16 %v133, %v132
  %v139 = vpack.c.bf16 %v135, %v134
  %v140 = vpack.c.bf16 %v137, %v136
  %v144 = vunpack.c.l.b16 %v138
  %v145 = vunpack.c.h.b16 %v138
  %v146 = vunpack.c.l.b16 %v139
  %v147 = vunpack.c.h.b16 %v139
  %v148 = vunpack.c.l.b16 %v140
  %v149 = vunpack.c.h.b16 %v140
  %v150 = vpack.c.b16 %v144, %v144
  %v151 = vpack.c.b16 %v145, %v145
  %v152 = vpack.c.b16 %v146, %v146
  %v153 = vpack.c.b16 %v147, %v147
  %v154 = vpack.c.b16 %v148, %v148
  %v155 = vpack.c.b16 %v149, %v149
  %vm162 = vcmask 519168
  %163 = vst.msk [vmem:[%s3] sm:$0xf] %vm162, %v150
  %164 = vst.msk [vmem:[%s3 + $0x4] sm:$0xf] %vm162, %v151
  %165 = vst.msk [vmem:[%s3 + $0x8] sm:$0xf] %vm162, %v152
  %166 = vst.msk [vmem:[%s3 + $0xc] sm:$0xf] %vm162, %v153
  %167 = vst.msk [vmem:[%s3 + $0x10] sm:$0xf] %vm162, %v154
  %168 = vst.msk [vmem:[%s3 + $0x14] sm:$0xf] %vm162, %v155
  // Predicated region
  $region14: #{_lambda_.20} parent=0 // pred_check
    _
  $region15: #{_lambda_.20} parent=0 // pred_check_branch
    %170 = sbr.rel (0) target = $region17
  $region16: #{_lambda_.20} parent=0 // pred_region
    _
  $region17: #{_lambda_.20} parent=0 // pred_fallthru
    _
  // Predicated region
  $region18: #{_lambda_.20} parent=0 // pred_check
    _
  $region19: #{_lambda_.20} parent=0 // pred_check_branch
    %172 = sbr.rel (0) target = $region21
  $region20: #{_lambda_.20} parent=0 // pred_region
    _
  $region21: #{_lambda_.20} parent=0 // pred_fallthru
    _

// kernel: _lambda_.21
$region0: #{_lambda_.21}
  #allocation0 [shape = 'u32[]', space=smem, size = 0x4, offset = 0x4, fixed_abs, tag = 'smem constant byte address 0x4 - core index']
  #allocation1 [shape = 'u32[144,128]{1,0:T(1,128)}', space=vmem, size = 0x12000, scoped, tag = 'internal scratch']
  %s0 = inlined_call_operand.vmem [shape: bf16[48,576], index: 0, kind: input, shape index: {}]
  %s1 = inlined_call_operand.vmem [shape: bf16[576,64], index: 1, kind: input, shape index: {}]
  %s2 = inlined_call_operand.vmem [shape: f32[1,64], index: 2, kind: input, shape index: {}]
  %s3 = inlined_call_operand.vmem [shape: bf16[48,64], index: 3, kind: input, shape index: {}]
  %s4 = inlined_call_operand.vmem [shape: bf16[48,64], index: 4, kind: output, shape index: {}]
  %s5 = sld [smem:[#allocation0]]
  $region26: #{_lambda_.21} parent=0
    _
  %s7 = ssub.s32 1, %s5
  %s8 = scalar_select 0, %s7, %s5
  // Predicated region
  $region2: #{_lambda_.21} parent=0 // pred_check
    _
  $region3: #{_lambda_.21} parent=0 // pred_check_branch
    %10 = sbr.rel (0) target = $region5
  $region4: #{_lambda_.21} parent=0 // pred_region
    _
  $region5: #{_lambda_.21} parent=0 // pred_fallthru
    _
  // Predicated region
  $region6: #{_lambda_.21} parent=0 // pred_check
    _
  $region7: #{_lambda_.21} parent=0 // pred_check_branch
    %12 = sbr.rel (0) target = $region9
  $region8: #{_lambda_.21} parent=0 // pred_region
    _
  $region9: #{_lambda_.21} parent=0 // pred_fallthru
    _
  // Predicated region
  $region10: #{_lambda_.21} parent=0 // pred_check
    _
  $region11: #{_lambda_.21} parent=0 // pred_check_branch
    %14 = sbr.rel (0) target = $region13
  $region12: #{_lambda_.21} parent=0 // pred_region
    _
  $region13: #{_lambda_.21} parent=0 // pred_fallthru
    _
  // Predicated region
  $region14: #{_lambda_.21} parent=0 // pred_check
    _
  $region15: #{_lambda_.21} parent=0 // pred_check_branch
    %16 = sbr.rel (0) target = $region17
  $region16: #{_lambda_.21} parent=0 // pred_region
    _
  $region17: #{_lambda_.21} parent=0 // pred_fallthru
    _
  %v18 = vld [vmem:[%s0] sm:$0xff]
  %v19 = vld [vmem:[%s0 + $0x8] sm:$0xff]
  %v20 = vld [vmem:[%s0 + $0x10] sm:$0xf]
  %v21 = vld [vmem:[%s0 + $0x14] sm:$0xff]
  %v22 = vld [vmem:[%s0 + $0x1c] sm:$0xff]
  %v23 = vld [vmem:[%s0 + $0x24] sm:$0xf]
  %v24 = vld [vmem:[%s0 + $0x28] sm:$0xff]
  %v25 = vld [vmem:[%s0 + $0x30] sm:$0xff]
  %v26 = vld [vmem:[%s0 + $0x38] sm:$0xf]
  %v27 = vld [vmem:[%s0 + $0x3c] sm:$0xff]
  %v28 = vld [vmem:[%s0 + $0x44] sm:$0xff]
  %v29 = vld [vmem:[%s0 + $0x4c] sm:$0xf]
  %v30 = vld [vmem:[%s0 + $0x50] sm:$0xff]
  %v31 = vld [vmem:[%s0 + $0x58] sm:$0xff]
  %v32 = vld [vmem:[%s0 + $0x60] sm:$0xf]
  %v33 = vld [vmem:[%s0 + $0x64] sm:$0xff]
  %v34 = vld [vmem:[%s0 + $0x6c] sm:$0xff]
  %v35 = vld [vmem:[%s0 + $0x74] sm:$0xf]
  %v36 = vld [vmem:[%s1] sm:$0xf]
  %v37 = vld [vmem:[%s1 + $0x4] sm:$0xf]
  %v38 = vld [vmem:[%s1 + $0x8] sm:$0xf]
  %v39 = vld [vmem:[%s1 + $0xc] sm:$0xf]
  %v40 = vld [vmem:[%s1 + $0x10] sm:$0xf]
  %v41 = vld [vmem:[%s1 + $0x14] sm:$0xf]
  %v42 = vld [vmem:[%s1 + $0x18] sm:$0xf]
  %v43 = vld [vmem:[%s1 + $0x1c] sm:$0xf]
  %v44 = vld [vmem:[%s1 + $0x20] sm:$0xf]
  %v45 = vld [vmem:[%s1 + $0x24] sm:$0xf]
  %v46 = vld [vmem:[%s1 + $0x28] sm:$0xf]
  %v47 = vld [vmem:[%s1 + $0x2c] sm:$0xf]
  %v48 = vld [vmem:[%s1 + $0x30] sm:$0xf]
  %v49 = vld [vmem:[%s1 + $0x34] sm:$0xf]
  %v50 = vld [vmem:[%s1 + $0x38] sm:$0xf]
  %v51 = vld [vmem:[%s1 + $0x3c] sm:$0xf]
  %v52 = vld [vmem:[%s1 + $0x40] sm:$0xf]
  %v53 = vld [vmem:[%s1 + $0x44] sm:$0xf]
  %v54 = vld [vmem:[%s1 + $0x48] sm:$0xf]
  %v55 = vld [vmem:[%s1 + $0x4c] sm:$0xf]
  %v56 = vld [vmem:[%s1 + $0x50] sm:$0xf]
  %v57 = vld [vmem:[%s1 + $0x54] sm:$0xf]
  %v58 = vld [vmem:[%s1 + $0x58] sm:$0xf]
  %v59 = vld [vmem:[%s1 + $0x5c] sm:$0xf]
  %v60 = vld [vmem:[%s1 + $0x60] sm:$0xf]
  %v61 = vld [vmem:[%s1 + $0x64] sm:$0xf]
  %v62 = vld [vmem:[%s1 + $0x68] sm:$0xf]
  %v63 = vld [vmem:[%s1 + $0x6c] sm:$0xf]
  %v64 = vld [vmem:[%s1 + $0x70] sm:$0xf]
  %v65 = vld [vmem:[%s1 + $0x74] sm:$0xf]
  %v66 = vld [vmem:[%s1 + $0x78] sm:$0xf]
  %v67 = vld [vmem:[%s1 + $0x7c] sm:$0xf]
  %v68 = vld [vmem:[%s1 + $0x80] sm:$0xf]
  %v69 = vld [vmem:[%s1 + $0x84] sm:$0xf]
  %v70 = vld [vmem:[%s1 + $0x88] sm:$0xf]
  %v71 = vld [vmem:[%s1 + $0x8c] sm:$0xf]
  %v72 = vld [vmem:[%s1 + $0x90] sm:$0xf]
  %v73 = vld [vmem:[%s1 + $0x94] sm:$0xf]
  %v74 = vld [vmem:[%s1 + $0x98] sm:$0xf]
  %v75 = vld [vmem:[%s1 + $0x9c] sm:$0xf]
  %v76 = vld [vmem:[%s1 + $0xa0] sm:$0xf]
  %v77 = vld [vmem:[%s1 + $0xa4] sm:$0xf]
  %v78 = vld [vmem:[%s1 + $0xa8] sm:$0xf]
  %v79 = vld [vmem:[%s1 + $0xac] sm:$0xf]
  %v80 = vld [vmem:[%s1 + $0xb0] sm:$0xf]
  %v81 = vld [vmem:[%s1 + $0xb4] sm:$0xf]
  %v82 = vld [vmem:[%s1 + $0xb8] sm:$0xf]
  %v83 = vld [vmem:[%s1 + $0xbc] sm:$0xf]
  %v84 = vld [vmem:[%s1 + $0xc0] sm:$0xf]
  %v85 = vld [vmem:[%s1 + $0xc4] sm:$0xf]
  %v86 = vld [vmem:[%s1 + $0xc8] sm:$0xf]
  %v87 = vld [vmem:[%s1 + $0xcc] sm:$0xf]
  %v88 = vld [vmem:[%s1 + $0xd0] sm:$0xf]
  %v89 = vld [vmem:[%s1 + $0xd4] sm:$0xf]
  %v90 = vld [vmem:[%s1 + $0xd8] sm:$0xf]
  %v91 = vld [vmem:[%s1 + $0xdc] sm:$0xf]
  %v92 = vld [vmem:[%s1 + $0xe0] sm:$0xf]
  %v93 = vld [vmem:[%s1 + $0xe4] sm:$0xf]
  %v94 = vld [vmem:[%s1 + $0xe8] sm:$0xf]
  %v95 = vld [vmem:[%s1 + $0xec] sm:$0xf]
  %v96 = vld [vmem:[%s1 + $0xf0] sm:$0xf]
  %v97 = vld [vmem:[%s1 + $0xf4] sm:$0xf]
  %v98 = vld [vmem:[%s1 + $0xf8] sm:$0xf]
  %v99 = vld [vmem:[%s1 + $0xfc] sm:$0xf]
  %v100 = vld [vmem:[%s1 + $0x100] sm:$0xf]
  %v101 = vld [vmem:[%s1 + $0x104] sm:$0xf]
  %v102 = vld [vmem:[%s1 + $0x108] sm:$0xf]
  %v103 = vld [vmem:[%s1 + $0x10c] sm:$0xf]
  %v104 = vld [vmem:[%s1 + $0x110] sm:$0xf]
  %v105 = vld [vmem:[%s1 + $0x114] sm:$0xf]
  %v106 = vld [vmem:[%s1 + $0x118] sm:$0xf]
  %v107 = vld [vmem:[%s1 + $0x11c] sm:$0xf]
  %v108 = vld [vmem:[%s2] sm:$0x1]
  %v110 = vlaneseq
  %v111 = vshrl.u32 %v110, 7
  %v112 = vsub.s32 0, %v111
  %v113 = vrot.slane %v108, %v112
  %v133 = vunpack.c.l.b16 %v18
  %v134 = vunpack.c.h.b16 %v18
  %v135 = vunpack.c.l.b16 %v19
  %v136 = vunpack.c.h.b16 %v19
  %v137 = vunpack.c.l.b16 %v20
  %v138 = vunpack.c.l.b16 %v21
  %v139 = vunpack.c.h.b16 %v21
  %v140 = vunpack.c.l.b16 %v22
  %v141 = vunpack.c.h.b16 %v22
  %v142 = vunpack.c.l.b16 %v23
  %v143 = vunpack.c.l.b16 %v24
  %v144 = vunpack.c.h.b16 %v24
  %v145 = vunpack.c.l.b16 %v25
  %v146 = vunpack.c.h.b16 %v25
  %v147 = vunpack.c.l.b16 %v26
  %v148 = vunpack.c.l.b16 %v27
  %v149 = vunpack.c.h.b16 %v27
  %v150 = vunpack.c.l.b16 %v28
  %v151 = vunpack.c.h.b16 %v28
  %v152 = vunpack.c.l.b16 %v29
  %v153 = vunpack.c.l.b16 %v30
  %v154 = vunpack.c.h.b16 %v30
  %v155 = vunpack.c.l.b16 %v31
  %v156 = vunpack.c.h.b16 %v31
  %v157 = vunpack.c.l.b16 %v32
  %v158 = vunpack.c.l.b16 %v33
  %v159 = vunpack.c.h.b16 %v33
  %v160 = vunpack.c.l.b16 %v34
  %v161 = vunpack.c.h.b16 %v34
  %v162 = vunpack.c.l.b16 %v35
  %v163 = vpack.c.b16 %v138, %v133
  %v164 = vpack.c.b16 %v139, %v134
  %v165 = vpack.c.b16 %v140, %v135
  %v166 = vpack.c.b16 %v141, %v136
  %v167 = vpack.c.b16 %v142, %v137
  %v168 = vpack.c.b16 %v148, %v143
  %v169 = vpack.c.b16 %v149, %v144
  %v170 = vpack.c.b16 %v150, %v145
  %v171 = vpack.c.b16 %v151, %v146
  %v172 = vpack.c.b16 %v152, %v147
  %v173 = vpack.c.b16 %v158, %v153
  %v174 = vpack.c.b16 %v159, %v154
  %v175 = vpack.c.b16 %v160, %v155
  %v176 = vpack.c.b16 %v161, %v156
  %v177 = vpack.c.b16 %v162, %v157
  %v262 = vunpack.c.l.b16 %v36
  %v263 = vunpack.c.l.b16 %v37
  %v264 = vunpack.c.l.b16 %v38
  %v265 = vunpack.c.l.b16 %v39
  %v266 = vunpack.c.l.b16 %v40
  %v267 = vunpack.c.l.b16 %v41
  %v268 = vunpack.c.l.b16 %v42
  %v269 = vunpack.c.l.b16 %v43
  %v270 = vunpack.c.l.b16 %v44
  %v271 = vunpack.c.l.b16 %v45
  %v272 = vunpack.c.l.b16 %v46
  %v273 = vunpack.c.l.b16 %v47
  %v274 = vunpack.c.l.b16 %v48
  %v275 = vunpack.c.l.b16 %v49
  %v276 = vunpack.c.l.b16 %v50
  %v277 = vunpack.c.l.b16 %v51
  %v278 = vunpack.c.l.b16 %v52
  %v279 = vunpack.c.l.b16 %v53
  %v280 = vunpack.c.l.b16 %v54
  %v281 = vunpack.c.l.b16 %v55
  %v282 = vunpack.c.l.b16 %v56
  %v283 = vunpack.c.l.b16 %v57
  %v284 = vunpack.c.l.b16 %v58
  %v285 = vunpack.c.l.b16 %v59
  %v286 = vunpack.c.l.b16 %v60
  %v287 = vunpack.c.l.b16 %v61
  %v288 = vunpack.c.l.b16 %v62
  %v289 = vunpack.c.l.b16 %v63
  %v290 = vunpack.c.l.b16 %v64
  %v291 = vunpack.c.l.b16 %v65
  %v292 = vunpack.c.l.b16 %v66
  %v293 = vunpack.c.l.b16 %v67
  %v294 = vunpack.c.l.b16 %v68
  %v295 = vunpack.c.l.b16 %v69
  %v296 = vunpack.c.l.b16 %v70
  %v297 = vunpack.c.l.b16 %v71
  %v298 = vunpack.c.l.b16 %v72
  %v299 = vunpack.c.l.b16 %v73
  %v300 = vunpack.c.l.b16 %v74
  %v301 = vunpack.c.l.b16 %v75
  %v302 = vunpack.c.l.b16 %v76
  %v303 = vunpack.c.l.b16 %v77
  %v304 = vunpack.c.l.b16 %v78
  %v305 = vunpack.c.l.b16 %v79
  %v306 = vunpack.c.l.b16 %v80
  %v307 = vunpack.c.l.b16 %v81
  %v308 = vunpack.c.l.b16 %v82
  %v309 = vunpack.c.l.b16 %v83
  %v310 = vunpack.c.l.b16 %v84
  %v311 = vunpack.c.l.b16 %v85
  %v312 = vunpack.c.l.b16 %v86
  %v313 = vunpack.c.l.b16 %v87
  %v314 = vunpack.c.l.b16 %v88
  %v315 = vunpack.c.l.b16 %v89
  %v316 = vunpack.c.l.b16 %v90
  %v317 = vunpack.c.l.b16 %v91
  %v318 = vunpack.c.l.b16 %v92
  %v319 = vunpack.c.l.b16 %v93
  %v320 = vunpack.c.l.b16 %v94
  %v321 = vunpack.c.l.b16 %v95
  %v322 = vunpack.c.l.b16 %v96
  %v323 = vunpack.c.l.b16 %v97
  %v324 = vunpack.c.l.b16 %v98
  %v325 = vunpack.c.l.b16 %v99
  %v326 = vunpack.c.l.b16 %v100
  %v327 = vunpack.c.l.b16 %v101
  %v328 = vunpack.c.l.b16 %v102
  %v329 = vunpack.c.l.b16 %v103
  %v330 = vunpack.c.l.b16 %v104
  %v331 = vunpack.c.l.b16 %v105
  %v332 = vunpack.c.l.b16 %v106
  %v333 = vunpack.c.l.b16 %v107
  %v334 = vpack.c.b16 %v263, %v262
  %v335 = vpack.c.b16 %v265, %v264
  %v336 = vpack.c.b16 %v267, %v266
  %v337 = vpack.c.b16 %v269, %v268
  %v338 = vpack.c.b16 %v271, %v270
  %v339 = vpack.c.b16 %v273, %v272
  %v340 = vpack.c.b16 %v275, %v274
  %v341 = vpack.c.b16 %v277, %v276
  %v342 = vpack.c.b16 %v279, %v278
  %v343 = vpack.c.b16 %v281, %v280
  %v344 = vpack.c.b16 %v283, %v282
  %v345 = vpack.c.b16 %v285, %v284
  %v346 = vpack.c.b16 %v287, %v286
  %v347 = vpack.c.b16 %v289, %v288
  %v348 = vpack.c.b16 %v291, %v290
  %v349 = vpack.c.b16 %v293, %v292
  %v350 = vpack.c.b16 %v295, %v294
  %v351 = vpack.c.b16 %v297, %v296
  %v352 = vpack.c.b16 %v299, %v298
  %v353 = vpack.c.b16 %v301, %v300
  %v354 = vpack.c.b16 %v303, %v302
  %v355 = vpack.c.b16 %v305, %v304
  %v356 = vpack.c.b16 %v307, %v306
  %v357 = vpack.c.b16 %v309, %v308
  %v358 = vpack.c.b16 %v311, %v310
  %v359 = vpack.c.b16 %v313, %v312
  %v360 = vpack.c.b16 %v315, %v314
  %v361 = vpack.c.b16 %v317, %v316
  %v362 = vpack.c.b16 %v319, %v318
  %v363 = vpack.c.b16 %v321, %v320
  %v364 = vpack.c.b16 %v323, %v322
  %v365 = vpack.c.b16 %v325, %v324
  %v366 = vpack.c.b16 %v327, %v326
  %v367 = vpack.c.b16 %v329, %v328
  %v368 = vpack.c.b16 %v331, %v330
  %v369 = vpack.c.b16 %v333, %v332
  %vm406 = vcmask 523264
  %v408 = vsel %vm406, %v167, 0
  %v411 = vsel %vm406, %v172, 0
  %v414 = vsel %vm406, %v177, 0
  %416 = vmatprep.subr.bf16.mxu0 0
  %417 = vmatpush1.bf16.msra.mxu0 %v334
  %418 = vmatprep.subr.bf16.mxu0 0
  %419 = vmatpush1.bf16.msra.mxu0 %v335
  %420 = vmatprep.subr.bf16.mxu0 0
  %421 = vmatpush1.bf16.msra.mxu0 %v336
  %422 = vmatprep.subr.bf16.mxu0 0
  %423 = vmatpush1.bf16.msra.mxu0 %v337
  %424 = vmatprep.subr.bf16.mxu0 0
  %425 = vmatpush1.bf16.msra.mxu0 %v338
  %426 = vmatprep.subr.bf16.mxu0 0
  %427 = vmatpush1.bf16.msra.mxu0 %v339
  %428 = vmatprep.subr.bf16.mxu0 0
  %429 = vmatpush1.bf16.msra.mxu0 %v340
  %430 = vmatprep.subr.bf16.mxu0 0
  %431 = vmatpush1.bf16.msra.mxu0 %v341
  %432 = vmatprep.subr.bf16.mxu0 0
  %433 = vmatpush1.bf16.msra.mxu0 %v342
  %434 = vmatprep.subr.bf16.mxu0 0
  %435 = vmatpush1.bf16.msra.mxu0 %v343
  %436 = vmatprep.subr.bf16.mxu0 0
  %437 = vmatpush1.bf16.msra.mxu0 %v344
  %438 = vmatprep.subr.bf16.mxu0 0
  %439 = vmatpush1.bf16.msra.mxu0 %v345
  %440 = vmatprep.subr.bf16.mxu0 0
  %441 = vmatpush1.bf16.msra.mxu0 %v346
  %442 = vmatprep.subr.bf16.mxu0 0
  %443 = vmatpush1.bf16.msra.mxu0 %v347
  %444 = vmatprep.subr.bf16.mxu0 0
  %445 = vmatpush1.bf16.msra.mxu0 %v348
  %446 = vmatprep.subr.bf16.mxu0 0
  %447 = vmatpush1.bf16.msra.mxu0 %v349
  %448 = vmatprep.mubr.bf16.mxu0 %v164
  %449 = vmatmul.mubr.bf16.gmra.mrb[0].mxu0 %v163
  %v450 = vpop.f32.mrb[0].mxu0
  %v451 = vadd.f32 %v113, %v450
  %v452 = vpop.f32.mrb[0].mxu0
  %v453 = vpop.f32.mrb[0].mxu0
  %v454 = vadd.f32 %v113, %v453
  %v455 = vpop.f32.mrb[0].mxu0
  %456 = vmatprep.mubr.bf16.mxu0 %v169
  %457 = vmatmul.mubr.bf16.gmra.mrb[0].mxu0 %v168
  %v458 = vpop.f32.mrb[0].mxu0
  %v459 = vadd.f32 %v113, %v458
  %v460 = vpop.f32.mrb[0].mxu0
  %v461 = vpop.f32.mrb[0].mxu0
  %v462 = vadd.f32 %v113, %v461
  %v463 = vpop.f32.mrb[0].mxu0
  %464 = vmatprep.mubr.bf16.mxu0 %v174
  %465 = vmatmul.mubr.bf16.gmra.mrb[0].mxu0 %v173
  %v466 = vpop.f32.mrb[0].mxu0
  %v467 = vadd.f32 %v113, %v466
  %v468 = vpop.f32.mrb[0].mxu0
  %v469 = vpop.f32.mrb[0].mxu0
  %v470 = vadd.f32 %v113, %v469
  %v471 = vpop.f32.mrb[0].mxu0
  %472 = vdwg.mxu0
  %473 = vmatprep.subr.bf16.mxu0 0
  %474 = vmatpush1.bf16.msra.mxu0 %v350
  %475 = vmatprep.subr.bf16.mxu0 0
  %476 = vmatpush1.bf16.msra.mxu0 %v351
  %477 = vmatprep.subr.bf16.mxu0 0
  %478 = vmatpush1.bf16.msra.mxu0 %v352
  %479 = vmatprep.subr.bf16.mxu0 0
  %480 = vmatpush1.bf16.msra.mxu0 %v353
  %481 = vmatprep.subr.bf16.mxu0 0
  %482 = vmatpush1.bf16.msra.mxu0 %v354
  %483 = vmatprep.subr.bf16.mxu0 0
  %484 = vmatpush1.bf16.msra.mxu0 %v355
  %485 = vmatprep.subr.bf16.mxu0 0
  %486 = vmatpush1.bf16.msra.mxu0 %v356
  %487 = vmatprep.subr.bf16.mxu0 0
  %488 = vmatpush1.bf16.msra.mxu0 %v357
  %489 = vmatprep.subr.bf16.mxu0 0
  %490 = vmatpush1.bf16.msra.mxu0 %v358
  %491 = vmatprep.subr.bf16.mxu0 0
  %492 = vmatpush1.bf16.msra.mxu0 %v359
  %493 = vmatprep.subr.bf16.mxu0 0
  %494 = vmatpush1.bf16.msra.mxu0 %v360
  %495 = vmatprep.subr.bf16.mxu0 0
  %496 = vmatpush1.bf16.msra.mxu0 %v361
  %497 = vmatprep.subr.bf16.mxu0 0
  %498 = vmatpush1.bf16.msra.mxu0 %v362
  %499 = vmatprep.subr.bf16.mxu0 0
  %500 = vmatpush1.bf16.msra.mxu0 %v363
  %501 = vmatprep.subr.bf16.mxu0 0
  %502 = vmatpush1.bf16.msra.mxu0 %v364
  %503 = vmatprep.subr.bf16.mxu0 0
  %504 = vmatpush1.bf16.msra.mxu0 %v365
  %505 = vmatprep.mubr.bf16.mxu0 %v166
  %506 = vmatmul.mubr.bf16.gmra.mrb[0].mxu0 %v165
  %v507 = vpop.f32.mrb[0].mxu0
  %v508 = vadd.f32 %v451, %v507
  %v509 = vpop.f32.mrb[0].mxu0
  %v510 = vpop.f32.mrb[0].mxu0
  %v511 = vadd.f32 %v454, %v510
  %v512 = vpop.f32.mrb[0].mxu0
  %513 = vmatprep.mubr.bf16.mxu0 %v171
  %514 = vmatmul.mubr.bf16.gmra.mrb[0].mxu0 %v170
  %v515 = vpop.f32.mrb[0].mxu0
  %v516 = vadd.f32 %v459, %v515
  %v517 = vpop.f32.mrb[0].mxu0
  %v518 = vpop.f32.mrb[0].mxu0
  %v519 = vadd.f32 %v462, %v518
  %v520 = vpop.f32.mrb[0].mxu0
  %521 = vmatprep.mubr.bf16.mxu0 %v176
  %522 = vmatmul.mubr.bf16.gmra.mrb[0].mxu0 %v175
  %v523 = vpop.f32.mrb[0].mxu0
  %v524 = vadd.f32 %v467, %v523
  %v525 = vpop.f32.mrb[0].mxu0
  %v526 = vpop.f32.mrb[0].mxu0
  %v527 = vadd.f32 %v470, %v526
  %v528 = vpop.f32.mrb[0].mxu0
  %529 = vdwg.mxu0
  %530 = vmatprep.subr.bf16.mxu0 0
  %531 = vmatpush1.bf16.msra.mxu0 %v366
  %532 = vmatprep.subr.bf16.mxu0 0
  %533 = vmatpush1.bf16.msra.mxu0 %v367
  %534 = vmatprep.subr.bf16.mxu0 0
  %535 = vmatpush1.bf16.msra.mxu0 %v368
  %536 = vmatprep.subr.bf16.mxu0 0
  %537 = vmatpush1.bf16.msra.mxu0 %v369
  %538 = vmatprep.subr.bf16.mxu0 0
  %539 = vmatpush1.bf16.msra.mxu0 0
  %540 = vmatprep.subr.bf16.mxu0 0
  %541 = vmatpush1.bf16.msra.mxu0 0
  %542 = vmatprep.subr.bf16.mxu0 0
  %543 = vmatpush1.bf16.msra.mxu0 0
  %544 = vmatprep.subr.bf16.mxu0 0
  %545 = vmatpush1.bf16.msra.mxu0 0
  %546 = vmatprep.subr.bf16.mxu0 0
  %547 = vmatpush1.bf16.msra.mxu0 0
  %548 = vmatprep.subr.bf16.mxu0 0
  %549 = vmatpush1.bf16.msra.mxu0 0
  %550 = vmatprep.subr.bf16.mxu0 0
  %551 = vmatpush1.bf16.msra.mxu0 0
  %552 = vmatprep.subr.bf16.mxu0 0
  %553 = vmatpush1.bf16.msra.mxu0 0
  %554 = vmatprep.subr.bf16.mxu0 0
  %555 = vmatpush1.bf16.msra.mxu0 0
  %556 = vmatprep.subr.bf16.mxu0 0
  %557 = vmatpush1.bf16.msra.mxu0 0
  %558 = vmatprep.subr.bf16.mxu0 0
  %559 = vmatpush1.bf16.msra.mxu0 0
  %560 = vmatprep.subr.bf16.mxu0 0
  %561 = vmatpush1.bf16.msra.mxu0 0
  %562 = vmatprep.mubr.bf16.mxu0 0
  %563 = vmatmul.mubr.bf16.gmra.mrb[0].mxu0 %v408
  %v564 = vpop.f32.mrb[0].mxu0
  %v565 = vadd.f32 %v508, %v564
  %v566 = vpop.f32.mrb[0].mxu0
  %v567 = vpop.f32.mrb[0].mxu0
  %v568 = vadd.f32 %v511, %v567
  %v569 = vpop.f32.mrb[0].mxu0
  %570 = vmatprep.mubr.bf16.mxu0 0
  %571 = vmatmul.mubr.bf16.gmra.mrb[0].mxu0 %v411
  %v572 = vpop.f32.mrb[0].mxu0
  %v573 = vadd.f32 %v516, %v572
  %v574 = vpop.f32.mrb[0].mxu0
  %v575 = vpop.f32.mrb[0].mxu0
  %v576 = vadd.f32 %v519, %v575
  %v577 = vpop.f32.mrb[0].mxu0
  %578 = vmatprep.mubr.bf16.mxu0 0
  %579 = vmatmul.mubr.bf16.gmra.mrb[0].mxu0 %v414
  %v580 = vpop.f32.mrb[0].mxu0
  %v581 = vadd.f32 %v524, %v580
  %v582 = vpop.f32.mrb[0].mxu0
  %v583 = vpop.f32.mrb[0].mxu0
  %v584 = vadd.f32 %v527, %v583
  %v585 = vpop.f32.mrb[0].mxu0
  %586 = vdwg.mxu0
  %v587 = vld [vmem:[%s3] sm:$0xf]
  %v588 = vld [vmem:[%s3 + $0x4] sm:$0xf]
  %v589 = vld [vmem:[%s3 + $0x8] sm:$0xf]
  %v590 = vld [vmem:[%s3 + $0xc] sm:$0xf]
  %v591 = vld [vmem:[%s3 + $0x10] sm:$0xf]
  %v592 = vld [vmem:[%s3 + $0x14] sm:$0xf]
  %v593 = vunpack.c.l.bf16 %v587
  %v594 = vunpack.c.l.bf16 %v588
  %v595 = vunpack.c.l.bf16 %v589
  %v596 = vunpack.c.l.bf16 %v590
  %v597 = vunpack.c.l.bf16 %v591
  %v598 = vunpack.c.l.bf16 %v592
  %v599 = vadd.f32 %v565, %v593
  %v600 = vadd.f32 %v568, %v594
  %v601 = vadd.f32 %v573, %v595
  %v602 = vadd.f32 %v576, %v596
  %v603 = vadd.f32 %v581, %v597
  %v604 = vadd.f32 %v584, %v598
  %v605 = vmax.f32 %v599, 0.0
  %v606 = vmax.f32 %v600, 0.0
  %v607 = vmax.f32 %v601, 0.0
  %v608 = vmax.f32 %v602, 0.0
  %v609 = vmax.f32 %v603, 0.0
  %v610 = vmax.f32 %v604, 0.0
  %v611 = vpack.c.bf16 %v606, %v605
  %v612 = vpack.c.bf16 %v608, %v607
  %v613 = vpack.c.bf16 %v610, %v609
  %v617 = vunpack.c.l.b16 %v611
  %v618 = vunpack.c.h.b16 %v611
  %v619 = vunpack.c.l.b16 %v612
  %v620 = vunpack.c.h.b16 %v612
  %v621 = vunpack.c.l.b16 %v613
  %v622 = vunpack.c.h.b16 %v613
  %v623 = vpack.c.b16 %v617, %v617
  %v624 = vpack.c.b16 %v618, %v618
  %v625 = vpack.c.b16 %v619, %v619
  %v626 = vpack.c.b16 %v620, %v620
  %v627 = vpack.c.b16 %v621, %v621
  %v628 = vpack.c.b16 %v622, %v622
  %vm635 = vcmask 519168
  %636 = vst.msk [vmem:[%s4] sm:$0xf] %vm635, %v623
  %637 = vst.msk [vmem:[%s4 + $0x4] sm:$0xf] %vm635, %v624
  %638 = vst.msk [vmem:[%s4 + $0x8] sm:$0xf] %vm635, %v625
  %639 = vst.msk [vmem:[%s4 + $0xc] sm:$0xf] %vm635, %v626
  %640 = vst.msk [vmem:[%s4 + $0x10] sm:$0xf] %vm635, %v627
  %641 = vst.msk [vmem:[%s4 + $0x14] sm:$0xf] %vm635, %v628
  // Predicated region
  $region18: #{_lambda_.21} parent=0 // pred_check
    _
  $region19: #{_lambda_.21} parent=0 // pred_check_branch
    %643 = sbr.rel (0) target = $region21
  $region20: #{_lambda_.21} parent=0 // pred_region
    _
  $region21: #{_lambda_.21} parent=0 // pred_fallthru
    _
  // Predicated region
  $region22: #{_lambda_.21} parent=0 // pred_check
    _
  $region23: #{_lambda_.21} parent=0 // pred_check_branch
    %645 = sbr.rel (0) target = $region25
  $region24: #{_lambda_.21} parent=0 // pred_region
    _
  $region25: #{_lambda_.21} parent=0 // pred_fallthru
    _

// kernel: _lambda_.22
$region0: #{_lambda_.22}
  #allocation0 [shape = 'u32[]', space=smem, size = 0x4, offset = 0x4, fixed_abs, tag = 'smem constant byte address 0x4 - core index']
  #allocation1 [shape = 'u32[144,128]{1,0:T(1,128)}', space=vmem, size = 0x12000, scoped, tag = 'internal scratch']
  %s0 = inlined_call_operand.vmem [shape: bf16[16,576], index: 0, kind: input, shape index: {}]
  %s1 = inlined_call_operand.vmem [shape: bf16[576,128], index: 1, kind: input, shape index: {}]
  %s2 = inlined_call_operand.vmem [shape: f32[1,128], index: 2, kind: input, shape index: {}]
  %s3 = inlined_call_operand.vmem [shape: bf16[16,128], index: 3, kind: output, shape index: {}]
  %s4 = sld [smem:[#allocation0]]
  $region22: #{_lambda_.22} parent=0
    _
  %s6 = ssub.s32 1, %s4
  %s7 = scalar_select 0, %s6, %s4
  // Predicated region
  $region2: #{_lambda_.22} parent=0 // pred_check
    _
  $region3: #{_lambda_.22} parent=0 // pred_check_branch
    %9 = sbr.rel (0) target = $region5
  $region4: #{_lambda_.22} parent=0 // pred_region
    _
  $region5: #{_lambda_.22} parent=0 // pred_fallthru
    _
  // Predicated region
  $region6: #{_lambda_.22} parent=0 // pred_check
    _
  $region7: #{_lambda_.22} parent=0 // pred_check_branch
    %11 = sbr.rel (0) target = $region9
  $region8: #{_lambda_.22} parent=0 // pred_region
    _
  $region9: #{_lambda_.22} parent=0 // pred_fallthru
    _
  // Predicated region
  $region10: #{_lambda_.22} parent=0 // pred_check
    _
  $region11: #{_lambda_.22} parent=0 // pred_check_branch
    %13 = sbr.rel (0) target = $region13
  $region12: #{_lambda_.22} parent=0 // pred_region
    _
  $region13: #{_lambda_.22} parent=0 // pred_fallthru
    _
  %v15 = vld [vmem:[%s0] sm:$0xff]
  %v16 = vld [vmem:[%s0 + $0x8] sm:$0xff]
  %v17 = vld [vmem:[%s0 + $0x10] sm:$0xf]
  %v18 = vld [vmem:[%s0 + $0x14] sm:$0xff]
  %v19 = vld [vmem:[%s0 + $0x1c] sm:$0xff]
  %v20 = vld [vmem:[%s0 + $0x24] sm:$0xf]
  %v21 = vld [vmem:[%s1] sm:$0xf]
  %v22 = vld [vmem:[%s1 + $0x4] sm:$0xf]
  %v23 = vld [vmem:[%s1 + $0x8] sm:$0xf]
  %v24 = vld [vmem:[%s1 + $0xc] sm:$0xf]
  %v25 = vld [vmem:[%s1 + $0x10] sm:$0xf]
  %v26 = vld [vmem:[%s1 + $0x14] sm:$0xf]
  %v27 = vld [vmem:[%s1 + $0x18] sm:$0xf]
  %v28 = vld [vmem:[%s1 + $0x1c] sm:$0xf]
  %v29 = vld [vmem:[%s1 + $0x20] sm:$0xf]
  %v30 = vld [vmem:[%s1 + $0x24] sm:$0xf]
  %v31 = vld [vmem:[%s1 + $0x28] sm:$0xf]
  %v32 = vld [vmem:[%s1 + $0x2c] sm:$0xf]
  %v33 = vld [vmem:[%s1 + $0x30] sm:$0xf]
  %v34 = vld [vmem:[%s1 + $0x34] sm:$0xf]
  %v35 = vld [vmem:[%s1 + $0x38] sm:$0xf]
  %v36 = vld [vmem:[%s1 + $0x3c] sm:$0xf]
  %v37 = vld [vmem:[%s1 + $0x40] sm:$0xf]
  %v38 = vld [vmem:[%s1 + $0x44] sm:$0xf]
  %v39 = vld [vmem:[%s1 + $0x48] sm:$0xf]
  %v40 = vld [vmem:[%s1 + $0x4c] sm:$0xf]
  %v41 = vld [vmem:[%s1 + $0x50] sm:$0xf]
  %v42 = vld [vmem:[%s1 + $0x54] sm:$0xf]
  %v43 = vld [vmem:[%s1 + $0x58] sm:$0xf]
  %v44 = vld [vmem:[%s1 + $0x5c] sm:$0xf]
  %v45 = vld [vmem:[%s1 + $0x60] sm:$0xf]
  %v46 = vld [vmem:[%s1 + $0x64] sm:$0xf]
  %v47 = vld [vmem:[%s1 + $0x68] sm:$0xf]
  %v48 = vld [vmem:[%s1 + $0x6c] sm:$0xf]
  %v49 = vld [vmem:[%s1 + $0x70] sm:$0xf]
  %v50 = vld [vmem:[%s1 + $0x74] sm:$0xf]
  %v51 = vld [vmem:[%s1 + $0x78] sm:$0xf]
  %v52 = vld [vmem:[%s1 + $0x7c] sm:$0xf]
  %v53 = vld [vmem:[%s1 + $0x80] sm:$0xf]
  %v54 = vld [vmem:[%s1 + $0x84] sm:$0xf]
  %v55 = vld [vmem:[%s1 + $0x88] sm:$0xf]
  %v56 = vld [vmem:[%s1 + $0x8c] sm:$0xf]
  %v57 = vld [vmem:[%s1 + $0x90] sm:$0xf]
  %v58 = vld [vmem:[%s1 + $0x94] sm:$0xf]
  %v59 = vld [vmem:[%s1 + $0x98] sm:$0xf]
  %v60 = vld [vmem:[%s1 + $0x9c] sm:$0xf]
  %v61 = vld [vmem:[%s1 + $0xa0] sm:$0xf]
  %v62 = vld [vmem:[%s1 + $0xa4] sm:$0xf]
  %v63 = vld [vmem:[%s1 + $0xa8] sm:$0xf]
  %v64 = vld [vmem:[%s1 + $0xac] sm:$0xf]
  %v65 = vld [vmem:[%s1 + $0xb0] sm:$0xf]
  %v66 = vld [vmem:[%s1 + $0xb4] sm:$0xf]
  %v67 = vld [vmem:[%s1 + $0xb8] sm:$0xf]
  %v68 = vld [vmem:[%s1 + $0xbc] sm:$0xf]
  %v69 = vld [vmem:[%s1 + $0xc0] sm:$0xf]
  %v70 = vld [vmem:[%s1 + $0xc4] sm:$0xf]
  %v71 = vld [vmem:[%s1 + $0xc8] sm:$0xf]
  %v72 = vld [vmem:[%s1 + $0xcc] sm:$0xf]
  %v73 = vld [vmem:[%s1 + $0xd0] sm:$0xf]
  %v74 = vld [vmem:[%s1 + $0xd4] sm:$0xf]
  %v75 = vld [vmem:[%s1 + $0xd8] sm:$0xf]
  %v76 = vld [vmem:[%s1 + $0xdc] sm:$0xf]
  %v77 = vld [vmem:[%s1 + $0xe0] sm:$0xf]
  %v78 = vld [vmem:[%s1 + $0xe4] sm:$0xf]
  %v79 = vld [vmem:[%s1 + $0xe8] sm:$0xf]
  %v80 = vld [vmem:[%s1 + $0xec] sm:$0xf]
  %v81 = vld [vmem:[%s1 + $0xf0] sm:$0xf]
  %v82 = vld [vmem:[%s1 + $0xf4] sm:$0xf]
  %v83 = vld [vmem:[%s1 + $0xf8] sm:$0xf]
  %v84 = vld [vmem:[%s1 + $0xfc] sm:$0xf]
  %v85 = vld [vmem:[%s1 + $0x100] sm:$0xf]
  %v86 = vld [vmem:[%s1 + $0x104] sm:$0xf]
  %v87 = vld [vmem:[%s1 + $0x108] sm:$0xf]
  %v88 = vld [vmem:[%s1 + $0x10c] sm:$0xf]
  %v89 = vld [vmem:[%s1 + $0x110] sm:$0xf]
  %v90 = vld [vmem:[%s1 + $0x114] sm:$0xf]
  %v91 = vld [vmem:[%s1 + $0x118] sm:$0xf]
  %v92 = vld [vmem:[%s1 + $0x11c] sm:$0xf]
  %v93 = vld [vmem:[%s2] sm:$0x1]
  %v95 = vlaneseq
  %v96 = vshrl.u32 %v95, 7
  %v97 = vsub.s32 0, %v96
  %v98 = vrot.slane %v93, %v97
  %v106 = vunpack.c.l.b16 %v15
  %v107 = vunpack.c.h.b16 %v15
  %v108 = vunpack.c.l.b16 %v16
  %v109 = vunpack.c.h.b16 %v16
  %v110 = vunpack.c.l.b16 %v17
  %v111 = vunpack.c.l.b16 %v18
  %v112 = vunpack.c.h.b16 %v18
  %v113 = vunpack.c.l.b16 %v19
  %v114 = vunpack.c.h.b16 %v19
  %v115 = vunpack.c.l.b16 %v20
  %v116 = vpack.c.b16 %v111, %v106
  %v117 = vpack.c.b16 %v112, %v107
  %v118 = vpack.c.b16 %v113, %v108
  %v119 = vpack.c.b16 %v114, %v109
  %v120 = vpack.c.b16 %v115, %v110
  %v197 = vunpack.c.l.b16 %v21
  %v198 = vunpack.c.l.b16 %v22
  %v199 = vunpack.c.l.b16 %v23
  %v200 = vunpack.c.l.b16 %v24
  %v201 = vunpack.c.l.b16 %v25
  %v202 = vunpack.c.l.b16 %v26
  %v203 = vunpack.c.l.b16 %v27
  %v204 = vunpack.c.l.b16 %v28
  %v205 = vunpack.c.l.b16 %v29
  %v206 = vunpack.c.l.b16 %v30
  %v207 = vunpack.c.l.b16 %v31
  %v208 = vunpack.c.l.b16 %v32
  %v209 = vunpack.c.l.b16 %v33
  %v210 = vunpack.c.l.b16 %v34
  %v211 = vunpack.c.l.b16 %v35
  %v212 = vunpack.c.l.b16 %v36
  %v213 = vunpack.c.l.b16 %v37
  %v214 = vunpack.c.l.b16 %v38
  %v215 = vunpack.c.l.b16 %v39
  %v216 = vunpack.c.l.b16 %v40
  %v217 = vunpack.c.l.b16 %v41
  %v218 = vunpack.c.l.b16 %v42
  %v219 = vunpack.c.l.b16 %v43
  %v220 = vunpack.c.l.b16 %v44
  %v221 = vunpack.c.l.b16 %v45
  %v222 = vunpack.c.l.b16 %v46
  %v223 = vunpack.c.l.b16 %v47
  %v224 = vunpack.c.l.b16 %v48
  %v225 = vunpack.c.l.b16 %v49
  %v226 = vunpack.c.l.b16 %v50
  %v227 = vunpack.c.l.b16 %v51
  %v228 = vunpack.c.l.b16 %v52
  %v229 = vunpack.c.l.b16 %v53
  %v230 = vunpack.c.l.b16 %v54
  %v231 = vunpack.c.l.b16 %v55
  %v232 = vunpack.c.l.b16 %v56
  %v233 = vunpack.c.l.b16 %v57
  %v234 = vunpack.c.l.b16 %v58
  %v235 = vunpack.c.l.b16 %v59
  %v236 = vunpack.c.l.b16 %v60
  %v237 = vunpack.c.l.b16 %v61
  %v238 = vunpack.c.l.b16 %v62
  %v239 = vunpack.c.l.b16 %v63
  %v240 = vunpack.c.l.b16 %v64
  %v241 = vunpack.c.l.b16 %v65
  %v242 = vunpack.c.l.b16 %v66
  %v243 = vunpack.c.l.b16 %v67
  %v244 = vunpack.c.l.b16 %v68
  %v245 = vunpack.c.l.b16 %v69
  %v246 = vunpack.c.l.b16 %v70
  %v247 = vunpack.c.l.b16 %v71
  %v248 = vunpack.c.l.b16 %v72
  %v249 = vunpack.c.l.b16 %v73
  %v250 = vunpack.c.l.b16 %v74
  %v251 = vunpack.c.l.b16 %v75
  %v252 = vunpack.c.l.b16 %v76
  %v253 = vunpack.c.l.b16 %v77
  %v254 = vunpack.c.l.b16 %v78
  %v255 = vunpack.c.l.b16 %v79
  %v256 = vunpack.c.l.b16 %v80
  %v257 = vunpack.c.l.b16 %v81
  %v258 = vunpack.c.l.b16 %v82
  %v259 = vunpack.c.l.b16 %v83
  %v260 = vunpack.c.l.b16 %v84
  %v261 = vunpack.c.l.b16 %v85
  %v262 = vunpack.c.l.b16 %v86
  %v263 = vunpack.c.l.b16 %v87
  %v264 = vunpack.c.l.b16 %v88
  %v265 = vunpack.c.l.b16 %v89
  %v266 = vunpack.c.l.b16 %v90
  %v267 = vunpack.c.l.b16 %v91
  %v268 = vunpack.c.l.b16 %v92
  %v269 = vpack.c.b16 %v198, %v197
  %v270 = vpack.c.b16 %v200, %v199
  %v271 = vpack.c.b16 %v202, %v201
  %v272 = vpack.c.b16 %v204, %v203
  %v273 = vpack.c.b16 %v206, %v205
  %v274 = vpack.c.b16 %v208, %v207
  %v275 = vpack.c.b16 %v210, %v209
  %v276 = vpack.c.b16 %v212, %v211
  %v277 = vpack.c.b16 %v214, %v213
  %v278 = vpack.c.b16 %v216, %v215
  %v279 = vpack.c.b16 %v218, %v217
  %v280 = vpack.c.b16 %v220, %v219
  %v281 = vpack.c.b16 %v222, %v221
  %v282 = vpack.c.b16 %v224, %v223
  %v283 = vpack.c.b16 %v226, %v225
  %v284 = vpack.c.b16 %v228, %v227
  %v285 = vpack.c.b16 %v230, %v229
  %v286 = vpack.c.b16 %v232, %v231
  %v287 = vpack.c.b16 %v234, %v233
  %v288 = vpack.c.b16 %v236, %v235
  %v289 = vpack.c.b16 %v238, %v237
  %v290 = vpack.c.b16 %v240, %v239
  %v291 = vpack.c.b16 %v242, %v241
  %v292 = vpack.c.b16 %v244, %v243
  %v293 = vpack.c.b16 %v246, %v245
  %v294 = vpack.c.b16 %v248, %v247
  %v295 = vpack.c.b16 %v250, %v249
  %v296 = vpack.c.b16 %v252, %v251
  %v297 = vpack.c.b16 %v254, %v253
  %v298 = vpack.c.b16 %v256, %v255
  %v299 = vpack.c.b16 %v258, %v257
  %v300 = vpack.c.b16 %v260, %v259
  %v301 = vpack.c.b16 %v262, %v261
  %v302 = vpack.c.b16 %v264, %v263
  %v303 = vpack.c.b16 %v266, %v265
  %v304 = vpack.c.b16 %v268, %v267
  %vm341 = vcmask 523264
  %v343 = vsel %vm341, %v120, 0
  %345 = vmatprep.subr.bf16.mxu0 0
  %346 = vmatpush1.bf16.msra.mxu0 %v269
  %347 = vmatprep.subr.bf16.mxu0 0
  %348 = vmatpush1.bf16.msra.mxu0 %v270
  %349 = vmatprep.subr.bf16.mxu0 0
  %350 = vmatpush1.bf16.msra.mxu0 %v271
  %351 = vmatprep.subr.bf16.mxu0 0
  %352 = vmatpush1.bf16.msra.mxu0 %v272
  %353 = vmatprep.subr.bf16.mxu0 0
  %354 = vmatpush1.bf16.msra.mxu0 %v273
  %355 = vmatprep.subr.bf16.mxu0 0
  %356 = vmatpush1.bf16.msra.mxu0 %v274
  %357 = vmatprep.subr.bf16.mxu0 0
  %358 = vmatpush1.bf16.msra.mxu0 %v275
  %359 = vmatprep.subr.bf16.mxu0 0
  %360 = vmatpush1.bf16.msra.mxu0 %v276
  %361 = vmatprep.subr.bf16.mxu0 0
  %362 = vmatpush1.bf16.msra.mxu0 %v277
  %363 = vmatprep.subr.bf16.mxu0 0
  %364 = vmatpush1.bf16.msra.mxu0 %v278
  %365 = vmatprep.subr.bf16.mxu0 0
  %366 = vmatpush1.bf16.msra.mxu0 %v279
  %367 = vmatprep.subr.bf16.mxu0 0
  %368 = vmatpush1.bf16.msra.mxu0 %v280
  %369 = vmatprep.subr.bf16.mxu0 0
  %370 = vmatpush1.bf16.msra.mxu0 %v281
  %371 = vmatprep.subr.bf16.mxu0 0
  %372 = vmatpush1.bf16.msra.mxu0 %v282
  %373 = vmatprep.subr.bf16.mxu0 0
  %374 = vmatpush1.bf16.msra.mxu0 %v283
  %375 = vmatprep.subr.bf16.mxu0 0
  %376 = vmatpush1.bf16.msra.mxu0 %v284
  %377 = vmatprep.mubr.bf16.mxu0 %v117
  %378 = vmatmul.mubr.bf16.gmra.mrb[0].mxu0 %v116
  %v379 = vpop.f32.mrb[0].mxu0
  %v380 = vadd.f32 %v98, %v379
  %v381 = vpop.f32.mrb[0].mxu0
  %v382 = vpop.f32.mrb[0].mxu0
  %v383 = vadd.f32 %v98, %v382
  %v384 = vpop.f32.mrb[0].mxu0
  %385 = vdwg.mxu0
  %386 = vmatprep.subr.bf16.mxu0 0
  %387 = vmatpush1.bf16.msra.mxu0 %v285
  %388 = vmatprep.subr.bf16.mxu0 0
  %389 = vmatpush1.bf16.msra.mxu0 %v286
  %390 = vmatprep.subr.bf16.mxu0 0
  %391 = vmatpush1.bf16.msra.mxu0 %v287
  %392 = vmatprep.subr.bf16.mxu0 0
  %393 = vmatpush1.bf16.msra.mxu0 %v288
  %394 = vmatprep.subr.bf16.mxu0 0
  %395 = vmatpush1.bf16.msra.mxu0 %v289
  %396 = vmatprep.subr.bf16.mxu0 0
  %397 = vmatpush1.bf16.msra.mxu0 %v290
  %398 = vmatprep.subr.bf16.mxu0 0
  %399 = vmatpush1.bf16.msra.mxu0 %v291
  %400 = vmatprep.subr.bf16.mxu0 0
  %401 = vmatpush1.bf16.msra.mxu0 %v292
  %402 = vmatprep.subr.bf16.mxu0 0
  %403 = vmatpush1.bf16.msra.mxu0 %v293
  %404 = vmatprep.subr.bf16.mxu0 0
  %405 = vmatpush1.bf16.msra.mxu0 %v294
  %406 = vmatprep.subr.bf16.mxu0 0
  %407 = vmatpush1.bf16.msra.mxu0 %v295
  %408 = vmatprep.subr.bf16.mxu0 0
  %409 = vmatpush1.bf16.msra.mxu0 %v296
  %410 = vmatprep.subr.bf16.mxu0 0
  %411 = vmatpush1.bf16.msra.mxu0 %v297
  %412 = vmatprep.subr.bf16.mxu0 0
  %413 = vmatpush1.bf16.msra.mxu0 %v298
  %414 = vmatprep.subr.bf16.mxu0 0
  %415 = vmatpush1.bf16.msra.mxu0 %v299
  %416 = vmatprep.subr.bf16.mxu0 0
  %417 = vmatpush1.bf16.msra.mxu0 %v300
  %418 = vmatprep.mubr.bf16.mxu0 %v119
  %419 = vmatmul.mubr.bf16.gmra.mrb[0].mxu0 %v118
  %v420 = vpop.f32.mrb[0].mxu0
  %v421 = vadd.f32 %v380, %v420
  %v422 = vpop.f32.mrb[0].mxu0
  %v423 = vpop.f32.mrb[0].mxu0
  %v424 = vadd.f32 %v383, %v423
  %v425 = vpop.f32.mrb[0].mxu0
  %426 = vdwg.mxu0
  %427 = vmatprep.subr.bf16.mxu0 0
  %428 = vmatpush1.bf16.msra.mxu0 %v301
  %429 = vmatprep.subr.bf16.mxu0 0
  %430 = vmatpush1.bf16.msra.mxu0 %v302
  %431 = vmatprep.subr.bf16.mxu0 0
  %432 = vmatpush1.bf16.msra.mxu0 %v303
  %433 = vmatprep.subr.bf16.mxu0 0
  %434 = vmatpush1.bf16.msra.mxu0 %v304
  %435 = vmatprep.subr.bf16.mxu0 0
  %436 = vmatpush1.bf16.msra.mxu0 0
  %437 = vmatprep.subr.bf16.mxu0 0
  %438 = vmatpush1.bf16.msra.mxu0 0
  %439 = vmatprep.subr.bf16.mxu0 0
  %440 = vmatpush1.bf16.msra.mxu0 0
  %441 = vmatprep.subr.bf16.mxu0 0
  %442 = vmatpush1.bf16.msra.mxu0 0
  %443 = vmatprep.subr.bf16.mxu0 0
  %444 = vmatpush1.bf16.msra.mxu0 0
  %445 = vmatprep.subr.bf16.mxu0 0
  %446 = vmatpush1.bf16.msra.mxu0 0
  %447 = vmatprep.subr.bf16.mxu0 0
  %448 = vmatpush1.bf16.msra.mxu0 0
  %449 = vmatprep.subr.bf16.mxu0 0
  %450 = vmatpush1.bf16.msra.mxu0 0
  %451 = vmatprep.subr.bf16.mxu0 0
  %452 = vmatpush1.bf16.msra.mxu0 0
  %453 = vmatprep.subr.bf16.mxu0 0
  %454 = vmatpush1.bf16.msra.mxu0 0
  %455 = vmatprep.subr.bf16.mxu0 0
  %456 = vmatpush1.bf16.msra.mxu0 0
  %457 = vmatprep.subr.bf16.mxu0 0
  %458 = vmatpush1.bf16.msra.mxu0 0
  %459 = vmatprep.mubr.bf16.mxu0 0
  %460 = vmatmul.mubr.bf16.gmra.mrb[0].mxu0 %v343
  %v461 = vpop.f32.mrb[0].mxu0
  %v462 = vadd.f32 %v421, %v461
  %v463 = vpop.f32.mrb[0].mxu0
  %v464 = vpop.f32.mrb[0].mxu0
  %v465 = vadd.f32 %v424, %v464
  %v466 = vpop.f32.mrb[0].mxu0
  %467 = vdwg.mxu0
  %v468 = vmax.f32 %v462, 0.0
  %v469 = vmax.f32 %v465, 0.0
  %v470 = vpack.c.bf16 %v469, %v468
  %v472 = vunpack.c.l.b16 %v470
  %v473 = vunpack.c.h.b16 %v470
  %v474 = vpack.c.b16 %v472, %v472
  %v475 = vpack.c.b16 %v473, %v473
  %478 = vst [vmem:[%s3] sm:$0xf] %v474
  %479 = vst [vmem:[%s3 + $0x4] sm:$0xf] %v475
  // Predicated region
  $region14: #{_lambda_.22} parent=0 // pred_check
    _
  $region15: #{_lambda_.22} parent=0 // pred_check_branch
    %481 = sbr.rel (0) target = $region17
  $region16: #{_lambda_.22} parent=0 // pred_region
    _
  $region17: #{_lambda_.22} parent=0 // pred_fallthru
    _
  // Predicated region
  $region18: #{_lambda_.22} parent=0 // pred_check
    _
  $region19: #{_lambda_.22} parent=0 // pred_check_branch
    %483 = sbr.rel (0) target = $region21
  $region20: #{_lambda_.22} parent=0 // pred_region
    _
  $region21: #{_lambda_.22} parent=0 // pred_fallthru
    _

// kernel: _lambda_.23
$region0: #{_lambda_.23}
  #allocation0 [shape = 'u32[]', space=smem, size = 0x4, offset = 0x4, fixed_abs, tag = 'smem constant byte address 0x4 - core index']
  #allocation1 [shape = 'u32[144,128]{1,0:T(1,128)}', space=vmem, size = 0x12000, scoped, tag = 'internal scratch']
  %s0 = inlined_call_operand.vmem [shape: bf16[16,64], index: 0, kind: input, shape index: {}]
  %s1 = inlined_call_operand.vmem [shape: bf16[64,128], index: 1, kind: input, shape index: {}]
  %s2 = inlined_call_operand.vmem [shape: f32[1,128], index: 2, kind: input, shape index: {}]
  %s3 = inlined_call_operand.vmem [shape: bf16[16,128], index: 3, kind: output, shape index: {}]
  %s4 = sld [smem:[#allocation0]]
  $region22: #{_lambda_.23} parent=0
    _
  %s6 = ssub.s32 1, %s4
  %s7 = scalar_select 0, %s6, %s4
  // Predicated region
  $region2: #{_lambda_.23} parent=0 // pred_check
    _
  $region3: #{_lambda_.23} parent=0 // pred_check_branch
    %9 = sbr.rel (0) target = $region5
  $region4: #{_lambda_.23} parent=0 // pred_region
    _
  $region5: #{_lambda_.23} parent=0 // pred_fallthru
    _
  // Predicated region
  $region6: #{_lambda_.23} parent=0 // pred_check
    _
  $region7: #{_lambda_.23} parent=0 // pred_check_branch
    %11 = sbr.rel (0) target = $region9
  $region8: #{_lambda_.23} parent=0 // pred_region
    _
  $region9: #{_lambda_.23} parent=0 // pred_fallthru
    _
  // Predicated region
  $region10: #{_lambda_.23} parent=0 // pred_check
    _
  $region11: #{_lambda_.23} parent=0 // pred_check_branch
    %13 = sbr.rel (0) target = $region13
  $region12: #{_lambda_.23} parent=0 // pred_region
    _
  $region13: #{_lambda_.23} parent=0 // pred_fallthru
    _
  %v15 = vld [vmem:[%s0] sm:$0xf]
  %v16 = vld [vmem:[%s0 + $0x4] sm:$0xf]
  %v17 = vld [vmem:[%s1] sm:$0xf]
  %v18 = vld [vmem:[%s1 + $0x4] sm:$0xf]
  %v19 = vld [vmem:[%s1 + $0x8] sm:$0xf]
  %v20 = vld [vmem:[%s1 + $0xc] sm:$0xf]
  %v21 = vld [vmem:[%s1 + $0x10] sm:$0xf]
  %v22 = vld [vmem:[%s1 + $0x14] sm:$0xf]
  %v23 = vld [vmem:[%s1 + $0x18] sm:$0xf]
  %v24 = vld [vmem:[%s1 + $0x1c] sm:$0xf]
  %v25 = vld [vmem:[%s2] sm:$0x1]
  %v27 = vlaneseq
  %v28 = vshrl.u32 %v27, 7
  %v29 = vsub.s32 0, %v28
  %v30 = vrot.slane %v25, %v29
  %v34 = vunpack.c.l.b16 %v15
  %v35 = vunpack.c.l.b16 %v16
  %v36 = vpack.c.b16 %v35, %v34
  %v45 = vunpack.c.l.b16 %v17
  %v46 = vunpack.c.l.b16 %v18
  %v47 = vunpack.c.l.b16 %v19
  %v48 = vunpack.c.l.b16 %v20
  %v49 = vunpack.c.l.b16 %v21
  %v50 = vunpack.c.l.b16 %v22
  %v51 = vunpack.c.l.b16 %v23
  %v52 = vunpack.c.l.b16 %v24
  %v53 = vpack.c.b16 %v46, %v45
  %v54 = vpack.c.b16 %v48, %v47
  %v55 = vpack.c.b16 %v50, %v49
  %v56 = vpack.c.b16 %v52, %v51
  %vm61 = vcmask 523264
  %v63 = vsel %vm61, %v36, 0
  %65 = vmatprep.subr.bf16.mxu0 0
  %66 = vmatpush1.bf16.msra.mxu0 %v53
  %67 = vmatprep.subr.bf16.mxu0 0
  %68 = vmatpush1.bf16.msra.mxu0 %v54
  %69 = vmatprep.subr.bf16.mxu0 0
  %70 = vmatpush1.bf16.msra.mxu0 %v55
  %71 = vmatprep.subr.bf16.mxu0 0
  %72 = vmatpush1.bf16.msra.mxu0 %v56
  %73 = vmatprep.subr.bf16.mxu0 0
  %74 = vmatpush1.bf16.msra.mxu0 0
  %75 = vmatprep.subr.bf16.mxu0 0
  %76 = vmatpush1.bf16.msra.mxu0 0
  %77 = vmatprep.subr.bf16.mxu0 0
  %78 = vmatpush1.bf16.msra.mxu0 0
  %79 = vmatprep.subr.bf16.mxu0 0
  %80 = vmatpush1.bf16.msra.mxu0 0
  %81 = vmatprep.subr.bf16.mxu0 0
  %82 = vmatpush1.bf16.msra.mxu0 0
  %83 = vmatprep.subr.bf16.mxu0 0
  %84 = vmatpush1.bf16.msra.mxu0 0
  %85 = vmatprep.subr.bf16.mxu0 0
  %86 = vmatpush1.bf16.msra.mxu0 0
  %87 = vmatprep.subr.bf16.mxu0 0
  %88 = vmatpush1.bf16.msra.mxu0 0
  %89 = vmatprep.subr.bf16.mxu0 0
  %90 = vmatpush1.bf16.msra.mxu0 0
  %91 = vmatprep.subr.bf16.mxu0 0
  %92 = vmatpush1.bf16.msra.mxu0 0
  %93 = vmatprep.subr.bf16.mxu0 0
  %94 = vmatpush1.bf16.msra.mxu0 0
  %95 = vmatprep.subr.bf16.mxu0 0
  %96 = vmatpush1.bf16.msra.mxu0 0
  %97 = vmatprep.mubr.bf16.mxu0 0
  %98 = vmatmul.mubr.bf16.gmra.mrb[0].mxu0 %v63
  %v99 = vpop.f32.mrb[0].mxu0
  %v100 = vadd.f32 %v30, %v99
  %v101 = vpop.f32.mrb[0].mxu0
  %v102 = vpop.f32.mrb[0].mxu0
  %v103 = vadd.f32 %v30, %v102
  %v104 = vpop.f32.mrb[0].mxu0
  %105 = vdwg.mxu0
  %v106 = vmax.f32 %v100, 0.0
  %v107 = vmax.f32 %v103, 0.0
  %v108 = vmin.f32 %v106, 6.0
  %v109 = vmin.f32 %v107, 6.0
  %v110 = vpack.c.bf16 %v109, %v108
  %v112 = vunpack.c.l.b16 %v110
  %v113 = vunpack.c.h.b16 %v110
  %v114 = vpack.c.b16 %v112, %v112
  %v115 = vpack.c.b16 %v113, %v113
  %118 = vst [vmem:[%s3] sm:$0xf] %v114
  %119 = vst [vmem:[%s3 + $0x4] sm:$0xf] %v115
  // Predicated region
  $region14: #{_lambda_.23} parent=0 // pred_check
    _
  $region15: #{_lambda_.23} parent=0 // pred_check_branch
    %121 = sbr.rel (0) target = $region17
  $region16: #{_lambda_.23} parent=0 // pred_region
    _
  $region17: #{_lambda_.23} parent=0 // pred_fallthru
    _
  // Predicated region
  $region18: #{_lambda_.23} parent=0 // pred_check
    _
  $region19: #{_lambda_.23} parent=0 // pred_check_branch
    %123 = sbr.rel (0) target = $region21
  $region20: #{_lambda_.23} parent=0 // pred_region
    _
  $region21: #{_lambda_.23} parent=0 // pred_fallthru
    _

// kernel: _lambda_.25
$region0: #{_lambda_.25}
  #allocation0 [shape = 'u32[]', space=smem, size = 0x4, offset = 0x4, fixed_abs, tag = 'smem constant byte address 0x4 - core index']
  #allocation1 [shape = 'u32[144,128]{1,0:T(1,128)}', space=vmem, size = 0x12000, scoped, tag = 'internal scratch']
  %s0 = inlined_call_operand.vmem [shape: bf16[16,128], index: 0, kind: input, shape index: {}]
  %s1 = inlined_call_operand.vmem [shape: bf16[128,32], index: 1, kind: input, shape index: {}]
  %s2 = inlined_call_operand.vmem [shape: f32[1,32], index: 2, kind: input, shape index: {}]
  %s3 = inlined_call_operand.vmem [shape: f32[16,32], index: 3, kind: output, shape index: {}]
  %s4 = sld [smem:[#allocation0]]
  $region22: #{_lambda_.25} parent=0
    _
  %s6 = ssub.s32 1, %s4
  %s7 = scalar_select 0, %s6, %s4
  // Predicated region
  $region2: #{_lambda_.25} parent=0 // pred_check
    _
  $region3: #{_lambda_.25} parent=0 // pred_check_branch
    %9 = sbr.rel (0) target = $region5
  $region4: #{_lambda_.25} parent=0 // pred_region
    _
  $region5: #{_lambda_.25} parent=0 // pred_fallthru
    _
  // Predicated region
  $region6: #{_lambda_.25} parent=0 // pred_check
    _
  $region7: #{_lambda_.25} parent=0 // pred_check_branch
    %11 = sbr.rel (0) target = $region9
  $region8: #{_lambda_.25} parent=0 // pred_region
    _
  $region9: #{_lambda_.25} parent=0 // pred_fallthru
    _
  // Predicated region
  $region10: #{_lambda_.25} parent=0 // pred_check
    _
  $region11: #{_lambda_.25} parent=0 // pred_check_branch
    %13 = sbr.rel (0) target = $region13
  $region12: #{_lambda_.25} parent=0 // pred_region
    _
  $region13: #{_lambda_.25} parent=0 // pred_fallthru
    _
  %v15 = vld [vmem:[%s0] sm:$0xf]
  %v16 = vld [vmem:[%s0 + $0x4] sm:$0xf]
  %v17 = vld [vmem:[%s1] sm:$0xf]
  %v18 = vld [vmem:[%s1 + $0x4] sm:$0xf]
  %v19 = vld [vmem:[%s1 + $0x8] sm:$0xf]
  %v20 = vld [vmem:[%s1 + $0xc] sm:$0xf]
  %v21 = vld [vmem:[%s1 + $0x10] sm:$0xf]
  %v22 = vld [vmem:[%s1 + $0x14] sm:$0xf]
  %v23 = vld [vmem:[%s1 + $0x18] sm:$0xf]
  %v24 = vld [vmem:[%s1 + $0x1c] sm:$0xf]
  %v25 = vld [vmem:[%s1 + $0x20] sm:$0xf]
  %v26 = vld [vmem:[%s1 + $0x24] sm:$0xf]
  %v27 = vld [vmem:[%s1 + $0x28] sm:$0xf]
  %v28 = vld [vmem:[%s1 + $0x2c] sm:$0xf]
  %v29 = vld [vmem:[%s1 + $0x30] sm:$0xf]
  %v30 = vld [vmem:[%s1 + $0x34] sm:$0xf]
  %v31 = vld [vmem:[%s1 + $0x38] sm:$0xf]
  %v32 = vld [vmem:[%s1 + $0x3c] sm:$0xf]
  %v33 = vld [vmem:[%s2] sm:$0x1]
  %v35 = vlaneseq
  %v36 = vshrl.u32 %v35, 7
  %v37 = vsub.s32 0, %v36
  %v38 = vrot.slane %v33, %v37
  %v42 = vunpack.c.l.b16 %v15
  %v43 = vunpack.c.l.b16 %v16
  %v44 = vpack.c.b16 %v43, %v42
  %v62 = vunpack.c.l.b16 %v17
  %v63 = vunpack.c.l.b16 %v18
  %v64 = vunpack.c.l.b16 %v19
  %v65 = vunpack.c.l.b16 %v20
  %v66 = vunpack.c.l.b16 %v21
  %v67 = vunpack.c.l.b16 %v22
  %v68 = vunpack.c.l.b16 %v23
  %v69 = vunpack.c.l.b16 %v24
  %v70 = vunpack.c.l.b16 %v25
  %v71 = vunpack.c.l.b16 %v26
  %v72 = vunpack.c.l.b16 %v27
  %v73 = vunpack.c.l.b16 %v28
  %v74 = vunpack.c.l.b16 %v29
  %v75 = vunpack.c.l.b16 %v30
  %v76 = vunpack.c.l.b16 %v31
  %v77 = vunpack.c.l.b16 %v32
  %v78 = vpack.c.b16 %v63, %v62
  %v79 = vpack.c.b16 %v65, %v64
  %v80 = vpack.c.b16 %v67, %v66
  %v81 = vpack.c.b16 %v69, %v68
  %v82 = vpack.c.b16 %v71, %v70
  %v83 = vpack.c.b16 %v73, %v72
  %v84 = vpack.c.b16 %v75, %v74
  %v85 = vpack.c.b16 %v77, %v76
  %94 = vmatprep.subr.bf16.mxu0 0
  %95 = vmatpush1.bf16.msra.mxu0 %v78
  %96 = vmatprep.subr.bf16.mxu0 0
  %97 = vmatpush1.bf16.msra.mxu0 %v79
  %98 = vmatprep.subr.bf16.mxu0 0
  %99 = vmatpush1.bf16.msra.mxu0 %v80
  %100 = vmatprep.subr.bf16.mxu0 0
  %101 = vmatpush1.bf16.msra.mxu0 %v81
  %102 = vmatprep.subr.bf16.mxu0 0
  %103 = vmatpush1.bf16.msra.mxu0 %v82
  %104 = vmatprep.subr.bf16.mxu0 0
  %105 = vmatpush1.bf16.msra.mxu0 %v83
  %106 = vmatprep.subr.bf16.mxu0 0
  %107 = vmatpush1.bf16.msra.mxu0 %v84
  %108 = vmatprep.subr.bf16.mxu0 0
  %109 = vmatpush1.bf16.msra.mxu0 %v85
  %110 = vmatprep.subr.bf16.mxu0 0
  %111 = vmatpush1.bf16.msra.mxu0 0
  %112 = vmatprep.subr.bf16.mxu0 0
  %113 = vmatpush1.bf16.msra.mxu0 0
  %114 = vmatprep.subr.bf16.mxu0 0
  %115 = vmatpush1.bf16.msra.mxu0 0
  %116 = vmatprep.subr.bf16.mxu0 0
  %117 = vmatpush1.bf16.msra.mxu0 0
  %118 = vmatprep.subr.bf16.mxu0 0
  %119 = vmatpush1.bf16.msra.mxu0 0
  %120 = vmatprep.subr.bf16.mxu0 0
  %121 = vmatpush1.bf16.msra.mxu0 0
  %122 = vmatprep.subr.bf16.mxu0 0
  %123 = vmatpush1.bf16.msra.mxu0 0
  %124 = vmatprep.subr.bf16.mxu0 0
  %125 = vmatpush1.bf16.msra.mxu0 0
  %126 = vmatprep.mubr.bf16.mxu0 0
  %127 = vmatmul.mubr.bf16.gmra.mrb[0].mxu0 %v44
  %v128 = vpop.f32.mrb[0].mxu0
  %v129 = vadd.f32 %v38, %v128
  %v130 = vpop.f32.mrb[0].mxu0
  %v131 = vpop.f32.mrb[0].mxu0
  %v132 = vadd.f32 %v38, %v131
  %v133 = vpop.f32.mrb[0].mxu0
  %134 = vdwg.mxu0
  %vm135 = vcmask 261120
  %136 = vst.msk [vmem:[%s3] sm:$0xff] %vm135, %v129
  %137 = vst.msk [vmem:[%s3 + $0x8] sm:$0xff] %vm135, %v132
  // Predicated region
  $region14: #{_lambda_.25} parent=0 // pred_check
    _
  $region15: #{_lambda_.25} parent=0 // pred_check_branch
    %139 = sbr.rel (0) target = $region17
  $region16: #{_lambda_.25} parent=0 // pred_region
    _
  $region17: #{_lambda_.25} parent=0 // pred_fallthru
    _
  // Predicated region
  $region18: #{_lambda_.25} parent=0 // pred_check
    _
  $region19: #{_lambda_.25} parent=0 // pred_check_branch
    %141 = sbr.rel (0) target = $region21
  $region20: #{_lambda_.25} parent=0 // pred_region
    _
  $region21: #{_lambda_.25} parent=0 // pred_fallthru
    _

// kernel: _lambda_.24
$region0: #{_lambda_.24}
  #allocation0 [shape = 'u32[]', space=smem, size = 0x4, offset = 0x4, fixed_abs, tag = 'smem constant byte address 0x4 - core index']
  #allocation1 [shape = 'u32[144,128]{1,0:T(1,128)}', space=vmem, size = 0x12000, scoped, tag = 'internal scratch']
  %s0 = inlined_call_operand.vmem [shape: bf16[16,1152], index: 0, kind: input, shape index: {}]
  %s1 = inlined_call_operand.vmem [shape: bf16[1152,128], index: 1, kind: input, shape index: {}]
  %s2 = inlined_call_operand.vmem [shape: f32[1,128], index: 2, kind: input, shape index: {}]
  %s3 = inlined_call_operand.vmem [shape: bf16[16,128], index: 3, kind: input, shape index: {}]
  %s4 = inlined_call_operand.vmem [shape: bf16[16,128], index: 4, kind: output, shape index: {}]
  %s5 = sld [smem:[#allocation0]]
  $region26: #{_lambda_.24} parent=0
    _
  %s7 = ssub.s32 1, %s5
  %s8 = scalar_select 0, %s7, %s5
  // Predicated region
  $region2: #{_lambda_.24} parent=0 // pred_check
    _
  $region3: #{_lambda_.24} parent=0 // pred_check_branch
    %10 = sbr.rel (0) target = $region5
  $region4: #{_lambda_.24} parent=0 // pred_region
    _
  $region5: #{_lambda_.24} parent=0 // pred_fallthru
    _
  // Predicated region
  $region6: #{_lambda_.24} parent=0 // pred_check
    _
  $region7: #{_lambda_.24} parent=0 // pred_check_branch
    %12 = sbr.rel (0) target = $region9
  $region8: #{_lambda_.24} parent=0 // pred_region
    _
  $region9: #{_lambda_.24} parent=0 // pred_fallthru
    _
  // Predicated region
  $region10: #{_lambda_.24} parent=0 // pred_check
    _
  $region11: #{_lambda_.24} parent=0 // pred_check_branch
    %14 = sbr.rel (0) target = $region13
  $region12: #{_lambda_.24} parent=0 // pred_region
    _
  $region13: #{_lambda_.24} parent=0 // pred_fallthru
    _
  // Predicated region
  $region14: #{_lambda_.24} parent=0 // pred_check
    _
  $region15: #{_lambda_.24} parent=0 // pred_check_branch
    %16 = sbr.rel (0) target = $region17
  $region16: #{_lambda_.24} parent=0 // pred_region
    _
  $region17: #{_lambda_.24} parent=0 // pred_fallthru
    _
  %v18 = vld [vmem:[%s0] sm:$0xff]
  %v19 = vld [vmem:[%s0 + $0x8] sm:$0xff]
  %v20 = vld [vmem:[%s0 + $0x10] sm:$0xff]
  %v21 = vld [vmem:[%s0 + $0x18] sm:$0xff]
  %v22 = vld [vmem:[%s0 + $0x20] sm:$0xf]
  %v23 = vld [vmem:[%s0 + $0x24] sm:$0xff]
  %v24 = vld [vmem:[%s0 + $0x2c] sm:$0xff]
  %v25 = vld [vmem:[%s0 + $0x34] sm:$0xff]
  %v26 = vld [vmem:[%s0 + $0x3c] sm:$0xff]
  %v27 = vld [vmem:[%s0 + $0x44] sm:$0xf]
  %v28 = vld [vmem:[%s1] sm:$0xf]
  %v29 = vld [vmem:[%s1 + $0x4] sm:$0xf]
  %v30 = vld [vmem:[%s1 + $0x8] sm:$0xf]
  %v31 = vld [vmem:[%s1 + $0xc] sm:$0xf]
  %v32 = vld [vmem:[%s1 + $0x10] sm:$0xf]
  %v33 = vld [vmem:[%s1 + $0x14] sm:$0xf]
  %v34 = vld [vmem:[%s1 + $0x18] sm:$0xf]
  %v35 = vld [vmem:[%s1 + $0x1c] sm:$0xf]
  %v36 = vld [vmem:[%s1 + $0x20] sm:$0xf]
  %v37 = vld [vmem:[%s1 + $0x24] sm:$0xf]
  %v38 = vld [vmem:[%s1 + $0x28] sm:$0xf]
  %v39 = vld [vmem:[%s1 + $0x2c] sm:$0xf]
  %v40 = vld [vmem:[%s1 + $0x30] sm:$0xf]
  %v41 = vld [vmem:[%s1 + $0x34] sm:$0xf]
  %v42 = vld [vmem:[%s1 + $0x38] sm:$0xf]
  %v43 = vld [vmem:[%s1 + $0x3c] sm:$0xf]
  %v44 = vld [vmem:[%s1 + $0x40] sm:$0xf]
  %v45 = vld [vmem:[%s1 + $0x44] sm:$0xf]
  %v46 = vld [vmem:[%s1 + $0x48] sm:$0xf]
  %v47 = vld [vmem:[%s1 + $0x4c] sm:$0xf]
  %v48 = vld [vmem:[%s1 + $0x50] sm:$0xf]
  %v49 = vld [vmem:[%s1 + $0x54] sm:$0xf]
  %v50 = vld [vmem:[%s1 + $0x58] sm:$0xf]
  %v51 = vld [vmem:[%s1 + $0x5c] sm:$0xf]
  %v52 = vld [vmem:[%s1 + $0x60] sm:$0xf]
  %v53 = vld [vmem:[%s1 + $0x64] sm:$0xf]
  %v54 = vld [vmem:[%s1 + $0x68] sm:$0xf]
  %v55 = vld [vmem:[%s1 + $0x6c] sm:$0xf]
  %v56 = vld [vmem:[%s1 + $0x70] sm:$0xf]
  %v57 = vld [vmem:[%s1 + $0x74] sm:$0xf]
  %v58 = vld [vmem:[%s1 + $0x78] sm:$0xf]
  %v59 = vld [vmem:[%s1 + $0x7c] sm:$0xf]
  %v60 = vld [vmem:[%s1 + $0x80] sm:$0xf]
  %v61 = vld [vmem:[%s1 + $0x84] sm:$0xf]
  %v62 = vld [vmem:[%s1 + $0x88] sm:$0xf]
  %v63 = vld [vmem:[%s1 + $0x8c] sm:$0xf]
  %v64 = vld [vmem:[%s1 + $0x90] sm:$0xf]
  %v65 = vld [vmem:[%s1 + $0x94] sm:$0xf]
  %v66 = vld [vmem:[%s1 + $0x98] sm:$0xf]
  %v67 = vld [vmem:[%s1 + $0x9c] sm:$0xf]
  %v68 = vld [vmem:[%s1 + $0xa0] sm:$0xf]
  %v69 = vld [vmem:[%s1 + $0xa4] sm:$0xf]
  %v70 = vld [vmem:[%s1 + $0xa8] sm:$0xf]
  %v71 = vld [vmem:[%s1 + $0xac] sm:$0xf]
  %v72 = vld [vmem:[%s1 + $0xb0] sm:$0xf]
  %v73 = vld [vmem:[%s1 + $0xb4] sm:$0xf]
  %v74 = vld [vmem:[%s1 + $0xb8] sm:$0xf]
  %v75 = vld [vmem:[%s1 + $0xbc] sm:$0xf]
  %v76 = vld [vmem:[%s1 + $0xc0] sm:$0xf]
  %v77 = vld [vmem:[%s1 + $0xc4] sm:$0xf]
  %v78 = vld [vmem:[%s1 + $0xc8] sm:$0xf]
  %v79 = vld [vmem:[%s1 + $0xcc] sm:$0xf]
  %v80 = vld [vmem:[%s1 + $0xd0] sm:$0xf]
  %v81 = vld [vmem:[%s1 + $0xd4] sm:$0xf]
  %v82 = vld [vmem:[%s1 + $0xd8] sm:$0xf]
  %v83 = vld [vmem:[%s1 + $0xdc] sm:$0xf]
  %v84 = vld [vmem:[%s1 + $0xe0] sm:$0xf]
  %v85 = vld [vmem:[%s1 + $0xe4] sm:$0xf]
  %v86 = vld [vmem:[%s1 + $0xe8] sm:$0xf]
  %v87 = vld [vmem:[%s1 + $0xec] sm:$0xf]
  %v88 = vld [vmem:[%s1 + $0xf0] sm:$0xf]
  %v89 = vld [vmem:[%s1 + $0xf4] sm:$0xf]
  %v90 = vld [vmem:[%s1 + $0xf8] sm:$0xf]
  %v91 = vld [vmem:[%s1 + $0xfc] sm:$0xf]
  %v92 = vld [vmem:[%s1 + $0x100] sm:$0xf]
  %v93 = vld [vmem:[%s1 + $0x104] sm:$0xf]
  %v94 = vld [vmem:[%s1 + $0x108] sm:$0xf]
  %v95 = vld [vmem:[%s1 + $0x10c] sm:$0xf]
  %v96 = vld [vmem:[%s1 + $0x110] sm:$0xf]
  %v97 = vld [vmem:[%s1 + $0x114] sm:$0xf]
  %v98 = vld [vmem:[%s1 + $0x118] sm:$0xf]
  %v99 = vld [vmem:[%s1 + $0x11c] sm:$0xf]
  %v100 = vld [vmem:[%s1 + $0x120] sm:$0xf]
  %v101 = vld [vmem:[%s1 + $0x124] sm:$0xf]
  %v102 = vld [vmem:[%s1 + $0x128] sm:$0xf]
  %v103 = vld [vmem:[%s1 + $0x12c] sm:$0xf]
  %v104 = vld [vmem:[%s1 + $0x130] sm:$0xf]
  %v105 = vld [vmem:[%s1 + $0x134] sm:$0xf]
  %v106 = vld [vmem:[%s1 + $0x138] sm:$0xf]
  %v107 = vld [vmem:[%s1 + $0x13c] sm:$0xf]
  %v108 = vld [vmem:[%s1 + $0x140] sm:$0xf]
  %v109 = vld [vmem:[%s1 + $0x144] sm:$0xf]
  %v110 = vld [vmem:[%s1 + $0x148] sm:$0xf]
  %v111 = vld [vmem:[%s1 + $0x14c] sm:$0xf]
  %v112 = vld [vmem:[%s1 + $0x150] sm:$0xf]
  %v113 = vld [vmem:[%s1 + $0x154] sm:$0xf]
  %v114 = vld [vmem:[%s1 + $0x158] sm:$0xf]
  %v115 = vld [vmem:[%s1 + $0x15c] sm:$0xf]
  %v116 = vld [vmem:[%s1 + $0x160] sm:$0xf]
  %v117 = vld [vmem:[%s1 + $0x164] sm:$0xf]
  %v118 = vld [vmem:[%s1 + $0x168] sm:$0xf]
  %v119 = vld [vmem:[%s1 + $0x16c] sm:$0xf]
  %v120 = vld [vmem:[%s1 + $0x170] sm:$0xf]
  %v121 = vld [vmem:[%s1 + $0x174] sm:$0xf]
  %v122 = vld [vmem:[%s1 + $0x178] sm:$0xf]
  %v123 = vld [vmem:[%s1 + $0x17c] sm:$0xf]
  %v124 = vld [vmem:[%s1 + $0x180] sm:$0xf]
  %v125 = vld [vmem:[%s1 + $0x184] sm:$0xf]
  %v126 = vld [vmem:[%s1 + $0x188] sm:$0xf]
  %v127 = vld [vmem:[%s1 + $0x18c] sm:$0xf]
  %v128 = vld [vmem:[%s1 + $0x190] sm:$0xf]
  %v129 = vld [vmem:[%s1 + $0x194] sm:$0xf]
  %v130 = vld [vmem:[%s1 + $0x198] sm:$0xf]
  %v131 = vld [vmem:[%s1 + $0x19c] sm:$0xf]
  %v132 = vld [vmem:[%s1 + $0x1a0] sm:$0xf]
  %v133 = vld [vmem:[%s1 + $0x1a4] sm:$0xf]
  %v134 = vld [vmem:[%s1 + $0x1a8] sm:$0xf]
  %v135 = vld [vmem:[%s1 + $0x1ac] sm:$0xf]
  %v136 = vld [vmem:[%s1 + $0x1b0] sm:$0xf]
  %v137 = vld [vmem:[%s1 + $0x1b4] sm:$0xf]
  %v138 = vld [vmem:[%s1 + $0x1b8] sm:$0xf]
  %v139 = vld [vmem:[%s1 + $0x1bc] sm:$0xf]
  %v140 = vld [vmem:[%s1 + $0x1c0] sm:$0xf]
  %v141 = vld [vmem:[%s1 + $0x1c4] sm:$0xf]
  %v142 = vld [vmem:[%s1 + $0x1c8] sm:$0xf]
  %v143 = vld [vmem:[%s1 + $0x1cc] sm:$0xf]
  %v144 = vld [vmem:[%s1 + $0x1d0] sm:$0xf]
  %v145 = vld [vmem:[%s1 + $0x1d4] sm:$0xf]
  %v146 = vld [vmem:[%s1 + $0x1d8] sm:$0xf]
  %v147 = vld [vmem:[%s1 + $0x1dc] sm:$0xf]
  %v148 = vld [vmem:[%s1 + $0x1e0] sm:$0xf]
  %v149 = vld [vmem:[%s1 + $0x1e4] sm:$0xf]
  %v150 = vld [vmem:[%s1 + $0x1e8] sm:$0xf]
  %v151 = vld [vmem:[%s1 + $0x1ec] sm:$0xf]
  %v152 = vld [vmem:[%s1 + $0x1f0] sm:$0xf]
  %v153 = vld [vmem:[%s1 + $0x1f4] sm:$0xf]
  %v154 = vld [vmem:[%s1 + $0x1f8] sm:$0xf]
  %v155 = vld [vmem:[%s1 + $0x1fc] sm:$0xf]
  %v156 = vld [vmem:[%s1 + $0x200] sm:$0xf]
  %v157 = vld [vmem:[%s1 + $0x204] sm:$0xf]
  %v158 = vld [vmem:[%s1 + $0x208] sm:$0xf]
  %v159 = vld [vmem:[%s1 + $0x20c] sm:$0xf]
  %v160 = vld [vmem:[%s1 + $0x210] sm:$0xf]
  %v161 = vld [vmem:[%s1 + $0x214] sm:$0xf]
  %v162 = vld [vmem:[%s1 + $0x218] sm:$0xf]
  %v163 = vld [vmem:[%s1 + $0x21c] sm:$0xf]
  %v164 = vld [vmem:[%s1 + $0x220] sm:$0xf]
  %v165 = vld [vmem:[%s1 + $0x224] sm:$0xf]
  %v166 = vld [vmem:[%s1 + $0x228] sm:$0xf]
  %v167 = vld [vmem:[%s1 + $0x22c] sm:$0xf]
  %v168 = vld [vmem:[%s1 + $0x230] sm:$0xf]
  %v169 = vld [vmem:[%s1 + $0x234] sm:$0xf]
  %v170 = vld [vmem:[%s1 + $0x238] sm:$0xf]
  %v171 = vld [vmem:[%s1 + $0x23c] sm:$0xf]
  %v172 = vld [vmem:[%s2] sm:$0x1]
  %v174 = vlaneseq
  %v175 = vshrl.u32 %v174, 7
  %v176 = vsub.s32 0, %v175
  %v177 = vrot.slane %v172, %v176
  %v189 = vunpack.c.l.b16 %v18
  %v190 = vunpack.c.h.b16 %v18
  %v191 = vunpack.c.l.b16 %v19
  %v192 = vunpack.c.h.b16 %v19
  %v193 = vunpack.c.l.b16 %v20
  %v194 = vunpack.c.h.b16 %v20
  %v195 = vunpack.c.l.b16 %v21
  %v196 = vunpack.c.h.b16 %v21
  %v197 = vunpack.c.l.b16 %v22
  %v198 = vunpack.c.l.b16 %v23
  %v199 = vunpack.c.h.b16 %v23
  %v200 = vunpack.c.l.b16 %v24
  %v201 = vunpack.c.h.b16 %v24
  %v202 = vunpack.c.l.b16 %v25
  %v203 = vunpack.c.h.b16 %v25
  %v204 = vunpack.c.l.b16 %v26
  %v205 = vunpack.c.h.b16 %v26
  %v206 = vunpack.c.l.b16 %v27
  %v207 = vpack.c.b16 %v198, %v189
  %v208 = vpack.c.b16 %v199, %v190
  %v209 = vpack.c.b16 %v200, %v191
  %v210 = vpack.c.b16 %v201, %v192
  %v211 = vpack.c.b16 %v202, %v193
  %v212 = vpack.c.b16 %v203, %v194
  %v213 = vpack.c.b16 %v204, %v195
  %v214 = vpack.c.b16 %v205, %v196
  %v215 = vpack.c.b16 %v206, %v197
  %v369 = vunpack.c.l.b16 %v28
  %v370 = vunpack.c.l.b16 %v29
  %v371 = vunpack.c.l.b16 %v30
  %v372 = vunpack.c.l.b16 %v31
  %v373 = vunpack.c.l.b16 %v32
  %v374 = vunpack.c.l.b16 %v33
  %v375 = vunpack.c.l.b16 %v34
  %v376 = vunpack.c.l.b16 %v35
  %v377 = vunpack.c.l.b16 %v36
  %v378 = vunpack.c.l.b16 %v37
  %v379 = vunpack.c.l.b16 %v38
  %v380 = vunpack.c.l.b16 %v39
  %v381 = vunpack.c.l.b16 %v40
  %v382 = vunpack.c.l.b16 %v41
  %v383 = vunpack.c.l.b16 %v42
  %v384 = vunpack.c.l.b16 %v43
  %v385 = vunpack.c.l.b16 %v44
  %v386 = vunpack.c.l.b16 %v45
  %v387 = vunpack.c.l.b16 %v46
  %v388 = vunpack.c.l.b16 %v47
  %v389 = vunpack.c.l.b16 %v48
  %v390 = vunpack.c.l.b16 %v49
  %v391 = vunpack.c.l.b16 %v50
  %v392 = vunpack.c.l.b16 %v51
  %v393 = vunpack.c.l.b16 %v52
  %v394 = vunpack.c.l.b16 %v53
  %v395 = vunpack.c.l.b16 %v54
  %v396 = vunpack.c.l.b16 %v55
  %v397 = vunpack.c.l.b16 %v56
  %v398 = vunpack.c.l.b16 %v57
  %v399 = vunpack.c.l.b16 %v58
  %v400 = vunpack.c.l.b16 %v59
  %v401 = vunpack.c.l.b16 %v60
  %v402 = vunpack.c.l.b16 %v61
  %v403 = vunpack.c.l.b16 %v62
  %v404 = vunpack.c.l.b16 %v63
  %v405 = vunpack.c.l.b16 %v64
  %v406 = vunpack.c.l.b16 %v65
  %v407 = vunpack.c.l.b16 %v66
  %v408 = vunpack.c.l.b16 %v67
  %v409 = vunpack.c.l.b16 %v68
  %v410 = vunpack.c.l.b16 %v69
  %v411 = vunpack.c.l.b16 %v70
  %v412 = vunpack.c.l.b16 %v71
  %v413 = vunpack.c.l.b16 %v72
  %v414 = vunpack.c.l.b16 %v73
  %v415 = vunpack.c.l.b16 %v74
  %v416 = vunpack.c.l.b16 %v75
  %v417 = vunpack.c.l.b16 %v76
  %v418 = vunpack.c.l.b16 %v77
  %v419 = vunpack.c.l.b16 %v78
  %v420 = vunpack.c.l.b16 %v79
  %v421 = vunpack.c.l.b16 %v80
  %v422 = vunpack.c.l.b16 %v81
  %v423 = vunpack.c.l.b16 %v82
  %v424 = vunpack.c.l.b16 %v83
  %v425 = vunpack.c.l.b16 %v84
  %v426 = vunpack.c.l.b16 %v85
  %v427 = vunpack.c.l.b16 %v86
  %v428 = vunpack.c.l.b16 %v87
  %v429 = vunpack.c.l.b16 %v88
  %v430 = vunpack.c.l.b16 %v89
  %v431 = vunpack.c.l.b16 %v90
  %v432 = vunpack.c.l.b16 %v91
  %v433 = vunpack.c.l.b16 %v92
  %v434 = vunpack.c.l.b16 %v93
  %v435 = vunpack.c.l.b16 %v94
  %v436 = vunpack.c.l.b16 %v95
  %v437 = vunpack.c.l.b16 %v96
  %v438 = vunpack.c.l.b16 %v97
  %v439 = vunpack.c.l.b16 %v98
  %v440 = vunpack.c.l.b16 %v99
  %v441 = vunpack.c.l.b16 %v100
  %v442 = vunpack.c.l.b16 %v101
  %v443 = vunpack.c.l.b16 %v102
  %v444 = vunpack.c.l.b16 %v103
  %v445 = vunpack.c.l.b16 %v104
  %v446 = vunpack.c.l.b16 %v105
  %v447 = vunpack.c.l.b16 %v106
  %v448 = vunpack.c.l.b16 %v107
  %v449 = vunpack.c.l.b16 %v108
  %v450 = vunpack.c.l.b16 %v109
  %v451 = vunpack.c.l.b16 %v110
  %v452 = vunpack.c.l.b16 %v111
  %v453 = vunpack.c.l.b16 %v112
  %v454 = vunpack.c.l.b16 %v113
  %v455 = vunpack.c.l.b16 %v114
  %v456 = vunpack.c.l.b16 %v115
  %v457 = vunpack.c.l.b16 %v116
  %v458 = vunpack.c.l.b16 %v117
  %v459 = vunpack.c.l.b16 %v118
  %v460 = vunpack.c.l.b16 %v119
  %v461 = vunpack.c.l.b16 %v120
  %v462 = vunpack.c.l.b16 %v121
  %v463 = vunpack.c.l.b16 %v122
  %v464 = vunpack.c.l.b16 %v123
  %v465 = vunpack.c.l.b16 %v124
  %v466 = vunpack.c.l.b16 %v125
  %v467 = vunpack.c.l.b16 %v126
  %v468 = vunpack.c.l.b16 %v127
  %v469 = vunpack.c.l.b16 %v128
  %v470 = vunpack.c.l.b16 %v129
  %v471 = vunpack.c.l.b16 %v130
  %v472 = vunpack.c.l.b16 %v131
  %v473 = vunpack.c.l.b16 %v132
  %v474 = vunpack.c.l.b16 %v133
  %v475 = vunpack.c.l.b16 %v134
  %v476 = vunpack.c.l.b16 %v135
  %v477 = vunpack.c.l.b16 %v136
  %v478 = vunpack.c.l.b16 %v137
  %v479 = vunpack.c.l.b16 %v138
  %v480 = vunpack.c.l.b16 %v139
  %v481 = vunpack.c.l.b16 %v140
  %v482 = vunpack.c.l.b16 %v141
  %v483 = vunpack.c.l.b16 %v142
  %v484 = vunpack.c.l.b16 %v143
  %v485 = vunpack.c.l.b16 %v144
  %v486 = vunpack.c.l.b16 %v145
  %v487 = vunpack.c.l.b16 %v146
  %v488 = vunpack.c.l.b16 %v147
  %v489 = vunpack.c.l.b16 %v148
  %v490 = vunpack.c.l.b16 %v149
  %v491 = vunpack.c.l.b16 %v150
  %v492 = vunpack.c.l.b16 %v151
  %v493 = vunpack.c.l.b16 %v152
  %v494 = vunpack.c.l.b16 %v153
  %v495 = vunpack.c.l.b16 %v154
  %v496 = vunpack.c.l.b16 %v155
  %v497 = vunpack.c.l.b16 %v156
  %v498 = vunpack.c.l.b16 %v157
  %v499 = vunpack.c.l.b16 %v158
  %v500 = vunpack.c.l.b16 %v159
  %v501 = vunpack.c.l.b16 %v160
  %v502 = vunpack.c.l.b16 %v161
  %v503 = vunpack.c.l.b16 %v162
  %v504 = vunpack.c.l.b16 %v163
  %v505 = vunpack.c.l.b16 %v164
  %v506 = vunpack.c.l.b16 %v165
  %v507 = vunpack.c.l.b16 %v166
  %v508 = vunpack.c.l.b16 %v167
  %v509 = vunpack.c.l.b16 %v168
  %v510 = vunpack.c.l.b16 %v169
  %v511 = vunpack.c.l.b16 %v170
  %v512 = vunpack.c.l.b16 %v171
  %v513 = vpack.c.b16 %v370, %v369
  %v514 = vpack.c.b16 %v372, %v371
  %v515 = vpack.c.b16 %v374, %v373
  %v516 = vpack.c.b16 %v376, %v375
  %v517 = vpack.c.b16 %v378, %v377
  %v518 = vpack.c.b16 %v380, %v379
  %v519 = vpack.c.b16 %v382, %v381
  %v520 = vpack.c.b16 %v384, %v383
  %v521 = vpack.c.b16 %v386, %v385
  %v522 = vpack.c.b16 %v388, %v387
  %v523 = vpack.c.b16 %v390, %v389
  %v524 = vpack.c.b16 %v392, %v391
  %v525 = vpack.c.b16 %v394, %v393
  %v526 = vpack.c.b16 %v396, %v395
  %v527 = vpack.c.b16 %v398, %v397
  %v528 = vpack.c.b16 %v400, %v399
  %v529 = vpack.c.b16 %v402, %v401
  %v530 = vpack.c.b16 %v404, %v403
  %v531 = vpack.c.b16 %v406, %v405
  %v532 = vpack.c.b16 %v408, %v407
  %v533 = vpack.c.b16 %v410, %v409
  %v534 = vpack.c.b16 %v412, %v411
  %v535 = vpack.c.b16 %v414, %v413
  %v536 = vpack.c.b16 %v416, %v415
  %v537 = vpack.c.b16 %v418, %v417
  %v538 = vpack.c.b16 %v420, %v419
  %v539 = vpack.c.b16 %v422, %v421
  %v540 = vpack.c.b16 %v424, %v423
  %v541 = vpack.c.b16 %v426, %v425
  %v542 = vpack.c.b16 %v428, %v427
  %v543 = vpack.c.b16 %v430, %v429
  %v544 = vpack.c.b16 %v432, %v431
  %v545 = vpack.c.b16 %v434, %v433
  %v546 = vpack.c.b16 %v436, %v435
  %v547 = vpack.c.b16 %v438, %v437
  %v548 = vpack.c.b16 %v440, %v439
  %v549 = vpack.c.b16 %v442, %v441
  %v550 = vpack.c.b16 %v444, %v443
  %v551 = vpack.c.b16 %v446, %v445
  %v552 = vpack.c.b16 %v448, %v447
  %v553 = vpack.c.b16 %v450, %v449
  %v554 = vpack.c.b16 %v452, %v451
  %v555 = vpack.c.b16 %v454, %v453
  %v556 = vpack.c.b16 %v456, %v455
  %v557 = vpack.c.b16 %v458, %v457
  %v558 = vpack.c.b16 %v460, %v459
  %v559 = vpack.c.b16 %v462, %v461
  %v560 = vpack.c.b16 %v464, %v463
  %v561 = vpack.c.b16 %v466, %v465
  %v562 = vpack.c.b16 %v468, %v467
  %v563 = vpack.c.b16 %v470, %v469
  %v564 = vpack.c.b16 %v472, %v471
  %v565 = vpack.c.b16 %v474, %v473
  %v566 = vpack.c.b16 %v476, %v475
  %v567 = vpack.c.b16 %v478, %v477
  %v568 = vpack.c.b16 %v480, %v479
  %v569 = vpack.c.b16 %v482, %v481
  %v570 = vpack.c.b16 %v484, %v483
  %v571 = vpack.c.b16 %v486, %v485
  %v572 = vpack.c.b16 %v488, %v487
  %v573 = vpack.c.b16 %v490, %v489
  %v574 = vpack.c.b16 %v492, %v491
  %v575 = vpack.c.b16 %v494, %v493
  %v576 = vpack.c.b16 %v496, %v495
  %v577 = vpack.c.b16 %v498, %v497
  %v578 = vpack.c.b16 %v500, %v499
  %v579 = vpack.c.b16 %v502, %v501
  %v580 = vpack.c.b16 %v504, %v503
  %v581 = vpack.c.b16 %v506, %v505
  %v582 = vpack.c.b16 %v508, %v507
  %v583 = vpack.c.b16 %v510, %v509
  %v584 = vpack.c.b16 %v512, %v511
  %657 = vmatprep.subr.bf16.mxu0 0
  %658 = vmatpush1.bf16.msra.mxu0 %v513
  %659 = vmatprep.subr.bf16.mxu0 0
  %660 = vmatpush1.bf16.msra.mxu0 %v514
  %661 = vmatprep.subr.bf16.mxu0 0
  %662 = vmatpush1.bf16.msra.mxu0 %v515
  %663 = vmatprep.subr.bf16.mxu0 0
  %664 = vmatpush1.bf16.msra.mxu0 %v516
  %665 = vmatprep.subr.bf16.mxu0 0
  %666 = vmatpush1.bf16.msra.mxu0 %v517
  %667 = vmatprep.subr.bf16.mxu0 0
  %668 = vmatpush1.bf16.msra.mxu0 %v518
  %669 = vmatprep.subr.bf16.mxu0 0
  %670 = vmatpush1.bf16.msra.mxu0 %v519
  %671 = vmatprep.subr.bf16.mxu0 0
  %672 = vmatpush1.bf16.msra.mxu0 %v520
  %673 = vmatprep.subr.bf16.mxu0 0
  %674 = vmatpush1.bf16.msra.mxu0 %v521
  %675 = vmatprep.subr.bf16.mxu0 0
  %676 = vmatpush1.bf16.msra.mxu0 %v522
  %677 = vmatprep.subr.bf16.mxu0 0
  %678 = vmatpush1.bf16.msra.mxu0 %v523
  %679 = vmatprep.subr.bf16.mxu0 0
  %680 = vmatpush1.bf16.msra.mxu0 %v524
  %681 = vmatprep.subr.bf16.mxu0 0
  %682 = vmatpush1.bf16.msra.mxu0 %v525
  %683 = vmatprep.subr.bf16.mxu0 0
  %684 = vmatpush1.bf16.msra.mxu0 %v526
  %685 = vmatprep.subr.bf16.mxu0 0
  %686 = vmatpush1.bf16.msra.mxu0 %v527
  %687 = vmatprep.subr.bf16.mxu0 0
  %688 = vmatpush1.bf16.msra.mxu0 %v528
  %689 = vmatprep.mubr.bf16.mxu0 %v208
  %690 = vmatmul.mubr.bf16.gmra.mrb[0].mxu0 %v207
  %v691 = vpop.f32.mrb[0].mxu0
  %v692 = vadd.f32 %v177, %v691
  %v693 = vpop.f32.mrb[0].mxu0
  %v694 = vpop.f32.mrb[0].mxu0
  %v695 = vadd.f32 %v177, %v694
  %v696 = vpop.f32.mrb[0].mxu0
  %697 = vdwg.mxu0
  %698 = vmatprep.subr.bf16.mxu0 0
  %699 = vmatpush1.bf16.msra.mxu0 %v529
  %700 = vmatprep.subr.bf16.mxu0 0
  %701 = vmatpush1.bf16.msra.mxu0 %v530
  %702 = vmatprep.subr.bf16.mxu0 0
  %703 = vmatpush1.bf16.msra.mxu0 %v531
  %704 = vmatprep.subr.bf16.mxu0 0
  %705 = vmatpush1.bf16.msra.mxu0 %v532
  %706 = vmatprep.subr.bf16.mxu0 0
  %707 = vmatpush1.bf16.msra.mxu0 %v533
  %708 = vmatprep.subr.bf16.mxu0 0
  %709 = vmatpush1.bf16.msra.mxu0 %v534
  %710 = vmatprep.subr.bf16.mxu0 0
  %711 = vmatpush1.bf16.msra.mxu0 %v535
  %712 = vmatprep.subr.bf16.mxu0 0
  %713 = vmatpush1.bf16.msra.mxu0 %v536
  %714 = vmatprep.subr.bf16.mxu0 0
  %715 = vmatpush1.bf16.msra.mxu0 %v537
  %716 = vmatprep.subr.bf16.mxu0 0
  %717 = vmatpush1.bf16.msra.mxu0 %v538
  %718 = vmatprep.subr.bf16.mxu0 0
  %719 = vmatpush1.bf16.msra.mxu0 %v539
  %720 = vmatprep.subr.bf16.mxu0 0
  %721 = vmatpush1.bf16.msra.mxu0 %v540
  %722 = vmatprep.subr.bf16.mxu0 0
  %723 = vmatpush1.bf16.msra.mxu0 %v541
  %724 = vmatprep.subr.bf16.mxu0 0
  %725 = vmatpush1.bf16.msra.mxu0 %v542
  %726 = vmatprep.subr.bf16.mxu0 0
  %727 = vmatpush1.bf16.msra.mxu0 %v543
  %728 = vmatprep.subr.bf16.mxu0 0
  %729 = vmatpush1.bf16.msra.mxu0 %v544
  %730 = vmatprep.mubr.bf16.mxu0 %v210
  %731 = vmatmul.mubr.bf16.gmra.mrb[0].mxu0 %v209
  %v732 = vpop.f32.mrb[0].mxu0
  %v733 = vadd.f32 %v692, %v732
  %v734 = vpop.f32.mrb[0].mxu0
  %v735 = vpop.f32.mrb[0].mxu0
  %v736 = vadd.f32 %v695, %v735
  %v737 = vpop.f32.mrb[0].mxu0
  %738 = vdwg.mxu0
  %739 = vmatprep.subr.bf16.mxu0 0
  %740 = vmatpush1.bf16.msra.mxu0 %v545
  %741 = vmatprep.subr.bf16.mxu0 0
  %742 = vmatpush1.bf16.msra.mxu0 %v546
  %743 = vmatprep.subr.bf16.mxu0 0
  %744 = vmatpush1.bf16.msra.mxu0 %v547
  %745 = vmatprep.subr.bf16.mxu0 0
  %746 = vmatpush1.bf16.msra.mxu0 %v548
  %747 = vmatprep.subr.bf16.mxu0 0
  %748 = vmatpush1.bf16.msra.mxu0 %v549
  %749 = vmatprep.subr.bf16.mxu0 0
  %750 = vmatpush1.bf16.msra.mxu0 %v550
  %751 = vmatprep.subr.bf16.mxu0 0
  %752 = vmatpush1.bf16.msra.mxu0 %v551
  %753 = vmatprep.subr.bf16.mxu0 0
  %754 = vmatpush1.bf16.msra.mxu0 %v552
  %755 = vmatprep.subr.bf16.mxu0 0
  %756 = vmatpush1.bf16.msra.mxu0 %v553
  %757 = vmatprep.subr.bf16.mxu0 0
  %758 = vmatpush1.bf16.msra.mxu0 %v554
  %759 = vmatprep.subr.bf16.mxu0 0
  %760 = vmatpush1.bf16.msra.mxu0 %v555
  %761 = vmatprep.subr.bf16.mxu0 0
  %762 = vmatpush1.bf16.msra.mxu0 %v556
  %763 = vmatprep.subr.bf16.mxu0 0
  %764 = vmatpush1.bf16.msra.mxu0 %v557
  %765 = vmatprep.subr.bf16.mxu0 0
  %766 = vmatpush1.bf16.msra.mxu0 %v558
  %767 = vmatprep.subr.bf16.mxu0 0
  %768 = vmatpush1.bf16.msra.mxu0 %v559
  %769 = vmatprep.subr.bf16.mxu0 0
  %770 = vmatpush1.bf16.msra.mxu0 %v560
  %771 = vmatprep.mubr.bf16.mxu0 %v212
  %772 = vmatmul.mubr.bf16.gmra.mrb[0].mxu0 %v211
  %v773 = vpop.f32.mrb[0].mxu0
  %v774 = vadd.f32 %v733, %v773
  %v775 = vpop.f32.mrb[0].mxu0
  %v776 = vpop.f32.mrb[0].mxu0
  %v777 = vadd.f32 %v736, %v776
  %v778 = vpop.f32.mrb[0].mxu0
  %779 = vdwg.mxu0
  %780 = vmatprep.subr.bf16.mxu0 0
  %781 = vmatpush1.bf16.msra.mxu0 %v561
  %782 = vmatprep.subr.bf16.mxu0 0
  %783 = vmatpush1.bf16.msra.mxu0 %v562
  %784 = vmatprep.subr.bf16.mxu0 0
  %785 = vmatpush1.bf16.msra.mxu0 %v563
  %786 = vmatprep.subr.bf16.mxu0 0
  %787 = vmatpush1.bf16.msra.mxu0 %v564
  %788 = vmatprep.subr.bf16.mxu0 0
  %789 = vmatpush1.bf16.msra.mxu0 %v565
  %790 = vmatprep.subr.bf16.mxu0 0
  %791 = vmatpush1.bf16.msra.mxu0 %v566
  %792 = vmatprep.subr.bf16.mxu0 0
  %793 = vmatpush1.bf16.msra.mxu0 %v567
  %794 = vmatprep.subr.bf16.mxu0 0
  %795 = vmatpush1.bf16.msra.mxu0 %v568
  %796 = vmatprep.subr.bf16.mxu0 0
  %797 = vmatpush1.bf16.msra.mxu0 %v569
  %798 = vmatprep.subr.bf16.mxu0 0
  %799 = vmatpush1.bf16.msra.mxu0 %v570
  %800 = vmatprep.subr.bf16.mxu0 0
  %801 = vmatpush1.bf16.msra.mxu0 %v571
  %802 = vmatprep.subr.bf16.mxu0 0
  %803 = vmatpush1.bf16.msra.mxu0 %v572
  %804 = vmatprep.subr.bf16.mxu0 0
  %805 = vmatpush1.bf16.msra.mxu0 %v573
  %806 = vmatprep.subr.bf16.mxu0 0
  %807 = vmatpush1.bf16.msra.mxu0 %v574
  %808 = vmatprep.subr.bf16.mxu0 0
  %809 = vmatpush1.bf16.msra.mxu0 %v575
  %810 = vmatprep.subr.bf16.mxu0 0
  %811 = vmatpush1.bf16.msra.mxu0 %v576
  %812 = vmatprep.mubr.bf16.mxu0 %v214
  %813 = vmatmul.mubr.bf16.gmra.mrb[0].mxu0 %v213
  %v814 = vpop.f32.mrb[0].mxu0
  %v815 = vadd.f32 %v774, %v814
  %v816 = vpop.f32.mrb[0].mxu0
  %v817 = vpop.f32.mrb[0].mxu0
  %v818 = vadd.f32 %v777, %v817
  %v819 = vpop.f32.mrb[0].mxu0
  %820 = vdwg.mxu0
  %821 = vmatprep.subr.bf16.mxu0 0
  %822 = vmatpush1.bf16.msra.mxu0 %v577
  %823 = vmatprep.subr.bf16.mxu0 0
  %824 = vmatpush1.bf16.msra.mxu0 %v578
  %825 = vmatprep.subr.bf16.mxu0 0
  %826 = vmatpush1.bf16.msra.mxu0 %v579
  %827 = vmatprep.subr.bf16.mxu0 0
  %828 = vmatpush1.bf16.msra.mxu0 %v580
  %829 = vmatprep.subr.bf16.mxu0 0
  %830 = vmatpush1.bf16.msra.mxu0 %v581
  %831 = vmatprep.subr.bf16.mxu0 0
  %832 = vmatpush1.bf16.msra.mxu0 %v582
  %833 = vmatprep.subr.bf16.mxu0 0
  %834 = vmatpush1.bf16.msra.mxu0 %v583
  %835 = vmatprep.subr.bf16.mxu0 0
  %836 = vmatpush1.bf16.msra.mxu0 %v584
  %837 = vmatprep.subr.bf16.mxu0 0
  %838 = vmatpush1.bf16.msra.mxu0 0
  %839 = vmatprep.subr.bf16.mxu0 0
  %840 = vmatpush1.bf16.msra.mxu0 0
  %841 = vmatprep.subr.bf16.mxu0 0
  %842 = vmatpush1.bf16.msra.mxu0 0
  %843 = vmatprep.subr.bf16.mxu0 0
  %844 = vmatpush1.bf16.msra.mxu0 0
  %845 = vmatprep.subr.bf16.mxu0 0
  %846 = vmatpush1.bf16.msra.mxu0 0
  %847 = vmatprep.subr.bf16.mxu0 0
  %848 = vmatpush1.bf16.msra.mxu0 0
  %849 = vmatprep.subr.bf16.mxu0 0
  %850 = vmatpush1.bf16.msra.mxu0 0
  %851 = vmatprep.subr.bf16.mxu0 0
  %852 = vmatpush1.bf16.msra.mxu0 0
  %853 = vmatprep.mubr.bf16.mxu0 0
  %854 = vmatmul.mubr.bf16.gmra.mrb[0].mxu0 %v215
  %v855 = vpop.f32.mrb[0].mxu0
  %v856 = vadd.f32 %v815, %v855
  %v857 = vpop.f32.mrb[0].mxu0
  %v858 = vpop.f32.mrb[0].mxu0
  %v859 = vadd.f32 %v818, %v858
  %v860 = vpop.f32.mrb[0].mxu0
  %861 = vdwg.mxu0
  %v862 = vld [vmem:[%s3] sm:$0xf]
  %v863 = vld [vmem:[%s3 + $0x4] sm:$0xf]
  %v864 = vunpack.c.l.bf16 %v862
  %v865 = vunpack.c.l.bf16 %v863
  %v866 = vadd.f32 %v856, %v864
  %v867 = vadd.f32 %v859, %v865
  %v868 = vmax.f32 %v866, 0.0
  %v869 = vmax.f32 %v867, 0.0
  %v870 = vpack.c.bf16 %v869, %v868
  %v872 = vunpack.c.l.b16 %v870
  %v873 = vunpack.c.h.b16 %v870
  %v874 = vpack.c.b16 %v872, %v872
  %v875 = vpack.c.b16 %v873, %v873
  %878 = vst [vmem:[%s4] sm:$0xf] %v874
  %879 = vst [vmem:[%s4 + $0x4] sm:$0xf] %v875
  // Predicated region
  $region18: #{_lambda_.24} parent=0 // pred_check
    _
  $region19: #{_lambda_.24} parent=0 // pred_check_branch
    %881 = sbr.rel (0) target = $region21
  $region20: #{_lambda_.24} parent=0 // pred_region
    _
  $region21: #{_lambda_.24} parent=0 // pred_fallthru
    _
  // Predicated region
  $region22: #{_lambda_.24} parent=0 // pred_check
    _
  $region23: #{_lambda_.24} parent=0 // pred_check_branch
    %883 = sbr.rel (0) target = $region25
  $region24: #{_lambda_.24} parent=0 // pred_region
    _
  $region25: #{_lambda_.24} parent=0 // pred_fallthru
    _

</llo_original>
